<compile_context>
chip_gen: v7x
topology: tpu7x:2x2x1
jax: 0.10.0
libtpu: 0.0.40
codegen_flags: <defaults>
</compile_context>

<pallas_src>
import functools
import math

import jax
import jax.numpy as jnp
from jax import lax
from jax.experimental import pallas as pl
from jax.experimental.pallas import tpu as pltpu


def _round_up(v, m):
    return (v + m - 1) // m * m


# ------------------------------------------------------------------
# Fused linear kernel: [residual +] (LN(x) | x) @ W + b  [+ activation]
# ------------------------------------------------------------------

def _linear_kernel(*refs, act, eps, use_ln, use_res):
    o_ref = refs[-1]
    idx = 0
    res_ref = None
    if use_res:
        res_ref = refs[idx]; idx += 1
    x_ref = refs[idx]; idx += 1
    if use_ln:
        g_ref = refs[idx]; beta_ref = refs[idx + 1]; idx += 2
    w_ref = refs[idx]
    b_ref = refs[idx + 1]

    x = x_ref[...].astype(jnp.float32)
    if use_ln:
        mu = jnp.mean(x, axis=-1, keepdims=True)
        xc = x - mu
        var = jnp.mean(xc * xc, axis=-1, keepdims=True)
        x = (xc * lax.rsqrt(var + eps)) * g_ref[...] + beta_ref[...]
    y = jnp.dot(x.astype(jnp.bfloat16), w_ref[...],
                preferred_element_type=jnp.float32) + b_ref[...]
    if act == "elu":                        # torch.nn.ELU(alpha=1.0)
        y = jnp.where(y > 0, y, jnp.exp(y) - 1.0)
    elif act == "gelu":                     # torch.nn.GELU (exact, erf based)
        y = 0.5 * y * (1.0 + lax.erf(y * 0.7071067811865476))
    if use_res:
        y = y + res_ref[...].astype(jnp.float32)
    o_ref[...] = y


def fused_linear(x, w, b, *, ln=None, residual=None, act=None, eps=1e-5, tile_m=256):
    """y = [residual +] act((LN(x) if ln else x) @ w + b).  w stored (in, out) bf16."""
    lead = x.shape[:-1]
    k = x.shape[-1]
    n = w.shape[1]
    x2 = x.reshape(-1, k)
    m = x2.shape[0]
    use_ln = ln is not None
    use_res = residual is not None
    res2 = residual.reshape(-1, n) if use_res else None

    tm = min(tile_m, _round_up(m, 8))        # tiles stay small: safe for v7x 64 MiB VMEM
    mp = _round_up(m, tm)
    if mp != m:
        x2 = jnp.pad(x2, ((0, mp - m), (0, 0)))
        if use_res:
            res2 = jnp.pad(res2, ((0, mp - m), (0, 0)))

    inputs, in_specs = [], []
    if use_res:
        inputs.append(res2)
        in_specs.append(pl.BlockSpec((tm, n), lambda i: (i, 0)))
    inputs.append(x2)
    in_specs.append(pl.BlockSpec((tm, k), lambda i: (i, 0)))
    if use_ln:
        inputs += [ln[0], ln[1]]
        in_specs += [pl.BlockSpec((1, k), lambda i: (0, 0)),
                     pl.BlockSpec((1, k), lambda i: (0, 0))]
    inputs += [w, b]
    in_specs += [pl.BlockSpec(w.shape, lambda i: (0, 0)),
                 pl.BlockSpec((1, n), lambda i: (0, 0))]

    out = pl.pallas_call(
        functools.partial(_linear_kernel, act=act, eps=eps,
                          use_ln=use_ln, use_res=use_res),
        grid=(mp // tm,),
        out_shape=jax.ShapeDtypeStruct((mp, n), jnp.float32),
        in_specs=in_specs,
        out_specs=pl.BlockSpec((tm, n), lambda i: (i, 0)),
        compiler_params=pltpu.CompilerParams(dimension_semantics=("parallel",)),
    )(*inputs)
    if mp != m:
        out = out[:m]
    return out.reshape(*lead, n)


# ------------------------------------------------------------------
# Standalone LayerNorm (only used for the final encoder / decoder norms)
# ------------------------------------------------------------------

def _ln_only_kernel(x_ref, g_ref, b_ref, o_ref, *, eps):
    x = x_ref[...].astype(jnp.float32)
    mu = jnp.mean(x, axis=-1, keepdims=True)
    xc = x - mu
    var = jnp.mean(xc * xc, axis=-1, keepdims=True)
    o_ref[...] = (xc * lax.rsqrt(var + eps)) * g_ref[...] + b_ref[...]


def layer_norm(x, g, b, eps=1e-5, tile_m=512):
    lead = x.shape[:-1]
    d = x.shape[-1]
    x2 = x.reshape(-1, d)
    m = x2.shape[0]
    tm = min(tile_m, _round_up(m, 8))
    mp = _round_up(m, tm)
    if mp != m:
        x2 = jnp.pad(x2, ((0, mp - m), (0, 0)))
    out = pl.pallas_call(
        functools.partial(_ln_only_kernel, eps=eps),
        grid=(mp // tm,),
        out_shape=jax.ShapeDtypeStruct((mp, d), jnp.float32),
        in_specs=[pl.BlockSpec((tm, d), lambda i: (i, 0)),
                  pl.BlockSpec((1, d), lambda i: (0, 0)),
                  pl.BlockSpec((1, d), lambda i: (0, 0))],
        out_specs=pl.BlockSpec((tm, d), lambda i: (i, 0)),
        compiler_params=pltpu.CompilerParams(dimension_semantics=("parallel",)),
    )(x2, g, b)
    if mp != m:
        out = out[:m]
    return out.reshape(*lead, d)


# ------------------------------------------------------------------
# Fully fused multi-head self-attention:
#   out = [x +] proj( MHA( LN(x) @ Wqkv ) )
# one pallas_call, gridded over the batch rows, all heads per block.
# ------------------------------------------------------------------

def _self_attn_kernel(*refs, num_heads, scale, causal, use_kb, add_residual, eps):
    o_ref = refs[-1]
    idx = 0
    x_ref = refs[idx]; idx += 1
    if use_kb:
        kb_ref = refs[idx]; idx += 1
    g_ref, b_ref, qkvw_ref, qkvb_ref, pw_ref, pb_ref = refs[idx:idx + 6]

    x = x_ref[0].astype(jnp.float32)                       # (L, D)
    L, D = x.shape
    dh = D // num_heads

    mu = jnp.mean(x, axis=-1, keepdims=True)
    xc = x - mu
    var = jnp.mean(xc * xc, axis=-1, keepdims=True)
    xn = (xc * lax.rsqrt(var + eps)) * g_ref[...] + b_ref[...]

    qkv = jnp.dot(xn.astype(jnp.bfloat16), qkvw_ref[...],
                  preferred_element_type=jnp.float32) + qkvb_ref[...]   # (L, 3D)

    if use_kb:
        kb = kb_ref[0]                                     # (1, L) additive key bias
    if causal:
        qi = lax.broadcasted_iota(jnp.int32, (L, L), 0)
        ki = lax.broadcasted_iota(jnp.int32, (L, L), 1)
        causal_ok = ki <= qi

    outs = []
    for h in range(num_heads):                             # unrolled, tiny head dim
        qh = qkv[:, h * dh:(h + 1) * dh].astype(jnp.bfloat16)
        kh = qkv[:, D + h * dh:D + (h + 1) * dh].astype(jnp.bfloat16)
        vh = qkv[:, 2 * D + h * dh:2 * D + (h + 1) * dh].astype(jnp.bfloat16)
        s = lax.dot_general(qh, kh, (((1,), (1,)), ((), ())),
                            preferred_element_type=jnp.float32) * scale
        if use_kb:
            s = s + kb
        if causal:
            s = jnp.where(causal_ok, s, -1e9)
        s = s - jnp.max(s, axis=-1, keepdims=True)
        e = jnp.exp(s)
        p = e * pl.reciprocal(jnp.sum(e, axis=-1, keepdims=True), approx=True)
        outs.append(jnp.dot(p.astype(jnp.bfloat16), vh,
                            preferred_element_type=jnp.float32))
    attn = jnp.concatenate(outs, axis=-1)                  # (L, D) lane-dense
    out = jnp.dot(attn.astype(jnp.bfloat16), pw_ref[...],
                  preferred_element_type=jnp.float32) + pb_ref[...]
    if add_residual:
        out = out + x
    o_ref[0] = out


def fused_self_attention(x, ln, p, *, num_heads, key_bias=None, causal=False,
                         add_residual=True, eps=1e-5):
    """x:(BB,L,D)  key_bias:(BB,1,L) additive (0 / -1e9) or None."""
    bb, L, D = x.shape
    dh = D // num_heads
    use_kb = key_bias is not None

    inputs = [x]
    in_specs = [pl.BlockSpec((1, L, D), lambda i: (i, 0, 0))]
    if use_kb:
        lk = key_bias.shape[-1]
        inputs.append(key_bias)
        in_specs.append(pl.BlockSpec((1, 1, lk), lambda i: (i, 0, 0)))
    weights = [ln[0], ln[1], p["qkv_w"], p["qkv_b"], p["proj_w"], p["proj_b"]]
    inputs += weights
    in_specs += [pl.BlockSpec(w.shape, lambda i: (0, 0)) for w in weights]

    kernel = functools.partial(_self_attn_kernel, num_heads=num_heads,
                               scale=dh ** -0.5, causal=causal, use_kb=use_kb,
                               add_residual=add_residual, eps=eps)
    return pl.pallas_call(
        kernel,
        grid=(bb,),
        out_shape=jax.ShapeDtypeStruct((bb, L, D), jnp.float32),
        in_specs=in_specs,
        out_specs=pl.BlockSpec((1, L, D), lambda i: (i, 0, 0)),
        compiler_params=pltpu.CompilerParams(dimension_semantics=("parallel",)),
    )(*inputs)


# ------------------------------------------------------------------
# Fully fused multi-head cross-attention:
#   out = xq + proj( MHA( LN_q(xq)Wq , LN_v(mem)Wk , LN_v(mem)Wv ) )
# ------------------------------------------------------------------

def _cross_attn_kernel(xq_ref, mem_ref, mb_ref, gq_ref, bq_ref, gv_ref, bv_ref,
                       qw_ref, qb_ref, kw_ref, kb_ref, vw_ref, vb_ref,
                       pw_ref, pb_ref, o_ref, *, num_heads, scale, eps):
    xq = xq_ref[0].astype(jnp.float32)                     # (Lq, D)
    mem = mem_ref[0].astype(jnp.float32)                   # (Lk, D)
    Lq, D = xq.shape
    dh = D // num_heads

    def _ln(v, g, b):
        mu = jnp.mean(v, axis=-1, keepdims=True)
        vc = v - mu
        var = jnp.mean(vc * vc, axis=-1, keepdims=True)
        return (vc * lax.rsqrt(var + eps)) * g + b

    xn = _ln(xq, gq_ref[...], bq_ref[...])
    mn = _ln(mem, gv_ref[...], bv_ref[...])

    q = jnp.dot(xn.astype(jnp.bfloat16), qw_ref[...],
                preferred_element_type=jnp.float32) + qb_ref[...]
    k = jnp.dot(mn.astype(jnp.bfloat16), kw_ref[...],
                preferred_element_type=jnp.float32) + kb_ref[...]
    v = jnp.dot(mn.astype(jnp.bfloat16), vw_ref[...],
                preferred_element_type=jnp.float32) + vb_ref[...]

    mb = mb_ref[0]                                         # (1, Lk) additive key bias
    outs = []
    for h in range(num_heads):
        qh = q[:, h * dh:(h + 1) * dh].astype(jnp.bfloat16)
        kh = k[:, h * dh:(h + 1) * dh].astype(jnp.bfloat16)
        vh = v[:, h * dh:(h + 1) * dh].astype(jnp.bfloat16)
        s = lax.dot_general(qh, kh, (((1,), (1,)), ((), ())),
                            preferred_element_type=jnp.float32) * scale + mb
        s = s - jnp.max(s, axis=-1, keepdims=True)
        e = jnp.exp(s)
        p = e * pl.reciprocal(jnp.sum(e, axis=-1, keepdims=True), approx=True)
        outs.append(jnp.dot(p.astype(jnp.bfloat16), vh,
                            preferred_element_type=jnp.float32))
    attn = jnp.concatenate(outs, axis=-1)
    out = jnp.dot(attn.astype(jnp.bfloat16), pw_ref[...],
                  preferred_element_type=jnp.float32) + pb_ref[...]
    o_ref[0] = out + xq


def fused_cross_attention(x, mem, mem_bias, ln_q, ln_kv, p, *, num_heads, eps=1e-5):
    """x:(BB,Lq,D)  mem:(BB,Lk,D)  mem_bias:(BB,1,Lk) additive (0 / -1e9)."""
    bb, lq, d = x.shape
    lk = mem.shape[1]
    dh = d // num_heads
    weights = [ln_q[0], ln_q[1], ln_kv[0], ln_kv[1],
               p["q_w"], p["q_b"], p["k_w"], p["k_b"],
               p["v_w"], p["v_b"], p["proj_w"], p["proj_b"]]
    in_specs = ([pl.BlockSpec((1, lq, d), lambda i: (i, 0, 0)),
                 pl.BlockSpec((1, lk, d), lambda i: (i, 0, 0)),
                 pl.BlockSpec((1, 1, lk), lambda i: (i, 0, 0))]
                + [pl.BlockSpec(w.shape, lambda i: (0, 0)) for w in weights])
    kernel = functools.partial(_cross_attn_kernel, num_heads=num_heads,
                               scale=dh ** -0.5, eps=eps)
    return pl.pallas_call(
        kernel,
        grid=(bb,),
        out_shape=jax.ShapeDtypeStruct((bb, lq, d), jnp.float32),
        in_specs=in_specs,
        out_specs=pl.BlockSpec((1, lq, d), lambda i: (i, 0, 0)),
        compiler_params=pltpu.CompilerParams(dimension_semantics=("parallel",)),
    )(x, mem, mem_bias, *weights)


# ------------------------------------------------------------------
# Positional encoding (plain JAX glue)
# ------------------------------------------------------------------

def sinusoidal_pe(length, d_model):
    pos = jnp.arange(length, dtype=jnp.float32)[:, None]
    div = jnp.exp(jnp.arange(0, d_model, 2, dtype=jnp.float32) *
                  (-math.log(10000.0) / d_model))
    pe = jnp.zeros((length, d_model), jnp.float32)
    pe = pe.at[:, 0::2].set(jnp.sin(pos * div))
    pe = pe.at[:, 1::2].set(jnp.cos(pos * div))
    return pe


# ------------------------------------------------------------------
# Encoder / Decoder
# ------------------------------------------------------------------

def encoder_block(x, b, t, n, kb_time, kb_space, p, num_heads):
    """Divided space-time attention block.  x:(B, N*T, D) (n-major)."""
    d = x.shape[-1]
    # temporal attention over T (fused LN + QKV + MHA + proj), residual via temporal_fc
    att_t = fused_self_attention(x.reshape(b * n, t, d), p["temporal_norm1"],
                                 p["temporal_attn"], num_heads=num_heads,
                                 key_bias=kb_time, causal=False, add_residual=False)
    att_t = att_t.reshape(b, n * t, d)
    xt = fused_linear(att_t, p["temporal_fc"]["w"], p["temporal_fc"]["b"], residual=x)
    # spatial attention over N (residual fused inside the kernel)
    xs = xt.reshape(b, n, t, d).transpose(0, 2, 1, 3).reshape(b * t, n, d)
    ys = fused_self_attention(xs, p["norm1"], p["attn"], num_heads=num_heads,
                              key_bias=kb_space, causal=False, add_residual=True)
    x = ys.reshape(b, t, n, d).transpose(0, 2, 1, 3).reshape(b, n * t, d)
    # MLP (LN fused into fc1, residual fused into fc2)
    h = fused_linear(x, p["mlp"]["fc1_w"], p["mlp"]["fc1_b"], ln=p["norm2"], act="gelu")
    x = fused_linear(h, p["mlp"]["fc2_w"], p["mlp"]["fc2_b"], residual=x)
    return x


def encoder_forward(x, src_mask, p, num_heads):
    """x:(B,T,N,D)  src_mask:(B,T,N)  ->  (B,T,N,D) PRE final norm."""
    b, t, n, d = x.shape
    x = x.reshape(b * t, n, d) + p["pos_embed"]                     # (b t) n m + pos_embed
    x = x.reshape(b, t, n, d).transpose(0, 2, 1, 3).reshape(b * n, t, d)
    x = x + sinusoidal_pe(t, d)[None]                               # sinusoidal time embed
    x = x.reshape(b, n * t, d)                                      # b (n t) m
    # compact additive key-bias masks built ONCE and reused by all blocks
    mask_nt = jnp.transpose(src_mask, (0, 2, 1))                    # (B, N, T)
    kb_time = jnp.where(mask_nt.reshape(b * n, 1, t) != 0, 0.0, -1e9).astype(jnp.float32)
    kb_space = jnp.where(src_mask.reshape(b * t, 1, n) != 0, 0.0, -1e9).astype(jnp.float32)
    for blk in p["blocks"]:
        x = encoder_block(x, b, t, n, kb_time, kb_space, blk, num_heads)
    return x.reshape(b, n, t, d).transpose(0, 2, 1, 3)              # b t n m (pre-norm)


def decoder_forward(trg, memory, mem_bias, p, num_heads):
    """trg:(BB,L,Cin)  memory:(BB,Nmem,D)  mem_bias:(BB,1,Nmem)."""
    l = trg.shape[1]
    d = p["trg_embedding"]["w"].shape[1]
    x = fused_linear(trg, p["trg_embedding"]["w"], p["trg_embedding"]["b"])
    x = x + sinusoidal_pe(l, d)[None]
    for blk in p["blocks"]:
        x = fused_self_attention(x, blk["norm1"], blk["self_attn"],
                                 num_heads=num_heads, causal=True, add_residual=True)
        x = fused_cross_attention(x, memory, mem_bias, blk["norm_q"], blk["norm_v"],
                                  blk["cross_attn"], num_heads=num_heads)
        h = fused_linear(x, blk["mlp"]["fc1_w"], blk["mlp"]["fc1_b"],
                         ln=blk["norm2"], act="gelu")
        x = fused_linear(h, blk["mlp"]["fc2_w"], blk["mlp"]["fc2_b"], residual=x)
    return layer_norm(x, *p["norm"])


# ------------------------------------------------------------------
# ObjectTransformer pieces
# ------------------------------------------------------------------

def encoder_input(feat, bbox_feat, params):
    embed_dim = params["downproject"]["w"].shape[1]
    coord_dim = params["bbox_fc2"]["w"].shape[1]
    b, _, t, _ = feat.shape
    feat = fused_linear(feat, params["downproject"]["w"], params["downproject"]["b"])
    bb = bbox_feat.reshape(-1, 4)
    bb = fused_linear(bb, params["bbox_fc1"]["w"], params["bbox_fc1"]["b"], act="elu")
    bb = fused_linear(bb, params["bbox_fc2"]["w"], params["bbox_fc2"]["b"], act="elu")
    bb = bb.reshape(b, -1, t, coord_dim)
    ho_feat = feat[:, 1:, :, :]
    global_feat = feat[:, 0:1, :, :]
    f = jnp.concatenate([ho_feat, bb], axis=-1).reshape(-1, embed_dim + coord_dim)
    f = fused_linear(f, params["feat_fusion"]["w"], params["feat_fusion"]["b"], act="elu")
    f = f.reshape(b, -1, t, embed_dim)
    f = jnp.concatenate([global_feat, f], axis=1)
    return jnp.transpose(f, (0, 2, 1, 3))                           # (B, T, P, D)


def object_transformer_forward(params, feat, bbox_feat, valid_mask, future_hands,
                               contact_point, future_valid, *, num_heads):
    del contact_point, future_valid  # only consumed by the (external) heads
    d = params["decoder"]["trg_embedding"]["w"].shape[1]
    if valid_mask.shape[1] != feat.shape[1]:
        src_mask = jnp.concatenate(
            [jnp.ones_like(valid_mask[:, 0:1, :]), valid_mask], axis=1)
    else:
        src_mask = valid_mask
    src_mask = jnp.transpose(src_mask, (0, 2, 1))                   # (B, T, P)

    x_in = encoder_input(feat, bbox_feat, params)                   # (B, T, P, D)
    x_enc = encoder_forward(x_in, src_mask, params["encoder"], num_heads)
    # final encoder LN applied only to the last timestep (identical to norm-then-slice)
    memory = layer_norm(x_enc[:, -1], *params["encoder"]["norm"])   # (B, P, D)
    mem_bias = jnp.where(src_mask[:, -1, :][:, None, :] != 0,
                         0.0, -1e9).astype(jnp.float32)             # (B, 1, P)

    b = memory.shape[0]
    future_rhand = future_hands[:, 0, :, :]
    future_lhand = future_hands[:, 1, :, :]
    rhand_input = future_rhand[:, :-1, :]
    lhand_input = future_lhand[:, :-1, :]
    # batch the two decoder passes into one run (2x fewer kernel launches)
    dec_in = jnp.concatenate([rhand_input, lhand_input], axis=0)    # (2B, L, Cin)
    mem2 = jnp.concatenate([memory, memory], axis=0)
    mb2 = jnp.concatenate([mem_bias, mem_bias], axis=0)
    x_dec = decoder_forward(dec_in, mem2, mb2, params["decoder"], num_heads)
    x_rhand, x_lhand = x_dec[:b], x_dec[b:]
    x_hand = jnp.concatenate([x_rhand, x_lhand], axis=1).reshape(-1, d)

    # TODO(synk): hand_head / object_head are externally-injected modules with no available
    # definition; the traj/obj loss computation cannot be reproduced, so we return the
    # features (x_hand, memory) that would feed those heads.
    return x_hand, memory


# ------------------------------------------------------------------
# Deterministic parameter init (trunc_normal(std=0.02) weights -> bf16, zero biases, LN=(1,0))
# ------------------------------------------------------------------

def init_params(key, *, src_in, trg_in, num_patches, embed_dim, coord_dim,
                enc_depth, dec_depth, mlp_ratio=4.0):
    keys = iter(jax.random.split(key, 1024))

    def tn(shape, std=0.02):
        return (std * jax.random.truncated_normal(next(keys), -2.0, 2.0, shape,
                                                  jnp.float32))

    def w16(shape):
        return tn(shape).astype(jnp.bfloat16)

    def lin(cin, cout):
        return {"w": w16((cin, cout)), "b": jnp.zeros((1, cout), jnp.float32)}

    def ln(dim):
        return (jnp.ones((1, dim), jnp.float32), jnp.zeros((1, dim), jnp.float32))

    hidden = int(embed_dim * mlp_ratio)

    def attn_p():
        return {"qkv_w": w16((embed_dim, 3 * embed_dim)),
                "qkv_b": jnp.zeros((1, 3 * embed_dim), jnp.float32),  # qkv_bias=False
                "proj_w": w16((embed_dim, embed_dim)),
                "proj_b": jnp.zeros((1, embed_dim), jnp.float32)}

    def xattn_p():
        p = {}
        for name in ("q", "k", "v", "proj"):
            p[name + "_w"] = w16((embed_dim, embed_dim))
            p[name + "_b"] = jnp.zeros((1, embed_dim), jnp.float32)
        return p

    def mlp_p():
        return {"fc1_w": w16((embed_dim, hidden)),
                "fc1_b": jnp.zeros((1, hidden), jnp.float32),
                "fc2_w": w16((hidden, embed_dim)),
                "fc2_b": jnp.zeros((1, embed_dim), jnp.float32)}

    enc_blocks = [{"temporal_norm1": ln(embed_dim), "temporal_attn": attn_p(),
                   "temporal_fc": lin(embed_dim, embed_dim),
                   "norm1": ln(embed_dim), "attn": attn_p(),
                   "norm2": ln(embed_dim), "mlp": mlp_p()} for _ in range(enc_depth)]
    dec_blocks = [{"norm1": ln(embed_dim), "self_attn": attn_p(),
                   "norm_q": ln(embed_dim), "norm_v": ln(embed_dim),
                   "cross_attn": xattn_p(),
                   "norm2": ln(embed_dim), "mlp": mlp_p()} for _ in range(dec_depth)]

    return {
        "downproject": lin(src_in, embed_dim),
        "bbox_fc1": lin(4, coord_dim // 2),
        "bbox_fc2": lin(coord_dim // 2, coord_dim),
        "feat_fusion": lin(embed_dim + coord_dim, embed_dim),
        "encoder": {"pos_embed": tn((1, num_patches, embed_dim)),
                    "blocks": enc_blocks, "norm": ln(embed_dim)},
        "decoder": {"trg_embedding": lin(trg_in, embed_dim),
                    "blocks": dec_blocks, "norm": ln(embed_dim)},
    }


# ------------------------------------------------------------------
# Demo
# ------------------------------------------------------------------

if __name__ == "__main__":
    B, P, T = 2, 5, 4              # batch, num_patches (1 global + 4 hand/obj), input frames
    SRC_IN, TRG_IN = 16, 2
    D, COORD, HEADS = 32, 8, 4
    ENC_DEPTH, DEC_DEPTH = 2, 2
    FUT_LEN = 5                    # future trajectory length (decoder seq = FUT_LEN - 1)

    key = jax.random.PRNGKey(0)
    k_param, k_feat, k_bbox, k_hand, k_cp = jax.random.split(key, 5)

    params = init_params(k_param, src_in=SRC_IN, trg_in=TRG_IN, num_patches=P,
                         embed_dim=D, coord_dim=COORD,
                         enc_depth=ENC_DEPTH, dec_depth=DEC_DEPTH)

    feat = jax.random.normal(k_feat, (B, P, T, SRC_IN), jnp.float32)
    bbox_feat = jax.random.uniform(k_bbox, (B, P - 1, T, 4), jnp.float32)
    valid_mask = jnp.ones((B, P - 1, T), jnp.float32).at[:, -1, :2].set(0.0)
    future_hands = jax.random.normal(k_hand, (B, 2, FUT_LEN, 2), jnp.float32)
    contact_point = jax.random.normal(k_cp, (B, 2), jnp.float32)
    future_valid = jnp.ones((B, 2), jnp.float32)

    fwd = jax.jit(functools.partial(object_transformer_forward, num_heads=HEADS))
    x_hand, memory = fwd(params, feat, bbox_feat, valid_mask, future_hands,
                         contact_point, future_valid)
    jax.block_until_ready((x_hand, memory))

    assert x_hand.shape == (B * 2 * (FUT_LEN - 1), D)
    assert memory.shape == (B, P, D)
    assert bool(jnp.all(jnp.isfinite(x_hand))) and bool(jnp.all(jnp.isfinite(memory)))
    print("KERNEL_OK")
</pallas_src>

<mosaic_0001>
module attributes {stable_mosaic.version = 11 : i64} {
  func.func @_linear_kernel(%arg0: i32, %arg1: memref<40x16xf32, #tpu.memory_space<vmem>>, %arg2: memref<16x32xbf16, #tpu.memory_space<vmem>>, %arg3: memref<1x32xf32, #tpu.memory_space<vmem>>, %arg4: memref<40x32xf32, #tpu.memory_space<vmem>>) attributes {dimension_semantics = [#tpu.dimension_semantics<parallel>], iteration_bounds = array<i64: 1>, scalar_prefetch = 0 : i64, scratch_operands = 0 : i64, tpu.core_type = #tpu.core_type<tc>, window_params = [{transform_indices = @transform_0, window_bounds = array<i64: 40, 16>}, {pipeline_mode = #tpu.pipeline_mode<synchronous>, transform_indices = @transform_1, window_bounds = array<i64: 16, 32>}, {pipeline_mode = #tpu.pipeline_mode<synchronous>, transform_indices = @transform_2, window_bounds = array<i64: 1, 32>}, {transform_indices = @transform_3, window_bounds = array<i64: 40, 32>}]} {
    %c0 = arith.constant 0 : index
    %c0_0 = arith.constant 0 : index
    %0 = vector.load %arg1[%c0, %c0_0] : memref<40x16xf32, #tpu.memory_space<vmem>>, vector<40x16xf32>
    %1 = arith.truncf %0 : vector<40x16xf32> to vector<40x16xbf16>
    %c0_1 = arith.constant 0 : index
    %c0_2 = arith.constant 0 : index
    %2 = vector.load %arg2[%c0_1, %c0_2] : memref<16x32xbf16, #tpu.memory_space<vmem>>, vector<16x32xbf16>
    %cst = arith.constant dense<0.000000e+00> : vector<40x32xf32>
    %3 = tpu.matmul %1, %2, %cst {dimension_numbers = #tpu.dot_dimension_numbers<[1], [0], [0], [1], [0, 0, 1, 1], [], []>} : vector<40x16xbf16>, vector<16x32xbf16>, vector<40x32xf32> -> vector<40x32xf32>
    %c0_3 = arith.constant 0 : index
    %c0_4 = arith.constant 0 : index
    %4 = vector.load %arg3[%c0_3, %c0_4] : memref<1x32xf32, #tpu.memory_space<vmem>>, vector<1x32xf32>
    %5 = vector.broadcast %4 : vector<1x32xf32> to vector<40x32xf32>
    %6 = arith.addf %3, %5 : vector<40x32xf32>
    %c0_5 = arith.constant 0 : index
    %c0_6 = arith.constant 0 : index
    %7 = vector.load %arg4[%c0_5, %c0_6] : memref<40x32xf32, #tpu.memory_space<vmem>>, vector<40x32xf32>
    tpu.vector_store %arg4[%c0_5, %c0_6], %6 {strides = array<i32>} : memref<40x32xf32, #tpu.memory_space<vmem>>, vector<40x32xf32>,
    return
  }
  func.func @transform_0(%arg0: i32) -> (i32, i32) {
    %c0_i32 = arith.constant 0 : i32
    %c0_i32_0 = arith.constant 0 : i32
    return %arg0, %c0_i32 : i32, i32
  }
  func.func @transform_1(%arg0: i32) -> (i32, i32) {
    %c0_i32 = arith.constant 0 : i32
    %c0_i32_0 = arith.constant 0 : i32
    %c0_i32_1 = arith.constant 0 : i32
    return %c0_i32, %c0_i32_0 : i32, i32
  }
  func.func @transform_2(%arg0: i32) -> (i32, i32) {
    %c0_i32 = arith.constant 0 : i32
    %c0_i32_0 = arith.constant 0 : i32
    %c0_i32_1 = arith.constant 0 : i32
    return %c0_i32, %c0_i32_0 : i32, i32
  }
  func.func @transform_3(%arg0: i32) -> (i32, i32) {
    %c0_i32 = arith.constant 0 : i32
    %c0_i32_0 = arith.constant 0 : i32
    return %arg0, %c0_i32 : i32, i32
  }
}

module attributes {stable_mosaic.version = 11 : i64} {
  func.func @_linear_kernel(%arg0: i32, %arg1: memref<32x4xf32, #tpu.memory_space<vmem>>, %arg2: memref<4x8xbf16, #tpu.memory_space<vmem>>, %arg3: memref<1x8xf32, #tpu.memory_space<vmem>>, %arg4: memref<32x8xf32, #tpu.memory_space<vmem>>) attributes {dimension_semantics = [#tpu.dimension_semantics<parallel>], iteration_bounds = array<i64: 1>, scalar_prefetch = 0 : i64, scratch_operands = 0 : i64, tpu.core_type = #tpu.core_type<tc>, window_params = [{transform_indices = @transform_0, window_bounds = array<i64: 32, 4>}, {pipeline_mode = #tpu.pipeline_mode<synchronous>, transform_indices = @transform_1, window_bounds = array<i64: 4, 8>}, {pipeline_mode = #tpu.pipeline_mode<synchronous>, transform_indices = @transform_2, window_bounds = array<i64: 1, 8>}, {transform_indices = @transform_3, window_bounds = array<i64: 32, 8>}]} {
    %c0 = arith.constant 0 : index
    %c0_0 = arith.constant 0 : index
    %0 = vector.load %arg1[%c0, %c0_0] : memref<32x4xf32, #tpu.memory_space<vmem>>, vector<32x4xf32>
    %1 = arith.truncf %0 : vector<32x4xf32> to vector<32x4xbf16>
    %c0_1 = arith.constant 0 : index
    %c0_2 = arith.constant 0 : index
    %2 = vector.load %arg2[%c0_1, %c0_2] : memref<4x8xbf16, #tpu.memory_space<vmem>>, vector<4x8xbf16>
    %cst = arith.constant dense<0.000000e+00> : vector<32x8xf32>
    %3 = tpu.matmul %1, %2, %cst {dimension_numbers = #tpu.dot_dimension_numbers<[1], [0], [0], [1], [0, 0, 1, 1], [], []>} : vector<32x4xbf16>, vector<4x8xbf16>, vector<32x8xf32> -> vector<32x8xf32>
    %c0_3 = arith.constant 0 : index
    %c0_4 = arith.constant 0 : index
    %4 = vector.load %arg3[%c0_3, %c0_4] : memref<1x8xf32, #tpu.memory_space<vmem>>, vector<1x8xf32>
    %5 = vector.broadcast %4 : vector<1x8xf32> to vector<32x8xf32>
    %6 = arith.addf %3, %5 : vector<32x8xf32>
    %cst_5 = arith.constant 0.000000e+00 : f32
    %7 = vector.broadcast %cst_5 : f32 to vector<32x8xf32>
    %8 = arith.cmpf ogt, %6, %7 : vector<32x8xf32>
    %9 = math.exp %6 : vector<32x8xf32>
    %cst_6 = arith.constant 1.000000e+00 : f32
    %10 = vector.broadcast %cst_6 : f32 to vector<32x8xf32>
    %11 = arith.subf %9, %10 : vector<32x8xf32>
    %12 = arith.select %8, %6, %11 : vector<32x8xi1>, vector<32x8xf32>
    %c0_7 = arith.constant 0 : index
    %c0_8 = arith.constant 0 : index
    %13 = vector.load %arg4[%c0_7, %c0_8] : memref<32x8xf32, #tpu.memory_space<vmem>>, vector<32x8xf32>
    tpu.vector_store %arg4[%c0_7, %c0_8], %12 {strides = array<i32>} : memref<32x8xf32, #tpu.memory_space<vmem>>, vector<32x8xf32>,
    return
  }
  func.func @transform_0(%arg0: i32) -> (i32, i32) {
    %c0_i32 = arith.constant 0 : i32
    %c0_i32_0 = arith.constant 0 : i32
    return %arg0, %c0_i32 : i32, i32
  }
  func.func @transform_1(%arg0: i32) -> (i32, i32) {
    %c0_i32 = arith.constant 0 : i32
    %c0_i32_0 = arith.constant 0 : i32
    %c0_i32_1 = arith.constant 0 : i32
    return %c0_i32, %c0_i32_0 : i32, i32
  }
  func.func @transform_2(%arg0: i32) -> (i32, i32) {
    %c0_i32 = arith.constant 0 : i32
    %c0_i32_0 = arith.constant 0 : i32
    %c0_i32_1 = arith.constant 0 : i32
    return %c0_i32, %c0_i32_0 : i32, i32
  }
  func.func @transform_3(%arg0: i32) -> (i32, i32) {
    %c0_i32 = arith.constant 0 : i32
    %c0_i32_0 = arith.constant 0 : i32
    return %arg0, %c0_i32 : i32, i32
  }
}

module attributes {stable_mosaic.version = 11 : i64} {
  func.func @_linear_kernel(%arg0: i32, %arg1: memref<32x4xf32, #tpu.memory_space<vmem>>, %arg2: memref<4x4xbf16, #tpu.memory_space<vmem>>, %arg3: memref<1x4xf32, #tpu.memory_space<vmem>>, %arg4: memref<32x4xf32, #tpu.memory_space<vmem>>) attributes {dimension_semantics = [#tpu.dimension_semantics<parallel>], iteration_bounds = array<i64: 1>, scalar_prefetch = 0 : i64, scratch_operands = 0 : i64, tpu.core_type = #tpu.core_type<tc>, window_params = [{transform_indices = @transform_0, window_bounds = array<i64: 32, 4>}, {pipeline_mode = #tpu.pipeline_mode<synchronous>, transform_indices = @transform_1, window_bounds = array<i64: 4, 4>}, {pipeline_mode = #tpu.pipeline_mode<synchronous>, transform_indices = @transform_2, window_bounds = array<i64: 1, 4>}, {transform_indices = @transform_3, window_bounds = array<i64: 32, 4>}]} {
    %c0 = arith.constant 0 : index
    %c0_0 = arith.constant 0 : index
    %0 = vector.load %arg1[%c0, %c0_0] : memref<32x4xf32, #tpu.memory_space<vmem>>, vector<32x4xf32>
    %1 = arith.truncf %0 : vector<32x4xf32> to vector<32x4xbf16>
    %c0_1 = arith.constant 0 : index
    %c0_2 = arith.constant 0 : index
    %2 = vector.load %arg2[%c0_1, %c0_2] : memref<4x4xbf16, #tpu.memory_space<vmem>>, vector<4x4xbf16>
    %cst = arith.constant dense<0.000000e+00> : vector<32x4xf32>
    %3 = tpu.matmul %1, %2, %cst {dimension_numbers = #tpu.dot_dimension_numbers<[1], [0], [0], [1], [0, 0, 1, 1], [], []>} : vector<32x4xbf16>, vector<4x4xbf16>, vector<32x4xf32> -> vector<32x4xf32>
    %c0_3 = arith.constant 0 : index
    %c0_4 = arith.constant 0 : index
    %4 = vector.load %arg3[%c0_3, %c0_4] : memref<1x4xf32, #tpu.memory_space<vmem>>, vector<1x4xf32>
    %5 = vector.broadcast %4 : vector<1x4xf32> to vector<32x4xf32>
    %6 = arith.addf %3, %5 : vector<32x4xf32>
    %cst_5 = arith.constant 0.000000e+00 : f32
    %7 = vector.broadcast %cst_5 : f32 to vector<32x4xf32>
    %8 = arith.cmpf ogt, %6, %7 : vector<32x4xf32>
    %9 = math.exp %6 : vector<32x4xf32>
    %cst_6 = arith.constant 1.000000e+00 : f32
    %10 = vector.broadcast %cst_6 : f32 to vector<32x4xf32>
    %11 = arith.subf %9, %10 : vector<32x4xf32>
    %12 = arith.select %8, %6, %11 : vector<32x4xi1>, vector<32x4xf32>
    %c0_7 = arith.constant 0 : index
    %c0_8 = arith.constant 0 : index
    %13 = vector.load %arg4[%c0_7, %c0_8] : memref<32x4xf32, #tpu.memory_space<vmem>>, vector<32x4xf32>
    tpu.vector_store %arg4[%c0_7, %c0_8], %12 {strides = array<i32>} : memref<32x4xf32, #tpu.memory_space<vmem>>, vector<32x4xf32>,
    return
  }
  func.func @transform_0(%arg0: i32) -> (i32, i32) {
    %c0_i32 = arith.constant 0 : i32
    %c0_i32_0 = arith.constant 0 : i32
    return %arg0, %c0_i32 : i32, i32
  }
  func.func @transform_1(%arg0: i32) -> (i32, i32) {
    %c0_i32 = arith.constant 0 : i32
    %c0_i32_0 = arith.constant 0 : i32
    %c0_i32_1 = arith.constant 0 : i32
    return %c0_i32, %c0_i32_0 : i32, i32
  }
  func.func @transform_2(%arg0: i32) -> (i32, i32) {
    %c0_i32 = arith.constant 0 : i32
    %c0_i32_0 = arith.constant 0 : i32
    %c0_i32_1 = arith.constant 0 : i32
    return %c0_i32, %c0_i32_0 : i32, i32
  }
  func.func @transform_3(%arg0: i32) -> (i32, i32) {
    %c0_i32 = arith.constant 0 : i32
    %c0_i32_0 = arith.constant 0 : i32
    return %arg0, %c0_i32 : i32, i32
  }
}

module attributes {stable_mosaic.version = 11 : i64} {
  func.func @_linear_kernel(%arg0: i32, %arg1: memref<32x40xf32, #tpu.memory_space<vmem>>, %arg2: memref<40x32xbf16, #tpu.memory_space<vmem>>, %arg3: memref<1x32xf32, #tpu.memory_space<vmem>>, %arg4: memref<32x32xf32, #tpu.memory_space<vmem>>) attributes {dimension_semantics = [#tpu.dimension_semantics<parallel>], iteration_bounds = array<i64: 1>, scalar_prefetch = 0 : i64, scratch_operands = 0 : i64, tpu.core_type = #tpu.core_type<tc>, window_params = [{transform_indices = @transform_0, window_bounds = array<i64: 32, 40>}, {pipeline_mode = #tpu.pipeline_mode<synchronous>, transform_indices = @transform_1, window_bounds = array<i64: 40, 32>}, {pipeline_mode = #tpu.pipeline_mode<synchronous>, transform_indices = @transform_2, window_bounds = array<i64: 1, 32>}, {transform_indices = @transform_3, window_bounds = array<i64: 32, 32>}]} {
    %c0 = arith.constant 0 : index
    %c0_0 = arith.constant 0 : index
    %0 = vector.load %arg1[%c0, %c0_0] : memref<32x40xf32, #tpu.memory_space<vmem>>, vector<32x40xf32>
    %1 = arith.truncf %0 : vector<32x40xf32> to vector<32x40xbf16>
    %c0_1 = arith.constant 0 : index
    %c0_2 = arith.constant 0 : index
    %2 = vector.load %arg2[%c0_1, %c0_2] : memref<40x32xbf16, #tpu.memory_space<vmem>>, vector<40x32xbf16>
    %cst = arith.constant dense<0.000000e+00> : vector<32x32xf32>
    %3 = tpu.matmul %1, %2, %cst {dimension_numbers = #tpu.dot_dimension_numbers<[1], [0], [0], [1], [0, 0, 1, 1], [], []>} : vector<32x40xbf16>, vector<40x32xbf16>, vector<32x32xf32> -> vector<32x32xf32>
    %c0_3 = arith.constant 0 : index
    %c0_4 = arith.constant 0 : index
    %4 = vector.load %arg3[%c0_3, %c0_4] : memref<1x32xf32, #tpu.memory_space<vmem>>, vector<1x32xf32>
    %5 = vector.broadcast %4 : vector<1x32xf32> to vector<32x32xf32>
    %6 = arith.addf %3, %5 : vector<32x32xf32>
    %cst_5 = arith.constant 0.000000e+00 : f32
    %7 = vector.broadcast %cst_5 : f32 to vector<32x32xf32>
    %8 = arith.cmpf ogt, %6, %7 : vector<32x32xf32>
    %9 = math.exp %6 : vector<32x32xf32>
    %cst_6 = arith.constant 1.000000e+00 : f32
    %10 = vector.broadcast %cst_6 : f32 to vector<32x32xf32>
    %11 = arith.subf %9, %10 : vector<32x32xf32>
    %12 = arith.select %8, %6, %11 : vector<32x32xi1>, vector<32x32xf32>
    %c0_7 = arith.constant 0 : index
    %c0_8 = arith.constant 0 : index
    %13 = vector.load %arg4[%c0_7, %c0_8] : memref<32x32xf32, #tpu.memory_space<vmem>>, vector<32x32xf32>
    tpu.vector_store %arg4[%c0_7, %c0_8], %12 {strides = array<i32>} : memref<32x32xf32, #tpu.memory_space<vmem>>, vector<32x32xf32>,
    return
  }
  func.func @transform_0(%arg0: i32) -> (i32, i32) {
    %c0_i32 = arith.constant 0 : i32
    %c0_i32_0 = arith.constant 0 : i32
    return %arg0, %c0_i32 : i32, i32
  }
  func.func @transform_1(%arg0: i32) -> (i32, i32) {
    %c0_i32 = arith.constant 0 : i32
    %c0_i32_0 = arith.constant 0 : i32
    %c0_i32_1 = arith.constant 0 : i32
    return %c0_i32, %c0_i32_0 : i32, i32
  }
  func.func @transform_2(%arg0: i32) -> (i32, i32) {
    %c0_i32 = arith.constant 0 : i32
    %c0_i32_0 = arith.constant 0 : i32
    %c0_i32_1 = arith.constant 0 : i32
    return %c0_i32, %c0_i32_0 : i32, i32
  }
  func.func @transform_3(%arg0: i32) -> (i32, i32) {
    %c0_i32 = arith.constant 0 : i32
    %c0_i32_0 = arith.constant 0 : i32
    return %arg0, %c0_i32 : i32, i32
  }
}

module attributes {stable_mosaic.version = 11 : i64} {
  func.func @_linear_kernel(%arg0: i32, %arg1: memref<40x32xf32, #tpu.memory_space<vmem>>, %arg2: memref<40x32xf32, #tpu.memory_space<vmem>>, %arg3: memref<32x32xbf16, #tpu.memory_space<vmem>>, %arg4: memref<1x32xf32, #tpu.memory_space<vmem>>, %arg5: memref<40x32xf32, #tpu.memory_space<vmem>>) attributes {dimension_semantics = [#tpu.dimension_semantics<parallel>], iteration_bounds = array<i64: 1>, scalar_prefetch = 0 : i64, scratch_operands = 0 : i64, tpu.core_type = #tpu.core_type<tc>, window_params = [{transform_indices = @transform_0, window_bounds = array<i64: 40, 32>}, {transform_indices = @transform_1, window_bounds = array<i64: 40, 32>}, {pipeline_mode = #tpu.pipeline_mode<synchronous>, transform_indices = @transform_2, window_bounds = array<i64: 32, 32>}, {pipeline_mode = #tpu.pipeline_mode<synchronous>, transform_indices = @transform_3, window_bounds = array<i64: 1, 32>}, {transform_indices = @transform_4, window_bounds = array<i64: 40, 32>}]} {
    %c0 = arith.constant 0 : index
    %c0_0 = arith.constant 0 : index
    %0 = vector.load %arg2[%c0, %c0_0] : memref<40x32xf32, #tpu.memory_space<vmem>>, vector<40x32xf32>
    %1 = arith.truncf %0 : vector<40x32xf32> to vector<40x32xbf16>
    %c0_1 = arith.constant 0 : index
    %c0_2 = arith.constant 0 : index
    %2 = vector.load %arg3[%c0_1, %c0_2] : memref<32x32xbf16, #tpu.memory_space<vmem>>, vector<32x32xbf16>
    %cst = arith.constant dense<0.000000e+00> : vector<40x32xf32>
    %3 = tpu.matmul %1, %2, %cst {dimension_numbers = #tpu.dot_dimension_numbers<[1], [0], [0], [1], [0, 0, 1, 1], [], []>} : vector<40x32xbf16>, vector<32x32xbf16>, vector<40x32xf32> -> vector<40x32xf32>
    %c0_3 = arith.constant 0 : index
    %c0_4 = arith.constant 0 : index
    %4 = vector.load %arg4[%c0_3, %c0_4] : memref<1x32xf32, #tpu.memory_space<vmem>>, vector<1x32xf32>
    %5 = vector.broadcast %4 : vector<1x32xf32> to vector<40x32xf32>
    %6 = arith.addf %3, %5 : vector<40x32xf32>
    %c0_5 = arith.constant 0 : index
    %c0_6 = arith.constant 0 : index
    %7 = vector.load %arg1[%c0_5, %c0_6] : memref<40x32xf32, #tpu.memory_space<vmem>>, vector<40x32xf32>
    %8 = arith.addf %6, %7 : vector<40x32xf32>
    %c0_7 = arith.constant 0 : index
    %c0_8 = arith.constant 0 : index
    %9 = vector.load %arg5[%c0_7, %c0_8] : memref<40x32xf32, #tpu.memory_space<vmem>>, vector<40x32xf32>
    tpu.vector_store %arg5[%c0_7, %c0_8], %8 {strides = array<i32>} : memref<40x32xf32, #tpu.memory_space<vmem>>, vector<40x32xf32>,
    return
  }
  func.func @transform_0(%arg0: i32) -> (i32, i32) {
    %c0_i32 = arith.constant 0 : i32
    %c0_i32_0 = arith.constant 0 : i32
    return %arg0, %c0_i32 : i32, i32
  }
  func.func @transform_1(%arg0: i32) -> (i32, i32) {
    %c0_i32 = arith.constant 0 : i32
    %c0_i32_0 = arith.constant 0 : i32
    return %arg0, %c0_i32 : i32, i32
  }
  func.func @transform_2(%arg0: i32) -> (i32, i32) {
    %c0_i32 = arith.constant 0 : i32
    %c0_i32_0 = arith.constant 0 : i32
    %c0_i32_1 = arith.constant 0 : i32
    return %c0_i32, %c0_i32_0 : i32, i32
  }
  func.func @transform_3(%arg0: i32) -> (i32, i32) {
    %c0_i32 = arith.constant 0 : i32
    %c0_i32_0 = arith.constant 0 : i32
    %c0_i32_1 = arith.constant 0 : i32
    return %c0_i32, %c0_i32_0 : i32, i32
  }
  func.func @transform_4(%arg0: i32) -> (i32, i32) {
    %c0_i32 = arith.constant 0 : i32
    %c0_i32_0 = arith.constant 0 : i32
    return %arg0, %c0_i32 : i32, i32
  }
}

module attributes {stable_mosaic.version = 11 : i64} {
  func.func @_self_attn_kernel(%arg0: i32, %arg1: memref<1x4x32xf32, #tpu.memory_space<vmem>>, %arg2: memref<1x1x4xf32, #tpu.memory_space<vmem>>, %arg3: memref<1x32xf32, #tpu.memory_space<vmem>>, %arg4: memref<1x32xf32, #tpu.memory_space<vmem>>, %arg5: memref<32x96xbf16, #tpu.memory_space<vmem>>, %arg6: memref<1x96xf32, #tpu.memory_space<vmem>>, %arg7: memref<32x32xbf16, #tpu.memory_space<vmem>>, %arg8: memref<1x32xf32, #tpu.memory_space<vmem>>, %arg9: memref<1x4x32xf32, #tpu.memory_space<vmem>>) attributes {dimension_semantics = [#tpu.dimension_semantics<parallel>], iteration_bounds = array<i64: 10>, scalar_prefetch = 0 : i64, scratch_operands = 0 : i64, tpu.core_type = #tpu.core_type<tc>, window_params = [{transform_indices = @transform_0, window_bounds = array<i64: 1, 4, 32>}, {transform_indices = @transform_1, window_bounds = array<i64: 1, 1, 4>}, {pipeline_mode = #tpu.pipeline_mode<synchronous>, transform_indices = @transform_2, window_bounds = array<i64: 1, 32>}, {pipeline_mode = #tpu.pipeline_mode<synchronous>, transform_indices = @transform_3, window_bounds = array<i64: 1, 32>}, {pipeline_mode = #tpu.pipeline_mode<synchronous>, transform_indices = @transform_4, window_bounds = array<i64: 32, 96>}, {pipeline_mode = #tpu.pipeline_mode<synchronous>, transform_indices = @transform_5, window_bounds = array<i64: 1, 96>}, {pipeline_mode = #tpu.pipeline_mode<synchronous>, transform_indices = @transform_6, window_bounds = array<i64: 32, 32>}, {pipeline_mode = #tpu.pipeline_mode<synchronous>, transform_indices = @transform_7, window_bounds = array<i64: 1, 32>}, {transform_indices = @transform_8, window_bounds = array<i64: 1, 4, 32>}]} {
    %c0 = arith.constant 0 : index
    %c0_0 = arith.constant 0 : index
    %c0_1 = arith.constant 0 : index
    %0 = vector.load %arg1[%c0, %c0_0, %c0_1] : memref<1x4x32xf32, #tpu.memory_space<vmem>>, vector<1x4x32xf32>
    %1 = vector.shape_cast %0 : vector<1x4x32xf32> to vector<4x32xf32>
    %cst = arith.constant dense<0.000000e+00> : vector<4xf32>
    %2 = vector.multi_reduction <add>, %1, %cst [1] : vector<4x32xf32> to vector<4xf32>
    %3 = vector.shape_cast %2 : vector<4xf32> to vector<4x1xf32>
    %cst_2 = arith.constant 3.200000e+01 : f32
    %4 = vector.broadcast %cst_2 : f32 to vector<4x1xf32>
    %5 = arith.divf %3, %4 : vector<4x1xf32>
    %6 = vector.broadcast %5 : vector<4x1xf32> to vector<4x32xf32>
    %7 = arith.subf %1, %6 : vector<4x32xf32>
    %8 = arith.mulf %7, %7 : vector<4x32xf32>
    %cst_3 = arith.constant dense<0.000000e+00> : vector<4xf32>
    %9 = vector.multi_reduction <add>, %8, %cst_3 [1] : vector<4x32xf32> to vector<4xf32>
    %10 = vector.shape_cast %9 : vector<4xf32> to vector<4x1xf32>
    %cst_4 = arith.constant 3.200000e+01 : f32
    %11 = vector.broadcast %cst_4 : f32 to vector<4x1xf32>
    %12 = arith.divf %10, %11 : vector<4x1xf32>
    %cst_5 = arith.constant 9.99999974E-6 : f32
    %13 = vector.broadcast %cst_5 : f32 to vector<4x1xf32>
    %14 = arith.addf %12, %13 : vector<4x1xf32>
    %15 = math.rsqrt %14 : vector<4x1xf32>
    %16 = vector.broadcast %15 : vector<4x1xf32> to vector<4x32xf32>
    %17 = arith.mulf %7, %16 : vector<4x32xf32>
    %c0_6 = arith.constant 0 : index
    %c0_7 = arith.constant 0 : index
    %18 = vector.load %arg3[%c0_6, %c0_7] : memref<1x32xf32, #tpu.memory_space<vmem>>, vector<1x32xf32>
    %19 = vector.broadcast %18 : vector<1x32xf32> to vector<4x32xf32>
    %20 = arith.mulf %17, %19 : vector<4x32xf32>
    %c0_8 = arith.constant 0 : index
    %c0_9 = arith.constant 0 : index
    %21 = vector.load %arg4[%c0_8, %c0_9] : memref<1x32xf32, #tpu.memory_space<vmem>>, vector<1x32xf32>
    %22 = vector.broadcast %21 : vector<1x32xf32> to vector<4x32xf32>
    %23 = arith.addf %20, %22 : vector<4x32xf32>
    %24 = arith.truncf %23 : vector<4x32xf32> to vector<4x32xbf16>
    %c0_10 = arith.constant 0 : index
    %c0_11 = arith.constant 0 : index
    %25 = vector.load %arg5[%c0_10, %c0_11] : memref<32x96xbf16, #tpu.memory_space<vmem>>, vector<32x96xbf16>
    %cst_12 = arith.constant dense<0.000000e+00> : vector<4x96xf32>
    %26 = tpu.matmul %24, %25, %cst_12 {dimension_numbers = #tpu.dot_dimension_numbers<[1], [0], [0], [1], [0, 0, 1, 1], [], []>} : vector<4x32xbf16>, vector<32x96xbf16>, vector<4x96xf32> -> vector<4x96xf32>
    %c0_13 = arith.constant 0 : index
    %c0_14 = arith.constant 0 : index
    %27 = vector.load %arg6[%c0_13, %c0_14] : memref<1x96xf32, #tpu.memory_space<vmem>>, vector<1x96xf32>
    %28 = vector.broadcast %27 : vector<1x96xf32> to vector<4x96xf32>
    %29 = arith.addf %26, %28 : vector<4x96xf32>
    %c0_15 = arith.constant 0 : index
    %c0_16 = arith.constant 0 : index
    %c0_17 = arith.constant 0 : index
    %30 = vector.load %arg2[%c0_15, %c0_16, %c0_17] : memref<1x1x4xf32, #tpu.memory_space<vmem>>, vector<1x1x4xf32>
    %31 = vector.shape_cast %30 : vector<1x1x4xf32> to vector<1x4xf32>
    %32 = vector.extract_strided_slice %29 {offsets = [0, 0], sizes = [4, 8], strides = [1, 1]} : vector<4x96xf32> to vector<4x8xf32>
    %33 = arith.truncf %32 : vector<4x8xf32> to vector<4x8xbf16>
    %34 = vector.extract_strided_slice %29 {offsets = [0, 32], sizes = [4, 8], strides = [1, 1]} : vector<4x96xf32> to vector<4x8xf32>
    %35 = arith.truncf %34 : vector<4x8xf32> to vector<4x8xbf16>
    %36 = vector.extract_strided_slice %29 {offsets = [0, 64], sizes = [4, 8], strides = [1, 1]} : vector<4x96xf32> to vector<4x8xf32>
    %37 = arith.truncf %36 : vector<4x8xf32> to vector<4x8xbf16>
    %cst_18 = arith.constant dense<0.000000e+00> : vector<4x4xf32>
    %38 = tpu.matmul %33, %35, %cst_18 {dimension_numbers = #tpu.dot_dimension_numbers<[1], [1], [0], [0], [0, 0, 1, 0], [], []>} : vector<4x8xbf16>, vector<4x8xbf16>, vector<4x4xf32> -> vector<4x4xf32>
    %cst_19 = arith.constant 0.353553385 : f32
    %39 = vector.broadcast %cst_19 : f32 to vector<4x4xf32>
    %40 = arith.mulf %38, %39 : vector<4x4xf32>
    %41 = vector.broadcast %31 : vector<1x4xf32> to vector<4x4xf32>
    %42 = arith.addf %40, %41 : vector<4x4xf32>
    %cst_20 = arith.constant dense<0xFF800000> : vector<4xf32>
    %43 = vector.multi_reduction <maximumf>, %42, %cst_20 [1] : vector<4x4xf32> to vector<4xf32>
    %44 = vector.shape_cast %43 : vector<4xf32> to vector<4x1xf32>
    %45 = vector.broadcast %44 : vector<4x1xf32> to vector<4x4xf32>
    %46 = arith.subf %42, %45 : vector<4x4xf32>
    %47 = math.exp %46 : vector<4x4xf32>
    %cst_21 = arith.constant dense<0.000000e+00> : vector<4xf32>
    %48 = vector.multi_reduction <add>, %47, %cst_21 [1] : vector<4x4xf32> to vector<4xf32>
    %49 = vector.shape_cast %48 : vector<4xf32> to vector<4x1xf32>
    %50 = tpu.reciprocal %49 {approx = true} : vector<4x1xf32> -> vector<4x1xf32>
    %51 = vector.broadcast %50 : vector<4x1xf32> to vector<4x4xf32>
    %52 = arith.mulf %47, %51 : vector<4x4xf32>
    %53 = arith.truncf %52 : vector<4x4xf32> to vector<4x4xbf16>
    %cst_22 = arith.constant dense<0.000000e+00> : vector<4x8xf32>
    %54 = tpu.matmul %53, %37, %cst_22 {dimension_numbers = #tpu.dot_dimension_numbers<[1], [0], [0], [1], [0, 0, 1, 1], [], []>} : vector<4x4xbf16>, vector<4x8xbf16>, vector<4x8xf32> -> vector<4x8xf32>
    %55 = vector.extract_strided_slice %29 {offsets = [0, 8], sizes = [4, 8], strides = [1, 1]} : vector<4x96xf32> to vector<4x8xf32>
    %56 = arith.truncf %55 : vector<4x8xf32> to vector<4x8xbf16>
    %57 = vector.extract_strided_slice %29 {offsets = [0, 40], sizes = [4, 8], strides = [1, 1]} : vector<4x96xf32> to vector<4x8xf32>
    %58 = arith.truncf %57 : vector<4x8xf32> to vector<4x8xbf16>
    %59 = vector.extract_strided_slice %29 {offsets = [0, 72], sizes = [4, 8], strides = [1, 1]} : vector<4x96xf32> to vector<4x8xf32>
    %60 = arith.truncf %59 : vector<4x8xf32> to vector<4x8xbf16>
    %cst_23 = arith.constant dense<0.000000e+00> : vector<4x4xf32>
    %61 = tpu.matmul %56, %58, %cst_23 {dimension_numbers = #tpu.dot_dimension_numbers<[1], [1], [0], [0], [0, 0, 1, 0], [], []>} : vector<4x8xbf16>, vector<4x8xbf16>, vector<4x4xf32> -> vector<4x4xf32>
    %cst_24 = arith.constant 0.353553385 : f32
    %62 = vector.broadcast %cst_24 : f32 to vector<4x4xf32>
    %63 = arith.mulf %61, %62 : vector<4x4xf32>
    %64 = vector.broadcast %31 : vector<1x4xf32> to vector<4x4xf32>
    %65 = arith.addf %63, %64 : vector<4x4xf32>
    %cst_25 = arith.constant dense<0xFF800000> : vector<4xf32>
    %66 = vector.multi_reduction <maximumf>, %65, %cst_25 [1] : vector<4x4xf32> to vector<4xf32>
    %67 = vector.shape_cast %66 : vector<4xf32> to vector<4x1xf32>
    %68 = vector.broadcast %67 : vector<4x1xf32> to vector<4x4xf32>
    %69 = arith.subf %65, %68 : vector<4x4xf32>
    %70 = math.exp %69 : vector<4x4xf32>
    %cst_26 = arith.constant dense<0.000000e+00> : vector<4xf32>
    %71 = vector.multi_reduction <add>, %70, %cst_26 [1] : vector<4x4xf32> to vector<4xf32>
    %72 = vector.shape_cast %71 : vector<4xf32> to vector<4x1xf32>
    %73 = tpu.reciprocal %72 {approx = true} : vector<4x1xf32> -> vector<4x1xf32>
    %74 = vector.broadcast %73 : vector<4x1xf32> to vector<4x4xf32>
    %75 = arith.mulf %70, %74 : vector<4x4xf32>
    %76 = arith.truncf %75 : vector<4x4xf32> to vector<4x4xbf16>
    %cst_27 = arith.constant dense<0.000000e+00> : vector<4x8xf32>
    %77 = tpu.matmul %76, %60, %cst_27 {dimension_numbers = #tpu.dot_dimension_numbers<[1], [0], [0], [1], [0, 0, 1, 1], [], []>} : vector<4x4xbf16>, vector<4x8xbf16>, vector<4x8xf32> -> vector<4x8xf32>
    %78 = vector.extract_strided_slice %29 {offsets = [0, 16], sizes = [4, 8], strides = [1, 1]} : vector<4x96xf32> to vector<4x8xf32>
    %79 = arith.truncf %78 : vector<4x8xf32> to vector<4x8xbf16>
    %80 = vector.extract_strided_slice %29 {offsets = [0, 48], sizes = [4, 8], strides = [1, 1]} : vector<4x96xf32> to vector<4x8xf32>
    %81 = arith.truncf %80 : vector<4x8xf32> to vector<4x8xbf16>
    %82 = vector.extract_strided_slice %29 {offsets = [0, 80], sizes = [4, 8], strides = [1, 1]} : vector<4x96xf32> to vector<4x8xf32>
    %83 = arith.truncf %82 : vector<4x8xf32> to vector<4x8xbf16>
    %cst_28 = arith.constant dense<0.000000e+00> : vector<4x4xf32>
    %84 = tpu.matmul %79, %81, %cst_28 {dimension_numbers = #tpu.dot_dimension_numbers<[1], [1], [0], [0], [0, 0, 1, 0], [], []>} : vector<4x8xbf16>, vector<4x8xbf16>, vector<4x4xf32> -> vector<4x4xf32>
    %cst_29 = arith.constant 0.353553385 : f32
    %85 = vector.broadcast %cst_29 : f32 to vector<4x4xf32>
    %86 = arith.mulf %84, %85 : vector<4x4xf32>
    %87 = vector.broadcast %31 : vector<1x4xf32> to vector<4x4xf32>
    %88 = arith.addf %86, %87 : vector<4x4xf32>
    %cst_30 = arith.constant dense<0xFF800000> : vector<4xf32>
    %89 = vector.multi_reduction <maximumf>, %88, %cst_30 [1] : vector<4x4xf32> to vector<4xf32>
    %90 = vector.shape_cast %89 : vector<4xf32> to vector<4x1xf32>
    %91 = vector.broadcast %90 : vector<4x1xf32> to vector<4x4xf32>
    %92 = arith.subf %88, %91 : vector<4x4xf32>
    %93 = math.exp %92 : vector<4x4xf32>
    %cst_31 = arith.constant dense<0.000000e+00> : vector<4xf32>
    %94 = vector.multi_reduction <add>, %93, %cst_31 [1] : vector<4x4xf32> to vector<4xf32>
    %95 = vector.shape_cast %94 : vector<4xf32> to vector<4x1xf32>
    %96 = tpu.reciprocal %95 {approx = true} : vector<4x1xf32> -> vector<4x1xf32>
    %97 = vector.broadcast %96 : vector<4x1xf32> to vector<4x4xf32>
    %98 = arith.mulf %93, %97 : vector<4x4xf32>
    %99 = arith.truncf %98 : vector<4x4xf32> to vector<4x4xbf16>
    %cst_32 = arith.constant dense<0.000000e+00> : vector<4x8xf32>
    %100 = tpu.matmul %99, %83, %cst_32 {dimension_numbers = #tpu.dot_dimension_numbers<[1], [0], [0], [1], [0, 0, 1, 1], [], []>} : vector<4x4xbf16>, vector<4x8xbf16>, vector<4x8xf32> -> vector<4x8xf32>
    %101 = vector.extract_strided_slice %29 {offsets = [0, 24], sizes = [4, 8], strides = [1, 1]} : vector<4x96xf32> to vector<4x8xf32>
    %102 = arith.truncf %101 : vector<4x8xf32> to vector<4x8xbf16>
    %103 = vector.extract_strided_slice %29 {offsets = [0, 56], sizes = [4, 8], strides = [1, 1]} : vector<4x96xf32> to vector<4x8xf32>
    %104 = arith.truncf %103 : vector<4x8xf32> to vector<4x8xbf16>
    %105 = vector.extract_strided_slice %29 {offsets = [0, 88], sizes = [4, 8], strides = [1, 1]} : vector<4x96xf32> to vector<4x8xf32>
    %106 = arith.truncf %105 : vector<4x8xf32> to vector<4x8xbf16>
    %cst_33 = arith.constant dense<0.000000e+00> : vector<4x4xf32>
    %107 = tpu.matmul %102, %104, %cst_33 {dimension_numbers = #tpu.dot_dimension_numbers<[1], [1], [0], [0], [0, 0, 1, 0], [], []>} : vector<4x8xbf16>, vector<4x8xbf16>, vector<4x4xf32> -> vector<4x4xf32>
    %cst_34 = arith.constant 0.353553385 : f32
    %108 = vector.broadcast %cst_34 : f32 to vector<4x4xf32>
    %109 = arith.mulf %107, %108 : vector<4x4xf32>
    %110 = vector.broadcast %31 : vector<1x4xf32> to vector<4x4xf32>
    %111 = arith.addf %109, %110 : vector<4x4xf32>
    %cst_35 = arith.constant dense<0xFF800000> : vector<4xf32>
    %112 = vector.multi_reduction <maximumf>, %111, %cst_35 [1] : vector<4x4xf32> to vector<4xf32>
    %113 = vector.shape_cast %112 : vector<4xf32> to vector<4x1xf32>
    %114 = vector.broadcast %113 : vector<4x1xf32> to vector<4x4xf32>
    %115 = arith.subf %111, %114 : vector<4x4xf32>
    %116 = math.exp %115 : vector<4x4xf32>
    %cst_36 = arith.constant dense<0.000000e+00> : vector<4xf32>
    %117 = vector.multi_reduction <add>, %116, %cst_36 [1] : vector<4x4xf32> to vector<4xf32>
    %118 = vector.shape_cast %117 : vector<4xf32> to vector<4x1xf32>
    %119 = tpu.reciprocal %118 {approx = true} : vector<4x1xf32> -> vector<4x1xf32>
    %120 = vector.broadcast %119 : vector<4x1xf32> to vector<4x4xf32>
    %121 = arith.mulf %116, %120 : vector<4x4xf32>
    %122 = arith.truncf %121 : vector<4x4xf32> to vector<4x4xbf16>
    %cst_37 = arith.constant dense<0.000000e+00> : vector<4x8xf32>
    %123 = tpu.matmul %122, %106, %cst_37 {dimension_numbers = #tpu.dot_dimension_numbers<[1], [0], [0], [1], [0, 0, 1, 1], [], []>} : vector<4x4xbf16>, vector<4x8xbf16>, vector<4x8xf32> -> vector<4x8xf32>
    %124 = tpu.concatenate %54, %77, %100, %123 in 1 : vector<4x8xf32>, vector<4x8xf32>, vector<4x8xf32>, vector<4x8xf32> -> vector<4x32xf32>
    %125 = arith.truncf %124 : vector<4x32xf32> to vector<4x32xbf16>
    %c0_38 = arith.constant 0 : index
    %c0_39 = arith.constant 0 : index
    %126 = vector.load %arg7[%c0_38, %c0_39] : memref<32x32xbf16, #tpu.memory_space<vmem>>, vector<32x32xbf16>
    %cst_40 = arith.constant dense<0.000000e+00> : vector<4x32xf32>
    %127 = tpu.matmul %125, %126, %cst_40 {dimension_numbers = #tpu.dot_dimension_numbers<[1], [0], [0], [1], [0, 0, 1, 1], [], []>} : vector<4x32xbf16>, vector<32x32xbf16>, vector<4x32xf32> -> vector<4x32xf32>
    %c0_41 = arith.constant 0 : index
    %c0_42 = arith.constant 0 : index
    %128 = vector.load %arg8[%c0_41, %c0_42] : memref<1x32xf32, #tpu.memory_space<vmem>>, vector<1x32xf32>
    %129 = vector.broadcast %128 : vector<1x32xf32> to vector<4x32xf32>
    %130 = arith.addf %127, %129 : vector<4x32xf32>
    %c0_43 = arith.constant 0 : index
    %c0_44 = arith.constant 0 : index
    %c0_45 = arith.constant 0 : index
    %131 = vector.load %arg9[%c0_43, %c0_44, %c0_45] : memref<1x4x32xf32, #tpu.memory_space<vmem>>, vector<1x4x32xf32>
    %132 = vector.shape_cast %131 : vector<1x4x32xf32> to vector<4x32xf32>
    %133 = vector.shape_cast %130 : vector<4x32xf32> to vector<1x4x32xf32>
    tpu.vector_store %arg9[%c0_43, %c0_44, %c0_45], %133 {strides = array<i32>} : memref<1x4x32xf32, #tpu.memory_space<vmem>>, vector<1x4x32xf32>,
    return
  }
  func.func @transform_0(%arg0: i32) -> (i32, i32, i32) {
    %c0_i32 = arith.constant 0 : i32
    %c0_i32_0 = arith.constant 0 : i32
    %c0_i32_1 = arith.constant 0 : i32
    return %arg0, %c0_i32, %c0_i32_0 : i32, i32, i32
  }
  func.func @transform_1(%arg0: i32) -> (i32, i32, i32) {
    %c0_i32 = arith.constant 0 : i32
    %c0_i32_0 = arith.constant 0 : i32
    %c0_i32_1 = arith.constant 0 : i32
    return %arg0, %c0_i32, %c0_i32_0 : i32, i32, i32
  }
  func.func @transform_2(%arg0: i32) -> (i32, i32) {
    %c0_i32 = arith.constant 0 : i32
    %c0_i32_0 = arith.constant 0 : i32
    %c0_i32_1 = arith.constant 0 : i32
    return %c0_i32, %c0_i32_0 : i32, i32
  }
  func.func @transform_3(%arg0: i32) -> (i32, i32) {
    %c0_i32 = arith.constant 0 : i32
    %c0_i32_0 = arith.constant 0 : i32
    %c0_i32_1 = arith.constant 0 : i32
    return %c0_i32, %c0_i32_0 : i32, i32
  }
  func.func @transform_4(%arg0: i32) -> (i32, i32) {
    %c0_i32 = arith.constant 0 : i32
    %c0_i32_0 = arith.constant 0 : i32
    %c0_i32_1 = arith.constant 0 : i32
    return %c0_i32, %c0_i32_0 : i32, i32
  }
  func.func @transform_5(%arg0: i32) -> (i32, i32) {
    %c0_i32 = arith.constant 0 : i32
    %c0_i32_0 = arith.constant 0 : i32
    %c0_i32_1 = arith.constant 0 : i32
    return %c0_i32, %c0_i32_0 : i32, i32
  }
  func.func @transform_6(%arg0: i32) -> (i32, i32) {
    %c0_i32 = arith.constant 0 : i32
    %c0_i32_0 = arith.constant 0 : i32
    %c0_i32_1 = arith.constant 0 : i32
    return %c0_i32, %c0_i32_0 : i32, i32
  }
  func.func @transform_7(%arg0: i32) -> (i32, i32) {
    %c0_i32 = arith.constant 0 : i32
    %c0_i32_0 = arith.constant 0 : i32
    %c0_i32_1 = arith.constant 0 : i32
    return %c0_i32, %c0_i32_0 : i32, i32
  }
  func.func @transform_8(%arg0: i32) -> (i32, i32, i32) {
    %c0_i32 = arith.constant 0 : i32
    %c0_i32_0 = arith.constant 0 : i32
    %c0_i32_1 = arith.constant 0 : i32
    return %arg0, %c0_i32, %c0_i32_0 : i32, i32, i32
  }
}

module attributes {stable_mosaic.version = 11 : i64} {
  func.func @_linear_kernel(%arg0: i32, %arg1: memref<40x32xf32, #tpu.memory_space<vmem>>, %arg2: memref<1x32xf32, #tpu.memory_space<vmem>>, %arg3: memref<1x32xf32, #tpu.memory_space<vmem>>, %arg4: memref<32x128xbf16, #tpu.memory_space<vmem>>, %arg5: memref<1x128xf32, #tpu.memory_space<vmem>>, %arg6: memref<40x128xf32, #tpu.memory_space<vmem>>) attributes {dimension_semantics = [#tpu.dimension_semantics<parallel>], iteration_bounds = array<i64: 1>, scalar_prefetch = 0 : i64, scratch_operands = 0 : i64, tpu.core_type = #tpu.core_type<tc>, window_params = [{transform_indices = @transform_0, window_bounds = array<i64: 40, 32>}, {pipeline_mode = #tpu.pipeline_mode<synchronous>, transform_indices = @transform_1, window_bounds = array<i64: 1, 32>}, {pipeline_mode = #tpu.pipeline_mode<synchronous>, transform_indices = @transform_2, window_bounds = array<i64: 1, 32>}, {pipeline_mode = #tpu.pipeline_mode<synchronous>, transform_indices = @transform_3, window_bounds = array<i64: 32, 128>}, {pipeline_mode = #tpu.pipeline_mode<synchronous>, transform_indices = @transform_4, window_bounds = array<i64: 1, 128>}, {transform_indices = @transform_5, window_bounds = array<i64: 40, 128>}]} {
    %c0 = arith.constant 0 : index
    %c0_0 = arith.constant 0 : index
    %0 = vector.load %arg1[%c0, %c0_0] : memref<40x32xf32, #tpu.memory_space<vmem>>, vector<40x32xf32>
    %cst = arith.constant dense<0.000000e+00> : vector<40xf32>
    %1 = vector.multi_reduction <add>, %0, %cst [1] : vector<40x32xf32> to vector<40xf32>
    %2 = vector.shape_cast %1 : vector<40xf32> to vector<40x1xf32>
    %cst_1 = arith.constant 3.200000e+01 : f32
    %3 = vector.broadcast %cst_1 : f32 to vector<40x1xf32>
    %4 = arith.divf %2, %3 : vector<40x1xf32>
    %5 = vector.broadcast %4 : vector<40x1xf32> to vector<40x32xf32>
    %6 = arith.subf %0, %5 : vector<40x32xf32>
    %7 = arith.mulf %6, %6 : vector<40x32xf32>
    %cst_2 = arith.constant dense<0.000000e+00> : vector<40xf32>
    %8 = vector.multi_reduction <add>, %7, %cst_2 [1] : vector<40x32xf32> to vector<40xf32>
    %9 = vector.shape_cast %8 : vector<40xf32> to vector<40x1xf32>
    %cst_3 = arith.constant 3.200000e+01 : f32
    %10 = vector.broadcast %cst_3 : f32 to vector<40x1xf32>
    %11 = arith.divf %9, %10 : vector<40x1xf32>
    %cst_4 = arith.constant 9.99999974E-6 : f32
    %12 = vector.broadcast %cst_4 : f32 to vector<40x1xf32>
    %13 = arith.addf %11, %12 : vector<40x1xf32>
    %14 = math.rsqrt %13 : vector<40x1xf32>
    %15 = vector.broadcast %14 : vector<40x1xf32> to vector<40x32xf32>
    %16 = arith.mulf %6, %15 : vector<40x32xf32>
    %c0_5 = arith.constant 0 : index
    %c0_6 = arith.constant 0 : index
    %17 = vector.load %arg2[%c0_5, %c0_6] : memref<1x32xf32, #tpu.memory_space<vmem>>, vector<1x32xf32>
    %18 = vector.broadcast %17 : vector<1x32xf32> to vector<40x32xf32>
    %19 = arith.mulf %16, %18 : vector<40x32xf32>
    %c0_7 = arith.constant 0 : index
    %c0_8 = arith.constant 0 : index
    %20 = vector.load %arg3[%c0_7, %c0_8] : memref<1x32xf32, #tpu.memory_space<vmem>>, vector<1x32xf32>
    %21 = vector.broadcast %20 : vector<1x32xf32> to vector<40x32xf32>
    %22 = arith.addf %19, %21 : vector<40x32xf32>
    %23 = arith.truncf %22 : vector<40x32xf32> to vector<40x32xbf16>
    %c0_9 = arith.constant 0 : index
    %c0_10 = arith.constant 0 : index
    %24 = vector.load %arg4[%c0_9, %c0_10] : memref<32x128xbf16, #tpu.memory_space<vmem>>, vector<32x128xbf16>
    %cst_11 = arith.constant dense<0.000000e+00> : vector<40x128xf32>
    %25 = tpu.matmul %23, %24, %cst_11 {dimension_numbers = #tpu.dot_dimension_numbers<[1], [0], [0], [1], [0, 0, 1, 1], [], []>} : vector<40x32xbf16>, vector<32x128xbf16>, vector<40x128xf32> -> vector<40x128xf32>
    %c0_12 = arith.constant 0 : index
    %c0_13 = arith.constant 0 : index
    %26 = vector.load %arg5[%c0_12, %c0_13] : memref<1x128xf32, #tpu.memory_space<vmem>>, vector<1x128xf32>
    %27 = vector.broadcast %26 : vector<1x128xf32> to vector<40x128xf32>
    %28 = arith.addf %25, %27 : vector<40x128xf32>
    %cst_14 = arith.constant 5.000000e-01 : f32
    %29 = vector.broadcast %cst_14 : f32 to vector<40x128xf32>
    %30 = arith.mulf %29, %28 : vector<40x128xf32>
    %cst_15 = arith.constant 0.707106769 : f32
    %31 = vector.broadcast %cst_15 : f32 to vector<40x128xf32>
    %32 = arith.mulf %28, %31 : vector<40x128xf32>
    %33 = math.erf %32 : vector<40x128xf32>
    %cst_16 = arith.constant 1.000000e+00 : f32
    %34 = vector.broadcast %cst_16 : f32 to vector<40x128xf32>
    %35 = arith.addf %34, %33 : vector<40x128xf32>
    %36 = arith.mulf %30, %35 : vector<40x128xf32>
    %c0_17 = arith.constant 0 : index
    %c0_18 = arith.constant 0 : index
    %37 = vector.load %arg6[%c0_17, %c0_18] : memref<40x128xf32, #tpu.memory_space<vmem>>, vector<40x128xf32>
    tpu.vector_store %arg6[%c0_17, %c0_18], %36 {strides = array<i32>} : memref<40x128xf32, #tpu.memory_space<vmem>>, vector<40x128xf32>,
    return
  }
  func.func @transform_0(%arg0: i32) -> (i32, i32) {
    %c0_i32 = arith.constant 0 : i32
    %c0_i32_0 = arith.constant 0 : i32
    return %arg0, %c0_i32 : i32, i32
  }
  func.func @transform_1(%arg0: i32) -> (i32, i32) {
    %c0_i32 = arith.constant 0 : i32
    %c0_i32_0 = arith.constant 0 : i32
    %c0_i32_1 = arith.constant 0 : i32
    return %c0_i32, %c0_i32_0 : i32, i32
  }
  func.func @transform_2(%arg0: i32) -> (i32, i32) {
    %c0_i32 = arith.constant 0 : i32
    %c0_i32_0 = arith.constant 0 : i32
    %c0_i32_1 = arith.constant 0 : i32
    return %c0_i32, %c0_i32_0 : i32, i32
  }
  func.func @transform_3(%arg0: i32) -> (i32, i32) {
    %c0_i32 = arith.constant 0 : i32
    %c0_i32_0 = arith.constant 0 : i32
    %c0_i32_1 = arith.constant 0 : i32
    return %c0_i32, %c0_i32_0 : i32, i32
  }
  func.func @transform_4(%arg0: i32) -> (i32, i32) {
    %c0_i32 = arith.constant 0 : i32
    %c0_i32_0 = arith.constant 0 : i32
    %c0_i32_1 = arith.constant 0 : i32
    return %c0_i32, %c0_i32_0 : i32, i32
  }
  func.func @transform_5(%arg0: i32) -> (i32, i32) {
    %c0_i32 = arith.constant 0 : i32
    %c0_i32_0 = arith.constant 0 : i32
    return %arg0, %c0_i32 : i32, i32
  }
}

module attributes {stable_mosaic.version = 11 : i64} {
  func.func @_self_attn_kernel(%arg0: i32, %arg1: memref<1x5x32xf32, #tpu.memory_space<vmem>>, %arg2: memref<1x1x5xf32, #tpu.memory_space<vmem>>, %arg3: memref<1x32xf32, #tpu.memory_space<vmem>>, %arg4: memref<1x32xf32, #tpu.memory_space<vmem>>, %arg5: memref<32x96xbf16, #tpu.memory_space<vmem>>, %arg6: memref<1x96xf32, #tpu.memory_space<vmem>>, %arg7: memref<32x32xbf16, #tpu.memory_space<vmem>>, %arg8: memref<1x32xf32, #tpu.memory_space<vmem>>, %arg9: memref<1x5x32xf32, #tpu.memory_space<vmem>>) attributes {dimension_semantics = [#tpu.dimension_semantics<parallel>], iteration_bounds = array<i64: 8>, scalar_prefetch = 0 : i64, scratch_operands = 0 : i64, tpu.core_type = #tpu.core_type<tc>, window_params = [{transform_indices = @transform_0, window_bounds = array<i64: 1, 5, 32>}, {transform_indices = @transform_1, window_bounds = array<i64: 1, 1, 5>}, {pipeline_mode = #tpu.pipeline_mode<synchronous>, transform_indices = @transform_2, window_bounds = array<i64: 1, 32>}, {pipeline_mode = #tpu.pipeline_mode<synchronous>, transform_indices = @transform_3, window_bounds = array<i64: 1, 32>}, {pipeline_mode = #tpu.pipeline_mode<synchronous>, transform_indices = @transform_4, window_bounds = array<i64: 32, 96>}, {pipeline_mode = #tpu.pipeline_mode<synchronous>, transform_indices = @transform_5, window_bounds = array<i64: 1, 96>}, {pipeline_mode = #tpu.pipeline_mode<synchronous>, transform_indices = @transform_6, window_bounds = array<i64: 32, 32>}, {pipeline_mode = #tpu.pipeline_mode<synchronous>, transform_indices = @transform_7, window_bounds = array<i64: 1, 32>}, {transform_indices = @transform_8, window_bounds = array<i64: 1, 5, 32>}]} {
    %c0 = arith.constant 0 : index
    %c0_0 = arith.constant 0 : index
    %c0_1 = arith.constant 0 : index
    %0 = vector.load %arg1[%c0, %c0_0, %c0_1] : memref<1x5x32xf32, #tpu.memory_space<vmem>>, vector<1x5x32xf32>
    %1 = vector.shape_cast %0 : vector<1x5x32xf32> to vector<5x32xf32>
    %cst = arith.constant dense<0.000000e+00> : vector<5xf32>
    %2 = vector.multi_reduction <add>, %1, %cst [1] : vector<5x32xf32> to vector<5xf32>
    %3 = vector.shape_cast %2 : vector<5xf32> to vector<5x1xf32>
    %cst_2 = arith.constant 3.200000e+01 : f32
    %4 = vector.broadcast %cst_2 : f32 to vector<5x1xf32>
    %5 = arith.divf %3, %4 : vector<5x1xf32>
    %6 = vector.broadcast %5 : vector<5x1xf32> to vector<5x32xf32>
    %7 = arith.subf %1, %6 : vector<5x32xf32>
    %8 = arith.mulf %7, %7 : vector<5x32xf32>
    %cst_3 = arith.constant dense<0.000000e+00> : vector<5xf32>
    %9 = vector.multi_reduction <add>, %8, %cst_3 [1] : vector<5x32xf32> to vector<5xf32>
    %10 = vector.shape_cast %9 : vector<5xf32> to vector<5x1xf32>
    %cst_4 = arith.constant 3.200000e+01 : f32
    %11 = vector.broadcast %cst_4 : f32 to vector<5x1xf32>
    %12 = arith.divf %10, %11 : vector<5x1xf32>
    %cst_5 = arith.constant 9.99999974E-6 : f32
    %13 = vector.broadcast %cst_5 : f32 to vector<5x1xf32>
    %14 = arith.addf %12, %13 : vector<5x1xf32>
    %15 = math.rsqrt %14 : vector<5x1xf32>
    %16 = vector.broadcast %15 : vector<5x1xf32> to vector<5x32xf32>
    %17 = arith.mulf %7, %16 : vector<5x32xf32>
    %c0_6 = arith.constant 0 : index
    %c0_7 = arith.constant 0 : index
    %18 = vector.load %arg3[%c0_6, %c0_7] : memref<1x32xf32, #tpu.memory_space<vmem>>, vector<1x32xf32>
    %19 = vector.broadcast %18 : vector<1x32xf32> to vector<5x32xf32>
    %20 = arith.mulf %17, %19 : vector<5x32xf32>
    %c0_8 = arith.constant 0 : index
    %c0_9 = arith.constant 0 : index
    %21 = vector.load %arg4[%c0_8, %c0_9] : memref<1x32xf32, #tpu.memory_space<vmem>>, vector<1x32xf32>
    %22 = vector.broadcast %21 : vector<1x32xf32> to vector<5x32xf32>
    %23 = arith.addf %20, %22 : vector<5x32xf32>
    %24 = arith.truncf %23 : vector<5x32xf32> to vector<5x32xbf16>
    %c0_10 = arith.constant 0 : index
    %c0_11 = arith.constant 0 : index
    %25 = vector.load %arg5[%c0_10, %c0_11] : memref<32x96xbf16, #tpu.memory_space<vmem>>, vector<32x96xbf16>
    %cst_12 = arith.constant dense<0.000000e+00> : vector<5x96xf32>
    %26 = tpu.matmul %24, %25, %cst_12 {dimension_numbers = #tpu.dot_dimension_numbers<[1], [0], [0], [1], [0, 0, 1, 1], [], []>} : vector<5x32xbf16>, vector<32x96xbf16>, vector<5x96xf32> -> vector<5x96xf32>
    %c0_13 = arith.constant 0 : index
    %c0_14 = arith.constant 0 : index
    %27 = vector.load %arg6[%c0_13, %c0_14] : memref<1x96xf32, #tpu.memory_space<vmem>>, vector<1x96xf32>
    %28 = vector.broadcast %27 : vector<1x96xf32> to vector<5x96xf32>
    %29 = arith.addf %26, %28 : vector<5x96xf32>
    %c0_15 = arith.constant 0 : index
    %c0_16 = arith.constant 0 : index
    %c0_17 = arith.constant 0 : index
    %30 = vector.load %arg2[%c0_15, %c0_16, %c0_17] : memref<1x1x5xf32, #tpu.memory_space<vmem>>, vector<1x1x5xf32>
    %31 = vector.shape_cast %30 : vector<1x1x5xf32> to vector<1x5xf32>
    %32 = vector.extract_strided_slice %29 {offsets = [0, 0], sizes = [5, 8], strides = [1, 1]} : vector<5x96xf32> to vector<5x8xf32>
    %33 = arith.truncf %32 : vector<5x8xf32> to vector<5x8xbf16>
    %34 = vector.extract_strided_slice %29 {offsets = [0, 32], sizes = [5, 8], strides = [1, 1]} : vector<5x96xf32> to vector<5x8xf32>
    %35 = arith.truncf %34 : vector<5x8xf32> to vector<5x8xbf16>
    %36 = vector.extract_strided_slice %29 {offsets = [0, 64], sizes = [5, 8], strides = [1, 1]} : vector<5x96xf32> to vector<5x8xf32>
    %37 = arith.truncf %36 : vector<5x8xf32> to vector<5x8xbf16>
    %cst_18 = arith.constant dense<0.000000e+00> : vector<5x5xf32>
    %38 = tpu.matmul %33, %35, %cst_18 {dimension_numbers = #tpu.dot_dimension_numbers<[1], [1], [0], [0], [0, 0, 1, 0], [], []>} : vector<5x8xbf16>, vector<5x8xbf16>, vector<5x5xf32> -> vector<5x5xf32>
    %cst_19 = arith.constant 0.353553385 : f32
    %39 = vector.broadcast %cst_19 : f32 to vector<5x5xf32>
    %40 = arith.mulf %38, %39 : vector<5x5xf32>
    %41 = vector.broadcast %31 : vector<1x5xf32> to vector<5x5xf32>
    %42 = arith.addf %40, %41 : vector<5x5xf32>
    %cst_20 = arith.constant dense<0xFF800000> : vector<5xf32>
    %43 = vector.multi_reduction <maximumf>, %42, %cst_20 [1] : vector<5x5xf32> to vector<5xf32>
    %44 = vector.shape_cast %43 : vector<5xf32> to vector<5x1xf32>
    %45 = vector.broadcast %44 : vector<5x1xf32> to vector<5x5xf32>
    %46 = arith.subf %42, %45 : vector<5x5xf32>
    %47 = math.exp %46 : vector<5x5xf32>
    %cst_21 = arith.constant dense<0.000000e+00> : vector<5xf32>
    %48 = vector.multi_reduction <add>, %47, %cst_21 [1] : vector<5x5xf32> to vector<5xf32>
    %49 = vector.shape_cast %48 : vector<5xf32> to vector<5x1xf32>
    %50 = tpu.reciprocal %49 {approx = true} : vector<5x1xf32> -> vector<5x1xf32>
    %51 = vector.broadcast %50 : vector<5x1xf32> to vector<5x5xf32>
    %52 = arith.mulf %47, %51 : vector<5x5xf32>
    %53 = arith.truncf %52 : vector<5x5xf32> to vector<5x5xbf16>
    %cst_22 = arith.constant dense<0.000000e+00> : vector<5x8xf32>
    %54 = tpu.matmul %53, %37, %cst_22 {dimension_numbers = #tpu.dot_dimension_numbers<[1], [0], [0], [1], [0, 0, 1, 1], [], []>} : vector<5x5xbf16>, vector<5x8xbf16>, vector<5x8xf32> -> vector<5x8xf32>
    %55 = vector.extract_strided_slice %29 {offsets = [0, 8], sizes = [5, 8], strides = [1, 1]} : vector<5x96xf32> to vector<5x8xf32>
    %56 = arith.truncf %55 : vector<5x8xf32> to vector<5x8xbf16>
    %57 = vector.extract_strided_slice %29 {offsets = [0, 40], sizes = [5, 8], strides = [1, 1]} : vector<5x96xf32> to vector<5x8xf32>
    %58 = arith.truncf %57 : vector<5x8xf32> to vector<5x8xbf16>
    %59 = vector.extract_strided_slice %29 {offsets = [0, 72], sizes = [5, 8], strides = [1, 1]} : vector<5x96xf32> to vector<5x8xf32>
    %60 = arith.truncf %59 : vector<5x8xf32> to vector<5x8xbf16>
    %cst_23 = arith.constant dense<0.000000e+00> : vector<5x5xf32>
    %61 = tpu.matmul %56, %58, %cst_23 {dimension_numbers = #tpu.dot_dimension_numbers<[1], [1], [0], [0], [0, 0, 1, 0], [], []>} : vector<5x8xbf16>, vector<5x8xbf16>, vector<5x5xf32> -> vector<5x5xf32>
    %cst_24 = arith.constant 0.353553385 : f32
    %62 = vector.broadcast %cst_24 : f32 to vector<5x5xf32>
    %63 = arith.mulf %61, %62 : vector<5x5xf32>
    %64 = vector.broadcast %31 : vector<1x5xf32> to vector<5x5xf32>
    %65 = arith.addf %63, %64 : vector<5x5xf32>
    %cst_25 = arith.constant dense<0xFF800000> : vector<5xf32>
    %66 = vector.multi_reduction <maximumf>, %65, %cst_25 [1] : vector<5x5xf32> to vector<5xf32>
    %67 = vector.shape_cast %66 : vector<5xf32> to vector<5x1xf32>
    %68 = vector.broadcast %67 : vector<5x1xf32> to vector<5x5xf32>
    %69 = arith.subf %65, %68 : vector<5x5xf32>
    %70 = math.exp %69 : vector<5x5xf32>
    %cst_26 = arith.constant dense<0.000000e+00> : vector<5xf32>
    %71 = vector.multi_reduction <add>, %70, %cst_26 [1] : vector<5x5xf32> to vector<5xf32>
    %72 = vector.shape_cast %71 : vector<5xf32> to vector<5x1xf32>
    %73 = tpu.reciprocal %72 {approx = true} : vector<5x1xf32> -> vector<5x1xf32>
    %74 = vector.broadcast %73 : vector<5x1xf32> to vector<5x5xf32>
    %75 = arith.mulf %70, %74 : vector<5x5xf32>
    %76 = arith.truncf %75 : vector<5x5xf32> to vector<5x5xbf16>
    %cst_27 = arith.constant dense<0.000000e+00> : vector<5x8xf32>
    %77 = tpu.matmul %76, %60, %cst_27 {dimension_numbers = #tpu.dot_dimension_numbers<[1], [0], [0], [1], [0, 0, 1, 1], [], []>} : vector<5x5xbf16>, vector<5x8xbf16>, vector<5x8xf32> -> vector<5x8xf32>
    %78 = vector.extract_strided_slice %29 {offsets = [0, 16], sizes = [5, 8], strides = [1, 1]} : vector<5x96xf32> to vector<5x8xf32>
    %79 = arith.truncf %78 : vector<5x8xf32> to vector<5x8xbf16>
    %80 = vector.extract_strided_slice %29 {offsets = [0, 48], sizes = [5, 8], strides = [1, 1]} : vector<5x96xf32> to vector<5x8xf32>
    %81 = arith.truncf %80 : vector<5x8xf32> to vector<5x8xbf16>
    %82 = vector.extract_strided_slice %29 {offsets = [0, 80], sizes = [5, 8], strides = [1, 1]} : vector<5x96xf32> to vector<5x8xf32>
    %83 = arith.truncf %82 : vector<5x8xf32> to vector<5x8xbf16>
    %cst_28 = arith.constant dense<0.000000e+00> : vector<5x5xf32>
    %84 = tpu.matmul %79, %81, %cst_28 {dimension_numbers = #tpu.dot_dimension_numbers<[1], [1], [0], [0], [0, 0, 1, 0], [], []>} : vector<5x8xbf16>, vector<5x8xbf16>, vector<5x5xf32> -> vector<5x5xf32>
    %cst_29 = arith.constant 0.353553385 : f32
    %85 = vector.broadcast %cst_29 : f32 to vector<5x5xf32>
    %86 = arith.mulf %84, %85 : vector<5x5xf32>
    %87 = vector.broadcast %31 : vector<1x5xf32> to vector<5x5xf32>
    %88 = arith.addf %86, %87 : vector<5x5xf32>
    %cst_30 = arith.constant dense<0xFF800000> : vector<5xf32>
    %89 = vector.multi_reduction <maximumf>, %88, %cst_30 [1] : vector<5x5xf32> to vector<5xf32>
    %90 = vector.shape_cast %89 : vector<5xf32> to vector<5x1xf32>
    %91 = vector.broadcast %90 : vector<5x1xf32> to vector<5x5xf32>
    %92 = arith.subf %88, %91 : vector<5x5xf32>
    %93 = math.exp %92 : vector<5x5xf32>
    %cst_31 = arith.constant dense<0.000000e+00> : vector<5xf32>
    %94 = vector.multi_reduction <add>, %93, %cst_31 [1] : vector<5x5xf32> to vector<5xf32>
    %95 = vector.shape_cast %94 : vector<5xf32> to vector<5x1xf32>
    %96 = tpu.reciprocal %95 {approx = true} : vector<5x1xf32> -> vector<5x1xf32>
    %97 = vector.broadcast %96 : vector<5x1xf32> to vector<5x5xf32>
    %98 = arith.mulf %93, %97 : vector<5x5xf32>
    %99 = arith.truncf %98 : vector<5x5xf32> to vector<5x5xbf16>
    %cst_32 = arith.constant dense<0.000000e+00> : vector<5x8xf32>
    %100 = tpu.matmul %99, %83, %cst_32 {dimension_numbers = #tpu.dot_dimension_numbers<[1], [0], [0], [1], [0, 0, 1, 1], [], []>} : vector<5x5xbf16>, vector<5x8xbf16>, vector<5x8xf32> -> vector<5x8xf32>
    %101 = vector.extract_strided_slice %29 {offsets = [0, 24], sizes = [5, 8], strides = [1, 1]} : vector<5x96xf32> to vector<5x8xf32>
    %102 = arith.truncf %101 : vector<5x8xf32> to vector<5x8xbf16>
    %103 = vector.extract_strided_slice %29 {offsets = [0, 56], sizes = [5, 8], strides = [1, 1]} : vector<5x96xf32> to vector<5x8xf32>
    %104 = arith.truncf %103 : vector<5x8xf32> to vector<5x8xbf16>
    %105 = vector.extract_strided_slice %29 {offsets = [0, 88], sizes = [5, 8], strides = [1, 1]} : vector<5x96xf32> to vector<5x8xf32>
    %106 = arith.truncf %105 : vector<5x8xf32> to vector<5x8xbf16>
    %cst_33 = arith.constant dense<0.000000e+00> : vector<5x5xf32>
    %107 = tpu.matmul %102, %104, %cst_33 {dimension_numbers = #tpu.dot_dimension_numbers<[1], [1], [0], [0], [0, 0, 1, 0], [], []>} : vector<5x8xbf16>, vector<5x8xbf16>, vector<5x5xf32> -> vector<5x5xf32>
    %cst_34 = arith.constant 0.353553385 : f32
    %108 = vector.broadcast %cst_34 : f32 to vector<5x5xf32>
    %109 = arith.mulf %107, %108 : vector<5x5xf32>
    %110 = vector.broadcast %31 : vector<1x5xf32> to vector<5x5xf32>
    %111 = arith.addf %109, %110 : vector<5x5xf32>
    %cst_35 = arith.constant dense<0xFF800000> : vector<5xf32>
    %112 = vector.multi_reduction <maximumf>, %111, %cst_35 [1] : vector<5x5xf32> to vector<5xf32>
    %113 = vector.shape_cast %112 : vector<5xf32> to vector<5x1xf32>
    %114 = vector.broadcast %113 : vector<5x1xf32> to vector<5x5xf32>
    %115 = arith.subf %111, %114 : vector<5x5xf32>
    %116 = math.exp %115 : vector<5x5xf32>
    %cst_36 = arith.constant dense<0.000000e+00> : vector<5xf32>
    %117 = vector.multi_reduction <add>, %116, %cst_36 [1] : vector<5x5xf32> to vector<5xf32>
    %118 = vector.shape_cast %117 : vector<5xf32> to vector<5x1xf32>
    %119 = tpu.reciprocal %118 {approx = true} : vector<5x1xf32> -> vector<5x1xf32>
    %120 = vector.broadcast %119 : vector<5x1xf32> to vector<5x5xf32>
    %121 = arith.mulf %116, %120 : vector<5x5xf32>
    %122 = arith.truncf %121 : vector<5x5xf32> to vector<5x5xbf16>
    %cst_37 = arith.constant dense<0.000000e+00> : vector<5x8xf32>
    %123 = tpu.matmul %122, %106, %cst_37 {dimension_numbers = #tpu.dot_dimension_numbers<[1], [0], [0], [1], [0, 0, 1, 1], [], []>} : vector<5x5xbf16>, vector<5x8xbf16>, vector<5x8xf32> -> vector<5x8xf32>
    %124 = tpu.concatenate %54, %77, %100, %123 in 1 : vector<5x8xf32>, vector<5x8xf32>, vector<5x8xf32>, vector<5x8xf32> -> vector<5x32xf32>
    %125 = arith.truncf %124 : vector<5x32xf32> to vector<5x32xbf16>
    %c0_38 = arith.constant 0 : index
    %c0_39 = arith.constant 0 : index
    %126 = vector.load %arg7[%c0_38, %c0_39] : memref<32x32xbf16, #tpu.memory_space<vmem>>, vector<32x32xbf16>
    %cst_40 = arith.constant dense<0.000000e+00> : vector<5x32xf32>
    %127 = tpu.matmul %125, %126, %cst_40 {dimension_numbers = #tpu.dot_dimension_numbers<[1], [0], [0], [1], [0, 0, 1, 1], [], []>} : vector<5x32xbf16>, vector<32x32xbf16>, vector<5x32xf32> -> vector<5x32xf32>
    %c0_41 = arith.constant 0 : index
    %c0_42 = arith.constant 0 : index
    %128 = vector.load %arg8[%c0_41, %c0_42] : memref<1x32xf32, #tpu.memory_space<vmem>>, vector<1x32xf32>
    %129 = vector.broadcast %128 : vector<1x32xf32> to vector<5x32xf32>
    %130 = arith.addf %127, %129 : vector<5x32xf32>
    %131 = arith.addf %130, %1 : vector<5x32xf32>
    %c0_43 = arith.constant 0 : index
    %c0_44 = arith.constant 0 : index
    %c0_45 = arith.constant 0 : index
    %132 = vector.load %arg9[%c0_43, %c0_44, %c0_45] : memref<1x5x32xf32, #tpu.memory_space<vmem>>, vector<1x5x32xf32>
    %133 = vector.shape_cast %132 : vector<1x5x32xf32> to vector<5x32xf32>
    %134 = vector.shape_cast %131 : vector<5x32xf32> to vector<1x5x32xf32>
    tpu.vector_store %arg9[%c0_43, %c0_44, %c0_45], %134 {strides = array<i32>} : memref<1x5x32xf32, #tpu.memory_space<vmem>>, vector<1x5x32xf32>,
    return
  }
  func.func @transform_0(%arg0: i32) -> (i32, i32, i32) {
    %c0_i32 = arith.constant 0 : i32
    %c0_i32_0 = arith.constant 0 : i32
    %c0_i32_1 = arith.constant 0 : i32
    return %arg0, %c0_i32, %c0_i32_0 : i32, i32, i32
  }
  func.func @transform_1(%arg0: i32) -> (i32, i32, i32) {
    %c0_i32 = arith.constant 0 : i32
    %c0_i32_0 = arith.constant 0 : i32
    %c0_i32_1 = arith.constant 0 : i32
    return %arg0, %c0_i32, %c0_i32_0 : i32, i32, i32
  }
  func.func @transform_2(%arg0: i32) -> (i32, i32) {
    %c0_i32 = arith.constant 0 : i32
    %c0_i32_0 = arith.constant 0 : i32
    %c0_i32_1 = arith.constant 0 : i32
    return %c0_i32, %c0_i32_0 : i32, i32
  }
  func.func @transform_3(%arg0: i32) -> (i32, i32) {
    %c0_i32 = arith.constant 0 : i32
    %c0_i32_0 = arith.constant 0 : i32
    %c0_i32_1 = arith.constant 0 : i32
    return %c0_i32, %c0_i32_0 : i32, i32
  }
  func.func @transform_4(%arg0: i32) -> (i32, i32) {
    %c0_i32 = arith.constant 0 : i32
    %c0_i32_0 = arith.constant 0 : i32
    %c0_i32_1 = arith.constant 0 : i32
    return %c0_i32, %c0_i32_0 : i32, i32
  }
  func.func @transform_5(%arg0: i32) -> (i32, i32) {
    %c0_i32 = arith.constant 0 : i32
    %c0_i32_0 = arith.constant 0 : i32
    %c0_i32_1 = arith.constant 0 : i32
    return %c0_i32, %c0_i32_0 : i32, i32
  }
  func.func @transform_6(%arg0: i32) -> (i32, i32) {
    %c0_i32 = arith.constant 0 : i32
    %c0_i32_0 = arith.constant 0 : i32
    %c0_i32_1 = arith.constant 0 : i32
    return %c0_i32, %c0_i32_0 : i32, i32
  }
  func.func @transform_7(%arg0: i32) -> (i32, i32) {
    %c0_i32 = arith.constant 0 : i32
    %c0_i32_0 = arith.constant 0 : i32
    %c0_i32_1 = arith.constant 0 : i32
    return %c0_i32, %c0_i32_0 : i32, i32
  }
  func.func @transform_8(%arg0: i32) -> (i32, i32, i32) {
    %c0_i32 = arith.constant 0 : i32
    %c0_i32_0 = arith.constant 0 : i32
    %c0_i32_1 = arith.constant 0 : i32
    return %arg0, %c0_i32, %c0_i32_0 : i32, i32, i32
  }
}

module attributes {stable_mosaic.version = 11 : i64} {
  func.func @_linear_kernel(%arg0: i32, %arg1: memref<40x32xf32, #tpu.memory_space<vmem>>, %arg2: memref<40x128xf32, #tpu.memory_space<vmem>>, %arg3: memref<128x32xbf16, #tpu.memory_space<vmem>>, %arg4: memref<1x32xf32, #tpu.memory_space<vmem>>, %arg5: memref<40x32xf32, #tpu.memory_space<vmem>>) attributes {dimension_semantics = [#tpu.dimension_semantics<parallel>], iteration_bounds = array<i64: 1>, scalar_prefetch = 0 : i64, scratch_operands = 0 : i64, tpu.core_type = #tpu.core_type<tc>, window_params = [{transform_indices = @transform_0, window_bounds = array<i64: 40, 32>}, {transform_indices = @transform_1, window_bounds = array<i64: 40, 128>}, {pipeline_mode = #tpu.pipeline_mode<synchronous>, transform_indices = @transform_2, window_bounds = array<i64: 128, 32>}, {pipeline_mode = #tpu.pipeline_mode<synchronous>, transform_indices = @transform_3, window_bounds = array<i64: 1, 32>}, {transform_indices = @transform_4, window_bounds = array<i64: 40, 32>}]} {
    %c0 = arith.constant 0 : index
    %c0_0 = arith.constant 0 : index
    %0 = vector.load %arg2[%c0, %c0_0] : memref<40x128xf32, #tpu.memory_space<vmem>>, vector<40x128xf32>
    %1 = arith.truncf %0 : vector<40x128xf32> to vector<40x128xbf16>
    %c0_1 = arith.constant 0 : index
    %c0_2 = arith.constant 0 : index
    %2 = vector.load %arg3[%c0_1, %c0_2] : memref<128x32xbf16, #tpu.memory_space<vmem>>, vector<128x32xbf16>
    %cst = arith.constant dense<0.000000e+00> : vector<40x32xf32>
    %3 = tpu.matmul %1, %2, %cst {dimension_numbers = #tpu.dot_dimension_numbers<[1], [0], [0], [1], [0, 0, 1, 1], [], []>} : vector<40x128xbf16>, vector<128x32xbf16>, vector<40x32xf32> -> vector<40x32xf32>
    %c0_3 = arith.constant 0 : index
    %c0_4 = arith.constant 0 : index
    %4 = vector.load %arg4[%c0_3, %c0_4] : memref<1x32xf32, #tpu.memory_space<vmem>>, vector<1x32xf32>
    %5 = vector.broadcast %4 : vector<1x32xf32> to vector<40x32xf32>
    %6 = arith.addf %3, %5 : vector<40x32xf32>
    %c0_5 = arith.constant 0 : index
    %c0_6 = arith.constant 0 : index
    %7 = vector.load %arg1[%c0_5, %c0_6] : memref<40x32xf32, #tpu.memory_space<vmem>>, vector<40x32xf32>
    %8 = arith.addf %6, %7 : vector<40x32xf32>
    %c0_7 = arith.constant 0 : index
    %c0_8 = arith.constant 0 : index
    %9 = vector.load %arg5[%c0_7, %c0_8] : memref<40x32xf32, #tpu.memory_space<vmem>>, vector<40x32xf32>
    tpu.vector_store %arg5[%c0_7, %c0_8], %8 {strides = array<i32>} : memref<40x32xf32, #tpu.memory_space<vmem>>, vector<40x32xf32>,
    return
  }
  func.func @transform_0(%arg0: i32) -> (i32, i32) {
    %c0_i32 = arith.constant 0 : i32
    %c0_i32_0 = arith.constant 0 : i32
    return %arg0, %c0_i32 : i32, i32
  }
  func.func @transform_1(%arg0: i32) -> (i32, i32) {
    %c0_i32 = arith.constant 0 : i32
    %c0_i32_0 = arith.constant 0 : i32
    return %arg0, %c0_i32 : i32, i32
  }
  func.func @transform_2(%arg0: i32) -> (i32, i32) {
    %c0_i32 = arith.constant 0 : i32
    %c0_i32_0 = arith.constant 0 : i32
    %c0_i32_1 = arith.constant 0 : i32
    return %c0_i32, %c0_i32_0 : i32, i32
  }
  func.func @transform_3(%arg0: i32) -> (i32, i32) {
    %c0_i32 = arith.constant 0 : i32
    %c0_i32_0 = arith.constant 0 : i32
    %c0_i32_1 = arith.constant 0 : i32
    return %c0_i32, %c0_i32_0 : i32, i32
  }
  func.func @transform_4(%arg0: i32) -> (i32, i32) {
    %c0_i32 = arith.constant 0 : i32
    %c0_i32_0 = arith.constant 0 : i32
    return %arg0, %c0_i32 : i32, i32
  }
}

module attributes {stable_mosaic.version = 11 : i64} {
  func.func @_ln_only_kernel(%arg0: i32, %arg1: memref<16x32xf32, #tpu.memory_space<vmem>>, %arg2: memref<1x32xf32, #tpu.memory_space<vmem>>, %arg3: memref<1x32xf32, #tpu.memory_space<vmem>>, %arg4: memref<16x32xf32, #tpu.memory_space<vmem>>) attributes {dimension_semantics = [#tpu.dimension_semantics<parallel>], iteration_bounds = array<i64: 1>, scalar_prefetch = 0 : i64, scratch_operands = 0 : i64, tpu.core_type = #tpu.core_type<tc>, window_params = [{transform_indices = @transform_0, window_bounds = array<i64: 16, 32>}, {pipeline_mode = #tpu.pipeline_mode<synchronous>, transform_indices = @transform_1, window_bounds = array<i64: 1, 32>}, {pipeline_mode = #tpu.pipeline_mode<synchronous>, transform_indices = @transform_2, window_bounds = array<i64: 1, 32>}, {transform_indices = @transform_3, window_bounds = array<i64: 16, 32>}]} {
    %c0 = arith.constant 0 : index
    %c0_0 = arith.constant 0 : index
    %0 = vector.load %arg1[%c0, %c0_0] : memref<16x32xf32, #tpu.memory_space<vmem>>, vector<16x32xf32>
    %cst = arith.constant dense<0.000000e+00> : vector<16xf32>
    %1 = vector.multi_reduction <add>, %0, %cst [1] : vector<16x32xf32> to vector<16xf32>
    %2 = vector.shape_cast %1 : vector<16xf32> to vector<16x1xf32>
    %cst_1 = arith.constant 3.200000e+01 : f32
    %3 = vector.broadcast %cst_1 : f32 to vector<16x1xf32>
    %4 = arith.divf %2, %3 : vector<16x1xf32>
    %5 = vector.broadcast %4 : vector<16x1xf32> to vector<16x32xf32>
    %6 = arith.subf %0, %5 : vector<16x32xf32>
    %7 = arith.mulf %6, %6 : vector<16x32xf32>
    %cst_2 = arith.constant dense<0.000000e+00> : vector<16xf32>
    %8 = vector.multi_reduction <add>, %7, %cst_2 [1] : vector<16x32xf32> to vector<16xf32>
    %9 = vector.shape_cast %8 : vector<16xf32> to vector<16x1xf32>
    %cst_3 = arith.constant 3.200000e+01 : f32
    %10 = vector.broadcast %cst_3 : f32 to vector<16x1xf32>
    %11 = arith.divf %9, %10 : vector<16x1xf32>
    %cst_4 = arith.constant 9.99999974E-6 : f32
    %12 = vector.broadcast %cst_4 : f32 to vector<16x1xf32>
    %13 = arith.addf %11, %12 : vector<16x1xf32>
    %14 = math.rsqrt %13 : vector<16x1xf32>
    %15 = vector.broadcast %14 : vector<16x1xf32> to vector<16x32xf32>
    %16 = arith.mulf %6, %15 : vector<16x32xf32>
    %c0_5 = arith.constant 0 : index
    %c0_6 = arith.constant 0 : index
    %17 = vector.load %arg2[%c0_5, %c0_6] : memref<1x32xf32, #tpu.memory_space<vmem>>, vector<1x32xf32>
    %18 = vector.broadcast %17 : vector<1x32xf32> to vector<16x32xf32>
    %19 = arith.mulf %16, %18 : vector<16x32xf32>
    %c0_7 = arith.constant 0 : index
    %c0_8 = arith.constant 0 : index
    %20 = vector.load %arg3[%c0_7, %c0_8] : memref<1x32xf32, #tpu.memory_space<vmem>>, vector<1x32xf32>
    %21 = vector.broadcast %20 : vector<1x32xf32> to vector<16x32xf32>
    %22 = arith.addf %19, %21 : vector<16x32xf32>
    %c0_9 = arith.constant 0 : index
    %c0_10 = arith.constant 0 : index
    %23 = vector.load %arg4[%c0_9, %c0_10] : memref<16x32xf32, #tpu.memory_space<vmem>>, vector<16x32xf32>
    tpu.vector_store %arg4[%c0_9, %c0_10], %22 {strides = array<i32>} : memref<16x32xf32, #tpu.memory_space<vmem>>, vector<16x32xf32>,
    return
  }
  func.func @transform_0(%arg0: i32) -> (i32, i32) {
    %c0_i32 = arith.constant 0 : i32
    %c0_i32_0 = arith.constant 0 : i32
    return %arg0, %c0_i32 : i32, i32
  }
  func.func @transform_1(%arg0: i32) -> (i32, i32) {
    %c0_i32 = arith.constant 0 : i32
    %c0_i32_0 = arith.constant 0 : i32
    %c0_i32_1 = arith.constant 0 : i32
    return %c0_i32, %c0_i32_0 : i32, i32
  }
  func.func @transform_2(%arg0: i32) -> (i32, i32) {
    %c0_i32 = arith.constant 0 : i32
    %c0_i32_0 = arith.constant 0 : i32
    %c0_i32_1 = arith.constant 0 : i32
    return %c0_i32, %c0_i32_0 : i32, i32
  }
  func.func @transform_3(%arg0: i32) -> (i32, i32) {
    %c0_i32 = arith.constant 0 : i32
    %c0_i32_0 = arith.constant 0 : i32
    return %arg0, %c0_i32 : i32, i32
  }
}

module attributes {stable_mosaic.version = 11 : i64} {
  func.func @_linear_kernel(%arg0: i32, %arg1: memref<16x2xf32, #tpu.memory_space<vmem>>, %arg2: memref<2x32xbf16, #tpu.memory_space<vmem>>, %arg3: memref<1x32xf32, #tpu.memory_space<vmem>>, %arg4: memref<16x32xf32, #tpu.memory_space<vmem>>) attributes {dimension_semantics = [#tpu.dimension_semantics<parallel>], iteration_bounds = array<i64: 1>, scalar_prefetch = 0 : i64, scratch_operands = 0 : i64, tpu.core_type = #tpu.core_type<tc>, window_params = [{transform_indices = @transform_0, window_bounds = array<i64: 16, 2>}, {pipeline_mode = #tpu.pipeline_mode<synchronous>, transform_indices = @transform_1, window_bounds = array<i64: 2, 32>}, {pipeline_mode = #tpu.pipeline_mode<synchronous>, transform_indices = @transform_2, window_bounds = array<i64: 1, 32>}, {transform_indices = @transform_3, window_bounds = array<i64: 16, 32>}]} {
    %c0 = arith.constant 0 : index
    %c0_0 = arith.constant 0 : index
    %0 = vector.load %arg1[%c0, %c0_0] : memref<16x2xf32, #tpu.memory_space<vmem>>, vector<16x2xf32>
    %1 = arith.truncf %0 : vector<16x2xf32> to vector<16x2xbf16>
    %c0_1 = arith.constant 0 : index
    %c0_2 = arith.constant 0 : index
    %2 = vector.load %arg2[%c0_1, %c0_2] : memref<2x32xbf16, #tpu.memory_space<vmem>>, vector<2x32xbf16>
    %cst = arith.constant dense<0.000000e+00> : vector<16x32xf32>
    %3 = tpu.matmul %1, %2, %cst {dimension_numbers = #tpu.dot_dimension_numbers<[1], [0], [0], [1], [0, 0, 1, 1], [], []>} : vector<16x2xbf16>, vector<2x32xbf16>, vector<16x32xf32> -> vector<16x32xf32>
    %c0_3 = arith.constant 0 : index
    %c0_4 = arith.constant 0 : index
    %4 = vector.load %arg3[%c0_3, %c0_4] : memref<1x32xf32, #tpu.memory_space<vmem>>, vector<1x32xf32>
    %5 = vector.broadcast %4 : vector<1x32xf32> to vector<16x32xf32>
    %6 = arith.addf %3, %5 : vector<16x32xf32>
    %c0_5 = arith.constant 0 : index
    %c0_6 = arith.constant 0 : index
    %7 = vector.load %arg4[%c0_5, %c0_6] : memref<16x32xf32, #tpu.memory_space<vmem>>, vector<16x32xf32>
    tpu.vector_store %arg4[%c0_5, %c0_6], %6 {strides = array<i32>} : memref<16x32xf32, #tpu.memory_space<vmem>>, vector<16x32xf32>,
    return
  }
  func.func @transform_0(%arg0: i32) -> (i32, i32) {
    %c0_i32 = arith.constant 0 : i32
    %c0_i32_0 = arith.constant 0 : i32
    return %arg0, %c0_i32 : i32, i32
  }
  func.func @transform_1(%arg0: i32) -> (i32, i32) {
    %c0_i32 = arith.constant 0 : i32
    %c0_i32_0 = arith.constant 0 : i32
    %c0_i32_1 = arith.constant 0 : i32
    return %c0_i32, %c0_i32_0 : i32, i32
  }
  func.func @transform_2(%arg0: i32) -> (i32, i32) {
    %c0_i32 = arith.constant 0 : i32
    %c0_i32_0 = arith.constant 0 : i32
    %c0_i32_1 = arith.constant 0 : i32
    return %c0_i32, %c0_i32_0 : i32, i32
  }
  func.func @transform_3(%arg0: i32) -> (i32, i32) {
    %c0_i32 = arith.constant 0 : i32
    %c0_i32_0 = arith.constant 0 : i32
    return %arg0, %c0_i32 : i32, i32
  }
}

module attributes {stable_mosaic.version = 11 : i64} {
  func.func @_self_attn_kernel(%arg0: i32, %arg1: memref<1x4x32xf32, #tpu.memory_space<vmem>>, %arg2: memref<1x32xf32, #tpu.memory_space<vmem>>, %arg3: memref<1x32xf32, #tpu.memory_space<vmem>>, %arg4: memref<32x96xbf16, #tpu.memory_space<vmem>>, %arg5: memref<1x96xf32, #tpu.memory_space<vmem>>, %arg6: memref<32x32xbf16, #tpu.memory_space<vmem>>, %arg7: memref<1x32xf32, #tpu.memory_space<vmem>>, %arg8: memref<1x4x32xf32, #tpu.memory_space<vmem>>) attributes {dimension_semantics = [#tpu.dimension_semantics<parallel>], iteration_bounds = array<i64: 4>, scalar_prefetch = 0 : i64, scratch_operands = 0 : i64, tpu.core_type = #tpu.core_type<tc>, window_params = [{transform_indices = @transform_0, window_bounds = array<i64: 1, 4, 32>}, {pipeline_mode = #tpu.pipeline_mode<synchronous>, transform_indices = @transform_1, window_bounds = array<i64: 1, 32>}, {pipeline_mode = #tpu.pipeline_mode<synchronous>, transform_indices = @transform_2, window_bounds = array<i64: 1, 32>}, {pipeline_mode = #tpu.pipeline_mode<synchronous>, transform_indices = @transform_3, window_bounds = array<i64: 32, 96>}, {pipeline_mode = #tpu.pipeline_mode<synchronous>, transform_indices = @transform_4, window_bounds = array<i64: 1, 96>}, {pipeline_mode = #tpu.pipeline_mode<synchronous>, transform_indices = @transform_5, window_bounds = array<i64: 32, 32>}, {pipeline_mode = #tpu.pipeline_mode<synchronous>, transform_indices = @transform_6, window_bounds = array<i64: 1, 32>}, {transform_indices = @transform_7, window_bounds = array<i64: 1, 4, 32>}]} {
    %c0 = arith.constant 0 : index
    %c0_0 = arith.constant 0 : index
    %c0_1 = arith.constant 0 : index
    %0 = vector.load %arg1[%c0, %c0_0, %c0_1] : memref<1x4x32xf32, #tpu.memory_space<vmem>>, vector<1x4x32xf32>
    %1 = vector.shape_cast %0 : vector<1x4x32xf32> to vector<4x32xf32>
    %cst = arith.constant dense<0.000000e+00> : vector<4xf32>
    %2 = vector.multi_reduction <add>, %1, %cst [1] : vector<4x32xf32> to vector<4xf32>
    %3 = vector.shape_cast %2 : vector<4xf32> to vector<4x1xf32>
    %cst_2 = arith.constant 3.200000e+01 : f32
    %4 = vector.broadcast %cst_2 : f32 to vector<4x1xf32>
    %5 = arith.divf %3, %4 : vector<4x1xf32>
    %6 = vector.broadcast %5 : vector<4x1xf32> to vector<4x32xf32>
    %7 = arith.subf %1, %6 : vector<4x32xf32>
    %8 = arith.mulf %7, %7 : vector<4x32xf32>
    %cst_3 = arith.constant dense<0.000000e+00> : vector<4xf32>
    %9 = vector.multi_reduction <add>, %8, %cst_3 [1] : vector<4x32xf32> to vector<4xf32>
    %10 = vector.shape_cast %9 : vector<4xf32> to vector<4x1xf32>
    %cst_4 = arith.constant 3.200000e+01 : f32
    %11 = vector.broadcast %cst_4 : f32 to vector<4x1xf32>
    %12 = arith.divf %10, %11 : vector<4x1xf32>
    %cst_5 = arith.constant 9.99999974E-6 : f32
    %13 = vector.broadcast %cst_5 : f32 to vector<4x1xf32>
    %14 = arith.addf %12, %13 : vector<4x1xf32>
    %15 = math.rsqrt %14 : vector<4x1xf32>
    %16 = vector.broadcast %15 : vector<4x1xf32> to vector<4x32xf32>
    %17 = arith.mulf %7, %16 : vector<4x32xf32>
    %c0_6 = arith.constant 0 : index
    %c0_7 = arith.constant 0 : index
    %18 = vector.load %arg2[%c0_6, %c0_7] : memref<1x32xf32, #tpu.memory_space<vmem>>, vector<1x32xf32>
    %19 = vector.broadcast %18 : vector<1x32xf32> to vector<4x32xf32>
    %20 = arith.mulf %17, %19 : vector<4x32xf32>
    %c0_8 = arith.constant 0 : index
    %c0_9 = arith.constant 0 : index
    %21 = vector.load %arg3[%c0_8, %c0_9] : memref<1x32xf32, #tpu.memory_space<vmem>>, vector<1x32xf32>
    %22 = vector.broadcast %21 : vector<1x32xf32> to vector<4x32xf32>
    %23 = arith.addf %20, %22 : vector<4x32xf32>
    %24 = arith.truncf %23 : vector<4x32xf32> to vector<4x32xbf16>
    %c0_10 = arith.constant 0 : index
    %c0_11 = arith.constant 0 : index
    %25 = vector.load %arg4[%c0_10, %c0_11] : memref<32x96xbf16, #tpu.memory_space<vmem>>, vector<32x96xbf16>
    %cst_12 = arith.constant dense<0.000000e+00> : vector<4x96xf32>
    %26 = tpu.matmul %24, %25, %cst_12 {dimension_numbers = #tpu.dot_dimension_numbers<[1], [0], [0], [1], [0, 0, 1, 1], [], []>} : vector<4x32xbf16>, vector<32x96xbf16>, vector<4x96xf32> -> vector<4x96xf32>
    %c0_13 = arith.constant 0 : index
    %c0_14 = arith.constant 0 : index
    %27 = vector.load %arg5[%c0_13, %c0_14] : memref<1x96xf32, #tpu.memory_space<vmem>>, vector<1x96xf32>
    %28 = vector.broadcast %27 : vector<1x96xf32> to vector<4x96xf32>
    %29 = arith.addf %26, %28 : vector<4x96xf32>
    %30 = tpu.iota {dimensions = array<i32: 0>} : vector<4x4xi32>
    %31 = tpu.iota {dimensions = array<i32: 1>} : vector<4x4xi32>
    %32 = arith.cmpi sle, %31, %30 : vector<4x4xi32>
    %33 = vector.extract_strided_slice %29 {offsets = [0, 0], sizes = [4, 8], strides = [1, 1]} : vector<4x96xf32> to vector<4x8xf32>
    %34 = arith.truncf %33 : vector<4x8xf32> to vector<4x8xbf16>
    %35 = vector.extract_strided_slice %29 {offsets = [0, 32], sizes = [4, 8], strides = [1, 1]} : vector<4x96xf32> to vector<4x8xf32>
    %36 = arith.truncf %35 : vector<4x8xf32> to vector<4x8xbf16>
    %37 = vector.extract_strided_slice %29 {offsets = [0, 64], sizes = [4, 8], strides = [1, 1]} : vector<4x96xf32> to vector<4x8xf32>
    %38 = arith.truncf %37 : vector<4x8xf32> to vector<4x8xbf16>
    %cst_15 = arith.constant dense<0.000000e+00> : vector<4x4xf32>
    %39 = tpu.matmul %34, %36, %cst_15 {dimension_numbers = #tpu.dot_dimension_numbers<[1], [1], [0], [0], [0, 0, 1, 0], [], []>} : vector<4x8xbf16>, vector<4x8xbf16>, vector<4x4xf32> -> vector<4x4xf32>
    %cst_16 = arith.constant 0.353553385 : f32
    %40 = vector.broadcast %cst_16 : f32 to vector<4x4xf32>
    %41 = arith.mulf %39, %40 : vector<4x4xf32>
    %cst_17 = arith.constant -1.000000e+09 : f32
    %42 = vector.broadcast %cst_17 : f32 to vector<4x4xf32>
    %43 = arith.select %32, %41, %42 : vector<4x4xi1>, vector<4x4xf32>
    %cst_18 = arith.constant dense<0xFF800000> : vector<4xf32>
    %44 = vector.multi_reduction <maximumf>, %43, %cst_18 [1] : vector<4x4xf32> to vector<4xf32>
    %45 = vector.shape_cast %44 : vector<4xf32> to vector<4x1xf32>
    %46 = vector.broadcast %45 : vector<4x1xf32> to vector<4x4xf32>
    %47 = arith.subf %43, %46 : vector<4x4xf32>
    %48 = math.exp %47 : vector<4x4xf32>
    %cst_19 = arith.constant dense<0.000000e+00> : vector<4xf32>
    %49 = vector.multi_reduction <add>, %48, %cst_19 [1] : vector<4x4xf32> to vector<4xf32>
    %50 = vector.shape_cast %49 : vector<4xf32> to vector<4x1xf32>
    %51 = tpu.reciprocal %50 {approx = true} : vector<4x1xf32> -> vector<4x1xf32>
    %52 = vector.broadcast %51 : vector<4x1xf32> to vector<4x4xf32>
    %53 = arith.mulf %48, %52 : vector<4x4xf32>
    %54 = arith.truncf %53 : vector<4x4xf32> to vector<4x4xbf16>
    %cst_20 = arith.constant dense<0.000000e+00> : vector<4x8xf32>
    %55 = tpu.matmul %54, %38, %cst_20 {dimension_numbers = #tpu.dot_dimension_numbers<[1], [0], [0], [1], [0, 0, 1, 1], [], []>} : vector<4x4xbf16>, vector<4x8xbf16>, vector<4x8xf32> -> vector<4x8xf32>
    %56 = vector.extract_strided_slice %29 {offsets = [0, 8], sizes = [4, 8], strides = [1, 1]} : vector<4x96xf32> to vector<4x8xf32>
    %57 = arith.truncf %56 : vector<4x8xf32> to vector<4x8xbf16>
    %58 = vector.extract_strided_slice %29 {offsets = [0, 40], sizes = [4, 8], strides = [1, 1]} : vector<4x96xf32> to vector<4x8xf32>
    %59 = arith.truncf %58 : vector<4x8xf32> to vector<4x8xbf16>
    %60 = vector.extract_strided_slice %29 {offsets = [0, 72], sizes = [4, 8], strides = [1, 1]} : vector<4x96xf32> to vector<4x8xf32>
    %61 = arith.truncf %60 : vector<4x8xf32> to vector<4x8xbf16>
    %cst_21 = arith.constant dense<0.000000e+00> : vector<4x4xf32>
    %62 = tpu.matmul %57, %59, %cst_21 {dimension_numbers = #tpu.dot_dimension_numbers<[1], [1], [0], [0], [0, 0, 1, 0], [], []>} : vector<4x8xbf16>, vector<4x8xbf16>, vector<4x4xf32> -> vector<4x4xf32>
    %cst_22 = arith.constant 0.353553385 : f32
    %63 = vector.broadcast %cst_22 : f32 to vector<4x4xf32>
    %64 = arith.mulf %62, %63 : vector<4x4xf32>
    %cst_23 = arith.constant -1.000000e+09 : f32
    %65 = vector.broadcast %cst_23 : f32 to vector<4x4xf32>
    %66 = arith.select %32, %64, %65 : vector<4x4xi1>, vector<4x4xf32>
    %cst_24 = arith.constant dense<0xFF800000> : vector<4xf32>
    %67 = vector.multi_reduction <maximumf>, %66, %cst_24 [1] : vector<4x4xf32> to vector<4xf32>
    %68 = vector.shape_cast %67 : vector<4xf32> to vector<4x1xf32>
    %69 = vector.broadcast %68 : vector<4x1xf32> to vector<4x4xf32>
    %70 = arith.subf %66, %69 : vector<4x4xf32>
    %71 = math.exp %70 : vector<4x4xf32>
    %cst_25 = arith.constant dense<0.000000e+00> : vector<4xf32>
    %72 = vector.multi_reduction <add>, %71, %cst_25 [1] : vector<4x4xf32> to vector<4xf32>
    %73 = vector.shape_cast %72 : vector<4xf32> to vector<4x1xf32>
    %74 = tpu.reciprocal %73 {approx = true} : vector<4x1xf32> -> vector<4x1xf32>
    %75 = vector.broadcast %74 : vector<4x1xf32> to vector<4x4xf32>
    %76 = arith.mulf %71, %75 : vector<4x4xf32>
    %77 = arith.truncf %76 : vector<4x4xf32> to vector<4x4xbf16>
    %cst_26 = arith.constant dense<0.000000e+00> : vector<4x8xf32>
    %78 = tpu.matmul %77, %61, %cst_26 {dimension_numbers = #tpu.dot_dimension_numbers<[1], [0], [0], [1], [0, 0, 1, 1], [], []>} : vector<4x4xbf16>, vector<4x8xbf16>, vector<4x8xf32> -> vector<4x8xf32>
    %79 = vector.extract_strided_slice %29 {offsets = [0, 16], sizes = [4, 8], strides = [1, 1]} : vector<4x96xf32> to vector<4x8xf32>
    %80 = arith.truncf %79 : vector<4x8xf32> to vector<4x8xbf16>
    %81 = vector.extract_strided_slice %29 {offsets = [0, 48], sizes = [4, 8], strides = [1, 1]} : vector<4x96xf32> to vector<4x8xf32>
    %82 = arith.truncf %81 : vector<4x8xf32> to vector<4x8xbf16>
    %83 = vector.extract_strided_slice %29 {offsets = [0, 80], sizes = [4, 8], strides = [1, 1]} : vector<4x96xf32> to vector<4x8xf32>
    %84 = arith.truncf %83 : vector<4x8xf32> to vector<4x8xbf16>
    %cst_27 = arith.constant dense<0.000000e+00> : vector<4x4xf32>
    %85 = tpu.matmul %80, %82, %cst_27 {dimension_numbers = #tpu.dot_dimension_numbers<[1], [1], [0], [0], [0, 0, 1, 0], [], []>} : vector<4x8xbf16>, vector<4x8xbf16>, vector<4x4xf32> -> vector<4x4xf32>
    %cst_28 = arith.constant 0.353553385 : f32
    %86 = vector.broadcast %cst_28 : f32 to vector<4x4xf32>
    %87 = arith.mulf %85, %86 : vector<4x4xf32>
    %cst_29 = arith.constant -1.000000e+09 : f32
    %88 = vector.broadcast %cst_29 : f32 to vector<4x4xf32>
    %89 = arith.select %32, %87, %88 : vector<4x4xi1>, vector<4x4xf32>
    %cst_30 = arith.constant dense<0xFF800000> : vector<4xf32>
    %90 = vector.multi_reduction <maximumf>, %89, %cst_30 [1] : vector<4x4xf32> to vector<4xf32>
    %91 = vector.shape_cast %90 : vector<4xf32> to vector<4x1xf32>
    %92 = vector.broadcast %91 : vector<4x1xf32> to vector<4x4xf32>
    %93 = arith.subf %89, %92 : vector<4x4xf32>
    %94 = math.exp %93 : vector<4x4xf32>
    %cst_31 = arith.constant dense<0.000000e+00> : vector<4xf32>
    %95 = vector.multi_reduction <add>, %94, %cst_31 [1] : vector<4x4xf32> to vector<4xf32>
    %96 = vector.shape_cast %95 : vector<4xf32> to vector<4x1xf32>
    %97 = tpu.reciprocal %96 {approx = true} : vector<4x1xf32> -> vector<4x1xf32>
    %98 = vector.broadcast %97 : vector<4x1xf32> to vector<4x4xf32>
    %99 = arith.mulf %94, %98 : vector<4x4xf32>
    %100 = arith.truncf %99 : vector<4x4xf32> to vector<4x4xbf16>
    %cst_32 = arith.constant dense<0.000000e+00> : vector<4x8xf32>
    %101 = tpu.matmul %100, %84, %cst_32 {dimension_numbers = #tpu.dot_dimension_numbers<[1], [0], [0], [1], [0, 0, 1, 1], [], []>} : vector<4x4xbf16>, vector<4x8xbf16>, vector<4x8xf32> -> vector<4x8xf32>
    %102 = vector.extract_strided_slice %29 {offsets = [0, 24], sizes = [4, 8], strides = [1, 1]} : vector<4x96xf32> to vector<4x8xf32>
    %103 = arith.truncf %102 : vector<4x8xf32> to vector<4x8xbf16>
    %104 = vector.extract_strided_slice %29 {offsets = [0, 56], sizes = [4, 8], strides = [1, 1]} : vector<4x96xf32> to vector<4x8xf32>
    %105 = arith.truncf %104 : vector<4x8xf32> to vector<4x8xbf16>
    %106 = vector.extract_strided_slice %29 {offsets = [0, 88], sizes = [4, 8], strides = [1, 1]} : vector<4x96xf32> to vector<4x8xf32>
    %107 = arith.truncf %106 : vector<4x8xf32> to vector<4x8xbf16>
    %cst_33 = arith.constant dense<0.000000e+00> : vector<4x4xf32>
    %108 = tpu.matmul %103, %105, %cst_33 {dimension_numbers = #tpu.dot_dimension_numbers<[1], [1], [0], [0], [0, 0, 1, 0], [], []>} : vector<4x8xbf16>, vector<4x8xbf16>, vector<4x4xf32> -> vector<4x4xf32>
    %cst_34 = arith.constant 0.353553385 : f32
    %109 = vector.broadcast %cst_34 : f32 to vector<4x4xf32>
    %110 = arith.mulf %108, %109 : vector<4x4xf32>
    %cst_35 = arith.constant -1.000000e+09 : f32
    %111 = vector.broadcast %cst_35 : f32 to vector<4x4xf32>
    %112 = arith.select %32, %110, %111 : vector<4x4xi1>, vector<4x4xf32>
    %cst_36 = arith.constant dense<0xFF800000> : vector<4xf32>
    %113 = vector.multi_reduction <maximumf>, %112, %cst_36 [1] : vector<4x4xf32> to vector<4xf32>
    %114 = vector.shape_cast %113 : vector<4xf32> to vector<4x1xf32>
    %115 = vector.broadcast %114 : vector<4x1xf32> to vector<4x4xf32>
    %116 = arith.subf %112, %115 : vector<4x4xf32>
    %117 = math.exp %116 : vector<4x4xf32>
    %cst_37 = arith.constant dense<0.000000e+00> : vector<4xf32>
    %118 = vector.multi_reduction <add>, %117, %cst_37 [1] : vector<4x4xf32> to vector<4xf32>
    %119 = vector.shape_cast %118 : vector<4xf32> to vector<4x1xf32>
    %120 = tpu.reciprocal %119 {approx = true} : vector<4x1xf32> -> vector<4x1xf32>
    %121 = vector.broadcast %120 : vector<4x1xf32> to vector<4x4xf32>
    %122 = arith.mulf %117, %121 : vector<4x4xf32>
    %123 = arith.truncf %122 : vector<4x4xf32> to vector<4x4xbf16>
    %cst_38 = arith.constant dense<0.000000e+00> : vector<4x8xf32>
    %124 = tpu.matmul %123, %107, %cst_38 {dimension_numbers = #tpu.dot_dimension_numbers<[1], [0], [0], [1], [0, 0, 1, 1], [], []>} : vector<4x4xbf16>, vector<4x8xbf16>, vector<4x8xf32> -> vector<4x8xf32>
    %125 = tpu.concatenate %55, %78, %101, %124 in 1 : vector<4x8xf32>, vector<4x8xf32>, vector<4x8xf32>, vector<4x8xf32> -> vector<4x32xf32>
    %126 = arith.truncf %125 : vector<4x32xf32> to vector<4x32xbf16>
    %c0_39 = arith.constant 0 : index
    %c0_40 = arith.constant 0 : index
    %127 = vector.load %arg6[%c0_39, %c0_40] : memref<32x32xbf16, #tpu.memory_space<vmem>>, vector<32x32xbf16>
    %cst_41 = arith.constant dense<0.000000e+00> : vector<4x32xf32>
    %128 = tpu.matmul %126, %127, %cst_41 {dimension_numbers = #tpu.dot_dimension_numbers<[1], [0], [0], [1], [0, 0, 1, 1], [], []>} : vector<4x32xbf16>, vector<32x32xbf16>, vector<4x32xf32> -> vector<4x32xf32>
    %c0_42 = arith.constant 0 : index
    %c0_43 = arith.constant 0 : index
    %129 = vector.load %arg7[%c0_42, %c0_43] : memref<1x32xf32, #tpu.memory_space<vmem>>, vector<1x32xf32>
    %130 = vector.broadcast %129 : vector<1x32xf32> to vector<4x32xf32>
    %131 = arith.addf %128, %130 : vector<4x32xf32>
    %132 = arith.addf %131, %1 : vector<4x32xf32>
    %c0_44 = arith.constant 0 : index
    %c0_45 = arith.constant 0 : index
    %c0_46 = arith.constant 0 : index
    %133 = vector.load %arg8[%c0_44, %c0_45, %c0_46] : memref<1x4x32xf32, #tpu.memory_space<vmem>>, vector<1x4x32xf32>
    %134 = vector.shape_cast %133 : vector<1x4x32xf32> to vector<4x32xf32>
    %135 = vector.shape_cast %132 : vector<4x32xf32> to vector<1x4x32xf32>
    tpu.vector_store %arg8[%c0_44, %c0_45, %c0_46], %135 {strides = array<i32>} : memref<1x4x32xf32, #tpu.memory_space<vmem>>, vector<1x4x32xf32>,
    return
  }
  func.func @transform_0(%arg0: i32) -> (i32, i32, i32) {
    %c0_i32 = arith.constant 0 : i32
    %c0_i32_0 = arith.constant 0 : i32
    %c0_i32_1 = arith.constant 0 : i32
    return %arg0, %c0_i32, %c0_i32_0 : i32, i32, i32
  }
  func.func @transform_1(%arg0: i32) -> (i32, i32) {
    %c0_i32 = arith.constant 0 : i32
    %c0_i32_0 = arith.constant 0 : i32
    %c0_i32_1 = arith.constant 0 : i32
    return %c0_i32, %c0_i32_0 : i32, i32
  }
  func.func @transform_2(%arg0: i32) -> (i32, i32) {
    %c0_i32 = arith.constant 0 : i32
    %c0_i32_0 = arith.constant 0 : i32
    %c0_i32_1 = arith.constant 0 : i32
    return %c0_i32, %c0_i32_0 : i32, i32
  }
  func.func @transform_3(%arg0: i32) -> (i32, i32) {
    %c0_i32 = arith.constant 0 : i32
    %c0_i32_0 = arith.constant 0 : i32
    %c0_i32_1 = arith.constant 0 : i32
    return %c0_i32, %c0_i32_0 : i32, i32
  }
  func.func @transform_4(%arg0: i32) -> (i32, i32) {
    %c0_i32 = arith.constant 0 : i32
    %c0_i32_0 = arith.constant 0 : i32
    %c0_i32_1 = arith.constant 0 : i32
    return %c0_i32, %c0_i32_0 : i32, i32
  }
  func.func @transform_5(%arg0: i32) -> (i32, i32) {
    %c0_i32 = arith.constant 0 : i32
    %c0_i32_0 = arith.constant 0 : i32
    %c0_i32_1 = arith.constant 0 : i32
    return %c0_i32, %c0_i32_0 : i32, i32
  }
  func.func @transform_6(%arg0: i32) -> (i32, i32) {
    %c0_i32 = arith.constant 0 : i32
    %c0_i32_0 = arith.constant 0 : i32
    %c0_i32_1 = arith.constant 0 : i32
    return %c0_i32, %c0_i32_0 : i32, i32
  }
  func.func @transform_7(%arg0: i32) -> (i32, i32, i32) {
    %c0_i32 = arith.constant 0 : i32
    %c0_i32_0 = arith.constant 0 : i32
    %c0_i32_1 = arith.constant 0 : i32
    return %arg0, %c0_i32, %c0_i32_0 : i32, i32, i32
  }
}

module attributes {stable_mosaic.version = 11 : i64} {
  func.func @_cross_attn_kernel(%arg0: i32, %arg1: memref<1x4x32xf32, #tpu.memory_space<vmem>>, %arg2: memref<1x5x32xf32, #tpu.memory_space<vmem>>, %arg3: memref<1x1x5xf32, #tpu.memory_space<vmem>>, %arg4: memref<1x32xf32, #tpu.memory_space<vmem>>, %arg5: memref<1x32xf32, #tpu.memory_space<vmem>>, %arg6: memref<1x32xf32, #tpu.memory_space<vmem>>, %arg7: memref<1x32xf32, #tpu.memory_space<vmem>>, %arg8: memref<32x32xbf16, #tpu.memory_space<vmem>>, %arg9: memref<1x32xf32, #tpu.memory_space<vmem>>, %arg10: memref<32x32xbf16, #tpu.memory_space<vmem>>, %arg11: memref<1x32xf32, #tpu.memory_space<vmem>>, %arg12: memref<32x32xbf16, #tpu.memory_space<vmem>>, %arg13: memref<1x32xf32, #tpu.memory_space<vmem>>, %arg14: memref<32x32xbf16, #tpu.memory_space<vmem>>, %arg15: memref<1x32xf32, #tpu.memory_space<vmem>>, %arg16: memref<1x4x32xf32, #tpu.memory_space<vmem>>) attributes {dimension_semantics = [#tpu.dimension_semantics<parallel>], iteration_bounds = array<i64: 4>, scalar_prefetch = 0 : i64, scratch_operands = 0 : i64, tpu.core_type = #tpu.core_type<tc>, window_params = [{transform_indices = @transform_0, window_bounds = array<i64: 1, 4, 32>}, {transform_indices = @transform_1, window_bounds = array<i64: 1, 5, 32>}, {transform_indices = @transform_2, window_bounds = array<i64: 1, 1, 5>}, {pipeline_mode = #tpu.pipeline_mode<synchronous>, transform_indices = @transform_3, window_bounds = array<i64: 1, 32>}, {pipeline_mode = #tpu.pipeline_mode<synchronous>, transform_indices = @transform_4, window_bounds = array<i64: 1, 32>}, {pipeline_mode = #tpu.pipeline_mode<synchronous>, transform_indices = @transform_5, window_bounds = array<i64: 1, 32>}, {pipeline_mode = #tpu.pipeline_mode<synchronous>, transform_indices = @transform_6, window_bounds = array<i64: 1, 32>}, {pipeline_mode = #tpu.pipeline_mode<synchronous>, transform_indices = @transform_7, window_bounds = array<i64: 32, 32>}, {pipeline_mode = #tpu.pipeline_mode<synchronous>, transform_indices = @transform_8, window_bounds = array<i64: 1, 32>}, {pipeline_mode = #tpu.pipeline_mode<synchronous>, transform_indices = @transform_9, window_bounds = array<i64: 32, 32>}, {pipeline_mode = #tpu.pipeline_mode<synchronous>, transform_indices = @transform_10, window_bounds = array<i64: 1, 32>}, {pipeline_mode = #tpu.pipeline_mode<synchronous>, transform_indices = @transform_11, window_bounds = array<i64: 32, 32>}, {pipeline_mode = #tpu.pipeline_mode<synchronous>, transform_indices = @transform_12, window_bounds = array<i64: 1, 32>}, {pipeline_mode = #tpu.pipeline_mode<synchronous>, transform_indices = @transform_13, window_bounds = array<i64: 32, 32>}, {pipeline_mode = #tpu.pipeline_mode<synchronous>, transform_indices = @transform_14, window_bounds = array<i64: 1, 32>}, {transform_indices = @transform_15, window_bounds = array<i64: 1, 4, 32>}]} {
    %c0 = arith.constant 0 : index
    %c0_0 = arith.constant 0 : index
    %c0_1 = arith.constant 0 : index
    %0 = vector.load %arg1[%c0, %c0_0, %c0_1] : memref<1x4x32xf32, #tpu.memory_space<vmem>>, vector<1x4x32xf32>
    %1 = vector.shape_cast %0 : vector<1x4x32xf32> to vector<4x32xf32>
    %c0_2 = arith.constant 0 : index
    %c0_3 = arith.constant 0 : index
    %c0_4 = arith.constant 0 : index
    %2 = vector.load %arg2[%c0_2, %c0_3, %c0_4] : memref<1x5x32xf32, #tpu.memory_space<vmem>>, vector<1x5x32xf32>
    %3 = vector.shape_cast %2 : vector<1x5x32xf32> to vector<5x32xf32>
    %c0_5 = arith.constant 0 : index
    %c0_6 = arith.constant 0 : index
    %4 = vector.load %arg4[%c0_5, %c0_6] : memref<1x32xf32, #tpu.memory_space<vmem>>, vector<1x32xf32>
    %c0_7 = arith.constant 0 : index
    %c0_8 = arith.constant 0 : index
    %5 = vector.load %arg5[%c0_7, %c0_8] : memref<1x32xf32, #tpu.memory_space<vmem>>, vector<1x32xf32>
    %cst = arith.constant dense<0.000000e+00> : vector<4xf32>
    %6 = vector.multi_reduction <add>, %1, %cst [1] : vector<4x32xf32> to vector<4xf32>
    %7 = vector.shape_cast %6 : vector<4xf32> to vector<4x1xf32>
    %cst_9 = arith.constant 3.200000e+01 : f32
    %8 = vector.broadcast %cst_9 : f32 to vector<4x1xf32>
    %9 = arith.divf %7, %8 : vector<4x1xf32>
    %10 = vector.broadcast %9 : vector<4x1xf32> to vector<4x32xf32>
    %11 = arith.subf %1, %10 : vector<4x32xf32>
    %12 = arith.mulf %11, %11 : vector<4x32xf32>
    %cst_10 = arith.constant dense<0.000000e+00> : vector<4xf32>
    %13 = vector.multi_reduction <add>, %12, %cst_10 [1] : vector<4x32xf32> to vector<4xf32>
    %14 = vector.shape_cast %13 : vector<4xf32> to vector<4x1xf32>
    %cst_11 = arith.constant 3.200000e+01 : f32
    %15 = vector.broadcast %cst_11 : f32 to vector<4x1xf32>
    %16 = arith.divf %14, %15 : vector<4x1xf32>
    %cst_12 = arith.constant 9.99999974E-6 : f32
    %17 = vector.broadcast %cst_12 : f32 to vector<4x1xf32>
    %18 = arith.addf %16, %17 : vector<4x1xf32>
    %19 = math.rsqrt %18 : vector<4x1xf32>
    %20 = vector.broadcast %19 : vector<4x1xf32> to vector<4x32xf32>
    %21 = arith.mulf %11, %20 : vector<4x32xf32>
    %22 = vector.broadcast %4 : vector<1x32xf32> to vector<4x32xf32>
    %23 = arith.mulf %21, %22 : vector<4x32xf32>
    %24 = vector.broadcast %5 : vector<1x32xf32> to vector<4x32xf32>
    %25 = arith.addf %23, %24 : vector<4x32xf32>
    %c0_13 = arith.constant 0 : index
    %c0_14 = arith.constant 0 : index
    %26 = vector.load %arg6[%c0_13, %c0_14] : memref<1x32xf32, #tpu.memory_space<vmem>>, vector<1x32xf32>
    %c0_15 = arith.constant 0 : index
    %c0_16 = arith.constant 0 : index
    %27 = vector.load %arg7[%c0_15, %c0_16] : memref<1x32xf32, #tpu.memory_space<vmem>>, vector<1x32xf32>
    %cst_17 = arith.constant dense<0.000000e+00> : vector<5xf32>
    %28 = vector.multi_reduction <add>, %3, %cst_17 [1] : vector<5x32xf32> to vector<5xf32>
    %29 = vector.shape_cast %28 : vector<5xf32> to vector<5x1xf32>
    %cst_18 = arith.constant 3.200000e+01 : f32
    %30 = vector.broadcast %cst_18 : f32 to vector<5x1xf32>
    %31 = arith.divf %29, %30 : vector<5x1xf32>
    %32 = vector.broadcast %31 : vector<5x1xf32> to vector<5x32xf32>
    %33 = arith.subf %3, %32 : vector<5x32xf32>
    %34 = arith.mulf %33, %33 : vector<5x32xf32>
    %cst_19 = arith.constant dense<0.000000e+00> : vector<5xf32>
    %35 = vector.multi_reduction <add>, %34, %cst_19 [1] : vector<5x32xf32> to vector<5xf32>
    %36 = vector.shape_cast %35 : vector<5xf32> to vector<5x1xf32>
    %cst_20 = arith.constant 3.200000e+01 : f32
    %37 = vector.broadcast %cst_20 : f32 to vector<5x1xf32>
    %38 = arith.divf %36, %37 : vector<5x1xf32>
    %cst_21 = arith.constant 9.99999974E-6 : f32
    %39 = vector.broadcast %cst_21 : f32 to vector<5x1xf32>
    %40 = arith.addf %38, %39 : vector<5x1xf32>
    %41 = math.rsqrt %40 : vector<5x1xf32>
    %42 = vector.broadcast %41 : vector<5x1xf32> to vector<5x32xf32>
    %43 = arith.mulf %33, %42 : vector<5x32xf32>
    %44 = vector.broadcast %26 : vector<1x32xf32> to vector<5x32xf32>
    %45 = arith.mulf %43, %44 : vector<5x32xf32>
    %46 = vector.broadcast %27 : vector<1x32xf32> to vector<5x32xf32>
    %47 = arith.addf %45, %46 : vector<5x32xf32>
    %48 = arith.truncf %25 : vector<4x32xf32> to vector<4x32xbf16>
    %c0_22 = arith.constant 0 : index
    %c0_23 = arith.constant 0 : index
    %49 = vector.load %arg8[%c0_22, %c0_23] : memref<32x32xbf16, #tpu.memory_space<vmem>>, vector<32x32xbf16>
    %cst_24 = arith.constant dense<0.000000e+00> : vector<4x32xf32>
    %50 = tpu.matmul %48, %49, %cst_24 {dimension_numbers = #tpu.dot_dimension_numbers<[1], [0], [0], [1], [0, 0, 1, 1], [], []>} : vector<4x32xbf16>, vector<32x32xbf16>, vector<4x32xf32> -> vector<4x32xf32>
    %c0_25 = arith.constant 0 : index
    %c0_26 = arith.constant 0 : index
    %51 = vector.load %arg9[%c0_25, %c0_26] : memref<1x32xf32, #tpu.memory_space<vmem>>, vector<1x32xf32>
    %52 = vector.broadcast %51 : vector<1x32xf32> to vector<4x32xf32>
    %53 = arith.addf %50, %52 : vector<4x32xf32>
    %54 = arith.truncf %47 : vector<5x32xf32> to vector<5x32xbf16>
    %c0_27 = arith.constant 0 : index
    %c0_28 = arith.constant 0 : index
    %55 = vector.load %arg10[%c0_27, %c0_28] : memref<32x32xbf16, #tpu.memory_space<vmem>>, vector<32x32xbf16>
    %cst_29 = arith.constant dense<0.000000e+00> : vector<5x32xf32>
    %56 = tpu.matmul %54, %55, %cst_29 {dimension_numbers = #tpu.dot_dimension_numbers<[1], [0], [0], [1], [0, 0, 1, 1], [], []>} : vector<5x32xbf16>, vector<32x32xbf16>, vector<5x32xf32> -> vector<5x32xf32>
    %c0_30 = arith.constant 0 : index
    %c0_31 = arith.constant 0 : index
    %57 = vector.load %arg11[%c0_30, %c0_31] : memref<1x32xf32, #tpu.memory_space<vmem>>, vector<1x32xf32>
    %58 = vector.broadcast %57 : vector<1x32xf32> to vector<5x32xf32>
    %59 = arith.addf %56, %58 : vector<5x32xf32>
    %60 = arith.truncf %47 : vector<5x32xf32> to vector<5x32xbf16>
    %c0_32 = arith.constant 0 : index
    %c0_33 = arith.constant 0 : index
    %61 = vector.load %arg12[%c0_32, %c0_33] : memref<32x32xbf16, #tpu.memory_space<vmem>>, vector<32x32xbf16>
    %cst_34 = arith.constant dense<0.000000e+00> : vector<5x32xf32>
    %62 = tpu.matmul %60, %61, %cst_34 {dimension_numbers = #tpu.dot_dimension_numbers<[1], [0], [0], [1], [0, 0, 1, 1], [], []>} : vector<5x32xbf16>, vector<32x32xbf16>, vector<5x32xf32> -> vector<5x32xf32>
    %c0_35 = arith.constant 0 : index
    %c0_36 = arith.constant 0 : index
    %63 = vector.load %arg13[%c0_35, %c0_36] : memref<1x32xf32, #tpu.memory_space<vmem>>, vector<1x32xf32>
    %64 = vector.broadcast %63 : vector<1x32xf32> to vector<5x32xf32>
    %65 = arith.addf %62, %64 : vector<5x32xf32>
    %c0_37 = arith.constant 0 : index
    %c0_38 = arith.constant 0 : index
    %c0_39 = arith.constant 0 : index
    %66 = vector.load %arg3[%c0_37, %c0_38, %c0_39] : memref<1x1x5xf32, #tpu.memory_space<vmem>>, vector<1x1x5xf32>
    %67 = vector.shape_cast %66 : vector<1x1x5xf32> to vector<1x5xf32>
    %68 = vector.extract_strided_slice %53 {offsets = [0, 0], sizes = [4, 8], strides = [1, 1]} : vector<4x32xf32> to vector<4x8xf32>
    %69 = arith.truncf %68 : vector<4x8xf32> to vector<4x8xbf16>
    %70 = vector.extract_strided_slice %59 {offsets = [0, 0], sizes = [5, 8], strides = [1, 1]} : vector<5x32xf32> to vector<5x8xf32>
    %71 = arith.truncf %70 : vector<5x8xf32> to vector<5x8xbf16>
    %72 = vector.extract_strided_slice %65 {offsets = [0, 0], sizes = [5, 8], strides = [1, 1]} : vector<5x32xf32> to vector<5x8xf32>
    %73 = arith.truncf %72 : vector<5x8xf32> to vector<5x8xbf16>
    %cst_40 = arith.constant dense<0.000000e+00> : vector<4x5xf32>
    %74 = tpu.matmul %69, %71, %cst_40 {dimension_numbers = #tpu.dot_dimension_numbers<[1], [1], [0], [0], [0, 0, 1, 0], [], []>} : vector<4x8xbf16>, vector<5x8xbf16>, vector<4x5xf32> -> vector<4x5xf32>
    %cst_41 = arith.constant 0.353553385 : f32
    %75 = vector.broadcast %cst_41 : f32 to vector<4x5xf32>
    %76 = arith.mulf %74, %75 : vector<4x5xf32>
    %77 = vector.broadcast %67 : vector<1x5xf32> to vector<4x5xf32>
    %78 = arith.addf %76, %77 : vector<4x5xf32>
    %cst_42 = arith.constant dense<0xFF800000> : vector<4xf32>
    %79 = vector.multi_reduction <maximumf>, %78, %cst_42 [1] : vector<4x5xf32> to vector<4xf32>
    %80 = vector.shape_cast %79 : vector<4xf32> to vector<4x1xf32>
    %81 = vector.broadcast %80 : vector<4x1xf32> to vector<4x5xf32>
    %82 = arith.subf %78, %81 : vector<4x5xf32>
    %83 = math.exp %82 : vector<4x5xf32>
    %cst_43 = arith.constant dense<0.000000e+00> : vector<4xf32>
    %84 = vector.multi_reduction <add>, %83, %cst_43 [1] : vector<4x5xf32> to vector<4xf32>
    %85 = vector.shape_cast %84 : vector<4xf32> to vector<4x1xf32>
    %86 = tpu.reciprocal %85 {approx = true} : vector<4x1xf32> -> vector<4x1xf32>
    %87 = vector.broadcast %86 : vector<4x1xf32> to vector<4x5xf32>
    %88 = arith.mulf %83, %87 : vector<4x5xf32>
    %89 = arith.truncf %88 : vector<4x5xf32> to vector<4x5xbf16>
    %cst_44 = arith.constant dense<0.000000e+00> : vector<4x8xf32>
    %90 = tpu.matmul %89, %73, %cst_44 {dimension_numbers = #tpu.dot_dimension_numbers<[1], [0], [0], [1], [0, 0, 1, 1], [], []>} : vector<4x5xbf16>, vector<5x8xbf16>, vector<4x8xf32> -> vector<4x8xf32>
    %91 = vector.extract_strided_slice %53 {offsets = [0, 8], sizes = [4, 8], strides = [1, 1]} : vector<4x32xf32> to vector<4x8xf32>
    %92 = arith.truncf %91 : vector<4x8xf32> to vector<4x8xbf16>
    %93 = vector.extract_strided_slice %59 {offsets = [0, 8], sizes = [5, 8], strides = [1, 1]} : vector<5x32xf32> to vector<5x8xf32>
    %94 = arith.truncf %93 : vector<5x8xf32> to vector<5x8xbf16>
    %95 = vector.extract_strided_slice %65 {offsets = [0, 8], sizes = [5, 8], strides = [1, 1]} : vector<5x32xf32> to vector<5x8xf32>
    %96 = arith.truncf %95 : vector<5x8xf32> to vector<5x8xbf16>
    %cst_45 = arith.constant dense<0.000000e+00> : vector<4x5xf32>
    %97 = tpu.matmul %92, %94, %cst_45 {dimension_numbers = #tpu.dot_dimension_numbers<[1], [1], [0], [0], [0, 0, 1, 0], [], []>} : vector<4x8xbf16>, vector<5x8xbf16>, vector<4x5xf32> -> vector<4x5xf32>
    %cst_46 = arith.constant 0.353553385 : f32
    %98 = vector.broadcast %cst_46 : f32 to vector<4x5xf32>
    %99 = arith.mulf %97, %98 : vector<4x5xf32>
    %100 = vector.broadcast %67 : vector<1x5xf32> to vector<4x5xf32>
    %101 = arith.addf %99, %100 : vector<4x5xf32>
    %cst_47 = arith.constant dense<0xFF800000> : vector<4xf32>
    %102 = vector.multi_reduction <maximumf>, %101, %cst_47 [1] : vector<4x5xf32> to vector<4xf32>
    %103 = vector.shape_cast %102 : vector<4xf32> to vector<4x1xf32>
    %104 = vector.broadcast %103 : vector<4x1xf32> to vector<4x5xf32>
    %105 = arith.subf %101, %104 : vector<4x5xf32>
    %106 = math.exp %105 : vector<4x5xf32>
    %cst_48 = arith.constant dense<0.000000e+00> : vector<4xf32>
    %107 = vector.multi_reduction <add>, %106, %cst_48 [1] : vector<4x5xf32> to vector<4xf32>
    %108 = vector.shape_cast %107 : vector<4xf32> to vector<4x1xf32>
    %109 = tpu.reciprocal %108 {approx = true} : vector<4x1xf32> -> vector<4x1xf32>
    %110 = vector.broadcast %109 : vector<4x1xf32> to vector<4x5xf32>
    %111 = arith.mulf %106, %110 : vector<4x5xf32>
    %112 = arith.truncf %111 : vector<4x5xf32> to vector<4x5xbf16>
    %cst_49 = arith.constant dense<0.000000e+00> : vector<4x8xf32>
    %113 = tpu.matmul %112, %96, %cst_49 {dimension_numbers = #tpu.dot_dimension_numbers<[1], [0], [0], [1], [0, 0, 1, 1], [], []>} : vector<4x5xbf16>, vector<5x8xbf16>, vector<4x8xf32> -> vector<4x8xf32>
    %114 = vector.extract_strided_slice %53 {offsets = [0, 16], sizes = [4, 8], strides = [1, 1]} : vector<4x32xf32> to vector<4x8xf32>
    %115 = arith.truncf %114 : vector<4x8xf32> to vector<4x8xbf16>
    %116 = vector.extract_strided_slice %59 {offsets = [0, 16], sizes = [5, 8], strides = [1, 1]} : vector<5x32xf32> to vector<5x8xf32>
    %117 = arith.truncf %116 : vector<5x8xf32> to vector<5x8xbf16>
    %118 = vector.extract_strided_slice %65 {offsets = [0, 16], sizes = [5, 8], strides = [1, 1]} : vector<5x32xf32> to vector<5x8xf32>
    %119 = arith.truncf %118 : vector<5x8xf32> to vector<5x8xbf16>
    %cst_50 = arith.constant dense<0.000000e+00> : vector<4x5xf32>
    %120 = tpu.matmul %115, %117, %cst_50 {dimension_numbers = #tpu.dot_dimension_numbers<[1], [1], [0], [0], [0, 0, 1, 0], [], []>} : vector<4x8xbf16>, vector<5x8xbf16>, vector<4x5xf32> -> vector<4x5xf32>
    %cst_51 = arith.constant 0.353553385 : f32
    %121 = vector.broadcast %cst_51 : f32 to vector<4x5xf32>
    %122 = arith.mulf %120, %121 : vector<4x5xf32>
    %123 = vector.broadcast %67 : vector<1x5xf32> to vector<4x5xf32>
    %124 = arith.addf %122, %123 : vector<4x5xf32>
    %cst_52 = arith.constant dense<0xFF800000> : vector<4xf32>
    %125 = vector.multi_reduction <maximumf>, %124, %cst_52 [1] : vector<4x5xf32> to vector<4xf32>
    %126 = vector.shape_cast %125 : vector<4xf32> to vector<4x1xf32>
    %127 = vector.broadcast %126 : vector<4x1xf32> to vector<4x5xf32>
    %128 = arith.subf %124, %127 : vector<4x5xf32>
    %129 = math.exp %128 : vector<4x5xf32>
    %cst_53 = arith.constant dense<0.000000e+00> : vector<4xf32>
    %130 = vector.multi_reduction <add>, %129, %cst_53 [1] : vector<4x5xf32> to vector<4xf32>
    %131 = vector.shape_cast %130 : vector<4xf32> to vector<4x1xf32>
    %132 = tpu.reciprocal %131 {approx = true} : vector<4x1xf32> -> vector<4x1xf32>
    %133 = vector.broadcast %132 : vector<4x1xf32> to vector<4x5xf32>
    %134 = arith.mulf %129, %133 : vector<4x5xf32>
    %135 = arith.truncf %134 : vector<4x5xf32> to vector<4x5xbf16>
    %cst_54 = arith.constant dense<0.000000e+00> : vector<4x8xf32>
    %136 = tpu.matmul %135, %119, %cst_54 {dimension_numbers = #tpu.dot_dimension_numbers<[1], [0], [0], [1], [0, 0, 1, 1], [], []>} : vector<4x5xbf16>, vector<5x8xbf16>, vector<4x8xf32> -> vector<4x8xf32>
    %137 = vector.extract_strided_slice %53 {offsets = [0, 24], sizes = [4, 8], strides = [1, 1]} : vector<4x32xf32> to vector<4x8xf32>
    %138 = arith.truncf %137 : vector<4x8xf32> to vector<4x8xbf16>
    %139 = vector.extract_strided_slice %59 {offsets = [0, 24], sizes = [5, 8], strides = [1, 1]} : vector<5x32xf32> to vector<5x8xf32>
    %140 = arith.truncf %139 : vector<5x8xf32> to vector<5x8xbf16>
    %141 = vector.extract_strided_slice %65 {offsets = [0, 24], sizes = [5, 8], strides = [1, 1]} : vector<5x32xf32> to vector<5x8xf32>
    %142 = arith.truncf %141 : vector<5x8xf32> to vector<5x8xbf16>
    %cst_55 = arith.constant dense<0.000000e+00> : vector<4x5xf32>
    %143 = tpu.matmul %138, %140, %cst_55 {dimension_numbers = #tpu.dot_dimension_numbers<[1], [1], [0], [0], [0, 0, 1, 0], [], []>} : vector<4x8xbf16>, vector<5x8xbf16>, vector<4x5xf32> -> vector<4x5xf32>
    %cst_56 = arith.constant 0.353553385 : f32
    %144 = vector.broadcast %cst_56 : f32 to vector<4x5xf32>
    %145 = arith.mulf %143, %144 : vector<4x5xf32>
    %146 = vector.broadcast %67 : vector<1x5xf32> to vector<4x5xf32>
    %147 = arith.addf %145, %146 : vector<4x5xf32>
    %cst_57 = arith.constant dense<0xFF800000> : vector<4xf32>
    %148 = vector.multi_reduction <maximumf>, %147, %cst_57 [1] : vector<4x5xf32> to vector<4xf32>
    %149 = vector.shape_cast %148 : vector<4xf32> to vector<4x1xf32>
    %150 = vector.broadcast %149 : vector<4x1xf32> to vector<4x5xf32>
    %151 = arith.subf %147, %150 : vector<4x5xf32>
    %152 = math.exp %151 : vector<4x5xf32>
    %cst_58 = arith.constant dense<0.000000e+00> : vector<4xf32>
    %153 = vector.multi_reduction <add>, %152, %cst_58 [1] : vector<4x5xf32> to vector<4xf32>
    %154 = vector.shape_cast %153 : vector<4xf32> to vector<4x1xf32>
    %155 = tpu.reciprocal %154 {approx = true} : vector<4x1xf32> -> vector<4x1xf32>
    %156 = vector.broadcast %155 : vector<4x1xf32> to vector<4x5xf32>
    %157 = arith.mulf %152, %156 : vector<4x5xf32>
    %158 = arith.truncf %157 : vector<4x5xf32> to vector<4x5xbf16>
    %cst_59 = arith.constant dense<0.000000e+00> : vector<4x8xf32>
    %159 = tpu.matmul %158, %142, %cst_59 {dimension_numbers = #tpu.dot_dimension_numbers<[1], [0], [0], [1], [0, 0, 1, 1], [], []>} : vector<4x5xbf16>, vector<5x8xbf16>, vector<4x8xf32> -> vector<4x8xf32>
    %160 = tpu.concatenate %90, %113, %136, %159 in 1 : vector<4x8xf32>, vector<4x8xf32>, vector<4x8xf32>, vector<4x8xf32> -> vector<4x32xf32>
    %161 = arith.truncf %160 : vector<4x32xf32> to vector<4x32xbf16>
    %c0_60 = arith.constant 0 : index
    %c0_61 = arith.constant 0 : index
    %162 = vector.load %arg14[%c0_60, %c0_61] : memref<32x32xbf16, #tpu.memory_space<vmem>>, vector<32x32xbf16>
    %cst_62 = arith.constant dense<0.000000e+00> : vector<4x32xf32>
    %163 = tpu.matmul %161, %162, %cst_62 {dimension_numbers = #tpu.dot_dimension_numbers<[1], [0], [0], [1], [0, 0, 1, 1], [], []>} : vector<4x32xbf16>, vector<32x32xbf16>, vector<4x32xf32> -> vector<4x32xf32>
    %c0_63 = arith.constant 0 : index
    %c0_64 = arith.constant 0 : index
    %164 = vector.load %arg15[%c0_63, %c0_64] : memref<1x32xf32, #tpu.memory_space<vmem>>, vector<1x32xf32>
    %165 = vector.broadcast %164 : vector<1x32xf32> to vector<4x32xf32>
    %166 = arith.addf %163, %165 : vector<4x32xf32>
    %167 = arith.addf %166, %1 : vector<4x32xf32>
    %c0_65 = arith.constant 0 : index
    %c0_66 = arith.constant 0 : index
    %c0_67 = arith.constant 0 : index
    %168 = vector.load %arg16[%c0_65, %c0_66, %c0_67] : memref<1x4x32xf32, #tpu.memory_space<vmem>>, vector<1x4x32xf32>
    %169 = vector.shape_cast %168 : vector<1x4x32xf32> to vector<4x32xf32>
    %170 = vector.shape_cast %167 : vector<4x32xf32> to vector<1x4x32xf32>
    tpu.vector_store %arg16[%c0_65, %c0_66, %c0_67], %170 {strides = array<i32>} : memref<1x4x32xf32, #tpu.memory_space<vmem>>, vector<1x4x32xf32>,
    return
  }
  func.func @transform_0(%arg0: i32) -> (i32, i32, i32) {
    %c0_i32 = arith.constant 0 : i32
    %c0_i32_0 = arith.constant 0 : i32
    %c0_i32_1 = arith.constant 0 : i32
    return %arg0, %c0_i32, %c0_i32_0 : i32, i32, i32
  }
  func.func @transform_1(%arg0: i32) -> (i32, i32, i32) {
    %c0_i32 = arith.constant 0 : i32
    %c0_i32_0 = arith.constant 0 : i32
    %c0_i32_1 = arith.constant 0 : i32
    return %arg0, %c0_i32, %c0_i32_0 : i32, i32, i32
  }
  func.func @transform_2(%arg0: i32) -> (i32, i32, i32) {
    %c0_i32 = arith.constant 0 : i32
    %c0_i32_0 = arith.constant 0 : i32
    %c0_i32_1 = arith.constant 0 : i32
    return %arg0, %c0_i32, %c0_i32_0 : i32, i32, i32
  }
  func.func @transform_3(%arg0: i32) -> (i32, i32) {
    %c0_i32 = arith.constant 0 : i32
    %c0_i32_0 = arith.constant 0 : i32
    %c0_i32_1 = arith.constant 0 : i32
    return %c0_i32, %c0_i32_0 : i32, i32
  }
  func.func @transform_4(%arg0: i32) -> (i32, i32) {
    %c0_i32 = arith.constant 0 : i32
    %c0_i32_0 = arith.constant 0 : i32
    %c0_i32_1 = arith.constant 0 : i32
    return %c0_i32, %c0_i32_0 : i32, i32
  }
  func.func @transform_5(%arg0: i32) -> (i32, i32) {
    %c0_i32 = arith.constant 0 : i32
    %c0_i32_0 = arith.constant 0 : i32
    %c0_i32_1 = arith.constant 0 : i32
    return %c0_i32, %c0_i32_0 : i32, i32
  }
  func.func @transform_6(%arg0: i32) -> (i32, i32) {
    %c0_i32 = arith.constant 0 : i32
    %c0_i32_0 = arith.constant 0 : i32
    %c0_i32_1 = arith.constant 0 : i32
    return %c0_i32, %c0_i32_0 : i32, i32
  }
  func.func @transform_7(%arg0: i32) -> (i32, i32) {
    %c0_i32 = arith.constant 0 : i32
    %c0_i32_0 = arith.constant 0 : i32
    %c0_i32_1 = arith.constant 0 : i32
    return %c0_i32, %c0_i32_0 : i32, i32
  }
  func.func @transform_8(%arg0: i32) -> (i32, i32) {
    %c0_i32 = arith.constant 0 : i32
    %c0_i32_0 = arith.constant 0 : i32
    %c0_i32_1 = arith.constant 0 : i32
    return %c0_i32, %c0_i32_0 : i32, i32
  }
  func.func @transform_9(%arg0: i32) -> (i32, i32) {
    %c0_i32 = arith.constant 0 : i32
    %c0_i32_0 = arith.constant 0 : i32
    %c0_i32_1 = arith.constant 0 : i32
    return %c0_i32, %c0_i32_0 : i32, i32
  }
  func.func @transform_10(%arg0: i32) -> (i32, i32) {
    %c0_i32 = arith.constant 0 : i32
    %c0_i32_0 = arith.constant 0 : i32
    %c0_i32_1 = arith.constant 0 : i32
    return %c0_i32, %c0_i32_0 : i32, i32
  }
  func.func @transform_11(%arg0: i32) -> (i32, i32) {
    %c0_i32 = arith.constant 0 : i32
    %c0_i32_0 = arith.constant 0 : i32
    %c0_i32_1 = arith.constant 0 : i32
    return %c0_i32, %c0_i32_0 : i32, i32
  }
  func.func @transform_12(%arg0: i32) -> (i32, i32) {
    %c0_i32 = arith.constant 0 : i32
    %c0_i32_0 = arith.constant 0 : i32
    %c0_i32_1 = arith.constant 0 : i32
    return %c0_i32, %c0_i32_0 : i32, i32
  }
  func.func @transform_13(%arg0: i32) -> (i32, i32) {
    %c0_i32 = arith.constant 0 : i32
    %c0_i32_0 = arith.constant 0 : i32
    %c0_i32_1 = arith.constant 0 : i32
    return %c0_i32, %c0_i32_0 : i32, i32
  }
  func.func @transform_14(%arg0: i32) -> (i32, i32) {
    %c0_i32 = arith.constant 0 : i32
    %c0_i32_0 = arith.constant 0 : i32
    %c0_i32_1 = arith.constant 0 : i32
    return %c0_i32, %c0_i32_0 : i32, i32
  }
  func.func @transform_15(%arg0: i32) -> (i32, i32, i32) {
    %c0_i32 = arith.constant 0 : i32
    %c0_i32_0 = arith.constant 0 : i32
    %c0_i32_1 = arith.constant 0 : i32
    return %arg0, %c0_i32, %c0_i32_0 : i32, i32, i32
  }
}

module attributes {stable_mosaic.version = 11 : i64} {
  func.func @_linear_kernel(%arg0: i32, %arg1: memref<16x32xf32, #tpu.memory_space<vmem>>, %arg2: memref<1x32xf32, #tpu.memory_space<vmem>>, %arg3: memref<1x32xf32, #tpu.memory_space<vmem>>, %arg4: memref<32x128xbf16, #tpu.memory_space<vmem>>, %arg5: memref<1x128xf32, #tpu.memory_space<vmem>>, %arg6: memref<16x128xf32, #tpu.memory_space<vmem>>) attributes {dimension_semantics = [#tpu.dimension_semantics<parallel>], iteration_bounds = array<i64: 1>, scalar_prefetch = 0 : i64, scratch_operands = 0 : i64, tpu.core_type = #tpu.core_type<tc>, window_params = [{transform_indices = @transform_0, window_bounds = array<i64: 16, 32>}, {pipeline_mode = #tpu.pipeline_mode<synchronous>, transform_indices = @transform_1, window_bounds = array<i64: 1, 32>}, {pipeline_mode = #tpu.pipeline_mode<synchronous>, transform_indices = @transform_2, window_bounds = array<i64: 1, 32>}, {pipeline_mode = #tpu.pipeline_mode<synchronous>, transform_indices = @transform_3, window_bounds = array<i64: 32, 128>}, {pipeline_mode = #tpu.pipeline_mode<synchronous>, transform_indices = @transform_4, window_bounds = array<i64: 1, 128>}, {transform_indices = @transform_5, window_bounds = array<i64: 16, 128>}]} {
    %c0 = arith.constant 0 : index
    %c0_0 = arith.constant 0 : index
    %0 = vector.load %arg1[%c0, %c0_0] : memref<16x32xf32, #tpu.memory_space<vmem>>, vector<16x32xf32>
    %cst = arith.constant dense<0.000000e+00> : vector<16xf32>
    %1 = vector.multi_reduction <add>, %0, %cst [1] : vector<16x32xf32> to vector<16xf32>
    %2 = vector.shape_cast %1 : vector<16xf32> to vector<16x1xf32>
    %cst_1 = arith.constant 3.200000e+01 : f32
    %3 = vector.broadcast %cst_1 : f32 to vector<16x1xf32>
    %4 = arith.divf %2, %3 : vector<16x1xf32>
    %5 = vector.broadcast %4 : vector<16x1xf32> to vector<16x32xf32>
    %6 = arith.subf %0, %5 : vector<16x32xf32>
    %7 = arith.mulf %6, %6 : vector<16x32xf32>
    %cst_2 = arith.constant dense<0.000000e+00> : vector<16xf32>
    %8 = vector.multi_reduction <add>, %7, %cst_2 [1] : vector<16x32xf32> to vector<16xf32>
    %9 = vector.shape_cast %8 : vector<16xf32> to vector<16x1xf32>
    %cst_3 = arith.constant 3.200000e+01 : f32
    %10 = vector.broadcast %cst_3 : f32 to vector<16x1xf32>
    %11 = arith.divf %9, %10 : vector<16x1xf32>
    %cst_4 = arith.constant 9.99999974E-6 : f32
    %12 = vector.broadcast %cst_4 : f32 to vector<16x1xf32>
    %13 = arith.addf %11, %12 : vector<16x1xf32>
    %14 = math.rsqrt %13 : vector<16x1xf32>
    %15 = vector.broadcast %14 : vector<16x1xf32> to vector<16x32xf32>
    %16 = arith.mulf %6, %15 : vector<16x32xf32>
    %c0_5 = arith.constant 0 : index
    %c0_6 = arith.constant 0 : index
    %17 = vector.load %arg2[%c0_5, %c0_6] : memref<1x32xf32, #tpu.memory_space<vmem>>, vector<1x32xf32>
    %18 = vector.broadcast %17 : vector<1x32xf32> to vector<16x32xf32>
    %19 = arith.mulf %16, %18 : vector<16x32xf32>
    %c0_7 = arith.constant 0 : index
    %c0_8 = arith.constant 0 : index
    %20 = vector.load %arg3[%c0_7, %c0_8] : memref<1x32xf32, #tpu.memory_space<vmem>>, vector<1x32xf32>
    %21 = vector.broadcast %20 : vector<1x32xf32> to vector<16x32xf32>
    %22 = arith.addf %19, %21 : vector<16x32xf32>
    %23 = arith.truncf %22 : vector<16x32xf32> to vector<16x32xbf16>
    %c0_9 = arith.constant 0 : index
    %c0_10 = arith.constant 0 : index
    %24 = vector.load %arg4[%c0_9, %c0_10] : memref<32x128xbf16, #tpu.memory_space<vmem>>, vector<32x128xbf16>
    %cst_11 = arith.constant dense<0.000000e+00> : vector<16x128xf32>
    %25 = tpu.matmul %23, %24, %cst_11 {dimension_numbers = #tpu.dot_dimension_numbers<[1], [0], [0], [1], [0, 0, 1, 1], [], []>} : vector<16x32xbf16>, vector<32x128xbf16>, vector<16x128xf32> -> vector<16x128xf32>
    %c0_12 = arith.constant 0 : index
    %c0_13 = arith.constant 0 : index
    %26 = vector.load %arg5[%c0_12, %c0_13] : memref<1x128xf32, #tpu.memory_space<vmem>>, vector<1x128xf32>
    %27 = vector.broadcast %26 : vector<1x128xf32> to vector<16x128xf32>
    %28 = arith.addf %25, %27 : vector<16x128xf32>
    %cst_14 = arith.constant 5.000000e-01 : f32
    %29 = vector.broadcast %cst_14 : f32 to vector<16x128xf32>
    %30 = arith.mulf %29, %28 : vector<16x128xf32>
    %cst_15 = arith.constant 0.707106769 : f32
    %31 = vector.broadcast %cst_15 : f32 to vector<16x128xf32>
    %32 = arith.mulf %28, %31 : vector<16x128xf32>
    %33 = math.erf %32 : vector<16x128xf32>
    %cst_16 = arith.constant 1.000000e+00 : f32
    %34 = vector.broadcast %cst_16 : f32 to vector<16x128xf32>
    %35 = arith.addf %34, %33 : vector<16x128xf32>
    %36 = arith.mulf %30, %35 : vector<16x128xf32>
    %c0_17 = arith.constant 0 : index
    %c0_18 = arith.constant 0 : index
    %37 = vector.load %arg6[%c0_17, %c0_18] : memref<16x128xf32, #tpu.memory_space<vmem>>, vector<16x128xf32>
    tpu.vector_store %arg6[%c0_17, %c0_18], %36 {strides = array<i32>} : memref<16x128xf32, #tpu.memory_space<vmem>>, vector<16x128xf32>,
    return
  }
  func.func @transform_0(%arg0: i32) -> (i32, i32) {
    %c0_i32 = arith.constant 0 : i32
    %c0_i32_0 = arith.constant 0 : i32
    return %arg0, %c0_i32 : i32, i32
  }
  func.func @transform_1(%arg0: i32) -> (i32, i32) {
    %c0_i32 = arith.constant 0 : i32
    %c0_i32_0 = arith.constant 0 : i32
    %c0_i32_1 = arith.constant 0 : i32
    return %c0_i32, %c0_i32_0 : i32, i32
  }
  func.func @transform_2(%arg0: i32) -> (i32, i32) {
    %c0_i32 = arith.constant 0 : i32
    %c0_i32_0 = arith.constant 0 : i32
    %c0_i32_1 = arith.constant 0 : i32
    return %c0_i32, %c0_i32_0 : i32, i32
  }
  func.func @transform_3(%arg0: i32) -> (i32, i32) {
    %c0_i32 = arith.constant 0 : i32
    %c0_i32_0 = arith.constant 0 : i32
    %c0_i32_1 = arith.constant 0 : i32
    return %c0_i32, %c0_i32_0 : i32, i32
  }
  func.func @transform_4(%arg0: i32) -> (i32, i32) {
    %c0_i32 = arith.constant 0 : i32
    %c0_i32_0 = arith.constant 0 : i32
    %c0_i32_1 = arith.constant 0 : i32
    return %c0_i32, %c0_i32_0 : i32, i32
  }
  func.func @transform_5(%arg0: i32) -> (i32, i32) {
    %c0_i32 = arith.constant 0 : i32
    %c0_i32_0 = arith.constant 0 : i32
    return %arg0, %c0_i32 : i32, i32
  }
}

module attributes {stable_mosaic.version = 11 : i64} {
  func.func @_linear_kernel(%arg0: i32, %arg1: memref<16x32xf32, #tpu.memory_space<vmem>>, %arg2: memref<16x128xf32, #tpu.memory_space<vmem>>, %arg3: memref<128x32xbf16, #tpu.memory_space<vmem>>, %arg4: memref<1x32xf32, #tpu.memory_space<vmem>>, %arg5: memref<16x32xf32, #tpu.memory_space<vmem>>) attributes {dimension_semantics = [#tpu.dimension_semantics<parallel>], iteration_bounds = array<i64: 1>, scalar_prefetch = 0 : i64, scratch_operands = 0 : i64, tpu.core_type = #tpu.core_type<tc>, window_params = [{transform_indices = @transform_0, window_bounds = array<i64: 16, 32>}, {transform_indices = @transform_1, window_bounds = array<i64: 16, 128>}, {pipeline_mode = #tpu.pipeline_mode<synchronous>, transform_indices = @transform_2, window_bounds = array<i64: 128, 32>}, {pipeline_mode = #tpu.pipeline_mode<synchronous>, transform_indices = @transform_3, window_bounds = array<i64: 1, 32>}, {transform_indices = @transform_4, window_bounds = array<i64: 16, 32>}]} {
    %c0 = arith.constant 0 : index
    %c0_0 = arith.constant 0 : index
    %0 = vector.load %arg2[%c0, %c0_0] : memref<16x128xf32, #tpu.memory_space<vmem>>, vector<16x128xf32>
    %1 = arith.truncf %0 : vector<16x128xf32> to vector<16x128xbf16>
    %c0_1 = arith.constant 0 : index
    %c0_2 = arith.constant 0 : index
    %2 = vector.load %arg3[%c0_1, %c0_2] : memref<128x32xbf16, #tpu.memory_space<vmem>>, vector<128x32xbf16>
    %cst = arith.constant dense<0.000000e+00> : vector<16x32xf32>
    %3 = tpu.matmul %1, %2, %cst {dimension_numbers = #tpu.dot_dimension_numbers<[1], [0], [0], [1], [0, 0, 1, 1], [], []>} : vector<16x128xbf16>, vector<128x32xbf16>, vector<16x32xf32> -> vector<16x32xf32>
    %c0_3 = arith.constant 0 : index
    %c0_4 = arith.constant 0 : index
    %4 = vector.load %arg4[%c0_3, %c0_4] : memref<1x32xf32, #tpu.memory_space<vmem>>, vector<1x32xf32>
    %5 = vector.broadcast %4 : vector<1x32xf32> to vector<16x32xf32>
    %6 = arith.addf %3, %5 : vector<16x32xf32>
    %c0_5 = arith.constant 0 : index
    %c0_6 = arith.constant 0 : index
    %7 = vector.load %arg1[%c0_5, %c0_6] : memref<16x32xf32, #tpu.memory_space<vmem>>, vector<16x32xf32>
    %8 = arith.addf %6, %7 : vector<16x32xf32>
    %c0_7 = arith.constant 0 : index
    %c0_8 = arith.constant 0 : index
    %9 = vector.load %arg5[%c0_7, %c0_8] : memref<16x32xf32, #tpu.memory_space<vmem>>, vector<16x32xf32>
    tpu.vector_store %arg5[%c0_7, %c0_8], %8 {strides = array<i32>} : memref<16x32xf32, #tpu.memory_space<vmem>>, vector<16x32xf32>,
    return
  }
  func.func @transform_0(%arg0: i32) -> (i32, i32) {
    %c0_i32 = arith.constant 0 : i32
    %c0_i32_0 = arith.constant 0 : i32
    return %arg0, %c0_i32 : i32, i32
  }
  func.func @transform_1(%arg0: i32) -> (i32, i32) {
    %c0_i32 = arith.constant 0 : i32
    %c0_i32_0 = arith.constant 0 : i32
    return %arg0, %c0_i32 : i32, i32
  }
  func.func @transform_2(%arg0: i32) -> (i32, i32) {
    %c0_i32 = arith.constant 0 : i32
    %c0_i32_0 = arith.constant 0 : i32
    %c0_i32_1 = arith.constant 0 : i32
    return %c0_i32, %c0_i32_0 : i32, i32
  }
  func.func @transform_3(%arg0: i32) -> (i32, i32) {
    %c0_i32 = arith.constant 0 : i32
    %c0_i32_0 = arith.constant 0 : i32
    %c0_i32_1 = arith.constant 0 : i32
    return %c0_i32, %c0_i32_0 : i32, i32
  }
  func.func @transform_4(%arg0: i32) -> (i32, i32) {
    %c0_i32 = arith.constant 0 : i32
    %c0_i32_0 = arith.constant 0 : i32
    return %arg0, %c0_i32 : i32, i32
  }
}

</mosaic_0001>

<llo_original>
// kernel: object_transformer_forward.26
$region0: #{object_transformer_forward.26}
  #allocation0 [shape = 'u32[]', space=smem, size = 0x4, offset = 0x4, fixed_abs, tag = 'smem constant byte address 0x4 - core index']
  #allocation1 [shape = 'u32[144,128]{1,0:T(1,128)}', space=vmem, size = 0x12000, scoped, tag = 'internal scratch']
  %s0 = inlined_call_operand.vmem [shape: f32[32,4], index: 0, kind: input, shape index: {}]
  %s1 = inlined_call_operand.vmem [shape: bf16[4,4], index: 1, kind: input, shape index: {}]
  %s2 = inlined_call_operand.vmem [shape: f32[1,4], index: 2, kind: input, shape index: {}]
  %s3 = inlined_call_operand.vmem [shape: f32[32,4], index: 3, kind: output, shape index: {}]
  %s4 = sld [smem:[#allocation0]]
  $region22: #{object_transformer_forward.26} parent=0
    _
  %s6 = ssub.s32 1, %s4
  %s7 = scalar_select 0, %s6, %s4
  // Predicated region
  $region2: #{object_transformer_forward.26} parent=0 // pred_check
    _
  $region3: #{object_transformer_forward.26} parent=0 // pred_check_branch
    %9 = sbr.rel (0) target = $region5
  $region4: #{object_transformer_forward.26} parent=0 // pred_region
    _
  $region5: #{object_transformer_forward.26} parent=0 // pred_fallthru
    _
  // Predicated region
  $region6: #{object_transformer_forward.26} parent=0 // pred_check
    _
  $region7: #{object_transformer_forward.26} parent=0 // pred_check_branch
    %11 = sbr.rel (0) target = $region9
  $region8: #{object_transformer_forward.26} parent=0 // pred_region
    _
  $region9: #{object_transformer_forward.26} parent=0 // pred_fallthru
    _
  // Predicated region
  $region10: #{object_transformer_forward.26} parent=0 // pred_check
    _
  $region11: #{object_transformer_forward.26} parent=0 // pred_check_branch
    %13 = sbr.rel (0) target = $region13
  $region12: #{object_transformer_forward.26} parent=0 // pred_region
    _
  $region13: #{object_transformer_forward.26} parent=0 // pred_fallthru
    _
  %v15 = vld [vmem:[%s0] sm:$0xff]
  %v16 = vld [vmem:[%s0 + $0x8] sm:$0xff]
  %v17 = vld [vmem:[%s0 + $0x10] sm:$0xff]
  %v18 = vld [vmem:[%s0 + $0x18] sm:$0xff]
  %v19 = vpack.c.bf16 %v16, %v15
  %v20 = vpack.c.bf16 %v18, %v17
  %v21 = vld [vmem:[%s1] sm:$0x3]
  %v22 = vld [vmem:[%s2] sm:$0x1]
  %v24 = vlaneseq
  %v25 = vshrl.u32 %v24, 7
  %v26 = vsub.s32 0, %v25
  %v27 = vrot.slane %v22, %v26
  %vm29 = vcmask 31744
  %v31 = vsel %vm29, %v19, 0
  %v34 = vsel %vm29, %v20, 0
  %vm36 = vcmask 1041408
  %v38 = vsel %vm36, %v21, 0
  %40 = vmatprep.subr.bf16.mxu0 0
  %41 = vmatpush1.bf16.msra.mxu0 %v38
  %42 = vmatprep.subr.bf16.mxu0 0
  %43 = vmatpush1.bf16.msra.mxu0 0
  %44 = vmatprep.subr.bf16.mxu0 0
  %45 = vmatpush1.bf16.msra.mxu0 0
  %46 = vmatprep.subr.bf16.mxu0 0
  %47 = vmatpush1.bf16.msra.mxu0 0
  %48 = vmatprep.subr.bf16.mxu0 0
  %49 = vmatpush1.bf16.msra.mxu0 0
  %50 = vmatprep.subr.bf16.mxu0 0
  %51 = vmatpush1.bf16.msra.mxu0 0
  %52 = vmatprep.subr.bf16.mxu0 0
  %53 = vmatpush1.bf16.msra.mxu0 0
  %54 = vmatprep.subr.bf16.mxu0 0
  %55 = vmatpush1.bf16.msra.mxu0 0
  %56 = vmatprep.subr.bf16.mxu0 0
  %57 = vmatpush1.bf16.msra.mxu0 0
  %58 = vmatprep.subr.bf16.mxu0 0
  %59 = vmatpush1.bf16.msra.mxu0 0
  %60 = vmatprep.subr.bf16.mxu0 0
  %61 = vmatpush1.bf16.msra.mxu0 0
  %62 = vmatprep.subr.bf16.mxu0 0
  %63 = vmatpush1.bf16.msra.mxu0 0
  %64 = vmatprep.subr.bf16.mxu0 0
  %65 = vmatpush1.bf16.msra.mxu0 0
  %66 = vmatprep.subr.bf16.mxu0 0
  %67 = vmatpush1.bf16.msra.mxu0 0
  %68 = vmatprep.subr.bf16.mxu0 0
  %69 = vmatpush1.bf16.msra.mxu0 0
  %70 = vmatprep.subr.bf16.mxu0 0
  %71 = vmatpush1.bf16.msra.mxu0 0
  %72 = vmatprep.mubr.bf16.mxu0 0
  %73 = vmatmul.mubr.bf16.gmra.mrb[0].mxu0 %v31
  %v74 = vpop.f32.mrb[0].mxu0
  %v75 = vadd.f32 %v27, %v74
  %v76 = vpop.f32.mrb[0].mxu0
  %v77 = vpop.f32.mrb[0].mxu0
  %v78 = vadd.f32 %v27, %v77
  %v79 = vpop.f32.mrb[0].mxu0
  %80 = vmatprep.mubr.bf16.mxu0 0
  %81 = vmatmul.mubr.bf16.gmra.mrb[0].mxu0 %v34
  %v82 = vpop.f32.mrb[0].mxu0
  %v83 = vadd.f32 %v27, %v82
  %v84 = vpop.f32.mrb[0].mxu0
  %v85 = vpop.f32.mrb[0].mxu0
  %v86 = vadd.f32 %v27, %v85
  %v87 = vpop.f32.mrb[0].mxu0
  %88 = vdwg.mxu0
  %vm89 = vcmp.gt.f32.partialorder %v75, 0.0
  %vm90 = vcmp.gt.f32.partialorder %v78, 0.0
  %vm91 = vcmp.gt.f32.partialorder %v83, 0.0
  %vm92 = vcmp.gt.f32.partialorder %v86, 0.0
  %v93 = vmul.f32 %v75, 1.442695
  %v94 = vpow.pop %v93
  %v95 = vmul.f32 %v78, 1.442695
  %v96 = vpow.pop %v95
  %v97 = vmul.f32 %v83, 1.442695
  %v98 = vpow.pop %v97
  %v99 = vmul.f32 %v86, 1.442695
  %v100 = vpow.pop %v99
  %v101 = vsub.f32 %v94, 1.0
  %v102 = vsub.f32 %v96, 1.0
  %v103 = vsub.f32 %v98, 1.0
  %v104 = vsub.f32 %v100, 1.0
  %v105 = vsel %vm89, %v75, %v101
  %v106 = vsel %vm90, %v78, %v102
  %v107 = vsel %vm91, %v83, %v103
  %v108 = vsel %vm92, %v86, %v104
  %109 = vst.msk [vmem:[%s3] sm:$0xff] %vm29, %v105
  %110 = vst.msk [vmem:[%s3 + $0x8] sm:$0xff] %vm29, %v106
  %111 = vst.msk [vmem:[%s3 + $0x10] sm:$0xff] %vm29, %v107
  %112 = vst.msk [vmem:[%s3 + $0x18] sm:$0xff] %vm29, %v108
  // Predicated region
  $region14: #{object_transformer_forward.26} parent=0 // pred_check
    _
  $region15: #{object_transformer_forward.26} parent=0 // pred_check_branch
    %114 = sbr.rel (0) target = $region17
  $region16: #{object_transformer_forward.26} parent=0 // pred_region
    _
  $region17: #{object_transformer_forward.26} parent=0 // pred_fallthru
    _
  // Predicated region
  $region18: #{object_transformer_forward.26} parent=0 // pred_check
    _
  $region19: #{object_transformer_forward.26} parent=0 // pred_check_branch
    %116 = sbr.rel (0) target = $region21
  $region20: #{object_transformer_forward.26} parent=0 // pred_region
    _
  $region21: #{object_transformer_forward.26} parent=0 // pred_fallthru
    _

// kernel: object_transformer_forward.27
$region0: #{object_transformer_forward.27}
  #allocation0 [shape = 'u32[]', space=smem, size = 0x4, offset = 0x4, fixed_abs, tag = 'smem constant byte address 0x4 - core index']
  #allocation1 [shape = 'u32[144,128]{1,0:T(1,128)}', space=vmem, size = 0x12000, scoped, tag = 'internal scratch']
  %s0 = inlined_call_operand.vmem [shape: f32[32,4], index: 0, kind: input, shape index: {}]
  %s1 = inlined_call_operand.vmem [shape: bf16[4,8], index: 1, kind: input, shape index: {}]
  %s2 = inlined_call_operand.vmem [shape: f32[1,8], index: 2, kind: input, shape index: {}]
  %s3 = inlined_call_operand.vmem [shape: f32[32,8], index: 3, kind: output, shape index: {}]
  %s4 = sld [smem:[#allocation0]]
  $region22: #{object_transformer_forward.27} parent=0
    _
  %s6 = ssub.s32 1, %s4
  %s7 = scalar_select 0, %s6, %s4
  // Predicated region
  $region2: #{object_transformer_forward.27} parent=0 // pred_check
    _
  $region3: #{object_transformer_forward.27} parent=0 // pred_check_branch
    %9 = sbr.rel (0) target = $region5
  $region4: #{object_transformer_forward.27} parent=0 // pred_region
    _
  $region5: #{object_transformer_forward.27} parent=0 // pred_fallthru
    _
  // Predicated region
  $region6: #{object_transformer_forward.27} parent=0 // pred_check
    _
  $region7: #{object_transformer_forward.27} parent=0 // pred_check_branch
    %11 = sbr.rel (0) target = $region9
  $region8: #{object_transformer_forward.27} parent=0 // pred_region
    _
  $region9: #{object_transformer_forward.27} parent=0 // pred_fallthru
    _
  // Predicated region
  $region10: #{object_transformer_forward.27} parent=0 // pred_check
    _
  $region11: #{object_transformer_forward.27} parent=0 // pred_check_branch
    %13 = sbr.rel (0) target = $region13
  $region12: #{object_transformer_forward.27} parent=0 // pred_region
    _
  $region13: #{object_transformer_forward.27} parent=0 // pred_fallthru
    _
  %v15 = vld [vmem:[%s0] sm:$0xff]
  %v16 = vld [vmem:[%s0 + $0x8] sm:$0xff]
  %v17 = vld [vmem:[%s0 + $0x10] sm:$0xff]
  %v18 = vld [vmem:[%s0 + $0x18] sm:$0xff]
  %v19 = vpack.c.bf16 %v16, %v15
  %v20 = vpack.c.bf16 %v18, %v17
  %v21 = vld [vmem:[%s1] sm:$0x3]
  %v22 = vld [vmem:[%s2] sm:$0x1]
  %v24 = vlaneseq
  %v25 = vshrl.u32 %v24, 7
  %v26 = vsub.s32 0, %v25
  %v27 = vrot.slane %v22, %v26
  %vm29 = vcmask 31744
  %v31 = vsel %vm29, %v19, 0
  %v34 = vsel %vm29, %v20, 0
  %vm36 = vcmask 1041408
  %v38 = vsel %vm36, %v21, 0
  %40 = vmatprep.subr.bf16.mxu0 0
  %41 = vmatpush1.bf16.msra.mxu0 %v38
  %42 = vmatprep.subr.bf16.mxu0 0
  %43 = vmatpush1.bf16.msra.mxu0 0
  %44 = vmatprep.subr.bf16.mxu0 0
  %45 = vmatpush1.bf16.msra.mxu0 0
  %46 = vmatprep.subr.bf16.mxu0 0
  %47 = vmatpush1.bf16.msra.mxu0 0
  %48 = vmatprep.subr.bf16.mxu0 0
  %49 = vmatpush1.bf16.msra.mxu0 0
  %50 = vmatprep.subr.bf16.mxu0 0
  %51 = vmatpush1.bf16.msra.mxu0 0
  %52 = vmatprep.subr.bf16.mxu0 0
  %53 = vmatpush1.bf16.msra.mxu0 0
  %54 = vmatprep.subr.bf16.mxu0 0
  %55 = vmatpush1.bf16.msra.mxu0 0
  %56 = vmatprep.subr.bf16.mxu0 0
  %57 = vmatpush1.bf16.msra.mxu0 0
  %58 = vmatprep.subr.bf16.mxu0 0
  %59 = vmatpush1.bf16.msra.mxu0 0
  %60 = vmatprep.subr.bf16.mxu0 0
  %61 = vmatpush1.bf16.msra.mxu0 0
  %62 = vmatprep.subr.bf16.mxu0 0
  %63 = vmatpush1.bf16.msra.mxu0 0
  %64 = vmatprep.subr.bf16.mxu0 0
  %65 = vmatpush1.bf16.msra.mxu0 0
  %66 = vmatprep.subr.bf16.mxu0 0
  %67 = vmatpush1.bf16.msra.mxu0 0
  %68 = vmatprep.subr.bf16.mxu0 0
  %69 = vmatpush1.bf16.msra.mxu0 0
  %70 = vmatprep.subr.bf16.mxu0 0
  %71 = vmatpush1.bf16.msra.mxu0 0
  %72 = vmatprep.mubr.bf16.mxu0 0
  %73 = vmatmul.mubr.bf16.gmra.mrb[0].mxu0 %v31
  %v74 = vpop.f32.mrb[0].mxu0
  %v75 = vadd.f32 %v27, %v74
  %v76 = vpop.f32.mrb[0].mxu0
  %v77 = vpop.f32.mrb[0].mxu0
  %v78 = vadd.f32 %v27, %v77
  %v79 = vpop.f32.mrb[0].mxu0
  %80 = vmatprep.mubr.bf16.mxu0 0
  %81 = vmatmul.mubr.bf16.gmra.mrb[0].mxu0 %v34
  %v82 = vpop.f32.mrb[0].mxu0
  %v83 = vadd.f32 %v27, %v82
  %v84 = vpop.f32.mrb[0].mxu0
  %v85 = vpop.f32.mrb[0].mxu0
  %v86 = vadd.f32 %v27, %v85
  %v87 = vpop.f32.mrb[0].mxu0
  %88 = vdwg.mxu0
  %vm89 = vcmp.gt.f32.partialorder %v75, 0.0
  %vm90 = vcmp.gt.f32.partialorder %v78, 0.0
  %vm91 = vcmp.gt.f32.partialorder %v83, 0.0
  %vm92 = vcmp.gt.f32.partialorder %v86, 0.0
  %v93 = vmul.f32 %v75, 1.442695
  %v94 = vpow.pop %v93
  %v95 = vmul.f32 %v78, 1.442695
  %v96 = vpow.pop %v95
  %v97 = vmul.f32 %v83, 1.442695
  %v98 = vpow.pop %v97
  %v99 = vmul.f32 %v86, 1.442695
  %v100 = vpow.pop %v99
  %v101 = vsub.f32 %v94, 1.0
  %v102 = vsub.f32 %v96, 1.0
  %v103 = vsub.f32 %v98, 1.0
  %v104 = vsub.f32 %v100, 1.0
  %v105 = vsel %vm89, %v75, %v101
  %v106 = vsel %vm90, %v78, %v102
  %v107 = vsel %vm91, %v83, %v103
  %v108 = vsel %vm92, %v86, %v104
  %vm109 = vcmask 64512
  %110 = vst.msk [vmem:[%s3] sm:$0xff] %vm109, %v105
  %111 = vst.msk [vmem:[%s3 + $0x8] sm:$0xff] %vm109, %v106
  %112 = vst.msk [vmem:[%s3 + $0x10] sm:$0xff] %vm109, %v107
  %113 = vst.msk [vmem:[%s3 + $0x18] sm:$0xff] %vm109, %v108
  // Predicated region
  $region14: #{object_transformer_forward.27} parent=0 // pred_check
    _
  $region15: #{object_transformer_forward.27} parent=0 // pred_check_branch
    %115 = sbr.rel (0) target = $region17
  $region16: #{object_transformer_forward.27} parent=0 // pred_region
    _
  $region17: #{object_transformer_forward.27} parent=0 // pred_fallthru
    _
  // Predicated region
  $region18: #{object_transformer_forward.27} parent=0 // pred_check
    _
  $region19: #{object_transformer_forward.27} parent=0 // pred_check_branch
    %117 = sbr.rel (0) target = $region21
  $region20: #{object_transformer_forward.27} parent=0 // pred_region
    _
  $region21: #{object_transformer_forward.27} parent=0 // pred_fallthru
    _

// kernel: object_transformer_forward.25
$region0: #{object_transformer_forward.25}
  #allocation0 [shape = 'u32[]', space=smem, size = 0x4, offset = 0x4, fixed_abs, tag = 'smem constant byte address 0x4 - core index']
  #allocation1 [shape = 'u32[144,128]{1,0:T(1,128)}', space=vmem, size = 0x12000, scoped, tag = 'internal scratch']
  %s0 = inlined_call_operand.vmem [shape: f32[40,16], index: 0, kind: input, shape index: {}]
  %s1 = inlined_call_operand.vmem [shape: bf16[16,32], index: 1, kind: input, shape index: {}]
  %s2 = inlined_call_operand.vmem [shape: f32[1,32], index: 2, kind: input, shape index: {}]
  %s3 = inlined_call_operand.vmem [shape: f32[40,32], index: 3, kind: output, shape index: {}]
  %s4 = sld [smem:[#allocation0]]
  $region22: #{object_transformer_forward.25} parent=0
    _
  %s6 = ssub.s32 1, %s4
  %s7 = scalar_select 0, %s6, %s4
  // Predicated region
  $region2: #{object_transformer_forward.25} parent=0 // pred_check
    _
  $region3: #{object_transformer_forward.25} parent=0 // pred_check_branch
    %9 = sbr.rel (0) target = $region5
  $region4: #{object_transformer_forward.25} parent=0 // pred_region
    _
  $region5: #{object_transformer_forward.25} parent=0 // pred_fallthru
    _
  // Predicated region
  $region6: #{object_transformer_forward.25} parent=0 // pred_check
    _
  $region7: #{object_transformer_forward.25} parent=0 // pred_check_branch
    %11 = sbr.rel (0) target = $region9
  $region8: #{object_transformer_forward.25} parent=0 // pred_region
    _
  $region9: #{object_transformer_forward.25} parent=0 // pred_fallthru
    _
  // Predicated region
  $region10: #{object_transformer_forward.25} parent=0 // pred_check
    _
  $region11: #{object_transformer_forward.25} parent=0 // pred_check_branch
    %13 = sbr.rel (0) target = $region13
  $region12: #{object_transformer_forward.25} parent=0 // pred_region
    _
  $region13: #{object_transformer_forward.25} parent=0 // pred_fallthru
    _
  %v15 = vld [vmem:[%s0] sm:$0xff]
  %v16 = vld [vmem:[%s0 + $0x8] sm:$0xff]
  %v17 = vld [vmem:[%s0 + $0x10] sm:$0xff]
  %v18 = vld [vmem:[%s0 + $0x18] sm:$0xff]
  %v19 = vld [vmem:[%s0 + $0x20] sm:$0xff]
  %v20 = vpack.c.bf16 %v16, %v15
  %v21 = vpack.c.bf16 %v18, %v17
  %v22 = vpack.c.bf16 %v19, %v19
  %v23 = vld [vmem:[%s1] sm:$0xf]
  %v24 = vld [vmem:[%s1 + $0x4] sm:$0xf]
  %v25 = vld [vmem:[%s2] sm:$0x1]
  %v27 = vlaneseq
  %v28 = vshrl.u32 %v27, 7
  %v29 = vsub.s32 0, %v28
  %v30 = vrot.slane %v25, %v29
  %v34 = vunpack.c.l.b16 %v23
  %v35 = vunpack.c.l.b16 %v24
  %v36 = vpack.c.b16 %v35, %v34
  %vm38 = vcmask 130048
  %v40 = vsel %vm38, %v20, 0
  %v43 = vsel %vm38, %v21, 0
  %v46 = vsel %vm38, %v22, 0
  %48 = vmatprep.subr.bf16.mxu0 0
  %49 = vmatpush1.bf16.msra.mxu0 %v36
  %50 = vmatprep.subr.bf16.mxu0 0
  %51 = vmatpush1.bf16.msra.mxu0 0
  %52 = vmatprep.subr.bf16.mxu0 0
  %53 = vmatpush1.bf16.msra.mxu0 0
  %54 = vmatprep.subr.bf16.mxu0 0
  %55 = vmatpush1.bf16.msra.mxu0 0
  %56 = vmatprep.subr.bf16.mxu0 0
  %57 = vmatpush1.bf16.msra.mxu0 0
  %58 = vmatprep.subr.bf16.mxu0 0
  %59 = vmatpush1.bf16.msra.mxu0 0
  %60 = vmatprep.subr.bf16.mxu0 0
  %61 = vmatpush1.bf16.msra.mxu0 0
  %62 = vmatprep.subr.bf16.mxu0 0
  %63 = vmatpush1.bf16.msra.mxu0 0
  %64 = vmatprep.subr.bf16.mxu0 0
  %65 = vmatpush1.bf16.msra.mxu0 0
  %66 = vmatprep.subr.bf16.mxu0 0
  %67 = vmatpush1.bf16.msra.mxu0 0
  %68 = vmatprep.subr.bf16.mxu0 0
  %69 = vmatpush1.bf16.msra.mxu0 0
  %70 = vmatprep.subr.bf16.mxu0 0
  %71 = vmatpush1.bf16.msra.mxu0 0
  %72 = vmatprep.subr.bf16.mxu0 0
  %73 = vmatpush1.bf16.msra.mxu0 0
  %74 = vmatprep.subr.bf16.mxu0 0
  %75 = vmatpush1.bf16.msra.mxu0 0
  %76 = vmatprep.subr.bf16.mxu0 0
  %77 = vmatpush1.bf16.msra.mxu0 0
  %78 = vmatprep.subr.bf16.mxu0 0
  %79 = vmatpush1.bf16.msra.mxu0 0
  %80 = vmatprep.mubr.bf16.mxu0 0
  %81 = vmatmul.mubr.bf16.gmra.mrb[0].mxu0 %v40
  %v82 = vpop.f32.mrb[0].mxu0
  %v83 = vadd.f32 %v30, %v82
  %v84 = vpop.f32.mrb[0].mxu0
  %v85 = vpop.f32.mrb[0].mxu0
  %v86 = vadd.f32 %v30, %v85
  %v87 = vpop.f32.mrb[0].mxu0
  %88 = vmatprep.mubr.bf16.mxu0 0
  %89 = vmatmul.mubr.bf16.gmra.mrb[0].mxu0 %v43
  %v90 = vpop.f32.mrb[0].mxu0
  %v91 = vadd.f32 %v30, %v90
  %v92 = vpop.f32.mrb[0].mxu0
  %v93 = vpop.f32.mrb[0].mxu0
  %v94 = vadd.f32 %v30, %v93
  %v95 = vpop.f32.mrb[0].mxu0
  %96 = vmatprep.mubr.bf16.mxu0 0
  %97 = vmatmul.mubr.bf16.gmra.mrb[0].mxu0 %v46
  %v98 = vpop.f32.mrb[0].mxu0
  %v99 = vadd.f32 %v30, %v98
  %v100 = vpop.f32.mrb[0].mxu0
  %v101 = vpop.f32.mrb[0].mxu0
  %v102 = vpop.f32.mrb[0].mxu0
  %103 = vdwg.mxu0
  %vm104 = vcmask 261120
  %105 = vst.msk [vmem:[%s3] sm:$0xff] %vm104, %v83
  %106 = vst.msk [vmem:[%s3 + $0x8] sm:$0xff] %vm104, %v86
  %107 = vst.msk [vmem:[%s3 + $0x10] sm:$0xff] %vm104, %v91
  %108 = vst.msk [vmem:[%s3 + $0x18] sm:$0xff] %vm104, %v94
  %109 = vst.msk [vmem:[%s3 + $0x20] sm:$0xff] %vm104, %v99
  // Predicated region
  $region14: #{object_transformer_forward.25} parent=0 // pred_check
    _
  $region15: #{object_transformer_forward.25} parent=0 // pred_check_branch
    %111 = sbr.rel (0) target = $region17
  $region16: #{object_transformer_forward.25} parent=0 // pred_region
    _
  $region17: #{object_transformer_forward.25} parent=0 // pred_fallthru
    _
  // Predicated region
  $region18: #{object_transformer_forward.25} parent=0 // pred_check
    _
  $region19: #{object_transformer_forward.25} parent=0 // pred_check_branch
    %113 = sbr.rel (0) target = $region21
  $region20: #{object_transformer_forward.25} parent=0 // pred_region
    _
  $region21: #{object_transformer_forward.25} parent=0 // pred_fallthru
    _

// kernel: object_transformer_forward.28
$region0: #{object_transformer_forward.28}
  #allocation0 [shape = 'u32[]', space=smem, size = 0x4, offset = 0x4, fixed_abs, tag = 'smem constant byte address 0x4 - core index']
  #allocation1 [shape = 'u32[144,128]{1,0:T(1,128)}', space=vmem, size = 0x12000, scoped, tag = 'internal scratch']
  %s0 = inlined_call_operand.vmem [shape: f32[32,40], index: 0, kind: input, shape index: {}]
  %s1 = inlined_call_operand.vmem [shape: bf16[40,32], index: 1, kind: input, shape index: {}]
  %s2 = inlined_call_operand.vmem [shape: f32[1,32], index: 2, kind: input, shape index: {}]
  %s3 = inlined_call_operand.vmem [shape: f32[32,32], index: 3, kind: output, shape index: {}]
  %s4 = sld [smem:[#allocation0]]
  $region22: #{object_transformer_forward.28} parent=0
    _
  %s6 = ssub.s32 1, %s4
  %s7 = scalar_select 0, %s6, %s4
  // Predicated region
  $region2: #{object_transformer_forward.28} parent=0 // pred_check
    _
  $region3: #{object_transformer_forward.28} parent=0 // pred_check_branch
    %9 = sbr.rel (0) target = $region5
  $region4: #{object_transformer_forward.28} parent=0 // pred_region
    _
  $region5: #{object_transformer_forward.28} parent=0 // pred_fallthru
    _
  // Predicated region
  $region6: #{object_transformer_forward.28} parent=0 // pred_check
    _
  $region7: #{object_transformer_forward.28} parent=0 // pred_check_branch
    %11 = sbr.rel (0) target = $region9
  $region8: #{object_transformer_forward.28} parent=0 // pred_region
    _
  $region9: #{object_transformer_forward.28} parent=0 // pred_fallthru
    _
  // Predicated region
  $region10: #{object_transformer_forward.28} parent=0 // pred_check
    _
  $region11: #{object_transformer_forward.28} parent=0 // pred_check_branch
    %13 = sbr.rel (0) target = $region13
  $region12: #{object_transformer_forward.28} parent=0 // pred_region
    _
  $region13: #{object_transformer_forward.28} parent=0 // pred_fallthru
    _
  %v15 = vld [vmem:[%s0] sm:$0xff]
  %v16 = vld [vmem:[%s0 + $0x8] sm:$0xff]
  %v17 = vld [vmem:[%s0 + $0x10] sm:$0xff]
  %v18 = vld [vmem:[%s0 + $0x18] sm:$0xff]
  %v19 = vpack.c.bf16 %v16, %v15
  %v20 = vpack.c.bf16 %v18, %v17
  %v21 = vld [vmem:[%s1] sm:$0xf]
  %v22 = vld [vmem:[%s1 + $0x4] sm:$0xf]
  %v23 = vld [vmem:[%s1 + $0x8] sm:$0xf]
  %v24 = vld [vmem:[%s1 + $0xc] sm:$0xf]
  %v25 = vld [vmem:[%s1 + $0x10] sm:$0xf]
  %v26 = vld [vmem:[%s2] sm:$0x1]
  %v28 = vlaneseq
  %v29 = vshrl.u32 %v28, 7
  %v30 = vsub.s32 0, %v29
  %v31 = vrot.slane %v26, %v30
  %v38 = vunpack.c.l.b16 %v21
  %v39 = vunpack.c.l.b16 %v22
  %v40 = vunpack.c.l.b16 %v23
  %v41 = vunpack.c.l.b16 %v24
  %v42 = vunpack.c.l.b16 %v25
  %v43 = vpack.c.b16 %v39, %v38
  %v44 = vpack.c.b16 %v41, %v40
  %v45 = vpack.c.b16 %v42, %v42
  %vm48 = vcmask 326656
  %v50 = vsel %vm48, %v19, 0
  %v53 = vsel %vm48, %v20, 0
  %vm55 = vcmask 1043456
  %v57 = vsel %vm55, %v45, 0
  %59 = vmatprep.subr.bf16.mxu0 0
  %60 = vmatpush1.bf16.msra.mxu0 %v43
  %61 = vmatprep.subr.bf16.mxu0 0
  %62 = vmatpush1.bf16.msra.mxu0 %v44
  %63 = vmatprep.subr.bf16.mxu0 0
  %64 = vmatpush1.bf16.msra.mxu0 %v57
  %65 = vmatprep.subr.bf16.mxu0 0
  %66 = vmatpush1.bf16.msra.mxu0 0
  %67 = vmatprep.subr.bf16.mxu0 0
  %68 = vmatpush1.bf16.msra.mxu0 0
  %69 = vmatprep.subr.bf16.mxu0 0
  %70 = vmatpush1.bf16.msra.mxu0 0
  %71 = vmatprep.subr.bf16.mxu0 0
  %72 = vmatpush1.bf16.msra.mxu0 0
  %73 = vmatprep.subr.bf16.mxu0 0
  %74 = vmatpush1.bf16.msra.mxu0 0
  %75 = vmatprep.subr.bf16.mxu0 0
  %76 = vmatpush1.bf16.msra.mxu0 0
  %77 = vmatprep.subr.bf16.mxu0 0
  %78 = vmatpush1.bf16.msra.mxu0 0
  %79 = vmatprep.subr.bf16.mxu0 0
  %80 = vmatpush1.bf16.msra.mxu0 0
  %81 = vmatprep.subr.bf16.mxu0 0
  %82 = vmatpush1.bf16.msra.mxu0 0
  %83 = vmatprep.subr.bf16.mxu0 0
  %84 = vmatpush1.bf16.msra.mxu0 0
  %85 = vmatprep.subr.bf16.mxu0 0
  %86 = vmatpush1.bf16.msra.mxu0 0
  %87 = vmatprep.subr.bf16.mxu0 0
  %88 = vmatpush1.bf16.msra.mxu0 0
  %89 = vmatprep.subr.bf16.mxu0 0
  %90 = vmatpush1.bf16.msra.mxu0 0
  %91 = vmatprep.mubr.bf16.mxu0 0
  %92 = vmatmul.mubr.bf16.gmra.mrb[0].mxu0 %v50
  %v93 = vpop.f32.mrb[0].mxu0
  %v94 = vadd.f32 %v31, %v93
  %v95 = vpop.f32.mrb[0].mxu0
  %v96 = vpop.f32.mrb[0].mxu0
  %v97 = vadd.f32 %v31, %v96
  %v98 = vpop.f32.mrb[0].mxu0
  %99 = vmatprep.mubr.bf16.mxu0 0
  %100 = vmatmul.mubr.bf16.gmra.mrb[0].mxu0 %v53
  %v101 = vpop.f32.mrb[0].mxu0
  %v102 = vadd.f32 %v31, %v101
  %v103 = vpop.f32.mrb[0].mxu0
  %v104 = vpop.f32.mrb[0].mxu0
  %v105 = vadd.f32 %v31, %v104
  %v106 = vpop.f32.mrb[0].mxu0
  %107 = vdwg.mxu0
  %vm108 = vcmp.gt.f32.partialorder %v94, 0.0
  %vm109 = vcmp.gt.f32.partialorder %v97, 0.0
  %vm110 = vcmp.gt.f32.partialorder %v102, 0.0
  %vm111 = vcmp.gt.f32.partialorder %v105, 0.0
  %v112 = vmul.f32 %v94, 1.442695
  %v113 = vpow.pop %v112
  %v114 = vmul.f32 %v97, 1.442695
  %v115 = vpow.pop %v114
  %v116 = vmul.f32 %v102, 1.442695
  %v117 = vpow.pop %v116
  %v118 = vmul.f32 %v105, 1.442695
  %v119 = vpow.pop %v118
  %v120 = vsub.f32 %v113, 1.0
  %v121 = vsub.f32 %v115, 1.0
  %v122 = vsub.f32 %v117, 1.0
  %v123 = vsub.f32 %v119, 1.0
  %v124 = vsel %vm108, %v94, %v120
  %v125 = vsel %vm109, %v97, %v121
  %v126 = vsel %vm110, %v102, %v122
  %v127 = vsel %vm111, %v105, %v123
  %vm128 = vcmask 261120
  %129 = vst.msk [vmem:[%s3] sm:$0xff] %vm128, %v124
  %130 = vst.msk [vmem:[%s3 + $0x8] sm:$0xff] %vm128, %v125
  %131 = vst.msk [vmem:[%s3 + $0x10] sm:$0xff] %vm128, %v126
  %132 = vst.msk [vmem:[%s3 + $0x18] sm:$0xff] %vm128, %v127
  // Predicated region
  $region14: #{object_transformer_forward.28} parent=0 // pred_check
    _
  $region15: #{object_transformer_forward.28} parent=0 // pred_check_branch
    %134 = sbr.rel (0) target = $region17
  $region16: #{object_transformer_forward.28} parent=0 // pred_region
    _
  $region17: #{object_transformer_forward.28} parent=0 // pred_fallthru
    _
  // Predicated region
  $region18: #{object_transformer_forward.28} parent=0 // pred_check
    _
  $region19: #{object_transformer_forward.28} parent=0 // pred_check_branch
    %136 = sbr.rel (0) target = $region21
  $region20: #{object_transformer_forward.28} parent=0 // pred_region
    _
  $region21: #{object_transformer_forward.28} parent=0 // pred_fallthru
    _

// kernel: object_transformer_forward.30
$region0: #{object_transformer_forward.30}
  #allocation0 [shape = 'u32[]', space=smem, size = 0x4, offset = 0x4, fixed_abs, tag = 'smem constant byte address 0x4 - core index']
  #allocation1 [shape = 'u32[144,128]{1,0:T(1,128)}', space=vmem, size = 0x12000, scoped, tag = 'internal scratch']
  %s0 = inlined_call_operand.vmem [shape: f32[40,32], index: 0, kind: input, shape index: {}]
  %s1 = inlined_call_operand.vmem [shape: f32[40,32], index: 1, kind: input, shape index: {}]
  %s2 = inlined_call_operand.vmem [shape: bf16[32,32], index: 2, kind: input, shape index: {}]
  %s3 = inlined_call_operand.vmem [shape: f32[1,32], index: 3, kind: input, shape index: {}]
  %s4 = inlined_call_operand.vmem [shape: f32[40,32], index: 4, kind: output, shape index: {}]
  %s5 = sld [smem:[#allocation0]]
  $region26: #{object_transformer_forward.30} parent=0
    _
  %s7 = ssub.s32 1, %s5
  %s8 = scalar_select 0, %s7, %s5
  // Predicated region
  $region2: #{object_transformer_forward.30} parent=0 // pred_check
    _
  $region3: #{object_transformer_forward.30} parent=0 // pred_check_branch
    %10 = sbr.rel (0) target = $region5
  $region4: #{object_transformer_forward.30} parent=0 // pred_region
    _
  $region5: #{object_transformer_forward.30} parent=0 // pred_fallthru
    _
  // Predicated region
  $region6: #{object_transformer_forward.30} parent=0 // pred_check
    _
  $region7: #{object_transformer_forward.30} parent=0 // pred_check_branch
    %12 = sbr.rel (0) target = $region9
  $region8: #{object_transformer_forward.30} parent=0 // pred_region
    _
  $region9: #{object_transformer_forward.30} parent=0 // pred_fallthru
    _
  // Predicated region
  $region10: #{object_transformer_forward.30} parent=0 // pred_check
    _
  $region11: #{object_transformer_forward.30} parent=0 // pred_check_branch
    %14 = sbr.rel (0) target = $region13
  $region12: #{object_transformer_forward.30} parent=0 // pred_region
    _
  $region13: #{object_transformer_forward.30} parent=0 // pred_fallthru
    _
  // Predicated region
  $region14: #{object_transformer_forward.30} parent=0 // pred_check
    _
  $region15: #{object_transformer_forward.30} parent=0 // pred_check_branch
    %16 = sbr.rel (0) target = $region17
  $region16: #{object_transformer_forward.30} parent=0 // pred_region
    _
  $region17: #{object_transformer_forward.30} parent=0 // pred_fallthru
    _
  %v18 = vld [vmem:[%s1] sm:$0xff]
  %v19 = vld [vmem:[%s1 + $0x8] sm:$0xff]
  %v20 = vld [vmem:[%s1 + $0x10] sm:$0xff]
  %v21 = vld [vmem:[%s1 + $0x18] sm:$0xff]
  %v22 = vld [vmem:[%s1 + $0x20] sm:$0xff]
  %v23 = vpack.c.bf16 %v19, %v18
  %v24 = vpack.c.bf16 %v21, %v20
  %v25 = vpack.c.bf16 %v22, %v22
  %v26 = vld [vmem:[%s2] sm:$0xf]
  %v27 = vld [vmem:[%s2 + $0x4] sm:$0xf]
  %v28 = vld [vmem:[%s2 + $0x8] sm:$0xf]
  %v29 = vld [vmem:[%s2 + $0xc] sm:$0xf]
  %v30 = vld [vmem:[%s3] sm:$0x1]
  %v32 = vlaneseq
  %v33 = vshrl.u32 %v32, 7
  %v34 = vsub.s32 0, %v33
  %v35 = vrot.slane %v30, %v34
  %v41 = vunpack.c.l.b16 %v26
  %v42 = vunpack.c.l.b16 %v27
  %v43 = vunpack.c.l.b16 %v28
  %v44 = vunpack.c.l.b16 %v29
  %v45 = vpack.c.b16 %v42, %v41
  %v46 = vpack.c.b16 %v44, %v43
  %vm49 = vcmask 261120
  %v51 = vsel %vm49, %v23, 0
  %v54 = vsel %vm49, %v24, 0
  %v57 = vsel %vm49, %v25, 0
  %59 = vmatprep.subr.bf16.mxu0 0
  %60 = vmatpush1.bf16.msra.mxu0 %v45
  %61 = vmatprep.subr.bf16.mxu0 0
  %62 = vmatpush1.bf16.msra.mxu0 %v46
  %63 = vmatprep.subr.bf16.mxu0 0
  %64 = vmatpush1.bf16.msra.mxu0 0
  %65 = vmatprep.subr.bf16.mxu0 0
  %66 = vmatpush1.bf16.msra.mxu0 0
  %67 = vmatprep.subr.bf16.mxu0 0
  %68 = vmatpush1.bf16.msra.mxu0 0
  %69 = vmatprep.subr.bf16.mxu0 0
  %70 = vmatpush1.bf16.msra.mxu0 0
  %71 = vmatprep.subr.bf16.mxu0 0
  %72 = vmatpush1.bf16.msra.mxu0 0
  %73 = vmatprep.subr.bf16.mxu0 0
  %74 = vmatpush1.bf16.msra.mxu0 0
  %75 = vmatprep.subr.bf16.mxu0 0
  %76 = vmatpush1.bf16.msra.mxu0 0
  %77 = vmatprep.subr.bf16.mxu0 0
  %78 = vmatpush1.bf16.msra.mxu0 0
  %79 = vmatprep.subr.bf16.mxu0 0
  %80 = vmatpush1.bf16.msra.mxu0 0
  %81 = vmatprep.subr.bf16.mxu0 0
  %82 = vmatpush1.bf16.msra.mxu0 0
  %83 = vmatprep.subr.bf16.mxu0 0
  %84 = vmatpush1.bf16.msra.mxu0 0
  %85 = vmatprep.subr.bf16.mxu0 0
  %86 = vmatpush1.bf16.msra.mxu0 0
  %87 = vmatprep.subr.bf16.mxu0 0
  %88 = vmatpush1.bf16.msra.mxu0 0
  %89 = vmatprep.subr.bf16.mxu0 0
  %90 = vmatpush1.bf16.msra.mxu0 0
  %91 = vmatprep.mubr.bf16.mxu0 0
  %92 = vmatmul.mubr.bf16.gmra.mrb[0].mxu0 %v51
  %v93 = vpop.f32.mrb[0].mxu0
  %v94 = vadd.f32 %v35, %v93
  %v95 = vpop.f32.mrb[0].mxu0
  %v96 = vpop.f32.mrb[0].mxu0
  %v97 = vadd.f32 %v35, %v96
  %v98 = vpop.f32.mrb[0].mxu0
  %99 = vmatprep.mubr.bf16.mxu0 0
  %100 = vmatmul.mubr.bf16.gmra.mrb[0].mxu0 %v54
  %v101 = vpop.f32.mrb[0].mxu0
  %v102 = vadd.f32 %v35, %v101
  %v103 = vpop.f32.mrb[0].mxu0
  %v104 = vpop.f32.mrb[0].mxu0
  %v105 = vadd.f32 %v35, %v104
  %v106 = vpop.f32.mrb[0].mxu0
  %107 = vmatprep.mubr.bf16.mxu0 0
  %108 = vmatmul.mubr.bf16.gmra.mrb[0].mxu0 %v57
  %v109 = vpop.f32.mrb[0].mxu0
  %v110 = vadd.f32 %v35, %v109
  %v111 = vpop.f32.mrb[0].mxu0
  %v112 = vpop.f32.mrb[0].mxu0
  %v113 = vpop.f32.mrb[0].mxu0
  %114 = vdwg.mxu0
  %v115 = vld [vmem:[%s0] sm:$0xff]
  %v116 = vld [vmem:[%s0 + $0x8] sm:$0xff]
  %v117 = vld [vmem:[%s0 + $0x10] sm:$0xff]
  %v118 = vld [vmem:[%s0 + $0x18] sm:$0xff]
  %v119 = vld [vmem:[%s0 + $0x20] sm:$0xff]
  %v120 = vadd.f32 %v94, %v115
  %v121 = vadd.f32 %v97, %v116
  %v122 = vadd.f32 %v102, %v117
  %v123 = vadd.f32 %v105, %v118
  %v124 = vadd.f32 %v110, %v119
  %125 = vst.msk [vmem:[%s4] sm:$0xff] %vm49, %v120
  %126 = vst.msk [vmem:[%s4 + $0x8] sm:$0xff] %vm49, %v121
  %127 = vst.msk [vmem:[%s4 + $0x10] sm:$0xff] %vm49, %v122
  %128 = vst.msk [vmem:[%s4 + $0x18] sm:$0xff] %vm49, %v123
  %129 = vst.msk [vmem:[%s4 + $0x20] sm:$0xff] %vm49, %v124
  // Predicated region
  $region18: #{object_transformer_forward.30} parent=0 // pred_check
    _
  $region19: #{object_transformer_forward.30} parent=0 // pred_check_branch
    %131 = sbr.rel (0) target = $region21
  $region20: #{object_transformer_forward.30} parent=0 // pred_region
    _
  $region21: #{object_transformer_forward.30} parent=0 // pred_fallthru
    _
  // Predicated region
  $region22: #{object_transformer_forward.30} parent=0 // pred_check
    _
  $region23: #{object_transformer_forward.30} parent=0 // pred_check_branch
    %133 = sbr.rel (0) target = $region25
  $region24: #{object_transformer_forward.30} parent=0 // pred_region
    _
  $region25: #{object_transformer_forward.30} parent=0 // pred_fallthru
    _

// kernel: object_transformer_forward.32
$region0: #{object_transformer_forward.32}
  #allocation0 [shape = 'u32[]', space=smem, size = 0x4, offset = 0x4, fixed_abs, tag = 'smem constant byte address 0x4 - core index']
  #allocation1 [shape = 'u32[144,128]{1,0:T(1,128)}', space=vmem, size = 0x12000, scoped, tag = 'internal scratch']
  %s0 = inlined_call_operand.vmem [shape: f32[40,32], index: 0, kind: input, shape index: {}]
  %s1 = inlined_call_operand.vmem [shape: f32[1,32], index: 1, kind: input, shape index: {}]
  %s2 = inlined_call_operand.vmem [shape: f32[1,32], index: 2, kind: input, shape index: {}]
  %s3 = inlined_call_operand.vmem [shape: bf16[32,128], index: 3, kind: input, shape index: {}]
  %s4 = inlined_call_operand.vmem [shape: f32[1,128], index: 4, kind: input, shape index: {}]
  %s5 = inlined_call_operand.vmem [shape: f32[40,128], index: 5, kind: output, shape index: {}]
  %s6 = sld [smem:[#allocation0]]
  $region30: #{object_transformer_forward.32} parent=0
    _
  %s8 = ssub.s32 1, %s6
  %s9 = scalar_select 0, %s8, %s6
  // Predicated region
  $region2: #{object_transformer_forward.32} parent=0 // pred_check
    _
  $region3: #{object_transformer_forward.32} parent=0 // pred_check_branch
    %11 = sbr.rel (0) target = $region5
  $region4: #{object_transformer_forward.32} parent=0 // pred_region
    _
  $region5: #{object_transformer_forward.32} parent=0 // pred_fallthru
    _
  // Predicated region
  $region6: #{object_transformer_forward.32} parent=0 // pred_check
    _
  $region7: #{object_transformer_forward.32} parent=0 // pred_check_branch
    %13 = sbr.rel (0) target = $region9
  $region8: #{object_transformer_forward.32} parent=0 // pred_region
    _
  $region9: #{object_transformer_forward.32} parent=0 // pred_fallthru
    _
  // Predicated region
  $region10: #{object_transformer_forward.32} parent=0 // pred_check
    _
  $region11: #{object_transformer_forward.32} parent=0 // pred_check_branch
    %15 = sbr.rel (0) target = $region13
  $region12: #{object_transformer_forward.32} parent=0 // pred_region
    _
  $region13: #{object_transformer_forward.32} parent=0 // pred_fallthru
    _
  // Predicated region
  $region14: #{object_transformer_forward.32} parent=0 // pred_check
    _
  $region15: #{object_transformer_forward.32} parent=0 // pred_check_branch
    %17 = sbr.rel (0) target = $region17
  $region16: #{object_transformer_forward.32} parent=0 // pred_region
    _
  $region17: #{object_transformer_forward.32} parent=0 // pred_fallthru
    _
  // Predicated region
  $region18: #{object_transformer_forward.32} parent=0 // pred_check
    _
  $region19: #{object_transformer_forward.32} parent=0 // pred_check_branch
    %19 = sbr.rel (0) target = $region21
  $region20: #{object_transformer_forward.32} parent=0 // pred_region
    _
  $region21: #{object_transformer_forward.32} parent=0 // pred_fallthru
    _
  %v21 = vld [vmem:[%s0] sm:$0xff]
  %v22 = vld [vmem:[%s0 + $0x8] sm:$0xff]
  %v23 = vld [vmem:[%s0 + $0x10] sm:$0xff]
  %v24 = vld [vmem:[%s0 + $0x18] sm:$0xff]
  %v25 = vld [vmem:[%s0 + $0x20] sm:$0xff]
  %vm26 = vcmask 261120
  %v27 = vsel %vm26, %v21, 0.0
  %28 = vadd.xlane.f32.xlu0 %v27
  %v29 = vpop.xlane.xlu0 %28
  %v30 = vsel %vm26, %v22, 0.0
  %31 = vadd.xlane.f32.xlu0 %v30
  %v32 = vpop.xlane.xlu0 %31
  %v33 = vsel %vm26, %v23, 0.0
  %34 = vadd.xlane.f32.xlu0 %v33
  %v35 = vpop.xlane.xlu0 %34
  %v36 = vsel %vm26, %v24, 0.0
  %37 = vadd.xlane.f32.xlu0 %v36
  %v38 = vpop.xlane.xlu0 %37
  %v39 = vsel %vm26, %v25, 0.0
  %40 = vadd.xlane.f32.xlu0 %v39
  %v41 = vpop.xlane.xlu0 %40
  %v42 = vrcp.pop 32.0
  %v43 = vmul.f32 %v29, %v42
  %v44 = vmul.f32 %v32, %v42
  %v45 = vmul.f32 %v35, %v42
  %v46 = vmul.f32 %v38, %v42
  %v47 = vmul.f32 %v41, %v42
  %v48 = vsub.f32 %v21, %v43
  %v49 = vsub.f32 %v22, %v44
  %v50 = vsub.f32 %v23, %v45
  %v51 = vsub.f32 %v24, %v46
  %v52 = vsub.f32 %v25, %v47
  %v53 = vmul.f32 %v48, %v48
  %v54 = vmul.f32 %v49, %v49
  %v55 = vmul.f32 %v50, %v50
  %v56 = vmul.f32 %v51, %v51
  %v57 = vmul.f32 %v52, %v52
  %v58 = vsel %vm26, %v53, 0.0
  %59 = vadd.xlane.f32.xlu0 %v58
  %v60 = vpop.xlane.xlu0 %59
  %v61 = vsel %vm26, %v54, 0.0
  %62 = vadd.xlane.f32.xlu0 %v61
  %v63 = vpop.xlane.xlu0 %62
  %v64 = vsel %vm26, %v55, 0.0
  %65 = vadd.xlane.f32.xlu0 %v64
  %v66 = vpop.xlane.xlu0 %65
  %v67 = vsel %vm26, %v56, 0.0
  %68 = vadd.xlane.f32.xlu0 %v67
  %v69 = vpop.xlane.xlu0 %68
  %v70 = vsel %vm26, %v57, 0.0
  %71 = vadd.xlane.f32.xlu0 %v70
  %v72 = vpop.xlane.xlu0 %71
  %v73 = vmul.f32 %v60, %v42
  %v74 = vmul.f32 %v63, %v42
  %v75 = vmul.f32 %v66, %v42
  %v76 = vmul.f32 %v69, %v42
  %v77 = vmul.f32 %v72, %v42
  %v78 = vadd.f32 %v73, 1e-05
  %v79 = vadd.f32 %v74, 1e-05
  %v80 = vadd.f32 %v75, 1e-05
  %v81 = vadd.f32 %v76, 1e-05
  %v82 = vadd.f32 %v77, 1e-05
  %v83 = vrsqrt.pop %v78
  %v84 = vrsqrt.pop %v79
  %v85 = vrsqrt.pop %v80
  %v86 = vrsqrt.pop %v81
  %v87 = vrsqrt.pop %v82
  %v88 = vmul.f32 %v48, %v83
  %v89 = vmul.f32 %v49, %v84
  %v90 = vmul.f32 %v50, %v85
  %v91 = vmul.f32 %v51, %v86
  %v92 = vmul.f32 %v52, %v87
  %v93 = vld [vmem:[%s1] sm:$0x1]
  %v95 = vlaneseq
  %v96 = vshrl.u32 %v95, 7
  %v97 = vsub.s32 0, %v96
  %v98 = vrot.slane %v93, %v97
  %v100 = vmul.f32 %v88, %v98
  %v101 = vmul.f32 %v89, %v98
  %v102 = vmul.f32 %v90, %v98
  %v103 = vmul.f32 %v91, %v98
  %v104 = vmul.f32 %v92, %v98
  %v105 = vld [vmem:[%s2] sm:$0x1]
  %v107 = vlaneseq
  %v108 = vshrl.u32 %v107, 7
  %v109 = vsub.s32 0, %v108
  %v110 = vrot.slane %v105, %v109
  %v112 = vadd.f32 %v100, %v110
  %v113 = vadd.f32 %v101, %v110
  %v114 = vadd.f32 %v102, %v110
  %v115 = vadd.f32 %v103, %v110
  %v116 = vadd.f32 %v104, %v110
  %v117 = vpack.c.bf16 %v113, %v112
  %v118 = vpack.c.bf16 %v115, %v114
  %v119 = vpack.c.bf16 %v116, %v116
  %v120 = vld [vmem:[%s3] sm:$0xf]
  %v121 = vld [vmem:[%s3 + $0x4] sm:$0xf]
  %v122 = vld [vmem:[%s3 + $0x8] sm:$0xf]
  %v123 = vld [vmem:[%s3 + $0xc] sm:$0xf]
  %v124 = vld [vmem:[%s4] sm:$0x1]
  %v126 = vlaneseq
  %v127 = vshrl.u32 %v126, 7
  %v128 = vsub.s32 0, %v127
  %v129 = vrot.slane %v124, %v128
  %v135 = vunpack.c.l.b16 %v120
  %v136 = vunpack.c.l.b16 %v121
  %v137 = vunpack.c.l.b16 %v122
  %v138 = vunpack.c.l.b16 %v123
  %v139 = vpack.c.b16 %v136, %v135
  %v140 = vpack.c.b16 %v138, %v137
  %v144 = vsel %vm26, %v117, 0
  %v147 = vsel %vm26, %v118, 0
  %v150 = vsel %vm26, %v119, 0
  %152 = vmatprep.subr.bf16.mxu0 0
  %153 = vmatpush1.bf16.msra.mxu0 %v139
  %154 = vmatprep.subr.bf16.mxu0 0
  %155 = vmatpush1.bf16.msra.mxu0 %v140
  %156 = vmatprep.subr.bf16.mxu0 0
  %157 = vmatpush1.bf16.msra.mxu0 0
  %158 = vmatprep.subr.bf16.mxu0 0
  %159 = vmatpush1.bf16.msra.mxu0 0
  %160 = vmatprep.subr.bf16.mxu0 0
  %161 = vmatpush1.bf16.msra.mxu0 0
  %162 = vmatprep.subr.bf16.mxu0 0
  %163 = vmatpush1.bf16.msra.mxu0 0
  %164 = vmatprep.subr.bf16.mxu0 0
  %165 = vmatpush1.bf16.msra.mxu0 0
  %166 = vmatprep.subr.bf16.mxu0 0
  %167 = vmatpush1.bf16.msra.mxu0 0
  %168 = vmatprep.subr.bf16.mxu0 0
  %169 = vmatpush1.bf16.msra.mxu0 0
  %170 = vmatprep.subr.bf16.mxu0 0
  %171 = vmatpush1.bf16.msra.mxu0 0
  %172 = vmatprep.subr.bf16.mxu0 0
  %173 = vmatpush1.bf16.msra.mxu0 0
  %174 = vmatprep.subr.bf16.mxu0 0
  %175 = vmatpush1.bf16.msra.mxu0 0
  %176 = vmatprep.subr.bf16.mxu0 0
  %177 = vmatpush1.bf16.msra.mxu0 0
  %178 = vmatprep.subr.bf16.mxu0 0
  %179 = vmatpush1.bf16.msra.mxu0 0
  %180 = vmatprep.subr.bf16.mxu0 0
  %181 = vmatpush1.bf16.msra.mxu0 0
  %182 = vmatprep.subr.bf16.mxu0 0
  %183 = vmatpush1.bf16.msra.mxu0 0
  %184 = vmatprep.mubr.bf16.mxu0 0
  %185 = vmatmul.mubr.bf16.gmra.mrb[0].mxu0 %v144
  %v186 = vpop.f32.mrb[0].mxu0
  %v187 = vadd.f32 %v129, %v186
  %v188 = vpop.f32.mrb[0].mxu0
  %v189 = vpop.f32.mrb[0].mxu0
  %v190 = vadd.f32 %v129, %v189
  %v191 = vpop.f32.mrb[0].mxu0
  %192 = vmatprep.mubr.bf16.mxu0 0
  %193 = vmatmul.mubr.bf16.gmra.mrb[0].mxu0 %v147
  %v194 = vpop.f32.mrb[0].mxu0
  %v195 = vadd.f32 %v129, %v194
  %v196 = vpop.f32.mrb[0].mxu0
  %v197 = vpop.f32.mrb[0].mxu0
  %v198 = vadd.f32 %v129, %v197
  %v199 = vpop.f32.mrb[0].mxu0
  %200 = vmatprep.mubr.bf16.mxu0 0
  %201 = vmatmul.mubr.bf16.gmra.mrb[0].mxu0 %v150
  %v202 = vpop.f32.mrb[0].mxu0
  %v203 = vadd.f32 %v129, %v202
  %v204 = vpop.f32.mrb[0].mxu0
  %v205 = vpop.f32.mrb[0].mxu0
  %v206 = vpop.f32.mrb[0].mxu0
  %207 = vdwg.mxu0
  %v208 = vmul.f32 %v187, 0.5
  %v209 = vmul.f32 %v190, 0.5
  %v210 = vmul.f32 %v195, 0.5
  %v211 = vmul.f32 %v198, 0.5
  %v212 = vmul.f32 %v203, 0.5
  %v213 = vmul.f32 %v187, 0.70710677
  %v214 = vmul.f32 %v190, 0.70710677
  %v215 = vmul.f32 %v195, 0.70710677
  %v216 = vmul.f32 %v198, 0.70710677
  %v217 = vmul.f32 %v203, 0.70710677
  %v218 = verf.f32.pop %v213
  %v219 = verf.f32.pop %v214
  %v220 = verf.f32.pop %v215
  %v221 = verf.f32.pop %v216
  %v222 = verf.f32.pop %v217
  %v223 = vadd.f32 %v218, 1.0
  %v224 = vadd.f32 %v219, 1.0
  %v225 = vadd.f32 %v220, 1.0
  %v226 = vadd.f32 %v221, 1.0
  %v227 = vadd.f32 %v222, 1.0
  %v228 = vmul.f32 %v208, %v223
  %v229 = vmul.f32 %v209, %v224
  %v230 = vmul.f32 %v210, %v225
  %v231 = vmul.f32 %v211, %v226
  %v232 = vmul.f32 %v212, %v227
  %233 = vst [vmem:[%s5] sm:$0xff] %v228
  %234 = vst [vmem:[%s5 + $0x8] sm:$0xff] %v229
  %235 = vst [vmem:[%s5 + $0x10] sm:$0xff] %v230
  %236 = vst [vmem:[%s5 + $0x18] sm:$0xff] %v231
  %237 = vst [vmem:[%s5 + $0x20] sm:$0xff] %v232
  // Predicated region
  $region22: #{object_transformer_forward.32} parent=0 // pred_check
    _
  $region23: #{object_transformer_forward.32} parent=0 // pred_check_branch
    %239 = sbr.rel (0) target = $region25
  $region24: #{object_transformer_forward.32} parent=0 // pred_region
    _
  $region25: #{object_transformer_forward.32} parent=0 // pred_fallthru
    _
  // Predicated region
  $region26: #{object_transformer_forward.32} parent=0 // pred_check
    _
  $region27: #{object_transformer_forward.32} parent=0 // pred_check_branch
    %241 = sbr.rel (0) target = $region29
  $region28: #{object_transformer_forward.32} parent=0 // pred_region
    _
  $region29: #{object_transformer_forward.32} parent=0 // pred_fallthru
    _

// kernel: object_transformer_forward.29
$region0: #{object_transformer_forward.29}
  #allocation0 [shape = 'u32[]', space=smem, size = 0x4, offset = 0x4, fixed_abs, tag = 'smem constant byte address 0x4 - core index']
  #allocation1 [shape = 'u32[144,128]{1,0:T(1,128)}', space=vmem, size = 0x12000, scoped, tag = 'internal scratch']
  %s0 = inlined_call_operand.vmem [shape: f32[10,4,32], index: 0, kind: input, shape index: {}]
  %s1 = inlined_call_operand.vmem [shape: f32[10,1,4], index: 1, kind: input, shape index: {}]
  %s2 = inlined_call_operand.vmem [shape: f32[1,32], index: 2, kind: input, shape index: {}]
  %s3 = inlined_call_operand.vmem [shape: f32[1,32], index: 3, kind: input, shape index: {}]
  %s4 = inlined_call_operand.vmem [shape: bf16[32,96], index: 4, kind: input, shape index: {}]
  %s5 = inlined_call_operand.vmem [shape: f32[1,96], index: 5, kind: input, shape index: {}]
  %s6 = inlined_call_operand.vmem [shape: bf16[32,32], index: 6, kind: input, shape index: {}]
  %s7 = inlined_call_operand.vmem [shape: f32[1,32], index: 7, kind: input, shape index: {}]
  %s8 = inlined_call_operand.vmem [shape: f32[10,4,32], index: 8, kind: output, shape index: {}]
  %s9 = sld [smem:[#allocation0]]
  $region65: #{object_transformer_forward.29} parent=0
    _
  %s11 = ssub.s32 1, %s9
  %s12 = scalar_select 0, %s11, %s9
  loop: start=0, step=1, limit=12
  $region2: #{object_transformer_forward.29} parent=0 // loop_pre_header
    _
  $region3: #{object_transformer_forward.29} parent=0 // loop_header
    %s14 = sphi 0, %s18
    %p15 = scmp.ge.s32.totalorder %s14, 12
    %s24 = sphi 0, %s26
    %s27 = sphi 0, %s24
    %s28 = sphi 0, %s27
    %s44 = sphi 0, %s28
    %s50 = sphi 0, %s52
    %s53 = sphi 0, %s50
    %s54 = sphi 0, %s53
    %s70 = sphi 0, %s54
    %s74 = sphi 0, %s74
    %s76 = sphi 0, %s74
    %s77 = sphi 0, %s76
    %s91 = sphi 0, %s77
    %s95 = sphi 0, %s95
    %s97 = sphi 0, %s95
    %s98 = sphi 0, %s97
    %s112 = sphi 0, %s98
    %s116 = sphi 0, %s116
    %s118 = sphi 0, %s116
    %s119 = sphi 0, %s118
    %s133 = sphi 0, %s119
    %s137 = sphi 0, %s137
    %s139 = sphi 0, %s137
    %s140 = sphi 0, %s139
    %s154 = sphi 0, %s140
    %s158 = sphi 0, %s158
    %s160 = sphi 0, %s158
    %s161 = sphi 0, %s160
    %s175 = sphi 0, %s161
    %s179 = sphi 0, %s179
    %s181 = sphi 0, %s179
    %s182 = sphi 0, %s181
    %s196 = sphi 0, %s182
    %s202 = sphi 0, %s204
    %s205 = sphi 0, %s202
    %s206 = sphi 0, %s205
    %s222 = sphi 0, %s206
  $region4: #{object_transformer_forward.29} parent=0 // loop_header_branch
    %17 = sbr.rel (%p15) target = $region8
  $region5: #{object_transformer_forward.29} parent=0 // loop_body
    %s19 = ssub.s32 %s14, 1
    %s20 = ssub.s32 %s14, 2
    %s21 = sadd.s32 %s14, 1
    %s22 = ssub.s32 %s14, %s21
    %p23 = scmp.eq.s32.totalorder %s22, 0
    %s25 = sadd.s32 %s24, 1
    %s26 = scalar_select %p23, %s24, %s25
    %p29 = pneg %p23
    %p30 = scmp.eq.s32.totalorder %s14, 9
    %p31 = por %p29, %p30
    %p32 = scmp.ne.s32.totalorder %s24, %s27
    %p33 = scmp.eq.s32.totalorder %s14, 0
    %p34 = por %p32, %p33
    %p35 = scmp.ne.s32.totalorder %s24, %s27
    %p36 = scmp.eq.s32.totalorder %s19, 9
    %p37 = por %p35, %p36
    %p38 = scmp.ne.s32.totalorder %s27, %s28
    %p39 = scmp.eq.s32.totalorder %s19, 0
    %p40 = por %p38, %p39
    %p41 = scmp.ne.s32.totalorder %s27, %s28
    %p42 = scmp.eq.s32.totalorder %s20, 9
    %p43 = por %p41, %p42
    %p45 = scmp.ne.s32.totalorder %s28, %s44
    %p46 = scmp.eq.s32.totalorder %s20, 0
    %p47 = por %p45, %p46
    %s48 = ssub.s32 %s14, %s21
    %p49 = scmp.eq.s32.totalorder %s48, 0
    %s51 = sadd.s32 %s50, 1
    %s52 = scalar_select %p49, %s50, %s51
    %p55 = pneg %p49
    %p56 = scmp.eq.s32.totalorder %s14, 9
    %p57 = por %p55, %p56
    %p58 = scmp.ne.s32.totalorder %s50, %s53
    %p59 = scmp.eq.s32.totalorder %s14, 0
    %p60 = por %p58, %p59
    %p61 = scmp.ne.s32.totalorder %s50, %s53
    %p62 = scmp.eq.s32.totalorder %s19, 9
    %p63 = por %p61, %p62
    %p64 = scmp.ne.s32.totalorder %s53, %s54
    %p65 = scmp.eq.s32.totalorder %s19, 0
    %p66 = por %p64, %p65
    %p67 = scmp.ne.s32.totalorder %s53, %s54
    %p68 = scmp.eq.s32.totalorder %s20, 9
    %p69 = por %p67, %p68
    %p71 = scmp.ne.s32.totalorder %s54, %s70
    %p72 = scmp.eq.s32.totalorder %s20, 0
    %p73 = por %p71, %p72
    %s75 = sadd.s32 %s74, 1
    %p78 = scmp.eq.s32.totalorder %s14, 9
    %p79 = scmp.ne.s32.totalorder %s74, %s76
    %p80 = scmp.eq.s32.totalorder %s14, 0
    %p81 = por %p79, %p80
    %p82 = scmp.ne.s32.totalorder %s74, %s76
    %p83 = scmp.eq.s32.totalorder %s19, 9
    %p84 = por %p82, %p83
    %p85 = scmp.ne.s32.totalorder %s76, %s77
    %p86 = scmp.eq.s32.totalorder %s19, 0
    %p87 = por %p85, %p86
    %p88 = scmp.ne.s32.totalorder %s76, %s77
    %p89 = scmp.eq.s32.totalorder %s20, 9
    %p90 = por %p88, %p89
    %p92 = scmp.ne.s32.totalorder %s77, %s91
    %p93 = scmp.eq.s32.totalorder %s20, 0
    %p94 = por %p92, %p93
    %s96 = sadd.s32 %s95, 1
    %p99 = scmp.eq.s32.totalorder %s14, 9
    %p100 = scmp.ne.s32.totalorder %s95, %s97
    %p101 = scmp.eq.s32.totalorder %s14, 0
    %p102 = por %p100, %p101
    %p103 = scmp.ne.s32.totalorder %s95, %s97
    %p104 = scmp.eq.s32.totalorder %s19, 9
    %p105 = por %p103, %p104
    %p106 = scmp.ne.s32.totalorder %s97, %s98
    %p107 = scmp.eq.s32.totalorder %s19, 0
    %p108 = por %p106, %p107
    %p109 = scmp.ne.s32.totalorder %s97, %s98
    %p110 = scmp.eq.s32.totalorder %s20, 9
    %p111 = por %p109, %p110
    %p113 = scmp.ne.s32.totalorder %s98, %s112
    %p114 = scmp.eq.s32.totalorder %s20, 0
    %p115 = por %p113, %p114
    %s117 = sadd.s32 %s116, 1
    %p120 = scmp.eq.s32.totalorder %s14, 9
    %p121 = scmp.ne.s32.totalorder %s116, %s118
    %p122 = scmp.eq.s32.totalorder %s14, 0
    %p123 = por %p121, %p122
    %p124 = scmp.ne.s32.totalorder %s116, %s118
    %p125 = scmp.eq.s32.totalorder %s19, 9
    %p126 = por %p124, %p125
    %p127 = scmp.ne.s32.totalorder %s118, %s119
    %p128 = scmp.eq.s32.totalorder %s19, 0
    %p129 = por %p127, %p128
    %p130 = scmp.ne.s32.totalorder %s118, %s119
    %p131 = scmp.eq.s32.totalorder %s20, 9
    %p132 = por %p130, %p131
    %p134 = scmp.ne.s32.totalorder %s119, %s133
    %p135 = scmp.eq.s32.totalorder %s20, 0
    %p136 = por %p134, %p135
    %s138 = sadd.s32 %s137, 1
    %p141 = scmp.eq.s32.totalorder %s14, 9
    %p142 = scmp.ne.s32.totalorder %s137, %s139
    %p143 = scmp.eq.s32.totalorder %s14, 0
    %p144 = por %p142, %p143
    %p145 = scmp.ne.s32.totalorder %s137, %s139
    %p146 = scmp.eq.s32.totalorder %s19, 9
    %p147 = por %p145, %p146
    %p148 = scmp.ne.s32.totalorder %s139, %s140
    %p149 = scmp.eq.s32.totalorder %s19, 0
    %p150 = por %p148, %p149
    %p151 = scmp.ne.s32.totalorder %s139, %s140
    %p152 = scmp.eq.s32.totalorder %s20, 9
    %p153 = por %p151, %p152
    %p155 = scmp.ne.s32.totalorder %s140, %s154
    %p156 = scmp.eq.s32.totalorder %s20, 0
    %p157 = por %p155, %p156
    %s159 = sadd.s32 %s158, 1
    %p162 = scmp.eq.s32.totalorder %s14, 9
    %p163 = scmp.ne.s32.totalorder %s158, %s160
    %p164 = scmp.eq.s32.totalorder %s14, 0
    %p165 = por %p163, %p164
    %p166 = scmp.ne.s32.totalorder %s158, %s160
    %p167 = scmp.eq.s32.totalorder %s19, 9
    %p168 = por %p166, %p167
    %p169 = scmp.ne.s32.totalorder %s160, %s161
    %p170 = scmp.eq.s32.totalorder %s19, 0
    %p171 = por %p169, %p170
    %p172 = scmp.ne.s32.totalorder %s160, %s161
    %p173 = scmp.eq.s32.totalorder %s20, 9
    %p174 = por %p172, %p173
    %p176 = scmp.ne.s32.totalorder %s161, %s175
    %p177 = scmp.eq.s32.totalorder %s20, 0
    %p178 = por %p176, %p177
    %s180 = sadd.s32 %s179, 1
    %p183 = scmp.eq.s32.totalorder %s14, 9
    %p184 = scmp.ne.s32.totalorder %s179, %s181
    %p185 = scmp.eq.s32.totalorder %s14, 0
    %p186 = por %p184, %p185
    %p187 = scmp.ne.s32.totalorder %s179, %s181
    %p188 = scmp.eq.s32.totalorder %s19, 9
    %p189 = por %p187, %p188
    %p190 = scmp.ne.s32.totalorder %s181, %s182
    %p191 = scmp.eq.s32.totalorder %s19, 0
    %p192 = por %p190, %p191
    %p193 = scmp.ne.s32.totalorder %s181, %s182
    %p194 = scmp.eq.s32.totalorder %s20, 9
    %p195 = por %p193, %p194
    %p197 = scmp.ne.s32.totalorder %s182, %s196
    %p198 = scmp.eq.s32.totalorder %s20, 0
    %p199 = por %p197, %p198
    %s200 = ssub.s32 %s14, %s21
    %p201 = scmp.eq.s32.totalorder %s200, 0
    %s203 = sadd.s32 %s202, 1
    %s204 = scalar_select %p201, %s202, %s203
    %p207 = pneg %p201
    %p208 = scmp.eq.s32.totalorder %s14, 9
    %p209 = por %p207, %p208
    %p210 = scmp.ne.s32.totalorder %s202, %s205
    %p211 = scmp.eq.s32.totalorder %s14, 0
    %p212 = por %p210, %p211
    %p213 = scmp.ne.s32.totalorder %s202, %s205
    %p214 = scmp.eq.s32.totalorder %s19, 9
    %p215 = por %p213, %p214
    %p216 = scmp.ne.s32.totalorder %s205, %s206
    %p217 = scmp.eq.s32.totalorder %s19, 0
    %p218 = por %p216, %p217
    %p219 = scmp.ne.s32.totalorder %s205, %s206
    %p220 = scmp.eq.s32.totalorder %s20, 9
    %p221 = por %p219, %p220
    %p223 = scmp.ne.s32.totalorder %s206, %s222
    %p224 = scmp.eq.s32.totalorder %s20, 0
    %p225 = por %p223, %p224
    %p226 = scmp.le.s32.totalorder 1, %s14
    %p227 = scmp.lt.s32.totalorder %s14, 11
    %p228 = pnand %p226, %p227
    %p229 = pneg %p228
    // Predicated region
    $region9: #{object_transformer_forward.29} parent=5 // pred_check
      _
    $region10: #{object_transformer_forward.29} parent=5 // pred_check_branch
      %231 = sbr.rel (%p228) target = $region12
    $region11: #{object_transformer_forward.29} parent=5 // pred_region
      %s232 = ssub.s32 %s14, 1
      // Predicated region
      $region13: #{object_transformer_forward.29} parent=11 // pred_check
        %p233 = pneg %p87
      $region14: #{object_transformer_forward.29} parent=11 // pred_check_branch
        %235 = sbr.rel (%p233) target = $region16
      $region15: #{object_transformer_forward.29} parent=11 // pred_region
        _
      $region16: #{object_transformer_forward.29} parent=11 // pred_fallthru
        _
      // Predicated region
      $region17: #{object_transformer_forward.29} parent=11 // pred_check
        %p236 = pneg %p108
      $region18: #{object_transformer_forward.29} parent=11 // pred_check_branch
        %238 = sbr.rel (%p236) target = $region20
      $region19: #{object_transformer_forward.29} parent=11 // pred_region
        _
      $region20: #{object_transformer_forward.29} parent=11 // pred_fallthru
        _
      // Predicated region
      $region21: #{object_transformer_forward.29} parent=11 // pred_check
        %p239 = pneg %p129
      $region22: #{object_transformer_forward.29} parent=11 // pred_check_branch
        %241 = sbr.rel (%p239) target = $region24
      $region23: #{object_transformer_forward.29} parent=11 // pred_region
        _
      $region24: #{object_transformer_forward.29} parent=11 // pred_fallthru
        _
      // Predicated region
      $region25: #{object_transformer_forward.29} parent=11 // pred_check
        %p242 = pneg %p150
      $region26: #{object_transformer_forward.29} parent=11 // pred_check_branch
        %244 = sbr.rel (%p242) target = $region28
      $region27: #{object_transformer_forward.29} parent=11 // pred_region
        _
      $region28: #{object_transformer_forward.29} parent=11 // pred_fallthru
        _
      // Predicated region
      $region29: #{object_transformer_forward.29} parent=11 // pred_check
        %p245 = pneg %p171
      $region30: #{object_transformer_forward.29} parent=11 // pred_check_branch
        %247 = sbr.rel (%p245) target = $region32
      $region31: #{object_transformer_forward.29} parent=11 // pred_region
        _
      $region32: #{object_transformer_forward.29} parent=11 // pred_fallthru
        _
      // Predicated region
      $region33: #{object_transformer_forward.29} parent=11 // pred_check
        %p248 = pneg %p192
      $region34: #{object_transformer_forward.29} parent=11 // pred_check_branch
        %250 = sbr.rel (%p248) target = $region36
      $region35: #{object_transformer_forward.29} parent=11 // pred_region
        _
      $region36: #{object_transformer_forward.29} parent=11 // pred_fallthru
        _
    $region12: #{object_transformer_forward.29} parent=5 // pred_fallthru
      _
    %p251 = scmp.lt.s32.totalorder %s14, 10
    // Predicated region
    $region37: #{object_transformer_forward.29} parent=5 // pred_check
      %p252 = pneg %p251
    $region38: #{object_transformer_forward.29} parent=5 // pred_check_branch
      %254 = sbr.rel (%p252) target = $region40
    $region39: #{object_transformer_forward.29} parent=5 // pred_region
      // Predicated region
      $region41: #{object_transformer_forward.29} parent=39 // pred_check
        %p255 = pneg %p34
      $region42: #{object_transformer_forward.29} parent=39 // pred_check_branch
        %257 = sbr.rel (%p255) target = $region44
      $region43: #{object_transformer_forward.29} parent=39 // pred_region
        %p258 = scmp.lt.s32.totalorder %s14, 9
        %s259 = scalar_select %p258, %s14, 9
        %s260 = smul.addr %s259, 4
        %s261 = scalar_lea.vmem %s0, %s260
      $region44: #{object_transformer_forward.29} parent=39 // pred_fallthru
        _
      // Predicated region
      $region45: #{object_transformer_forward.29} parent=39 // pred_check
        %p262 = pneg %p60
      $region46: #{object_transformer_forward.29} parent=39 // pred_check_branch
        %264 = sbr.rel (%p262) target = $region48
      $region47: #{object_transformer_forward.29} parent=39 // pred_region
        %p265 = scmp.lt.s32.totalorder %s14, 9
        %s266 = scalar_select %p265, %s14, 9
        %s267 = scalar_lea.vmem %s1, %s266
      $region48: #{object_transformer_forward.29} parent=39 // pred_fallthru
        _
    $region40: #{object_transformer_forward.29} parent=5 // pred_fallthru
      _
    %p268 = scmp.le.s32.totalorder 1, %s14
    %p269 = scmp.lt.s32.totalorder %s14, 11
    %p270 = pnand %p268, %p269
    %p271 = pneg %p270
    // Predicated region
    $region49: #{object_transformer_forward.29} parent=5 // pred_check
      _
    $region50: #{object_transformer_forward.29} parent=5 // pred_check_branch
      %273 = sbr.rel (%p270) target = $region52
    $region51: #{object_transformer_forward.29} parent=5 // pred_region
      %s274 = ssub.s32 %s14, 1
      %p275 = scmp.lt.s32.totalorder %s19, 9
      %s276 = scalar_select %p275, %s19, 9
      %s277 = smul.addr %s276, 4
      %s278 = scalar_lea.vmem %s0, %s277
      %p279 = pneg %p40
      %p280 = pneg %p37
      %p281 = scmp.lt.s32.totalorder %s19, 9
      %s282 = scalar_select %p281, %s19, 9
      %s283 = scalar_lea.vmem %s1, %s282
      %p284 = pneg %p66
      %p285 = pneg %p63
      %p286 = pneg %p87
      %p287 = pneg %p84
      %p288 = pneg %p108
      %p289 = pneg %p105
      %p290 = pneg %p129
      %p291 = pneg %p126
      %p292 = pneg %p150
      %p293 = pneg %p147
      %p294 = pneg %p171
      %p295 = pneg %p168
      %p296 = pneg %p192
      %p297 = pneg %p189
      %p298 = pneg %p218
      %p299 = pneg %p215
      %p300 = scmp.lt.s32.totalorder %s19, 9
      %s301 = scalar_select %p300, %s19, 9
      %s302 = smul.addr %s301, 4
      %s303 = scalar_lea.vmem %s8, %s302
      %p304 = scmp.lt.s32.totalorder %s19, 9
      %s305 = scalar_select %p304, %s19, 9
      %s306 = smul.addr %s305, 4
      %s307 = scalar_lea.vmem %s0, %s306
      %p308 = scmp.lt.s32.totalorder %s19, 9
      %s309 = scalar_select %p308, %s19, 9
      %s310 = scalar_lea.vmem %s1, %s309
      %p311 = scmp.lt.s32.totalorder %s19, 9
      %s312 = scalar_select %p311, %s19, 9
      %s313 = smul.addr %s312, 4
      %s314 = scalar_lea.vmem %s8, %s313
      %v316 = vld [vmem:[%s307] sm:$0xf]
      %vm317 = vcmask 257024
      %v318 = vsel %vm317, %v316, 0.0
      %319 = vadd.xlane.f32.xlu0 %v318
      %v320 = vpop.xlane.xlu0 %319
      %v321 = vrcp.pop 32.0
      %v322 = vmul.f32 %v320, %v321
      %v323 = vsub.f32 %v316, %v322
      %v324 = vmul.f32 %v323, %v323
      %v325 = vsel %vm317, %v324, 0.0
      %326 = vadd.xlane.f32.xlu0 %v325
      %v327 = vpop.xlane.xlu0 %326
      %v328 = vmul.f32 %v327, %v321
      %v329 = vadd.f32 %v328, 1e-05
      %v330 = vrsqrt.pop %v329
      %v331 = vmul.f32 %v323, %v330
      %v332 = vld [vmem:[%s2] sm:$0x1]
      %v334 = vlaneseq
      %v335 = vshrl.u32 %v334, 7
      %v336 = vsub.s32 0, %v335
      %v337 = vrot.slane %v332, %v336
      %v339 = vmul.f32 %v331, %v337
      %v340 = vld [vmem:[%s3] sm:$0x1]
      %v342 = vlaneseq
      %v343 = vshrl.u32 %v342, 7
      %v344 = vsub.s32 0, %v343
      %v345 = vrot.slane %v340, %v344
      %v347 = vadd.f32 %v339, %v345
      %v348 = vpack.c.bf16 %v347, %v347
      %v349 = vld [vmem:[%s4] sm:$0xf]
      %v350 = vld [vmem:[%s4 + $0x4] sm:$0xf]
      %v351 = vld [vmem:[%s4 + $0x8] sm:$0xf]
      %v352 = vld [vmem:[%s4 + $0xc] sm:$0xf]
      %v353 = vld [vmem:[%s5] sm:$0x1]
      %v355 = vlaneseq
      %v356 = vshrl.u32 %v355, 7
      %v357 = vsub.s32 0, %v356
      %v358 = vrot.slane %v353, %v357
      %v364 = vunpack.c.l.b16 %v349
      %v365 = vunpack.c.l.b16 %v350
      %v366 = vunpack.c.l.b16 %v351
      %v367 = vunpack.c.l.b16 %v352
      %v368 = vpack.c.b16 %v365, %v364
      %v369 = vpack.c.b16 %v367, %v366
      %vm372 = vcmask 261120
      %v374 = vsel %vm372, %v348, 0
      %376 = vmatprep.subr.bf16.mxu0 0
      %377 = vmatpush1.bf16.msra.mxu0 %v368
      %378 = vmatprep.subr.bf16.mxu0 0
      %379 = vmatpush1.bf16.msra.mxu0 %v369
      %380 = vmatprep.subr.bf16.mxu0 0
      %381 = vmatpush1.bf16.msra.mxu0 0
      %382 = vmatprep.subr.bf16.mxu0 0
      %383 = vmatpush1.bf16.msra.mxu0 0
      %384 = vmatprep.subr.bf16.mxu0 0
      %385 = vmatpush1.bf16.msra.mxu0 0
      %386 = vmatprep.subr.bf16.mxu0 0
      %387 = vmatpush1.bf16.msra.mxu0 0
      %388 = vmatprep.subr.bf16.mxu0 0
      %389 = vmatpush1.bf16.msra.mxu0 0
      %390 = vmatprep.subr.bf16.mxu0 0
      %391 = vmatpush1.bf16.msra.mxu0 0
      %392 = vmatprep.subr.bf16.mxu0 0
      %393 = vmatpush1.bf16.msra.mxu0 0
      %394 = vmatprep.subr.bf16.mxu0 0
      %395 = vmatpush1.bf16.msra.mxu0 0
      %396 = vmatprep.subr.bf16.mxu0 0
      %397 = vmatpush1.bf16.msra.mxu0 0
      %398 = vmatprep.subr.bf16.mxu0 0
      %399 = vmatpush1.bf16.msra.mxu0 0
      %400 = vmatprep.subr.bf16.mxu0 0
      %401 = vmatpush1.bf16.msra.mxu0 0
      %402 = vmatprep.subr.bf16.mxu0 0
      %403 = vmatpush1.bf16.msra.mxu0 0
      %404 = vmatprep.subr.bf16.mxu0 0
      %405 = vmatpush1.bf16.msra.mxu0 0
      %406 = vmatprep.subr.bf16.mxu0 0
      %407 = vmatpush1.bf16.msra.mxu0 0
      %408 = vmatprep.mubr.bf16.mxu0 0
      %409 = vmatmul.mubr.bf16.gmra.mrb[0].mxu0 %v374
      %v410 = vpop.f32.mrb[0].mxu0
      %v411 = vadd.f32 %v358, %v410
      %v412 = vpop.f32.mrb[0].mxu0
      %v413 = vpop.f32.mrb[0].mxu0
      %v414 = vpop.f32.mrb[0].mxu0
      %415 = vdwg.mxu0
      %v416 = vld [vmem:[%s310] sm:$0x1]
      %v417 = vpack.c.bf16 %v411, %v411
      %419 = vrot.lane.b32.xlu0 %v417, 96
      %v420 = vpop.permute.xlu0 %419
      %vm421 = vcmask 64512
      %v423 = vsel %vm421, %v417, 0
      %v426 = vsel %vm421, %v420, 0
      %428 = vmatprep.subr.bf16.mxu0 0
      %429 = vmatpush1.bf16.xpose.msra.mxu0 %v426
      %430 = vmatprep.subr.bf16.mxu0 0
      %431 = vmatpush1.bf16.xpose.msra.mxu0 0
      %432 = vmatprep.subr.bf16.mxu0 0
      %433 = vmatpush1.bf16.xpose.msra.mxu0 0
      %434 = vmatprep.subr.bf16.mxu0 0
      %435 = vmatpush1.bf16.xpose.msra.mxu0 0
      %436 = vmatprep.subr.bf16.mxu0 0
      %437 = vmatpush1.bf16.xpose.msra.mxu0 0
      %438 = vmatprep.subr.bf16.mxu0 0
      %439 = vmatpush1.bf16.xpose.msra.mxu0 0
      %440 = vmatprep.subr.bf16.mxu0 0
      %441 = vmatpush1.bf16.xpose.msra.mxu0 0
      %442 = vmatprep.subr.bf16.mxu0 0
      %443 = vmatpush1.bf16.xpose.msra.mxu0 0
      %444 = vmatprep.subr.bf16.mxu0 0
      %445 = vmatpush1.bf16.xpose.msra.mxu0 0
      %446 = vmatprep.subr.bf16.mxu0 0
      %447 = vmatpush1.bf16.xpose.msra.mxu0 0
      %448 = vmatprep.subr.bf16.mxu0 0
      %449 = vmatpush1.bf16.xpose.msra.mxu0 0
      %450 = vmatprep.subr.bf16.mxu0 0
      %451 = vmatpush1.bf16.xpose.msra.mxu0 0
      %452 = vmatprep.subr.bf16.mxu0 0
      %453 = vmatpush1.bf16.xpose.msra.mxu0 0
      %454 = vmatprep.subr.bf16.mxu0 0
      %455 = vmatpush1.bf16.xpose.msra.mxu0 0
      %456 = vmatprep.subr.bf16.mxu0 0
      %457 = vmatpush1.bf16.xpose.msra.mxu0 0
      %458 = vmatprep.subr.bf16.mxu0 0
      %459 = vmatpush1.bf16.xpose.msra.mxu0 0
      %460 = vmatprep.mubr.bf16.mxu0 0
      %461 = vmatmul.mubr.bf16.gmra.mrb[0].mxu0 %v423
      %v462 = vpop.f32.mrb[0].mxu0
      %v463 = vadd.f32 0.0, %v462
      %v464 = vpop.f32.mrb[0].mxu0
      %v465 = vpop.f32.mrb[0].mxu0
      %v466 = vpop.f32.mrb[0].mxu0
      %467 = vdwg.mxu0
      %v468 = vmul.f32 %v463, 0.35355338
      %v470 = vlaneseq
      %v471 = vshrl.u32 %v470, 7
      %v472 = vsub.s32 0, %v471
      %v473 = vrot.slane %v416, %v472
      %v475 = vadd.f32 %v468, %v473
      %vm476 = vcmask 27648
      %v477 = vsel %vm476, %v475, -inf
      %478 = vmax.xlane.f32.xlu0 %v477
      %v479 = vpop.xlane.xlu0 %478
      %v480 = vsub.f32 %v475, %v479
      %v481 = vmul.f32 %v480, 1.442695
      %v482 = vpow.pop %v481
      %v483 = vsel %vm476, %v482, 0.0
      %484 = vadd.xlane.f32.xlu0 %v483
      %v485 = vpop.xlane.xlu0 %484
      %v486 = vrcp.pop %v485
      %v487 = vmul.f32 %v482, %v486
      %v488 = vpack.c.bf16 %v487, %v487
      %489 = vrot.lane.b32.xlu0 %v417, 64
      %v490 = vpop.permute.xlu0 %489
      %vm491 = vcmask 31744
      %v493 = vsel %vm491, %v488, 0
      %vm495 = vcmask 1041408
      %v497 = vsel %vm495, %v490, 0
      %499 = vmatprep.subr.bf16.mxu0 0
      %500 = vmatpush1.bf16.msra.mxu0 %v497
      %501 = vmatprep.subr.bf16.mxu0 0
      %502 = vmatpush1.bf16.msra.mxu0 0
      %503 = vmatprep.subr.bf16.mxu0 0
      %504 = vmatpush1.bf16.msra.mxu0 0
      %505 = vmatprep.subr.bf16.mxu0 0
      %506 = vmatpush1.bf16.msra.mxu0 0
      %507 = vmatprep.subr.bf16.mxu0 0
      %508 = vmatpush1.bf16.msra.mxu0 0
      %509 = vmatprep.subr.bf16.mxu0 0
      %510 = vmatpush1.bf16.msra.mxu0 0
      %511 = vmatprep.subr.bf16.mxu0 0
      %512 = vmatpush1.bf16.msra.mxu0 0
      %513 = vmatprep.subr.bf16.mxu0 0
      %514 = vmatpush1.bf16.msra.mxu0 0
      %515 = vmatprep.subr.bf16.mxu0 0
      %516 = vmatpush1.bf16.msra.mxu0 0
      %517 = vmatprep.subr.bf16.mxu0 0
      %518 = vmatpush1.bf16.msra.mxu0 0
      %519 = vmatprep.subr.bf16.mxu0 0
      %520 = vmatpush1.bf16.msra.mxu0 0
      %521 = vmatprep.subr.bf16.mxu0 0
      %522 = vmatpush1.bf16.msra.mxu0 0
      %523 = vmatprep.subr.bf16.mxu0 0
      %524 = vmatpush1.bf16.msra.mxu0 0
      %525 = vmatprep.subr.bf16.mxu0 0
      %526 = vmatpush1.bf16.msra.mxu0 0
      %527 = vmatprep.subr.bf16.mxu0 0
      %528 = vmatpush1.bf16.msra.mxu0 0
      %529 = vmatprep.subr.bf16.mxu0 0
      %530 = vmatpush1.bf16.msra.mxu0 0
      %531 = vmatprep.mubr.bf16.mxu0 0
      %532 = vmatmul.mubr.bf16.gmra.mrb[0].mxu0 %v493
      %v533 = vpop.f32.mrb[0].mxu0
      %v534 = vadd.f32 0.0, %v533
      %v535 = vpop.f32.mrb[0].mxu0
      %v536 = vpop.f32.mrb[0].mxu0
      %v537 = vpop.f32.mrb[0].mxu0
      %538 = vdwg.mxu0
      %539 = vrot.lane.b32.xlu0 %v417, 120
      %v540 = vpop.permute.xlu0 %539
      %541 = vrot.lane.b32.xlu0 %v417, 88
      %v542 = vpop.permute.xlu0 %541
      %v544 = vsel %vm421, %v540, 0
      %v547 = vsel %vm421, %v542, 0
      %549 = vmatprep.subr.bf16.mxu0 0
      %550 = vmatpush1.bf16.xpose.msra.mxu0 %v547
      %551 = vmatprep.subr.bf16.mxu0 0
      %552 = vmatpush1.bf16.xpose.msra.mxu0 0
      %553 = vmatprep.subr.bf16.mxu0 0
      %554 = vmatpush1.bf16.xpose.msra.mxu0 0
      %555 = vmatprep.subr.bf16.mxu0 0
      %556 = vmatpush1.bf16.xpose.msra.mxu0 0
      %557 = vmatprep.subr.bf16.mxu0 0
      %558 = vmatpush1.bf16.xpose.msra.mxu0 0
      %559 = vmatprep.subr.bf16.mxu0 0
      %560 = vmatpush1.bf16.xpose.msra.mxu0 0
      %561 = vmatprep.subr.bf16.mxu0 0
      %562 = vmatpush1.bf16.xpose.msra.mxu0 0
      %563 = vmatprep.subr.bf16.mxu0 0
      %564 = vmatpush1.bf16.xpose.msra.mxu0 0
      %565 = vmatprep.subr.bf16.mxu0 0
      %566 = vmatpush1.bf16.xpose.msra.mxu0 0
      %567 = vmatprep.subr.bf16.mxu0 0
      %568 = vmatpush1.bf16.xpose.msra.mxu0 0
      %569 = vmatprep.subr.bf16.mxu0 0
      %570 = vmatpush1.bf16.xpose.msra.mxu0 0
      %571 = vmatprep.subr.bf16.mxu0 0
      %572 = vmatpush1.bf16.xpose.msra.mxu0 0
      %573 = vmatprep.subr.bf16.mxu0 0
      %574 = vmatpush1.bf16.xpose.msra.mxu0 0
      %575 = vmatprep.subr.bf16.mxu0 0
      %576 = vmatpush1.bf16.xpose.msra.mxu0 0
      %577 = vmatprep.subr.bf16.mxu0 0
      %578 = vmatpush1.bf16.xpose.msra.mxu0 0
      %579 = vmatprep.subr.bf16.mxu0 0
      %580 = vmatpush1.bf16.xpose.msra.mxu0 0
      %581 = vmatprep.mubr.bf16.mxu0 0
      %582 = vmatmul.mubr.bf16.gmra.mrb[0].mxu0 %v544
      %v583 = vpop.f32.mrb[0].mxu0
      %v584 = vadd.f32 0.0, %v583
      %v585 = vpop.f32.mrb[0].mxu0
      %v586 = vpop.f32.mrb[0].mxu0
      %v587 = vpop.f32.mrb[0].mxu0
      %588 = vdwg.mxu0
      %v589 = vmul.f32 %v584, 0.35355338
      %v590 = vadd.f32 %v589, %v473
      %v591 = vsel %vm476, %v590, -inf
      %592 = vmax.xlane.f32.xlu0 %v591
      %v593 = vpop.xlane.xlu0 %592
      %v594 = vsub.f32 %v590, %v593
      %v595 = vmul.f32 %v594, 1.442695
      %v596 = vpow.pop %v595
      %v597 = vsel %vm476, %v596, 0.0
      %598 = vadd.xlane.f32.xlu0 %v597
      %v599 = vpop.xlane.xlu0 %598
      %v600 = vrcp.pop %v599
      %v601 = vmul.f32 %v596, %v600
      %v602 = vpack.c.bf16 %v601, %v601
      %603 = vrot.lane.b32.xlu0 %v417, 56
      %v604 = vpop.permute.xlu0 %603
      %v606 = vsel %vm491, %v602, 0
      %v609 = vsel %vm495, %v604, 0
      %611 = vmatprep.subr.bf16.mxu0 0
      %612 = vmatpush1.bf16.msra.mxu0 %v609
      %613 = vmatprep.subr.bf16.mxu0 0
      %614 = vmatpush1.bf16.msra.mxu0 0
      %615 = vmatprep.subr.bf16.mxu0 0
      %616 = vmatpush1.bf16.msra.mxu0 0
      %617 = vmatprep.subr.bf16.mxu0 0
      %618 = vmatpush1.bf16.msra.mxu0 0
      %619 = vmatprep.subr.bf16.mxu0 0
      %620 = vmatpush1.bf16.msra.mxu0 0
      %621 = vmatprep.subr.bf16.mxu0 0
      %622 = vmatpush1.bf16.msra.mxu0 0
      %623 = vmatprep.subr.bf16.mxu0 0
      %624 = vmatpush1.bf16.msra.mxu0 0
      %625 = vmatprep.subr.bf16.mxu0 0
      %626 = vmatpush1.bf16.msra.mxu0 0
      %627 = vmatprep.subr.bf16.mxu0 0
      %628 = vmatpush1.bf16.msra.mxu0 0
      %629 = vmatprep.subr.bf16.mxu0 0
      %630 = vmatpush1.bf16.msra.mxu0 0
      %631 = vmatprep.subr.bf16.mxu0 0
      %632 = vmatpush1.bf16.msra.mxu0 0
      %633 = vmatprep.subr.bf16.mxu0 0
      %634 = vmatpush1.bf16.msra.mxu0 0
      %635 = vmatprep.subr.bf16.mxu0 0
      %636 = vmatpush1.bf16.msra.mxu0 0
      %637 = vmatprep.subr.bf16.mxu0 0
      %638 = vmatpush1.bf16.msra.mxu0 0
      %639 = vmatprep.subr.bf16.mxu0 0
      %640 = vmatpush1.bf16.msra.mxu0 0
      %641 = vmatprep.subr.bf16.mxu0 0
      %642 = vmatpush1.bf16.msra.mxu0 0
      %643 = vmatprep.mubr.bf16.mxu0 0
      %644 = vmatmul.mubr.bf16.gmra.mrb[0].mxu0 %v606
      %v645 = vpop.f32.mrb[0].mxu0
      %v646 = vadd.f32 0.0, %v645
      %v647 = vpop.f32.mrb[0].mxu0
      %v648 = vpop.f32.mrb[0].mxu0
      %v649 = vpop.f32.mrb[0].mxu0
      %650 = vdwg.mxu0
      %651 = vrot.lane.b32.xlu0 %v417, 112
      %v652 = vpop.permute.xlu0 %651
      %653 = vrot.lane.b32.xlu0 %v417, 80
      %v654 = vpop.permute.xlu0 %653
      %v656 = vsel %vm421, %v652, 0
      %v659 = vsel %vm421, %v654, 0
      %661 = vmatprep.subr.bf16.mxu0 0
      %662 = vmatpush1.bf16.xpose.msra.mxu0 %v659
      %663 = vmatprep.subr.bf16.mxu0 0
      %664 = vmatpush1.bf16.xpose.msra.mxu0 0
      %665 = vmatprep.subr.bf16.mxu0 0
      %666 = vmatpush1.bf16.xpose.msra.mxu0 0
      %667 = vmatprep.subr.bf16.mxu0 0
      %668 = vmatpush1.bf16.xpose.msra.mxu0 0
      %669 = vmatprep.subr.bf16.mxu0 0
      %670 = vmatpush1.bf16.xpose.msra.mxu0 0
      %671 = vmatprep.subr.bf16.mxu0 0
      %672 = vmatpush1.bf16.xpose.msra.mxu0 0
      %673 = vmatprep.subr.bf16.mxu0 0
      %674 = vmatpush1.bf16.xpose.msra.mxu0 0
      %675 = vmatprep.subr.bf16.mxu0 0
      %676 = vmatpush1.bf16.xpose.msra.mxu0 0
      %677 = vmatprep.subr.bf16.mxu0 0
      %678 = vmatpush1.bf16.xpose.msra.mxu0 0
      %679 = vmatprep.subr.bf16.mxu0 0
      %680 = vmatpush1.bf16.xpose.msra.mxu0 0
      %681 = vmatprep.subr.bf16.mxu0 0
      %682 = vmatpush1.bf16.xpose.msra.mxu0 0
      %683 = vmatprep.subr.bf16.mxu0 0
      %684 = vmatpush1.bf16.xpose.msra.mxu0 0
      %685 = vmatprep.subr.bf16.mxu0 0
      %686 = vmatpush1.bf16.xpose.msra.mxu0 0
      %687 = vmatprep.subr.bf16.mxu0 0
      %688 = vmatpush1.bf16.xpose.msra.mxu0 0
      %689 = vmatprep.subr.bf16.mxu0 0
      %690 = vmatpush1.bf16.xpose.msra.mxu0 0
      %691 = vmatprep.subr.bf16.mxu0 0
      %692 = vmatpush1.bf16.xpose.msra.mxu0 0
      %693 = vmatprep.mubr.bf16.mxu0 0
      %694 = vmatmul.mubr.bf16.gmra.mrb[0].mxu0 %v656
      %v695 = vpop.f32.mrb[0].mxu0
      %v696 = vadd.f32 0.0, %v695
      %v697 = vpop.f32.mrb[0].mxu0
      %v698 = vpop.f32.mrb[0].mxu0
      %v699 = vpop.f32.mrb[0].mxu0
      %700 = vdwg.mxu0
      %v701 = vmul.f32 %v696, 0.35355338
      %v702 = vadd.f32 %v701, %v473
      %v703 = vsel %vm476, %v702, -inf
      %704 = vmax.xlane.f32.xlu0 %v703
      %v705 = vpop.xlane.xlu0 %704
      %v706 = vsub.f32 %v702, %v705
      %v707 = vmul.f32 %v706, 1.442695
      %v708 = vpow.pop %v707
      %v709 = vsel %vm476, %v708, 0.0
      %710 = vadd.xlane.f32.xlu0 %v709
      %v711 = vpop.xlane.xlu0 %710
      %v712 = vrcp.pop %v711
      %v713 = vmul.f32 %v708, %v712
      %v714 = vpack.c.bf16 %v713, %v713
      %715 = vrot.lane.b32.xlu0 %v417, 48
      %v716 = vpop.permute.xlu0 %715
      %v718 = vsel %vm491, %v714, 0
      %v721 = vsel %vm495, %v716, 0
      %723 = vmatprep.subr.bf16.mxu0 0
      %724 = vmatpush1.bf16.msra.mxu0 %v721
      %725 = vmatprep.subr.bf16.mxu0 0
      %726 = vmatpush1.bf16.msra.mxu0 0
      %727 = vmatprep.subr.bf16.mxu0 0
      %728 = vmatpush1.bf16.msra.mxu0 0
      %729 = vmatprep.subr.bf16.mxu0 0
      %730 = vmatpush1.bf16.msra.mxu0 0
      %731 = vmatprep.subr.bf16.mxu0 0
      %732 = vmatpush1.bf16.msra.mxu0 0
      %733 = vmatprep.subr.bf16.mxu0 0
      %734 = vmatpush1.bf16.msra.mxu0 0
      %735 = vmatprep.subr.bf16.mxu0 0
      %736 = vmatpush1.bf16.msra.mxu0 0
      %737 = vmatprep.subr.bf16.mxu0 0
      %738 = vmatpush1.bf16.msra.mxu0 0
      %739 = vmatprep.subr.bf16.mxu0 0
      %740 = vmatpush1.bf16.msra.mxu0 0
      %741 = vmatprep.subr.bf16.mxu0 0
      %742 = vmatpush1.bf16.msra.mxu0 0
      %743 = vmatprep.subr.bf16.mxu0 0
      %744 = vmatpush1.bf16.msra.mxu0 0
      %745 = vmatprep.subr.bf16.mxu0 0
      %746 = vmatpush1.bf16.msra.mxu0 0
      %747 = vmatprep.subr.bf16.mxu0 0
      %748 = vmatpush1.bf16.msra.mxu0 0
      %749 = vmatprep.subr.bf16.mxu0 0
      %750 = vmatpush1.bf16.msra.mxu0 0
      %751 = vmatprep.subr.bf16.mxu0 0
      %752 = vmatpush1.bf16.msra.mxu0 0
      %753 = vmatprep.subr.bf16.mxu0 0
      %754 = vmatpush1.bf16.msra.mxu0 0
      %755 = vmatprep.mubr.bf16.mxu0 0
      %756 = vmatmul.mubr.bf16.gmra.mrb[0].mxu0 %v718
      %v757 = vpop.f32.mrb[0].mxu0
      %v758 = vadd.f32 0.0, %v757
      %v759 = vpop.f32.mrb[0].mxu0
      %v760 = vpop.f32.mrb[0].mxu0
      %v761 = vpop.f32.mrb[0].mxu0
      %762 = vdwg.mxu0
      %763 = vrot.lane.b32.xlu0 %v417, 104
      %v764 = vpop.permute.xlu0 %763
      %765 = vrot.lane.b32.xlu0 %v417, 72
      %v766 = vpop.permute.xlu0 %765
      %v768 = vsel %vm421, %v764, 0
      %v771 = vsel %vm421, %v766, 0
      %773 = vmatprep.subr.bf16.mxu0 0
      %774 = vmatpush1.bf16.xpose.msra.mxu0 %v771
      %775 = vmatprep.subr.bf16.mxu0 0
      %776 = vmatpush1.bf16.xpose.msra.mxu0 0
      %777 = vmatprep.subr.bf16.mxu0 0
      %778 = vmatpush1.bf16.xpose.msra.mxu0 0
      %779 = vmatprep.subr.bf16.mxu0 0
      %780 = vmatpush1.bf16.xpose.msra.mxu0 0
      %781 = vmatprep.subr.bf16.mxu0 0
      %782 = vmatpush1.bf16.xpose.msra.mxu0 0
      %783 = vmatprep.subr.bf16.mxu0 0
      %784 = vmatpush1.bf16.xpose.msra.mxu0 0
      %785 = vmatprep.subr.bf16.mxu0 0
      %786 = vmatpush1.bf16.xpose.msra.mxu0 0
      %787 = vmatprep.subr.bf16.mxu0 0
      %788 = vmatpush1.bf16.xpose.msra.mxu0 0
      %789 = vmatprep.subr.bf16.mxu0 0
      %790 = vmatpush1.bf16.xpose.msra.mxu0 0
      %791 = vmatprep.subr.bf16.mxu0 0
      %792 = vmatpush1.bf16.xpose.msra.mxu0 0
      %793 = vmatprep.subr.bf16.mxu0 0
      %794 = vmatpush1.bf16.xpose.msra.mxu0 0
      %795 = vmatprep.subr.bf16.mxu0 0
      %796 = vmatpush1.bf16.xpose.msra.mxu0 0
      %797 = vmatprep.subr.bf16.mxu0 0
      %798 = vmatpush1.bf16.xpose.msra.mxu0 0
      %799 = vmatprep.subr.bf16.mxu0 0
      %800 = vmatpush1.bf16.xpose.msra.mxu0 0
      %801 = vmatprep.subr.bf16.mxu0 0
      %802 = vmatpush1.bf16.xpose.msra.mxu0 0
      %803 = vmatprep.subr.bf16.mxu0 0
      %804 = vmatpush1.bf16.xpose.msra.mxu0 0
      %805 = vmatprep.mubr.bf16.mxu0 0
      %806 = vmatmul.mubr.bf16.gmra.mrb[0].mxu0 %v768
      %v807 = vpop.f32.mrb[0].mxu0
      %v808 = vadd.f32 0.0, %v807
      %v809 = vpop.f32.mrb[0].mxu0
      %v810 = vpop.f32.mrb[0].mxu0
      %v811 = vpop.f32.mrb[0].mxu0
      %812 = vdwg.mxu0
      %v813 = vmul.f32 %v808, 0.35355338
      %v814 = vadd.f32 %v813, %v473
      %v815 = vsel %vm476, %v814, -inf
      %816 = vmax.xlane.f32.xlu0 %v815
      %v817 = vpop.xlane.xlu0 %816
      %v818 = vsub.f32 %v814, %v817
      %v819 = vmul.f32 %v818, 1.442695
      %v820 = vpow.pop %v819
      %v821 = vsel %vm476, %v820, 0.0
      %822 = vadd.xlane.f32.xlu0 %v821
      %v823 = vpop.xlane.xlu0 %822
      %v824 = vrcp.pop %v823
      %v825 = vmul.f32 %v820, %v824
      %v826 = vpack.c.bf16 %v825, %v825
      %827 = vrot.lane.b32.xlu0 %v417, 40
      %v828 = vpop.permute.xlu0 %827
      %v830 = vsel %vm491, %v826, 0
      %v833 = vsel %vm495, %v828, 0
      %835 = vmatprep.subr.bf16.mxu0 0
      %836 = vmatpush1.bf16.msra.mxu0 %v833
      %837 = vmatprep.subr.bf16.mxu0 0
      %838 = vmatpush1.bf16.msra.mxu0 0
      %839 = vmatprep.subr.bf16.mxu0 0
      %840 = vmatpush1.bf16.msra.mxu0 0
      %841 = vmatprep.subr.bf16.mxu0 0
      %842 = vmatpush1.bf16.msra.mxu0 0
      %843 = vmatprep.subr.bf16.mxu0 0
      %844 = vmatpush1.bf16.msra.mxu0 0
      %845 = vmatprep.subr.bf16.mxu0 0
      %846 = vmatpush1.bf16.msra.mxu0 0
      %847 = vmatprep.subr.bf16.mxu0 0
      %848 = vmatpush1.bf16.msra.mxu0 0
      %849 = vmatprep.subr.bf16.mxu0 0
      %850 = vmatpush1.bf16.msra.mxu0 0
      %851 = vmatprep.subr.bf16.mxu0 0
      %852 = vmatpush1.bf16.msra.mxu0 0
      %853 = vmatprep.subr.bf16.mxu0 0
      %854 = vmatpush1.bf16.msra.mxu0 0
      %855 = vmatprep.subr.bf16.mxu0 0
      %856 = vmatpush1.bf16.msra.mxu0 0
      %857 = vmatprep.subr.bf16.mxu0 0
      %858 = vmatpush1.bf16.msra.mxu0 0
      %859 = vmatprep.subr.bf16.mxu0 0
      %860 = vmatpush1.bf16.msra.mxu0 0
      %861 = vmatprep.subr.bf16.mxu0 0
      %862 = vmatpush1.bf16.msra.mxu0 0
      %863 = vmatprep.subr.bf16.mxu0 0
      %864 = vmatpush1.bf16.msra.mxu0 0
      %865 = vmatprep.subr.bf16.mxu0 0
      %866 = vmatpush1.bf16.msra.mxu0 0
      %867 = vmatprep.mubr.bf16.mxu0 0
      %868 = vmatmul.mubr.bf16.gmra.mrb[0].mxu0 %v830
      %v869 = vpop.f32.mrb[0].mxu0
      %v870 = vadd.f32 0.0, %v869
      %v871 = vpop.f32.mrb[0].mxu0
      %v872 = vpop.f32.mrb[0].mxu0
      %v873 = vpop.f32.mrb[0].mxu0
      %874 = vdwg.mxu0
      %876 = vrot.lane.b32.xlu0 %v646, 8
      %v877 = vpop.permute.xlu0 %876
      %880 = vrot.lane.b32.xlu0 %v758, 16
      %v881 = vpop.permute.xlu0 %880
      %884 = vrot.lane.b32.xlu0 %v870, 24
      %v885 = vpop.permute.xlu0 %884
      %v887 = vsel %vm421, %v534, %v877
      %vm888 = vcmask 130048
      %v889 = vsel %vm888, %v887, %v881
      %vm890 = vcmask 195584
      %v891 = vsel %vm890, %v889, %v885
      %v892 = vpack.c.bf16 %v891, %v891
      %v893 = vld [vmem:[%s6] sm:$0xf]
      %v894 = vld [vmem:[%s6 + $0x4] sm:$0xf]
      %v895 = vld [vmem:[%s6 + $0x8] sm:$0xf]
      %v896 = vld [vmem:[%s6 + $0xc] sm:$0xf]
      %v897 = vld [vmem:[%s7] sm:$0x1]
      %v899 = vlaneseq
      %v900 = vshrl.u32 %v899, 7
      %v901 = vsub.s32 0, %v900
      %v902 = vrot.slane %v897, %v901
      %v908 = vunpack.c.l.b16 %v893
      %v909 = vunpack.c.l.b16 %v894
      %v910 = vunpack.c.l.b16 %v895
      %v911 = vunpack.c.l.b16 %v896
      %v912 = vpack.c.b16 %v909, %v908
      %v913 = vpack.c.b16 %v911, %v910
      %v917 = vsel %vm372, %v892, 0
      %919 = vmatprep.subr.bf16.mxu0 0
      %920 = vmatpush1.bf16.msra.mxu0 %v912
      %921 = vmatprep.subr.bf16.mxu0 0
      %922 = vmatpush1.bf16.msra.mxu0 %v913
      %923 = vmatprep.subr.bf16.mxu0 0
      %924 = vmatpush1.bf16.msra.mxu0 0
      %925 = vmatprep.subr.bf16.mxu0 0
      %926 = vmatpush1.bf16.msra.mxu0 0
      %927 = vmatprep.subr.bf16.mxu0 0
      %928 = vmatpush1.bf16.msra.mxu0 0
      %929 = vmatprep.subr.bf16.mxu0 0
      %930 = vmatpush1.bf16.msra.mxu0 0
      %931 = vmatprep.subr.bf16.mxu0 0
      %932 = vmatpush1.bf16.msra.mxu0 0
      %933 = vmatprep.subr.bf16.mxu0 0
      %934 = vmatpush1.bf16.msra.mxu0 0
      %935 = vmatprep.subr.bf16.mxu0 0
      %936 = vmatpush1.bf16.msra.mxu0 0
      %937 = vmatprep.subr.bf16.mxu0 0
      %938 = vmatpush1.bf16.msra.mxu0 0
      %939 = vmatprep.subr.bf16.mxu0 0
      %940 = vmatpush1.bf16.msra.mxu0 0
      %941 = vmatprep.subr.bf16.mxu0 0
      %942 = vmatpush1.bf16.msra.mxu0 0
      %943 = vmatprep.subr.bf16.mxu0 0
      %944 = vmatpush1.bf16.msra.mxu0 0
      %945 = vmatprep.subr.bf16.mxu0 0
      %946 = vmatpush1.bf16.msra.mxu0 0
      %947 = vmatprep.subr.bf16.mxu0 0
      %948 = vmatpush1.bf16.msra.mxu0 0
      %949 = vmatprep.subr.bf16.mxu0 0
      %950 = vmatpush1.bf16.msra.mxu0 0
      %951 = vmatprep.mubr.bf16.mxu0 0
      %952 = vmatmul.mubr.bf16.gmra.mrb[0].mxu0 %v917
      %v953 = vpop.f32.mrb[0].mxu0
      %v954 = vadd.f32 %v902, %v953
      %v955 = vpop.f32.mrb[0].mxu0
      %v956 = vpop.f32.mrb[0].mxu0
      %v957 = vpop.f32.mrb[0].mxu0
      %958 = vdwg.mxu0
      %959 = vst.msk [vmem:[%s314] sm:$0xf] %vm317, %v954
      %p960 = scmp.lt.s32.totalorder %s19, 9
      %s961 = scalar_select %p960, %s19, 9
      %s962 = smul.addr %s961, 4
      %s963 = scalar_lea.vmem %s8, %s962
      // Predicated region
      $region53: #{object_transformer_forward.29} parent=51 // pred_check
        %p964 = pneg %p215
      $region54: #{object_transformer_forward.29} parent=51 // pred_check_branch
        %966 = sbr.rel (%p964) target = $region56
      $region55: #{object_transformer_forward.29} parent=51 // pred_region
        _
      $region56: #{object_transformer_forward.29} parent=51 // pred_fallthru
        _
    $region52: #{object_transformer_forward.29} parent=5 // pred_fallthru
      _
    %p967 = scmp.le.s32.totalorder 2, %s14
    // Predicated region
    $region57: #{object_transformer_forward.29} parent=5 // pred_check
      %p968 = pneg %p967
    $region58: #{object_transformer_forward.29} parent=5 // pred_check_branch
      %970 = sbr.rel (%p968) target = $region60
    $region59: #{object_transformer_forward.29} parent=5 // pred_region
      %s971 = ssub.s32 %s14, 2
      // Predicated region
      $region61: #{object_transformer_forward.29} parent=59 // pred_check
        %p972 = pneg %p221
      $region62: #{object_transformer_forward.29} parent=59 // pred_check_branch
        %974 = sbr.rel (%p972) target = $region64
      $region63: #{object_transformer_forward.29} parent=59 // pred_region
        %p975 = scmp.lt.s32.totalorder %s20, 9
        %s976 = scalar_select %p975, %s20, 9
        %s977 = smul.addr %s976, 4
        %s978 = scalar_lea.vmem %s8, %s977
      $region64: #{object_transformer_forward.29} parent=59 // pred_fallthru
        _
    $region60: #{object_transformer_forward.29} parent=5 // pred_fallthru
      _
  $region6: #{object_transformer_forward.29} parent=0 // loop_footer
    %s18 = sadd.s32 1, %s14
  $region7: #{object_transformer_forward.29} parent=0 // loop_footer_branch
    %13 = sbr.rel target = $region3
  $region8: #{object_transformer_forward.29} parent=0 // loop_exit
    _

// kernel: object_transformer_forward.31
$region0: #{object_transformer_forward.31}
  #allocation0 [shape = 'u32[]', space=smem, size = 0x4, offset = 0x4, fixed_abs, tag = 'smem constant byte address 0x4 - core index']
  #allocation1 [shape = 'u32[144,128]{1,0:T(1,128)}', space=vmem, size = 0x12000, scoped, tag = 'internal scratch']
  %s0 = inlined_call_operand.vmem [shape: f32[8,5,32], index: 0, kind: input, shape index: {}]
  %s1 = inlined_call_operand.vmem [shape: f32[8,1,5], index: 1, kind: input, shape index: {}]
  %s2 = inlined_call_operand.vmem [shape: f32[1,32], index: 2, kind: input, shape index: {}]
  %s3 = inlined_call_operand.vmem [shape: f32[1,32], index: 3, kind: input, shape index: {}]
  %s4 = inlined_call_operand.vmem [shape: bf16[32,96], index: 4, kind: input, shape index: {}]
  %s5 = inlined_call_operand.vmem [shape: f32[1,96], index: 5, kind: input, shape index: {}]
  %s6 = inlined_call_operand.vmem [shape: bf16[32,32], index: 6, kind: input, shape index: {}]
  %s7 = inlined_call_operand.vmem [shape: f32[1,32], index: 7, kind: input, shape index: {}]
  %s8 = inlined_call_operand.vmem [shape: f32[8,5,32], index: 8, kind: output, shape index: {}]
  %s9 = sld [smem:[#allocation0]]
  $region65: #{object_transformer_forward.31} parent=0
    _
  %s11 = ssub.s32 1, %s9
  %s12 = scalar_select 0, %s11, %s9
  loop: start=0, step=1, limit=10
  $region2: #{object_transformer_forward.31} parent=0 // loop_pre_header
    _
  $region3: #{object_transformer_forward.31} parent=0 // loop_header
    %s14 = sphi 0, %s18
    %p15 = scmp.ge.s32.totalorder %s14, 10
    %s24 = sphi 0, %s26
    %s27 = sphi 0, %s24
    %s28 = sphi 0, %s27
    %s44 = sphi 0, %s28
    %s50 = sphi 0, %s52
    %s53 = sphi 0, %s50
    %s54 = sphi 0, %s53
    %s70 = sphi 0, %s54
    %s74 = sphi 0, %s74
    %s76 = sphi 0, %s74
    %s77 = sphi 0, %s76
    %s91 = sphi 0, %s77
    %s95 = sphi 0, %s95
    %s97 = sphi 0, %s95
    %s98 = sphi 0, %s97
    %s112 = sphi 0, %s98
    %s116 = sphi 0, %s116
    %s118 = sphi 0, %s116
    %s119 = sphi 0, %s118
    %s133 = sphi 0, %s119
    %s137 = sphi 0, %s137
    %s139 = sphi 0, %s137
    %s140 = sphi 0, %s139
    %s154 = sphi 0, %s140
    %s158 = sphi 0, %s158
    %s160 = sphi 0, %s158
    %s161 = sphi 0, %s160
    %s175 = sphi 0, %s161
    %s179 = sphi 0, %s179
    %s181 = sphi 0, %s179
    %s182 = sphi 0, %s181
    %s196 = sphi 0, %s182
    %s202 = sphi 0, %s204
    %s205 = sphi 0, %s202
    %s206 = sphi 0, %s205
    %s222 = sphi 0, %s206
  $region4: #{object_transformer_forward.31} parent=0 // loop_header_branch
    %17 = sbr.rel (%p15) target = $region8
  $region5: #{object_transformer_forward.31} parent=0 // loop_body
    %s19 = ssub.s32 %s14, 1
    %s20 = ssub.s32 %s14, 2
    %s21 = sadd.s32 %s14, 1
    %s22 = ssub.s32 %s14, %s21
    %p23 = scmp.eq.s32.totalorder %s22, 0
    %s25 = sadd.s32 %s24, 1
    %s26 = scalar_select %p23, %s24, %s25
    %p29 = pneg %p23
    %p30 = scmp.eq.s32.totalorder %s14, 7
    %p31 = por %p29, %p30
    %p32 = scmp.ne.s32.totalorder %s24, %s27
    %p33 = scmp.eq.s32.totalorder %s14, 0
    %p34 = por %p32, %p33
    %p35 = scmp.ne.s32.totalorder %s24, %s27
    %p36 = scmp.eq.s32.totalorder %s19, 7
    %p37 = por %p35, %p36
    %p38 = scmp.ne.s32.totalorder %s27, %s28
    %p39 = scmp.eq.s32.totalorder %s19, 0
    %p40 = por %p38, %p39
    %p41 = scmp.ne.s32.totalorder %s27, %s28
    %p42 = scmp.eq.s32.totalorder %s20, 7
    %p43 = por %p41, %p42
    %p45 = scmp.ne.s32.totalorder %s28, %s44
    %p46 = scmp.eq.s32.totalorder %s20, 0
    %p47 = por %p45, %p46
    %s48 = ssub.s32 %s14, %s21
    %p49 = scmp.eq.s32.totalorder %s48, 0
    %s51 = sadd.s32 %s50, 1
    %s52 = scalar_select %p49, %s50, %s51
    %p55 = pneg %p49
    %p56 = scmp.eq.s32.totalorder %s14, 7
    %p57 = por %p55, %p56
    %p58 = scmp.ne.s32.totalorder %s50, %s53
    %p59 = scmp.eq.s32.totalorder %s14, 0
    %p60 = por %p58, %p59
    %p61 = scmp.ne.s32.totalorder %s50, %s53
    %p62 = scmp.eq.s32.totalorder %s19, 7
    %p63 = por %p61, %p62
    %p64 = scmp.ne.s32.totalorder %s53, %s54
    %p65 = scmp.eq.s32.totalorder %s19, 0
    %p66 = por %p64, %p65
    %p67 = scmp.ne.s32.totalorder %s53, %s54
    %p68 = scmp.eq.s32.totalorder %s20, 7
    %p69 = por %p67, %p68
    %p71 = scmp.ne.s32.totalorder %s54, %s70
    %p72 = scmp.eq.s32.totalorder %s20, 0
    %p73 = por %p71, %p72
    %s75 = sadd.s32 %s74, 1
    %p78 = scmp.eq.s32.totalorder %s14, 7
    %p79 = scmp.ne.s32.totalorder %s74, %s76
    %p80 = scmp.eq.s32.totalorder %s14, 0
    %p81 = por %p79, %p80
    %p82 = scmp.ne.s32.totalorder %s74, %s76
    %p83 = scmp.eq.s32.totalorder %s19, 7
    %p84 = por %p82, %p83
    %p85 = scmp.ne.s32.totalorder %s76, %s77
    %p86 = scmp.eq.s32.totalorder %s19, 0
    %p87 = por %p85, %p86
    %p88 = scmp.ne.s32.totalorder %s76, %s77
    %p89 = scmp.eq.s32.totalorder %s20, 7
    %p90 = por %p88, %p89
    %p92 = scmp.ne.s32.totalorder %s77, %s91
    %p93 = scmp.eq.s32.totalorder %s20, 0
    %p94 = por %p92, %p93
    %s96 = sadd.s32 %s95, 1
    %p99 = scmp.eq.s32.totalorder %s14, 7
    %p100 = scmp.ne.s32.totalorder %s95, %s97
    %p101 = scmp.eq.s32.totalorder %s14, 0
    %p102 = por %p100, %p101
    %p103 = scmp.ne.s32.totalorder %s95, %s97
    %p104 = scmp.eq.s32.totalorder %s19, 7
    %p105 = por %p103, %p104
    %p106 = scmp.ne.s32.totalorder %s97, %s98
    %p107 = scmp.eq.s32.totalorder %s19, 0
    %p108 = por %p106, %p107
    %p109 = scmp.ne.s32.totalorder %s97, %s98
    %p110 = scmp.eq.s32.totalorder %s20, 7
    %p111 = por %p109, %p110
    %p113 = scmp.ne.s32.totalorder %s98, %s112
    %p114 = scmp.eq.s32.totalorder %s20, 0
    %p115 = por %p113, %p114
    %s117 = sadd.s32 %s116, 1
    %p120 = scmp.eq.s32.totalorder %s14, 7
    %p121 = scmp.ne.s32.totalorder %s116, %s118
    %p122 = scmp.eq.s32.totalorder %s14, 0
    %p123 = por %p121, %p122
    %p124 = scmp.ne.s32.totalorder %s116, %s118
    %p125 = scmp.eq.s32.totalorder %s19, 7
    %p126 = por %p124, %p125
    %p127 = scmp.ne.s32.totalorder %s118, %s119
    %p128 = scmp.eq.s32.totalorder %s19, 0
    %p129 = por %p127, %p128
    %p130 = scmp.ne.s32.totalorder %s118, %s119
    %p131 = scmp.eq.s32.totalorder %s20, 7
    %p132 = por %p130, %p131
    %p134 = scmp.ne.s32.totalorder %s119, %s133
    %p135 = scmp.eq.s32.totalorder %s20, 0
    %p136 = por %p134, %p135
    %s138 = sadd.s32 %s137, 1
    %p141 = scmp.eq.s32.totalorder %s14, 7
    %p142 = scmp.ne.s32.totalorder %s137, %s139
    %p143 = scmp.eq.s32.totalorder %s14, 0
    %p144 = por %p142, %p143
    %p145 = scmp.ne.s32.totalorder %s137, %s139
    %p146 = scmp.eq.s32.totalorder %s19, 7
    %p147 = por %p145, %p146
    %p148 = scmp.ne.s32.totalorder %s139, %s140
    %p149 = scmp.eq.s32.totalorder %s19, 0
    %p150 = por %p148, %p149
    %p151 = scmp.ne.s32.totalorder %s139, %s140
    %p152 = scmp.eq.s32.totalorder %s20, 7
    %p153 = por %p151, %p152
    %p155 = scmp.ne.s32.totalorder %s140, %s154
    %p156 = scmp.eq.s32.totalorder %s20, 0
    %p157 = por %p155, %p156
    %s159 = sadd.s32 %s158, 1
    %p162 = scmp.eq.s32.totalorder %s14, 7
    %p163 = scmp.ne.s32.totalorder %s158, %s160
    %p164 = scmp.eq.s32.totalorder %s14, 0
    %p165 = por %p163, %p164
    %p166 = scmp.ne.s32.totalorder %s158, %s160
    %p167 = scmp.eq.s32.totalorder %s19, 7
    %p168 = por %p166, %p167
    %p169 = scmp.ne.s32.totalorder %s160, %s161
    %p170 = scmp.eq.s32.totalorder %s19, 0
    %p171 = por %p169, %p170
    %p172 = scmp.ne.s32.totalorder %s160, %s161
    %p173 = scmp.eq.s32.totalorder %s20, 7
    %p174 = por %p172, %p173
    %p176 = scmp.ne.s32.totalorder %s161, %s175
    %p177 = scmp.eq.s32.totalorder %s20, 0
    %p178 = por %p176, %p177
    %s180 = sadd.s32 %s179, 1
    %p183 = scmp.eq.s32.totalorder %s14, 7
    %p184 = scmp.ne.s32.totalorder %s179, %s181
    %p185 = scmp.eq.s32.totalorder %s14, 0
    %p186 = por %p184, %p185
    %p187 = scmp.ne.s32.totalorder %s179, %s181
    %p188 = scmp.eq.s32.totalorder %s19, 7
    %p189 = por %p187, %p188
    %p190 = scmp.ne.s32.totalorder %s181, %s182
    %p191 = scmp.eq.s32.totalorder %s19, 0
    %p192 = por %p190, %p191
    %p193 = scmp.ne.s32.totalorder %s181, %s182
    %p194 = scmp.eq.s32.totalorder %s20, 7
    %p195 = por %p193, %p194
    %p197 = scmp.ne.s32.totalorder %s182, %s196
    %p198 = scmp.eq.s32.totalorder %s20, 0
    %p199 = por %p197, %p198
    %s200 = ssub.s32 %s14, %s21
    %p201 = scmp.eq.s32.totalorder %s200, 0
    %s203 = sadd.s32 %s202, 1
    %s204 = scalar_select %p201, %s202, %s203
    %p207 = pneg %p201
    %p208 = scmp.eq.s32.totalorder %s14, 7
    %p209 = por %p207, %p208
    %p210 = scmp.ne.s32.totalorder %s202, %s205
    %p211 = scmp.eq.s32.totalorder %s14, 0
    %p212 = por %p210, %p211
    %p213 = scmp.ne.s32.totalorder %s202, %s205
    %p214 = scmp.eq.s32.totalorder %s19, 7
    %p215 = por %p213, %p214
    %p216 = scmp.ne.s32.totalorder %s205, %s206
    %p217 = scmp.eq.s32.totalorder %s19, 0
    %p218 = por %p216, %p217
    %p219 = scmp.ne.s32.totalorder %s205, %s206
    %p220 = scmp.eq.s32.totalorder %s20, 7
    %p221 = por %p219, %p220
    %p223 = scmp.ne.s32.totalorder %s206, %s222
    %p224 = scmp.eq.s32.totalorder %s20, 0
    %p225 = por %p223, %p224
    %p226 = scmp.le.s32.totalorder 1, %s14
    %p227 = scmp.lt.s32.totalorder %s14, 9
    %p228 = pnand %p226, %p227
    %p229 = pneg %p228
    // Predicated region
    $region9: #{object_transformer_forward.31} parent=5 // pred_check
      _
    $region10: #{object_transformer_forward.31} parent=5 // pred_check_branch
      %231 = sbr.rel (%p228) target = $region12
    $region11: #{object_transformer_forward.31} parent=5 // pred_region
      %s232 = ssub.s32 %s14, 1
      // Predicated region
      $region13: #{object_transformer_forward.31} parent=11 // pred_check
        %p233 = pneg %p87
      $region14: #{object_transformer_forward.31} parent=11 // pred_check_branch
        %235 = sbr.rel (%p233) target = $region16
      $region15: #{object_transformer_forward.31} parent=11 // pred_region
        _
      $region16: #{object_transformer_forward.31} parent=11 // pred_fallthru
        _
      // Predicated region
      $region17: #{object_transformer_forward.31} parent=11 // pred_check
        %p236 = pneg %p108
      $region18: #{object_transformer_forward.31} parent=11 // pred_check_branch
        %238 = sbr.rel (%p236) target = $region20
      $region19: #{object_transformer_forward.31} parent=11 // pred_region
        _
      $region20: #{object_transformer_forward.31} parent=11 // pred_fallthru
        _
      // Predicated region
      $region21: #{object_transformer_forward.31} parent=11 // pred_check
        %p239 = pneg %p129
      $region22: #{object_transformer_forward.31} parent=11 // pred_check_branch
        %241 = sbr.rel (%p239) target = $region24
      $region23: #{object_transformer_forward.31} parent=11 // pred_region
        _
      $region24: #{object_transformer_forward.31} parent=11 // pred_fallthru
        _
      // Predicated region
      $region25: #{object_transformer_forward.31} parent=11 // pred_check
        %p242 = pneg %p150
      $region26: #{object_transformer_forward.31} parent=11 // pred_check_branch
        %244 = sbr.rel (%p242) target = $region28
      $region27: #{object_transformer_forward.31} parent=11 // pred_region
        _
      $region28: #{object_transformer_forward.31} parent=11 // pred_fallthru
        _
      // Predicated region
      $region29: #{object_transformer_forward.31} parent=11 // pred_check
        %p245 = pneg %p171
      $region30: #{object_transformer_forward.31} parent=11 // pred_check_branch
        %247 = sbr.rel (%p245) target = $region32
      $region31: #{object_transformer_forward.31} parent=11 // pred_region
        _
      $region32: #{object_transformer_forward.31} parent=11 // pred_fallthru
        _
      // Predicated region
      $region33: #{object_transformer_forward.31} parent=11 // pred_check
        %p248 = pneg %p192
      $region34: #{object_transformer_forward.31} parent=11 // pred_check_branch
        %250 = sbr.rel (%p248) target = $region36
      $region35: #{object_transformer_forward.31} parent=11 // pred_region
        _
      $region36: #{object_transformer_forward.31} parent=11 // pred_fallthru
        _
    $region12: #{object_transformer_forward.31} parent=5 // pred_fallthru
      _
    %p251 = scmp.lt.s32.totalorder %s14, 8
    // Predicated region
    $region37: #{object_transformer_forward.31} parent=5 // pred_check
      %p252 = pneg %p251
    $region38: #{object_transformer_forward.31} parent=5 // pred_check_branch
      %254 = sbr.rel (%p252) target = $region40
    $region39: #{object_transformer_forward.31} parent=5 // pred_region
      // Predicated region
      $region41: #{object_transformer_forward.31} parent=39 // pred_check
        %p255 = pneg %p34
      $region42: #{object_transformer_forward.31} parent=39 // pred_check_branch
        %257 = sbr.rel (%p255) target = $region44
      $region43: #{object_transformer_forward.31} parent=39 // pred_region
        %p258 = scmp.lt.s32.totalorder %s14, 7
        %s259 = scalar_select %p258, %s14, 7
        %s260 = smul.addr %s259, 8
        %s261 = scalar_lea.vmem %s0, %s260
      $region44: #{object_transformer_forward.31} parent=39 // pred_fallthru
        _
      // Predicated region
      $region45: #{object_transformer_forward.31} parent=39 // pred_check
        %p262 = pneg %p60
      $region46: #{object_transformer_forward.31} parent=39 // pred_check_branch
        %264 = sbr.rel (%p262) target = $region48
      $region47: #{object_transformer_forward.31} parent=39 // pred_region
        %p265 = scmp.lt.s32.totalorder %s14, 7
        %s266 = scalar_select %p265, %s14, 7
        %s267 = scalar_lea.vmem %s1, %s266
      $region48: #{object_transformer_forward.31} parent=39 // pred_fallthru
        _
    $region40: #{object_transformer_forward.31} parent=5 // pred_fallthru
      _
    %p268 = scmp.le.s32.totalorder 1, %s14
    %p269 = scmp.lt.s32.totalorder %s14, 9
    %p270 = pnand %p268, %p269
    %p271 = pneg %p270
    // Predicated region
    $region49: #{object_transformer_forward.31} parent=5 // pred_check
      _
    $region50: #{object_transformer_forward.31} parent=5 // pred_check_branch
      %273 = sbr.rel (%p270) target = $region52
    $region51: #{object_transformer_forward.31} parent=5 // pred_region
      %s274 = ssub.s32 %s14, 1
      %p275 = scmp.lt.s32.totalorder %s19, 7
      %s276 = scalar_select %p275, %s19, 7
      %s277 = smul.addr %s276, 8
      %s278 = scalar_lea.vmem %s0, %s277
      %p279 = pneg %p40
      %p280 = pneg %p37
      %p281 = scmp.lt.s32.totalorder %s19, 7
      %s282 = scalar_select %p281, %s19, 7
      %s283 = scalar_lea.vmem %s1, %s282
      %p284 = pneg %p66
      %p285 = pneg %p63
      %p286 = pneg %p87
      %p287 = pneg %p84
      %p288 = pneg %p108
      %p289 = pneg %p105
      %p290 = pneg %p129
      %p291 = pneg %p126
      %p292 = pneg %p150
      %p293 = pneg %p147
      %p294 = pneg %p171
      %p295 = pneg %p168
      %p296 = pneg %p192
      %p297 = pneg %p189
      %p298 = pneg %p218
      %p299 = pneg %p215
      %p300 = scmp.lt.s32.totalorder %s19, 7
      %s301 = scalar_select %p300, %s19, 7
      %s302 = smul.addr %s301, 8
      %s303 = scalar_lea.vmem %s8, %s302
      %p304 = scmp.lt.s32.totalorder %s19, 7
      %s305 = scalar_select %p304, %s19, 7
      %s306 = smul.addr %s305, 8
      %s307 = scalar_lea.vmem %s0, %s306
      %p308 = scmp.lt.s32.totalorder %s19, 7
      %s309 = scalar_select %p308, %s19, 7
      %s310 = scalar_lea.vmem %s1, %s309
      %p311 = scmp.lt.s32.totalorder %s19, 7
      %s312 = scalar_select %p311, %s19, 7
      %s313 = smul.addr %s312, 8
      %s314 = scalar_lea.vmem %s8, %s313
      %v316 = vld [vmem:[%s307] sm:$0x1f]
      %vm317 = vcmask 258048
      %v318 = vsel %vm317, %v316, 0.0
      %319 = vadd.xlane.f32.xlu0 %v318
      %v320 = vpop.xlane.xlu0 %319
      %v321 = vrcp.pop 32.0
      %v322 = vmul.f32 %v320, %v321
      %v323 = vsub.f32 %v316, %v322
      %v324 = vmul.f32 %v323, %v323
      %v325 = vsel %vm317, %v324, 0.0
      %326 = vadd.xlane.f32.xlu0 %v325
      %v327 = vpop.xlane.xlu0 %326
      %v328 = vmul.f32 %v327, %v321
      %v329 = vadd.f32 %v328, 1e-05
      %v330 = vrsqrt.pop %v329
      %v331 = vmul.f32 %v323, %v330
      %v332 = vld [vmem:[%s2] sm:$0x1]
      %v334 = vlaneseq
      %v335 = vshrl.u32 %v334, 7
      %v336 = vsub.s32 0, %v335
      %v337 = vrot.slane %v332, %v336
      %v339 = vmul.f32 %v331, %v337
      %v340 = vld [vmem:[%s3] sm:$0x1]
      %v342 = vlaneseq
      %v343 = vshrl.u32 %v342, 7
      %v344 = vsub.s32 0, %v343
      %v345 = vrot.slane %v340, %v344
      %v347 = vadd.f32 %v339, %v345
      %v348 = vpack.c.bf16 %v347, %v347
      %v349 = vld [vmem:[%s4] sm:$0xf]
      %v350 = vld [vmem:[%s4 + $0x4] sm:$0xf]
      %v351 = vld [vmem:[%s4 + $0x8] sm:$0xf]
      %v352 = vld [vmem:[%s4 + $0xc] sm:$0xf]
      %v353 = vld [vmem:[%s5] sm:$0x1]
      %v355 = vlaneseq
      %v356 = vshrl.u32 %v355, 7
      %v357 = vsub.s32 0, %v356
      %v358 = vrot.slane %v353, %v357
      %v364 = vunpack.c.l.b16 %v349
      %v365 = vunpack.c.l.b16 %v350
      %v366 = vunpack.c.l.b16 %v351
      %v367 = vunpack.c.l.b16 %v352
      %v368 = vpack.c.b16 %v365, %v364
      %v369 = vpack.c.b16 %v367, %v366
      %vm372 = vcmask 261120
      %v374 = vsel %vm372, %v348, 0
      %376 = vmatprep.subr.bf16.mxu0 0
      %377 = vmatpush1.bf16.msra.mxu0 %v368
      %378 = vmatprep.subr.bf16.mxu0 0
      %379 = vmatpush1.bf16.msra.mxu0 %v369
      %380 = vmatprep.subr.bf16.mxu0 0
      %381 = vmatpush1.bf16.msra.mxu0 0
      %382 = vmatprep.subr.bf16.mxu0 0
      %383 = vmatpush1.bf16.msra.mxu0 0
      %384 = vmatprep.subr.bf16.mxu0 0
      %385 = vmatpush1.bf16.msra.mxu0 0
      %386 = vmatprep.subr.bf16.mxu0 0
      %387 = vmatpush1.bf16.msra.mxu0 0
      %388 = vmatprep.subr.bf16.mxu0 0
      %389 = vmatpush1.bf16.msra.mxu0 0
      %390 = vmatprep.subr.bf16.mxu0 0
      %391 = vmatpush1.bf16.msra.mxu0 0
      %392 = vmatprep.subr.bf16.mxu0 0
      %393 = vmatpush1.bf16.msra.mxu0 0
      %394 = vmatprep.subr.bf16.mxu0 0
      %395 = vmatpush1.bf16.msra.mxu0 0
      %396 = vmatprep.subr.bf16.mxu0 0
      %397 = vmatpush1.bf16.msra.mxu0 0
      %398 = vmatprep.subr.bf16.mxu0 0
      %399 = vmatpush1.bf16.msra.mxu0 0
      %400 = vmatprep.subr.bf16.mxu0 0
      %401 = vmatpush1.bf16.msra.mxu0 0
      %402 = vmatprep.subr.bf16.mxu0 0
      %403 = vmatpush1.bf16.msra.mxu0 0
      %404 = vmatprep.subr.bf16.mxu0 0
      %405 = vmatpush1.bf16.msra.mxu0 0
      %406 = vmatprep.subr.bf16.mxu0 0
      %407 = vmatpush1.bf16.msra.mxu0 0
      %408 = vmatprep.mubr.bf16.mxu0 0
      %409 = vmatmul.mubr.bf16.gmra.mrb[0].mxu0 %v374
      %v410 = vpop.f32.mrb[0].mxu0
      %v411 = vadd.f32 %v358, %v410
      %v412 = vpop.f32.mrb[0].mxu0
      %v413 = vpop.f32.mrb[0].mxu0
      %v414 = vpop.f32.mrb[0].mxu0
      %415 = vdwg.mxu0
      %v416 = vld [vmem:[%s310] sm:$0x1]
      %v417 = vpack.c.bf16 %v411, %v411
      %419 = vrot.lane.b32.xlu0 %v417, 96
      %v420 = vpop.permute.xlu0 %419
      %vm421 = vcmask 64512
      %v423 = vsel %vm421, %v417, 0
      %v426 = vsel %vm421, %v420, 0
      %428 = vmatprep.subr.bf16.mxu0 0
      %429 = vmatpush1.bf16.xpose.msra.mxu0 %v426
      %430 = vmatprep.subr.bf16.mxu0 0
      %431 = vmatpush1.bf16.xpose.msra.mxu0 0
      %432 = vmatprep.subr.bf16.mxu0 0
      %433 = vmatpush1.bf16.xpose.msra.mxu0 0
      %434 = vmatprep.subr.bf16.mxu0 0
      %435 = vmatpush1.bf16.xpose.msra.mxu0 0
      %436 = vmatprep.subr.bf16.mxu0 0
      %437 = vmatpush1.bf16.xpose.msra.mxu0 0
      %438 = vmatprep.subr.bf16.mxu0 0
      %439 = vmatpush1.bf16.xpose.msra.mxu0 0
      %440 = vmatprep.subr.bf16.mxu0 0
      %441 = vmatpush1.bf16.xpose.msra.mxu0 0
      %442 = vmatprep.subr.bf16.mxu0 0
      %443 = vmatpush1.bf16.xpose.msra.mxu0 0
      %444 = vmatprep.subr.bf16.mxu0 0
      %445 = vmatpush1.bf16.xpose.msra.mxu0 0
      %446 = vmatprep.subr.bf16.mxu0 0
      %447 = vmatpush1.bf16.xpose.msra.mxu0 0
      %448 = vmatprep.subr.bf16.mxu0 0
      %449 = vmatpush1.bf16.xpose.msra.mxu0 0
      %450 = vmatprep.subr.bf16.mxu0 0
      %451 = vmatpush1.bf16.xpose.msra.mxu0 0
      %452 = vmatprep.subr.bf16.mxu0 0
      %453 = vmatpush1.bf16.xpose.msra.mxu0 0
      %454 = vmatprep.subr.bf16.mxu0 0
      %455 = vmatpush1.bf16.xpose.msra.mxu0 0
      %456 = vmatprep.subr.bf16.mxu0 0
      %457 = vmatpush1.bf16.xpose.msra.mxu0 0
      %458 = vmatprep.subr.bf16.mxu0 0
      %459 = vmatpush1.bf16.xpose.msra.mxu0 0
      %460 = vmatprep.mubr.bf16.mxu0 0
      %461 = vmatmul.mubr.bf16.gmra.mrb[0].mxu0 %v423
      %v462 = vpop.f32.mrb[0].mxu0
      %v463 = vadd.f32 0.0, %v462
      %v464 = vpop.f32.mrb[0].mxu0
      %v465 = vpop.f32.mrb[0].mxu0
      %v466 = vpop.f32.mrb[0].mxu0
      %467 = vdwg.mxu0
      %v468 = vmul.f32 %v463, 0.35355338
      %v470 = vlaneseq
      %v471 = vshrl.u32 %v470, 7
      %v472 = vsub.s32 0, %v471
      %v473 = vrot.slane %v416, %v472
      %v475 = vadd.f32 %v468, %v473
      %vm476 = vcmask 36864
      %v477 = vsel %vm476, %v475, -inf
      %478 = vmax.xlane.f32.xlu0 %v477
      %v479 = vpop.xlane.xlu0 %478
      %v480 = vsub.f32 %v475, %v479
      %v481 = vmul.f32 %v480, 1.442695
      %v482 = vpow.pop %v481
      %v483 = vsel %vm476, %v482, 0.0
      %484 = vadd.xlane.f32.xlu0 %v483
      %v485 = vpop.xlane.xlu0 %484
      %v486 = vrcp.pop %v485
      %v487 = vmul.f32 %v482, %v486
      %v488 = vpack.c.bf16 %v487, %v487
      %489 = vrot.lane.b32.xlu0 %v417, 64
      %v490 = vpop.permute.xlu0 %489
      %vm491 = vcmask 39936
      %v493 = vsel %vm491, %v488, 0
      %vm495 = vcmask 1041408
      %vm496 = vcmask 1042432
      %v497 = vsel %vm495, 4294967295, 65535
      %v498 = vsel %vm496, %v497, 0
      %v500 = vand.u32 %v490, %v498
      %502 = vmatprep.subr.bf16.mxu0 0
      %503 = vmatpush1.bf16.msra.mxu0 %v500
      %504 = vmatprep.subr.bf16.mxu0 0
      %505 = vmatpush1.bf16.msra.mxu0 0
      %506 = vmatprep.subr.bf16.mxu0 0
      %507 = vmatpush1.bf16.msra.mxu0 0
      %508 = vmatprep.subr.bf16.mxu0 0
      %509 = vmatpush1.bf16.msra.mxu0 0
      %510 = vmatprep.subr.bf16.mxu0 0
      %511 = vmatpush1.bf16.msra.mxu0 0
      %512 = vmatprep.subr.bf16.mxu0 0
      %513 = vmatpush1.bf16.msra.mxu0 0
      %514 = vmatprep.subr.bf16.mxu0 0
      %515 = vmatpush1.bf16.msra.mxu0 0
      %516 = vmatprep.subr.bf16.mxu0 0
      %517 = vmatpush1.bf16.msra.mxu0 0
      %518 = vmatprep.subr.bf16.mxu0 0
      %519 = vmatpush1.bf16.msra.mxu0 0
      %520 = vmatprep.subr.bf16.mxu0 0
      %521 = vmatpush1.bf16.msra.mxu0 0
      %522 = vmatprep.subr.bf16.mxu0 0
      %523 = vmatpush1.bf16.msra.mxu0 0
      %524 = vmatprep.subr.bf16.mxu0 0
      %525 = vmatpush1.bf16.msra.mxu0 0
      %526 = vmatprep.subr.bf16.mxu0 0
      %527 = vmatpush1.bf16.msra.mxu0 0
      %528 = vmatprep.subr.bf16.mxu0 0
      %529 = vmatpush1.bf16.msra.mxu0 0
      %530 = vmatprep.subr.bf16.mxu0 0
      %531 = vmatpush1.bf16.msra.mxu0 0
      %532 = vmatprep.subr.bf16.mxu0 0
      %533 = vmatpush1.bf16.msra.mxu0 0
      %534 = vmatprep.mubr.bf16.mxu0 0
      %535 = vmatmul.mubr.bf16.gmra.mrb[0].mxu0 %v493
      %v536 = vpop.f32.mrb[0].mxu0
      %v537 = vadd.f32 0.0, %v536
      %v538 = vpop.f32.mrb[0].mxu0
      %v539 = vpop.f32.mrb[0].mxu0
      %v540 = vpop.f32.mrb[0].mxu0
      %541 = vdwg.mxu0
      %542 = vrot.lane.b32.xlu0 %v417, 120
      %v543 = vpop.permute.xlu0 %542
      %544 = vrot.lane.b32.xlu0 %v417, 88
      %v545 = vpop.permute.xlu0 %544
      %v547 = vsel %vm421, %v543, 0
      %v550 = vsel %vm421, %v545, 0
      %552 = vmatprep.subr.bf16.mxu0 0
      %553 = vmatpush1.bf16.xpose.msra.mxu0 %v550
      %554 = vmatprep.subr.bf16.mxu0 0
      %555 = vmatpush1.bf16.xpose.msra.mxu0 0
      %556 = vmatprep.subr.bf16.mxu0 0
      %557 = vmatpush1.bf16.xpose.msra.mxu0 0
      %558 = vmatprep.subr.bf16.mxu0 0
      %559 = vmatpush1.bf16.xpose.msra.mxu0 0
      %560 = vmatprep.subr.bf16.mxu0 0
      %561 = vmatpush1.bf16.xpose.msra.mxu0 0
      %562 = vmatprep.subr.bf16.mxu0 0
      %563 = vmatpush1.bf16.xpose.msra.mxu0 0
      %564 = vmatprep.subr.bf16.mxu0 0
      %565 = vmatpush1.bf16.xpose.msra.mxu0 0
      %566 = vmatprep.subr.bf16.mxu0 0
      %567 = vmatpush1.bf16.xpose.msra.mxu0 0
      %568 = vmatprep.subr.bf16.mxu0 0
      %569 = vmatpush1.bf16.xpose.msra.mxu0 0
      %570 = vmatprep.subr.bf16.mxu0 0
      %571 = vmatpush1.bf16.xpose.msra.mxu0 0
      %572 = vmatprep.subr.bf16.mxu0 0
      %573 = vmatpush1.bf16.xpose.msra.mxu0 0
      %574 = vmatprep.subr.bf16.mxu0 0
      %575 = vmatpush1.bf16.xpose.msra.mxu0 0
      %576 = vmatprep.subr.bf16.mxu0 0
      %577 = vmatpush1.bf16.xpose.msra.mxu0 0
      %578 = vmatprep.subr.bf16.mxu0 0
      %579 = vmatpush1.bf16.xpose.msra.mxu0 0
      %580 = vmatprep.subr.bf16.mxu0 0
      %581 = vmatpush1.bf16.xpose.msra.mxu0 0
      %582 = vmatprep.subr.bf16.mxu0 0
      %583 = vmatpush1.bf16.xpose.msra.mxu0 0
      %584 = vmatprep.mubr.bf16.mxu0 0
      %585 = vmatmul.mubr.bf16.gmra.mrb[0].mxu0 %v547
      %v586 = vpop.f32.mrb[0].mxu0
      %v587 = vadd.f32 0.0, %v586
      %v588 = vpop.f32.mrb[0].mxu0
      %v589 = vpop.f32.mrb[0].mxu0
      %v590 = vpop.f32.mrb[0].mxu0
      %591 = vdwg.mxu0
      %v592 = vmul.f32 %v587, 0.35355338
      %v593 = vadd.f32 %v592, %v473
      %v594 = vsel %vm476, %v593, -inf
      %595 = vmax.xlane.f32.xlu0 %v594
      %v596 = vpop.xlane.xlu0 %595
      %v597 = vsub.f32 %v593, %v596
      %v598 = vmul.f32 %v597, 1.442695
      %v599 = vpow.pop %v598
      %v600 = vsel %vm476, %v599, 0.0
      %601 = vadd.xlane.f32.xlu0 %v600
      %v602 = vpop.xlane.xlu0 %601
      %v603 = vrcp.pop %v602
      %v604 = vmul.f32 %v599, %v603
      %v605 = vpack.c.bf16 %v604, %v604
      %606 = vrot.lane.b32.xlu0 %v417, 56
      %v607 = vpop.permute.xlu0 %606
      %v609 = vsel %vm491, %v605, 0
      %v612 = vand.u32 %v607, %v498
      %614 = vmatprep.subr.bf16.mxu0 0
      %615 = vmatpush1.bf16.msra.mxu0 %v612
      %616 = vmatprep.subr.bf16.mxu0 0
      %617 = vmatpush1.bf16.msra.mxu0 0
      %618 = vmatprep.subr.bf16.mxu0 0
      %619 = vmatpush1.bf16.msra.mxu0 0
      %620 = vmatprep.subr.bf16.mxu0 0
      %621 = vmatpush1.bf16.msra.mxu0 0
      %622 = vmatprep.subr.bf16.mxu0 0
      %623 = vmatpush1.bf16.msra.mxu0 0
      %624 = vmatprep.subr.bf16.mxu0 0
      %625 = vmatpush1.bf16.msra.mxu0 0
      %626 = vmatprep.subr.bf16.mxu0 0
      %627 = vmatpush1.bf16.msra.mxu0 0
      %628 = vmatprep.subr.bf16.mxu0 0
      %629 = vmatpush1.bf16.msra.mxu0 0
      %630 = vmatprep.subr.bf16.mxu0 0
      %631 = vmatpush1.bf16.msra.mxu0 0
      %632 = vmatprep.subr.bf16.mxu0 0
      %633 = vmatpush1.bf16.msra.mxu0 0
      %634 = vmatprep.subr.bf16.mxu0 0
      %635 = vmatpush1.bf16.msra.mxu0 0
      %636 = vmatprep.subr.bf16.mxu0 0
      %637 = vmatpush1.bf16.msra.mxu0 0
      %638 = vmatprep.subr.bf16.mxu0 0
      %639 = vmatpush1.bf16.msra.mxu0 0
      %640 = vmatprep.subr.bf16.mxu0 0
      %641 = vmatpush1.bf16.msra.mxu0 0
      %642 = vmatprep.subr.bf16.mxu0 0
      %643 = vmatpush1.bf16.msra.mxu0 0
      %644 = vmatprep.subr.bf16.mxu0 0
      %645 = vmatpush1.bf16.msra.mxu0 0
      %646 = vmatprep.mubr.bf16.mxu0 0
      %647 = vmatmul.mubr.bf16.gmra.mrb[0].mxu0 %v609
      %v648 = vpop.f32.mrb[0].mxu0
      %v649 = vadd.f32 0.0, %v648
      %v650 = vpop.f32.mrb[0].mxu0
      %v651 = vpop.f32.mrb[0].mxu0
      %v652 = vpop.f32.mrb[0].mxu0
      %653 = vdwg.mxu0
      %654 = vrot.lane.b32.xlu0 %v417, 112
      %v655 = vpop.permute.xlu0 %654
      %656 = vrot.lane.b32.xlu0 %v417, 80
      %v657 = vpop.permute.xlu0 %656
      %v659 = vsel %vm421, %v655, 0
      %v662 = vsel %vm421, %v657, 0
      %664 = vmatprep.subr.bf16.mxu0 0
      %665 = vmatpush1.bf16.xpose.msra.mxu0 %v662
      %666 = vmatprep.subr.bf16.mxu0 0
      %667 = vmatpush1.bf16.xpose.msra.mxu0 0
      %668 = vmatprep.subr.bf16.mxu0 0
      %669 = vmatpush1.bf16.xpose.msra.mxu0 0
      %670 = vmatprep.subr.bf16.mxu0 0
      %671 = vmatpush1.bf16.xpose.msra.mxu0 0
      %672 = vmatprep.subr.bf16.mxu0 0
      %673 = vmatpush1.bf16.xpose.msra.mxu0 0
      %674 = vmatprep.subr.bf16.mxu0 0
      %675 = vmatpush1.bf16.xpose.msra.mxu0 0
      %676 = vmatprep.subr.bf16.mxu0 0
      %677 = vmatpush1.bf16.xpose.msra.mxu0 0
      %678 = vmatprep.subr.bf16.mxu0 0
      %679 = vmatpush1.bf16.xpose.msra.mxu0 0
      %680 = vmatprep.subr.bf16.mxu0 0
      %681 = vmatpush1.bf16.xpose.msra.mxu0 0
      %682 = vmatprep.subr.bf16.mxu0 0
      %683 = vmatpush1.bf16.xpose.msra.mxu0 0
      %684 = vmatprep.subr.bf16.mxu0 0
      %685 = vmatpush1.bf16.xpose.msra.mxu0 0
      %686 = vmatprep.subr.bf16.mxu0 0
      %687 = vmatpush1.bf16.xpose.msra.mxu0 0
      %688 = vmatprep.subr.bf16.mxu0 0
      %689 = vmatpush1.bf16.xpose.msra.mxu0 0
      %690 = vmatprep.subr.bf16.mxu0 0
      %691 = vmatpush1.bf16.xpose.msra.mxu0 0
      %692 = vmatprep.subr.bf16.mxu0 0
      %693 = vmatpush1.bf16.xpose.msra.mxu0 0
      %694 = vmatprep.subr.bf16.mxu0 0
      %695 = vmatpush1.bf16.xpose.msra.mxu0 0
      %696 = vmatprep.mubr.bf16.mxu0 0
      %697 = vmatmul.mubr.bf16.gmra.mrb[0].mxu0 %v659
      %v698 = vpop.f32.mrb[0].mxu0
      %v699 = vadd.f32 0.0, %v698
      %v700 = vpop.f32.mrb[0].mxu0
      %v701 = vpop.f32.mrb[0].mxu0
      %v702 = vpop.f32.mrb[0].mxu0
      %703 = vdwg.mxu0
      %v704 = vmul.f32 %v699, 0.35355338
      %v705 = vadd.f32 %v704, %v473
      %v706 = vsel %vm476, %v705, -inf
      %707 = vmax.xlane.f32.xlu0 %v706
      %v708 = vpop.xlane.xlu0 %707
      %v709 = vsub.f32 %v705, %v708
      %v710 = vmul.f32 %v709, 1.442695
      %v711 = vpow.pop %v710
      %v712 = vsel %vm476, %v711, 0.0
      %713 = vadd.xlane.f32.xlu0 %v712
      %v714 = vpop.xlane.xlu0 %713
      %v715 = vrcp.pop %v714
      %v716 = vmul.f32 %v711, %v715
      %v717 = vpack.c.bf16 %v716, %v716
      %718 = vrot.lane.b32.xlu0 %v417, 48
      %v719 = vpop.permute.xlu0 %718
      %v721 = vsel %vm491, %v717, 0
      %v724 = vand.u32 %v719, %v498
      %726 = vmatprep.subr.bf16.mxu0 0
      %727 = vmatpush1.bf16.msra.mxu0 %v724
      %728 = vmatprep.subr.bf16.mxu0 0
      %729 = vmatpush1.bf16.msra.mxu0 0
      %730 = vmatprep.subr.bf16.mxu0 0
      %731 = vmatpush1.bf16.msra.mxu0 0
      %732 = vmatprep.subr.bf16.mxu0 0
      %733 = vmatpush1.bf16.msra.mxu0 0
      %734 = vmatprep.subr.bf16.mxu0 0
      %735 = vmatpush1.bf16.msra.mxu0 0
      %736 = vmatprep.subr.bf16.mxu0 0
      %737 = vmatpush1.bf16.msra.mxu0 0
      %738 = vmatprep.subr.bf16.mxu0 0
      %739 = vmatpush1.bf16.msra.mxu0 0
      %740 = vmatprep.subr.bf16.mxu0 0
      %741 = vmatpush1.bf16.msra.mxu0 0
      %742 = vmatprep.subr.bf16.mxu0 0
      %743 = vmatpush1.bf16.msra.mxu0 0
      %744 = vmatprep.subr.bf16.mxu0 0
      %745 = vmatpush1.bf16.msra.mxu0 0
      %746 = vmatprep.subr.bf16.mxu0 0
      %747 = vmatpush1.bf16.msra.mxu0 0
      %748 = vmatprep.subr.bf16.mxu0 0
      %749 = vmatpush1.bf16.msra.mxu0 0
      %750 = vmatprep.subr.bf16.mxu0 0
      %751 = vmatpush1.bf16.msra.mxu0 0
      %752 = vmatprep.subr.bf16.mxu0 0
      %753 = vmatpush1.bf16.msra.mxu0 0
      %754 = vmatprep.subr.bf16.mxu0 0
      %755 = vmatpush1.bf16.msra.mxu0 0
      %756 = vmatprep.subr.bf16.mxu0 0
      %757 = vmatpush1.bf16.msra.mxu0 0
      %758 = vmatprep.mubr.bf16.mxu0 0
      %759 = vmatmul.mubr.bf16.gmra.mrb[0].mxu0 %v721
      %v760 = vpop.f32.mrb[0].mxu0
      %v761 = vadd.f32 0.0, %v760
      %v762 = vpop.f32.mrb[0].mxu0
      %v763 = vpop.f32.mrb[0].mxu0
      %v764 = vpop.f32.mrb[0].mxu0
      %765 = vdwg.mxu0
      %766 = vrot.lane.b32.xlu0 %v417, 104
      %v767 = vpop.permute.xlu0 %766
      %768 = vrot.lane.b32.xlu0 %v417, 72
      %v769 = vpop.permute.xlu0 %768
      %v771 = vsel %vm421, %v767, 0
      %v774 = vsel %vm421, %v769, 0
      %776 = vmatprep.subr.bf16.mxu0 0
      %777 = vmatpush1.bf16.xpose.msra.mxu0 %v774
      %778 = vmatprep.subr.bf16.mxu0 0
      %779 = vmatpush1.bf16.xpose.msra.mxu0 0
      %780 = vmatprep.subr.bf16.mxu0 0
      %781 = vmatpush1.bf16.xpose.msra.mxu0 0
      %782 = vmatprep.subr.bf16.mxu0 0
      %783 = vmatpush1.bf16.xpose.msra.mxu0 0
      %784 = vmatprep.subr.bf16.mxu0 0
      %785 = vmatpush1.bf16.xpose.msra.mxu0 0
      %786 = vmatprep.subr.bf16.mxu0 0
      %787 = vmatpush1.bf16.xpose.msra.mxu0 0
      %788 = vmatprep.subr.bf16.mxu0 0
      %789 = vmatpush1.bf16.xpose.msra.mxu0 0
      %790 = vmatprep.subr.bf16.mxu0 0
      %791 = vmatpush1.bf16.xpose.msra.mxu0 0
      %792 = vmatprep.subr.bf16.mxu0 0
      %793 = vmatpush1.bf16.xpose.msra.mxu0 0
      %794 = vmatprep.subr.bf16.mxu0 0
      %795 = vmatpush1.bf16.xpose.msra.mxu0 0
      %796 = vmatprep.subr.bf16.mxu0 0
      %797 = vmatpush1.bf16.xpose.msra.mxu0 0
      %798 = vmatprep.subr.bf16.mxu0 0
      %799 = vmatpush1.bf16.xpose.msra.mxu0 0
      %800 = vmatprep.subr.bf16.mxu0 0
      %801 = vmatpush1.bf16.xpose.msra.mxu0 0
      %802 = vmatprep.subr.bf16.mxu0 0
      %803 = vmatpush1.bf16.xpose.msra.mxu0 0
      %804 = vmatprep.subr.bf16.mxu0 0
      %805 = vmatpush1.bf16.xpose.msra.mxu0 0
      %806 = vmatprep.subr.bf16.mxu0 0
      %807 = vmatpush1.bf16.xpose.msra.mxu0 0
      %808 = vmatprep.mubr.bf16.mxu0 0
      %809 = vmatmul.mubr.bf16.gmra.mrb[0].mxu0 %v771
      %v810 = vpop.f32.mrb[0].mxu0
      %v811 = vadd.f32 0.0, %v810
      %v812 = vpop.f32.mrb[0].mxu0
      %v813 = vpop.f32.mrb[0].mxu0
      %v814 = vpop.f32.mrb[0].mxu0
      %815 = vdwg.mxu0
      %v816 = vmul.f32 %v811, 0.35355338
      %v817 = vadd.f32 %v816, %v473
      %v818 = vsel %vm476, %v817, -inf
      %819 = vmax.xlane.f32.xlu0 %v818
      %v820 = vpop.xlane.xlu0 %819
      %v821 = vsub.f32 %v817, %v820
      %v822 = vmul.f32 %v821, 1.442695
      %v823 = vpow.pop %v822
      %v824 = vsel %vm476, %v823, 0.0
      %825 = vadd.xlane.f32.xlu0 %v824
      %v826 = vpop.xlane.xlu0 %825
      %v827 = vrcp.pop %v826
      %v828 = vmul.f32 %v823, %v827
      %v829 = vpack.c.bf16 %v828, %v828
      %830 = vrot.lane.b32.xlu0 %v417, 40
      %v831 = vpop.permute.xlu0 %830
      %v833 = vsel %vm491, %v829, 0
      %v836 = vand.u32 %v831, %v498
      %838 = vmatprep.subr.bf16.mxu0 0
      %839 = vmatpush1.bf16.msra.mxu0 %v836
      %840 = vmatprep.subr.bf16.mxu0 0
      %841 = vmatpush1.bf16.msra.mxu0 0
      %842 = vmatprep.subr.bf16.mxu0 0
      %843 = vmatpush1.bf16.msra.mxu0 0
      %844 = vmatprep.subr.bf16.mxu0 0
      %845 = vmatpush1.bf16.msra.mxu0 0
      %846 = vmatprep.subr.bf16.mxu0 0
      %847 = vmatpush1.bf16.msra.mxu0 0
      %848 = vmatprep.subr.bf16.mxu0 0
      %849 = vmatpush1.bf16.msra.mxu0 0
      %850 = vmatprep.subr.bf16.mxu0 0
      %851 = vmatpush1.bf16.msra.mxu0 0
      %852 = vmatprep.subr.bf16.mxu0 0
      %853 = vmatpush1.bf16.msra.mxu0 0
      %854 = vmatprep.subr.bf16.mxu0 0
      %855 = vmatpush1.bf16.msra.mxu0 0
      %856 = vmatprep.subr.bf16.mxu0 0
      %857 = vmatpush1.bf16.msra.mxu0 0
      %858 = vmatprep.subr.bf16.mxu0 0
      %859 = vmatpush1.bf16.msra.mxu0 0
      %860 = vmatprep.subr.bf16.mxu0 0
      %861 = vmatpush1.bf16.msra.mxu0 0
      %862 = vmatprep.subr.bf16.mxu0 0
      %863 = vmatpush1.bf16.msra.mxu0 0
      %864 = vmatprep.subr.bf16.mxu0 0
      %865 = vmatpush1.bf16.msra.mxu0 0
      %866 = vmatprep.subr.bf16.mxu0 0
      %867 = vmatpush1.bf16.msra.mxu0 0
      %868 = vmatprep.subr.bf16.mxu0 0
      %869 = vmatpush1.bf16.msra.mxu0 0
      %870 = vmatprep.mubr.bf16.mxu0 0
      %871 = vmatmul.mubr.bf16.gmra.mrb[0].mxu0 %v833
      %v872 = vpop.f32.mrb[0].mxu0
      %v873 = vadd.f32 0.0, %v872
      %v874 = vpop.f32.mrb[0].mxu0
      %v875 = vpop.f32.mrb[0].mxu0
      %v876 = vpop.f32.mrb[0].mxu0
      %877 = vdwg.mxu0
      %879 = vrot.lane.b32.xlu0 %v649, 8
      %v880 = vpop.permute.xlu0 %879
      %883 = vrot.lane.b32.xlu0 %v761, 16
      %v884 = vpop.permute.xlu0 %883
      %887 = vrot.lane.b32.xlu0 %v873, 24
      %v888 = vpop.permute.xlu0 %887
      %v890 = vsel %vm421, %v537, %v880
      %vm891 = vcmask 130048
      %v892 = vsel %vm891, %v890, %v884
      %vm893 = vcmask 195584
      %v894 = vsel %vm893, %v892, %v888
      %v895 = vpack.c.bf16 %v894, %v894
      %v896 = vld [vmem:[%s6] sm:$0xf]
      %v897 = vld [vmem:[%s6 + $0x4] sm:$0xf]
      %v898 = vld [vmem:[%s6 + $0x8] sm:$0xf]
      %v899 = vld [vmem:[%s6 + $0xc] sm:$0xf]
      %v900 = vld [vmem:[%s7] sm:$0x1]
      %v902 = vlaneseq
      %v903 = vshrl.u32 %v902, 7
      %v904 = vsub.s32 0, %v903
      %v905 = vrot.slane %v900, %v904
      %v911 = vunpack.c.l.b16 %v896
      %v912 = vunpack.c.l.b16 %v897
      %v913 = vunpack.c.l.b16 %v898
      %v914 = vunpack.c.l.b16 %v899
      %v915 = vpack.c.b16 %v912, %v911
      %v916 = vpack.c.b16 %v914, %v913
      %v920 = vsel %vm372, %v895, 0
      %922 = vmatprep.subr.bf16.mxu0 0
      %923 = vmatpush1.bf16.msra.mxu0 %v915
      %924 = vmatprep.subr.bf16.mxu0 0
      %925 = vmatpush1.bf16.msra.mxu0 %v916
      %926 = vmatprep.subr.bf16.mxu0 0
      %927 = vmatpush1.bf16.msra.mxu0 0
      %928 = vmatprep.subr.bf16.mxu0 0
      %929 = vmatpush1.bf16.msra.mxu0 0
      %930 = vmatprep.subr.bf16.mxu0 0
      %931 = vmatpush1.bf16.msra.mxu0 0
      %932 = vmatprep.subr.bf16.mxu0 0
      %933 = vmatpush1.bf16.msra.mxu0 0
      %934 = vmatprep.subr.bf16.mxu0 0
      %935 = vmatpush1.bf16.msra.mxu0 0
      %936 = vmatprep.subr.bf16.mxu0 0
      %937 = vmatpush1.bf16.msra.mxu0 0
      %938 = vmatprep.subr.bf16.mxu0 0
      %939 = vmatpush1.bf16.msra.mxu0 0
      %940 = vmatprep.subr.bf16.mxu0 0
      %941 = vmatpush1.bf16.msra.mxu0 0
      %942 = vmatprep.subr.bf16.mxu0 0
      %943 = vmatpush1.bf16.msra.mxu0 0
      %944 = vmatprep.subr.bf16.mxu0 0
      %945 = vmatpush1.bf16.msra.mxu0 0
      %946 = vmatprep.subr.bf16.mxu0 0
      %947 = vmatpush1.bf16.msra.mxu0 0
      %948 = vmatprep.subr.bf16.mxu0 0
      %949 = vmatpush1.bf16.msra.mxu0 0
      %950 = vmatprep.subr.bf16.mxu0 0
      %951 = vmatpush1.bf16.msra.mxu0 0
      %952 = vmatprep.subr.bf16.mxu0 0
      %953 = vmatpush1.bf16.msra.mxu0 0
      %954 = vmatprep.mubr.bf16.mxu0 0
      %955 = vmatmul.mubr.bf16.gmra.mrb[0].mxu0 %v920
      %v956 = vpop.f32.mrb[0].mxu0
      %v957 = vadd.f32 %v905, %v956
      %v958 = vpop.f32.mrb[0].mxu0
      %v959 = vpop.f32.mrb[0].mxu0
      %v960 = vpop.f32.mrb[0].mxu0
      %961 = vdwg.mxu0
      %v962 = vadd.f32 %v957, %v316
      %963 = vst.msk [vmem:[%s314] sm:$0x1f] %vm317, %v962
      %p964 = scmp.lt.s32.totalorder %s19, 7
      %s965 = scalar_select %p964, %s19, 7
      %s966 = smul.addr %s965, 8
      %s967 = scalar_lea.vmem %s8, %s966
      // Predicated region
      $region53: #{object_transformer_forward.31} parent=51 // pred_check
        %p968 = pneg %p215
      $region54: #{object_transformer_forward.31} parent=51 // pred_check_branch
        %970 = sbr.rel (%p968) target = $region56
      $region55: #{object_transformer_forward.31} parent=51 // pred_region
        _
      $region56: #{object_transformer_forward.31} parent=51 // pred_fallthru
        _
    $region52: #{object_transformer_forward.31} parent=5 // pred_fallthru
      _
    %p971 = scmp.le.s32.totalorder 2, %s14
    // Predicated region
    $region57: #{object_transformer_forward.31} parent=5 // pred_check
      %p972 = pneg %p971
    $region58: #{object_transformer_forward.31} parent=5 // pred_check_branch
      %974 = sbr.rel (%p972) target = $region60
    $region59: #{object_transformer_forward.31} parent=5 // pred_region
      %s975 = ssub.s32 %s14, 2
      // Predicated region
      $region61: #{object_transformer_forward.31} parent=59 // pred_check
        %p976 = pneg %p221
      $region62: #{object_transformer_forward.31} parent=59 // pred_check_branch
        %978 = sbr.rel (%p976) target = $region64
      $region63: #{object_transformer_forward.31} parent=59 // pred_region
        %p979 = scmp.lt.s32.totalorder %s20, 7
        %s980 = scalar_select %p979, %s20, 7
        %s981 = smul.addr %s980, 8
        %s982 = scalar_lea.vmem %s8, %s981
      $region64: #{object_transformer_forward.31} parent=59 // pred_fallthru
        _
    $region60: #{object_transformer_forward.31} parent=5 // pred_fallthru
      _
  $region6: #{object_transformer_forward.31} parent=0 // loop_footer
    %s18 = sadd.s32 1, %s14
  $region7: #{object_transformer_forward.31} parent=0 // loop_footer_branch
    %13 = sbr.rel target = $region3
  $region8: #{object_transformer_forward.31} parent=0 // loop_exit
    _

// kernel: squeeze.3
$region0: #{squeeze.3}
  %s0 = inlined_call_operand.vmem [shape: f32[2,1,5,32], index: 0, kind: input, shape index: {}]
  %s1 = inlined_call_operand.vmem [shape: f32[10,32], index: 1, kind: output, shape index: {}]
  %v2 = vld [vmem:[%s0] sm:$0x1f]
  %vm3 = vcmask 261120
  %4 = vst.msk [vmem:[%s1] sm:$0x1f] %vm3, %v2
  %s5 = scalar_lea.vmem %s0, 8
  %v6 = vld [vmem:[%s5] sm:$0x1f]
  %vm7 = vcmask 261120
  %s8 = scalar_lea.vmem %s1, 5
  %9 = vst.msk [vmem:[%s8] sm:$0x1f] %vm7, %v6

// kernel: object_transformer_forward.33
$region0: #{object_transformer_forward.33}
  #allocation0 [shape = 'u32[]', space=smem, size = 0x4, offset = 0x4, fixed_abs, tag = 'smem constant byte address 0x4 - core index']
  #allocation1 [shape = 'u32[144,128]{1,0:T(1,128)}', space=vmem, size = 0x12000, scoped, tag = 'internal scratch']
  %s0 = inlined_call_operand.vmem [shape: f32[40,32], index: 0, kind: input, shape index: {}]
  %s1 = inlined_call_operand.vmem [shape: f32[40,128], index: 1, kind: input, shape index: {}]
  %s2 = inlined_call_operand.vmem [shape: bf16[128,32], index: 2, kind: input, shape index: {}]
  %s3 = inlined_call_operand.vmem [shape: f32[1,32], index: 3, kind: input, shape index: {}]
  %s4 = inlined_call_operand.vmem [shape: f32[40,32], index: 4, kind: output, shape index: {}]
  %s5 = sld [smem:[#allocation0]]
  $region26: #{object_transformer_forward.33} parent=0
    _
  %s7 = ssub.s32 1, %s5
  %s8 = scalar_select 0, %s7, %s5
  // Predicated region
  $region2: #{object_transformer_forward.33} parent=0 // pred_check
    _
  $region3: #{object_transformer_forward.33} parent=0 // pred_check_branch
    %10 = sbr.rel (0) target = $region5
  $region4: #{object_transformer_forward.33} parent=0 // pred_region
    _
  $region5: #{object_transformer_forward.33} parent=0 // pred_fallthru
    _
  // Predicated region
  $region6: #{object_transformer_forward.33} parent=0 // pred_check
    _
  $region7: #{object_transformer_forward.33} parent=0 // pred_check_branch
    %12 = sbr.rel (0) target = $region9
  $region8: #{object_transformer_forward.33} parent=0 // pred_region
    _
  $region9: #{object_transformer_forward.33} parent=0 // pred_fallthru
    _
  // Predicated region
  $region10: #{object_transformer_forward.33} parent=0 // pred_check
    _
  $region11: #{object_transformer_forward.33} parent=0 // pred_check_branch
    %14 = sbr.rel (0) target = $region13
  $region12: #{object_transformer_forward.33} parent=0 // pred_region
    _
  $region13: #{object_transformer_forward.33} parent=0 // pred_fallthru
    _
  // Predicated region
  $region14: #{object_transformer_forward.33} parent=0 // pred_check
    _
  $region15: #{object_transformer_forward.33} parent=0 // pred_check_branch
    %16 = sbr.rel (0) target = $region17
  $region16: #{object_transformer_forward.33} parent=0 // pred_region
    _
  $region17: #{object_transformer_forward.33} parent=0 // pred_fallthru
    _
  %v18 = vld [vmem:[%s1] sm:$0xff]
  %v19 = vld [vmem:[%s1 + $0x8] sm:$0xff]
  %v20 = vld [vmem:[%s1 + $0x10] sm:$0xff]
  %v21 = vld [vmem:[%s1 + $0x18] sm:$0xff]
  %v22 = vld [vmem:[%s1 + $0x20] sm:$0xff]
  %v23 = vpack.c.bf16 %v19, %v18
  %v24 = vpack.c.bf16 %v21, %v20
  %v25 = vpack.c.bf16 %v22, %v22
  %v26 = vld [vmem:[%s2] sm:$0xf]
  %v27 = vld [vmem:[%s2 + $0x4] sm:$0xf]
  %v28 = vld [vmem:[%s2 + $0x8] sm:$0xf]
  %v29 = vld [vmem:[%s2 + $0xc] sm:$0xf]
  %v30 = vld [vmem:[%s2 + $0x10] sm:$0xf]
  %v31 = vld [vmem:[%s2 + $0x14] sm:$0xf]
  %v32 = vld [vmem:[%s2 + $0x18] sm:$0xf]
  %v33 = vld [vmem:[%s2 + $0x1c] sm:$0xf]
  %v34 = vld [vmem:[%s2 + $0x20] sm:$0xf]
  %v35 = vld [vmem:[%s2 + $0x24] sm:$0xf]
  %v36 = vld [vmem:[%s2 + $0x28] sm:$0xf]
  %v37 = vld [vmem:[%s2 + $0x2c] sm:$0xf]
  %v38 = vld [vmem:[%s2 + $0x30] sm:$0xf]
  %v39 = vld [vmem:[%s2 + $0x34] sm:$0xf]
  %v40 = vld [vmem:[%s2 + $0x38] sm:$0xf]
  %v41 = vld [vmem:[%s2 + $0x3c] sm:$0xf]
  %v42 = vld [vmem:[%s3] sm:$0x1]
  %v44 = vlaneseq
  %v45 = vshrl.u32 %v44, 7
  %v46 = vsub.s32 0, %v45
  %v47 = vrot.slane %v42, %v46
  %v65 = vunpack.c.l.b16 %v26
  %v66 = vunpack.c.l.b16 %v27
  %v67 = vunpack.c.l.b16 %v28
  %v68 = vunpack.c.l.b16 %v29
  %v69 = vunpack.c.l.b16 %v30
  %v70 = vunpack.c.l.b16 %v31
  %v71 = vunpack.c.l.b16 %v32
  %v72 = vunpack.c.l.b16 %v33
  %v73 = vunpack.c.l.b16 %v34
  %v74 = vunpack.c.l.b16 %v35
  %v75 = vunpack.c.l.b16 %v36
  %v76 = vunpack.c.l.b16 %v37
  %v77 = vunpack.c.l.b16 %v38
  %v78 = vunpack.c.l.b16 %v39
  %v79 = vunpack.c.l.b16 %v40
  %v80 = vunpack.c.l.b16 %v41
  %v81 = vpack.c.b16 %v66, %v65
  %v82 = vpack.c.b16 %v68, %v67
  %v83 = vpack.c.b16 %v70, %v69
  %v84 = vpack.c.b16 %v72, %v71
  %v85 = vpack.c.b16 %v74, %v73
  %v86 = vpack.c.b16 %v76, %v75
  %v87 = vpack.c.b16 %v78, %v77
  %v88 = vpack.c.b16 %v80, %v79
  %97 = vmatprep.subr.bf16.mxu0 0
  %98 = vmatpush1.bf16.msra.mxu0 %v81
  %99 = vmatprep.subr.bf16.mxu0 0
  %100 = vmatpush1.bf16.msra.mxu0 %v82
  %101 = vmatprep.subr.bf16.mxu0 0
  %102 = vmatpush1.bf16.msra.mxu0 %v83
  %103 = vmatprep.subr.bf16.mxu0 0
  %104 = vmatpush1.bf16.msra.mxu0 %v84
  %105 = vmatprep.subr.bf16.mxu0 0
  %106 = vmatpush1.bf16.msra.mxu0 %v85
  %107 = vmatprep.subr.bf16.mxu0 0
  %108 = vmatpush1.bf16.msra.mxu0 %v86
  %109 = vmatprep.subr.bf16.mxu0 0
  %110 = vmatpush1.bf16.msra.mxu0 %v87
  %111 = vmatprep.subr.bf16.mxu0 0
  %112 = vmatpush1.bf16.msra.mxu0 %v88
  %113 = vmatprep.subr.bf16.mxu0 0
  %114 = vmatpush1.bf16.msra.mxu0 0
  %115 = vmatprep.subr.bf16.mxu0 0
  %116 = vmatpush1.bf16.msra.mxu0 0
  %117 = vmatprep.subr.bf16.mxu0 0
  %118 = vmatpush1.bf16.msra.mxu0 0
  %119 = vmatprep.subr.bf16.mxu0 0
  %120 = vmatpush1.bf16.msra.mxu0 0
  %121 = vmatprep.subr.bf16.mxu0 0
  %122 = vmatpush1.bf16.msra.mxu0 0
  %123 = vmatprep.subr.bf16.mxu0 0
  %124 = vmatpush1.bf16.msra.mxu0 0
  %125 = vmatprep.subr.bf16.mxu0 0
  %126 = vmatpush1.bf16.msra.mxu0 0
  %127 = vmatprep.subr.bf16.mxu0 0
  %128 = vmatpush1.bf16.msra.mxu0 0
  %129 = vmatprep.mubr.bf16.mxu0 0
  %130 = vmatmul.mubr.bf16.gmra.mrb[0].mxu0 %v23
  %v131 = vpop.f32.mrb[0].mxu0
  %v132 = vadd.f32 %v47, %v131
  %v133 = vpop.f32.mrb[0].mxu0
  %v134 = vpop.f32.mrb[0].mxu0
  %v135 = vadd.f32 %v47, %v134
  %v136 = vpop.f32.mrb[0].mxu0
  %137 = vmatprep.mubr.bf16.mxu0 0
  %138 = vmatmul.mubr.bf16.gmra.mrb[0].mxu0 %v24
  %v139 = vpop.f32.mrb[0].mxu0
  %v140 = vadd.f32 %v47, %v139
  %v141 = vpop.f32.mrb[0].mxu0
  %v142 = vpop.f32.mrb[0].mxu0
  %v143 = vadd.f32 %v47, %v142
  %v144 = vpop.f32.mrb[0].mxu0
  %145 = vmatprep.mubr.bf16.mxu0 0
  %146 = vmatmul.mubr.bf16.gmra.mrb[0].mxu0 %v25
  %v147 = vpop.f32.mrb[0].mxu0
  %v148 = vadd.f32 %v47, %v147
  %v149 = vpop.f32.mrb[0].mxu0
  %v150 = vpop.f32.mrb[0].mxu0
  %v151 = vpop.f32.mrb[0].mxu0
  %152 = vdwg.mxu0
  %v153 = vld [vmem:[%s0] sm:$0xff]
  %v154 = vld [vmem:[%s0 + $0x8] sm:$0xff]
  %v155 = vld [vmem:[%s0 + $0x10] sm:$0xff]
  %v156 = vld [vmem:[%s0 + $0x18] sm:$0xff]
  %v157 = vld [vmem:[%s0 + $0x20] sm:$0xff]
  %v158 = vadd.f32 %v132, %v153
  %v159 = vadd.f32 %v135, %v154
  %v160 = vadd.f32 %v140, %v155
  %v161 = vadd.f32 %v143, %v156
  %v162 = vadd.f32 %v148, %v157
  %vm163 = vcmask 261120
  %164 = vst.msk [vmem:[%s4] sm:$0xff] %vm163, %v158
  %165 = vst.msk [vmem:[%s4 + $0x8] sm:$0xff] %vm163, %v159
  %166 = vst.msk [vmem:[%s4 + $0x10] sm:$0xff] %vm163, %v160
  %167 = vst.msk [vmem:[%s4 + $0x18] sm:$0xff] %vm163, %v161
  %168 = vst.msk [vmem:[%s4 + $0x20] sm:$0xff] %vm163, %v162
  // Predicated region
  $region18: #{object_transformer_forward.33} parent=0 // pred_check
    _
  $region19: #{object_transformer_forward.33} parent=0 // pred_check_branch
    %170 = sbr.rel (0) target = $region21
  $region20: #{object_transformer_forward.33} parent=0 // pred_region
    _
  $region21: #{object_transformer_forward.33} parent=0 // pred_fallthru
    _
  // Predicated region
  $region22: #{object_transformer_forward.33} parent=0 // pred_check
    _
  $region23: #{object_transformer_forward.33} parent=0 // pred_check_branch
    %172 = sbr.rel (0) target = $region25
  $region24: #{object_transformer_forward.33} parent=0 // pred_region
    _
  $region25: #{object_transformer_forward.33} parent=0 // pred_fallthru
    _

// kernel: object_transformer_forward.39
$region0: #{object_transformer_forward.39}
  #allocation0 [shape = 'u32[]', space=smem, size = 0x4, offset = 0x4, fixed_abs, tag = 'smem constant byte address 0x4 - core index']
  #allocation1 [shape = 'u32[144,128]{1,0:T(1,128)}', space=vmem, size = 0x12000, scoped, tag = 'internal scratch']
  %s0 = inlined_call_operand.vmem [shape: f32[16,32], index: 0, kind: input, shape index: {}]
  %s1 = inlined_call_operand.vmem [shape: f32[1,32], index: 1, kind: input, shape index: {}]
  %s2 = inlined_call_operand.vmem [shape: f32[1,32], index: 2, kind: input, shape index: {}]
  %s3 = inlined_call_operand.vmem [shape: f32[16,32], index: 3, kind: output, shape index: {}]
  %s4 = sld [smem:[#allocation0]]
  $region22: #{object_transformer_forward.39} parent=0
    _
  %s6 = ssub.s32 1, %s4
  %s7 = scalar_select 0, %s6, %s4
  // Predicated region
  $region2: #{object_transformer_forward.39} parent=0 // pred_check
    _
  $region3: #{object_transformer_forward.39} parent=0 // pred_check_branch
    %9 = sbr.rel (0) target = $region5
  $region4: #{object_transformer_forward.39} parent=0 // pred_region
    _
  $region5: #{object_transformer_forward.39} parent=0 // pred_fallthru
    _
  // Predicated region
  $region6: #{object_transformer_forward.39} parent=0 // pred_check
    _
  $region7: #{object_transformer_forward.39} parent=0 // pred_check_branch
    %11 = sbr.rel (0) target = $region9
  $region8: #{object_transformer_forward.39} parent=0 // pred_region
    _
  $region9: #{object_transformer_forward.39} parent=0 // pred_fallthru
    _
  // Predicated region
  $region10: #{object_transformer_forward.39} parent=0 // pred_check
    _
  $region11: #{object_transformer_forward.39} parent=0 // pred_check_branch
    %13 = sbr.rel (0) target = $region13
  $region12: #{object_transformer_forward.39} parent=0 // pred_region
    _
  $region13: #{object_transformer_forward.39} parent=0 // pred_fallthru
    _
  %v14 = vld [vmem:[%s0] sm:$0xff]
  %v15 = vld [vmem:[%s0 + $0x8] sm:$0xff]
  %vm16 = vcmask 261120
  %v17 = vsel %vm16, %v14, 0.0
  %18 = vadd.xlane.f32.xlu0 %v17
  %v19 = vpop.xlane.xlu0 %18
  %v20 = vsel %vm16, %v15, 0.0
  %21 = vadd.xlane.f32.xlu0 %v20
  %v22 = vpop.xlane.xlu0 %21
  %v23 = vrcp.pop 32.0
  %v24 = vmul.f32 %v19, %v23
  %v25 = vmul.f32 %v22, %v23
  %v26 = vsub.f32 %v14, %v24
  %v27 = vsub.f32 %v15, %v25
  %v28 = vmul.f32 %v26, %v26
  %v29 = vmul.f32 %v27, %v27
  %v30 = vsel %vm16, %v28, 0.0
  %31 = vadd.xlane.f32.xlu0 %v30
  %v32 = vpop.xlane.xlu0 %31
  %v33 = vsel %vm16, %v29, 0.0
  %34 = vadd.xlane.f32.xlu0 %v33
  %v35 = vpop.xlane.xlu0 %34
  %v36 = vmul.f32 %v32, %v23
  %v37 = vmul.f32 %v35, %v23
  %v38 = vadd.f32 %v36, 1e-05
  %v39 = vadd.f32 %v37, 1e-05
  %v40 = vrsqrt.pop %v38
  %v41 = vrsqrt.pop %v39
  %v42 = vmul.f32 %v26, %v40
  %v43 = vmul.f32 %v27, %v41
  %v44 = vld [vmem:[%s1] sm:$0x1]
  %v46 = vlaneseq
  %v47 = vshrl.u32 %v46, 7
  %v48 = vsub.s32 0, %v47
  %v49 = vrot.slane %v44, %v48
  %v51 = vmul.f32 %v42, %v49
  %v52 = vmul.f32 %v43, %v49
  %v53 = vld [vmem:[%s2] sm:$0x1]
  %v55 = vlaneseq
  %v56 = vshrl.u32 %v55, 7
  %v57 = vsub.s32 0, %v56
  %v58 = vrot.slane %v53, %v57
  %v60 = vadd.f32 %v51, %v58
  %v61 = vadd.f32 %v52, %v58
  %62 = vst.msk [vmem:[%s3] sm:$0xff] %vm16, %v60
  %63 = vst.msk [vmem:[%s3 + $0x8] sm:$0xff] %vm16, %v61
  // Predicated region
  $region14: #{object_transformer_forward.39} parent=0 // pred_check
    _
  $region15: #{object_transformer_forward.39} parent=0 // pred_check_branch
    %65 = sbr.rel (0) target = $region17
  $region16: #{object_transformer_forward.39} parent=0 // pred_region
    _
  $region17: #{object_transformer_forward.39} parent=0 // pred_fallthru
    _
  // Predicated region
  $region18: #{object_transformer_forward.39} parent=0 // pred_check
    _
  $region19: #{object_transformer_forward.39} parent=0 // pred_check_branch
    %67 = sbr.rel (0) target = $region21
  $region20: #{object_transformer_forward.39} parent=0 // pred_region
    _
  $region21: #{object_transformer_forward.39} parent=0 // pred_fallthru
    _

// kernel: object_transformer_forward.40
$region0: #{object_transformer_forward.40}
  #allocation0 [shape = 'u32[]', space=smem, size = 0x4, offset = 0x4, fixed_abs, tag = 'smem constant byte address 0x4 - core index']
  #allocation1 [shape = 'u32[144,128]{1,0:T(1,128)}', space=vmem, size = 0x12000, scoped, tag = 'internal scratch']
  %s0 = inlined_call_operand.vmem [shape: f32[16,2], index: 0, kind: input, shape index: {}]
  %s1 = inlined_call_operand.vmem [shape: bf16[2,32], index: 1, kind: input, shape index: {}]
  %s2 = inlined_call_operand.vmem [shape: f32[1,32], index: 2, kind: input, shape index: {}]
  %s3 = inlined_call_operand.vmem [shape: f32[16,32], index: 3, kind: output, shape index: {}]
  %s4 = sld [smem:[#allocation0]]
  $region22: #{object_transformer_forward.40} parent=0
    _
  %s6 = ssub.s32 1, %s4
  %s7 = scalar_select 0, %s6, %s4
  // Predicated region
  $region2: #{object_transformer_forward.40} parent=0 // pred_check
    _
  $region3: #{object_transformer_forward.40} parent=0 // pred_check_branch
    %9 = sbr.rel (0) target = $region5
  $region4: #{object_transformer_forward.40} parent=0 // pred_region
    _
  $region5: #{object_transformer_forward.40} parent=0 // pred_fallthru
    _
  // Predicated region
  $region6: #{object_transformer_forward.40} parent=0 // pred_check
    _
  $region7: #{object_transformer_forward.40} parent=0 // pred_check_branch
    %11 = sbr.rel (0) target = $region9
  $region8: #{object_transformer_forward.40} parent=0 // pred_region
    _
  $region9: #{object_transformer_forward.40} parent=0 // pred_fallthru
    _
  // Predicated region
  $region10: #{object_transformer_forward.40} parent=0 // pred_check
    _
  $region11: #{object_transformer_forward.40} parent=0 // pred_check_branch
    %13 = sbr.rel (0) target = $region13
  $region12: #{object_transformer_forward.40} parent=0 // pred_region
    _
  $region13: #{object_transformer_forward.40} parent=0 // pred_fallthru
    _
  %v15 = vld [vmem:[%s0] sm:$0xff]
  %v16 = vld [vmem:[%s0 + $0x8] sm:$0xff]
  %v17 = vpack.c.bf16 %v16, %v15
  %v18 = vld [vmem:[%s1] sm:$0x1]
  %v19 = vld [vmem:[%s2] sm:$0x1]
  %v21 = vlaneseq
  %v22 = vshrl.u32 %v21, 7
  %v23 = vsub.s32 0, %v22
  %v24 = vrot.slane %v19, %v23
  %vm26 = vcmask 15360
  %v28 = vsel %vm26, %v17, 0
  %vm30 = vcmask 1040384
  %v32 = vsel %vm30, %v18, 0
  %34 = vmatprep.subr.bf16.mxu0 0
  %35 = vmatpush1.bf16.msra.mxu0 %v32
  %36 = vmatprep.subr.bf16.mxu0 0
  %37 = vmatpush1.bf16.msra.mxu0 0
  %38 = vmatprep.subr.bf16.mxu0 0
  %39 = vmatpush1.bf16.msra.mxu0 0
  %40 = vmatprep.subr.bf16.mxu0 0
  %41 = vmatpush1.bf16.msra.mxu0 0
  %42 = vmatprep.subr.bf16.mxu0 0
  %43 = vmatpush1.bf16.msra.mxu0 0
  %44 = vmatprep.subr.bf16.mxu0 0
  %45 = vmatpush1.bf16.msra.mxu0 0
  %46 = vmatprep.subr.bf16.mxu0 0
  %47 = vmatpush1.bf16.msra.mxu0 0
  %48 = vmatprep.subr.bf16.mxu0 0
  %49 = vmatpush1.bf16.msra.mxu0 0
  %50 = vmatprep.subr.bf16.mxu0 0
  %51 = vmatpush1.bf16.msra.mxu0 0
  %52 = vmatprep.subr.bf16.mxu0 0
  %53 = vmatpush1.bf16.msra.mxu0 0
  %54 = vmatprep.subr.bf16.mxu0 0
  %55 = vmatpush1.bf16.msra.mxu0 0
  %56 = vmatprep.subr.bf16.mxu0 0
  %57 = vmatpush1.bf16.msra.mxu0 0
  %58 = vmatprep.subr.bf16.mxu0 0
  %59 = vmatpush1.bf16.msra.mxu0 0
  %60 = vmatprep.subr.bf16.mxu0 0
  %61 = vmatpush1.bf16.msra.mxu0 0
  %62 = vmatprep.subr.bf16.mxu0 0
  %63 = vmatpush1.bf16.msra.mxu0 0
  %64 = vmatprep.subr.bf16.mxu0 0
  %65 = vmatpush1.bf16.msra.mxu0 0
  %66 = vmatprep.mubr.bf16.mxu0 0
  %67 = vmatmul.mubr.bf16.gmra.mrb[0].mxu0 %v28
  %v68 = vpop.f32.mrb[0].mxu0
  %v69 = vadd.f32 %v24, %v68
  %v70 = vpop.f32.mrb[0].mxu0
  %v71 = vpop.f32.mrb[0].mxu0
  %v72 = vadd.f32 %v24, %v71
  %v73 = vpop.f32.mrb[0].mxu0
  %74 = vdwg.mxu0
  %vm75 = vcmask 261120
  %76 = vst.msk [vmem:[%s3] sm:$0xff] %vm75, %v69
  %77 = vst.msk [vmem:[%s3 + $0x8] sm:$0xff] %vm75, %v72
  // Predicated region
  $region14: #{object_transformer_forward.40} parent=0 // pred_check
    _
  $region15: #{object_transformer_forward.40} parent=0 // pred_check_branch
    %79 = sbr.rel (0) target = $region17
  $region16: #{object_transformer_forward.40} parent=0 // pred_region
    _
  $region17: #{object_transformer_forward.40} parent=0 // pred_fallthru
    _
  // Predicated region
  $region18: #{object_transformer_forward.40} parent=0 // pred_check
    _
  $region19: #{object_transformer_forward.40} parent=0 // pred_check_branch
    %81 = sbr.rel (0) target = $region21
  $region20: #{object_transformer_forward.40} parent=0 // pred_region
    _
  $region21: #{object_transformer_forward.40} parent=0 // pred_fallthru
    _

// kernel: object_transformer_forward.41
$region0: #{object_transformer_forward.41}
  #allocation0 [shape = 'u32[]', space=smem, size = 0x4, offset = 0x4, fixed_abs, tag = 'smem constant byte address 0x4 - core index']
  #allocation1 [shape = 'u32[144,128]{1,0:T(1,128)}', space=vmem, size = 0x12000, scoped, tag = 'internal scratch']
  %s0 = inlined_call_operand.vmem [shape: f32[4,4,32], index: 0, kind: input, shape index: {}]
  %s1 = inlined_call_operand.vmem [shape: f32[1,32], index: 1, kind: input, shape index: {}]
  %s2 = inlined_call_operand.vmem [shape: f32[1,32], index: 2, kind: input, shape index: {}]
  %s3 = inlined_call_operand.vmem [shape: bf16[32,96], index: 3, kind: input, shape index: {}]
  %s4 = inlined_call_operand.vmem [shape: f32[1,96], index: 4, kind: input, shape index: {}]
  %s5 = inlined_call_operand.vmem [shape: bf16[32,32], index: 5, kind: input, shape index: {}]
  %s6 = inlined_call_operand.vmem [shape: f32[1,32], index: 6, kind: input, shape index: {}]
  %s7 = inlined_call_operand.vmem [shape: f32[4,4,32], index: 7, kind: output, shape index: {}]
  %s8 = sld [smem:[#allocation0]]
  $region61: #{object_transformer_forward.41} parent=0
    _
  %s10 = ssub.s32 1, %s8
  %s11 = scalar_select 0, %s10, %s8
  loop: start=0, step=1, limit=6
  $region2: #{object_transformer_forward.41} parent=0 // loop_pre_header
    _
  $region3: #{object_transformer_forward.41} parent=0 // loop_header
    %s13 = sphi 0, %s17
    %p14 = scmp.ge.s32.totalorder %s13, 6
    %s23 = sphi 0, %s25
    %s26 = sphi 0, %s23
    %s27 = sphi 0, %s26
    %s43 = sphi 0, %s27
    %s47 = sphi 0, %s47
    %s49 = sphi 0, %s47
    %s50 = sphi 0, %s49
    %s64 = sphi 0, %s50
    %s68 = sphi 0, %s68
    %s70 = sphi 0, %s68
    %s71 = sphi 0, %s70
    %s85 = sphi 0, %s71
    %s89 = sphi 0, %s89
    %s91 = sphi 0, %s89
    %s92 = sphi 0, %s91
    %s106 = sphi 0, %s92
    %s110 = sphi 0, %s110
    %s112 = sphi 0, %s110
    %s113 = sphi 0, %s112
    %s127 = sphi 0, %s113
    %s131 = sphi 0, %s131
    %s133 = sphi 0, %s131
    %s134 = sphi 0, %s133
    %s148 = sphi 0, %s134
    %s152 = sphi 0, %s152
    %s154 = sphi 0, %s152
    %s155 = sphi 0, %s154
    %s169 = sphi 0, %s155
    %s175 = sphi 0, %s177
    %s178 = sphi 0, %s175
    %s179 = sphi 0, %s178
    %s195 = sphi 0, %s179
  $region4: #{object_transformer_forward.41} parent=0 // loop_header_branch
    %16 = sbr.rel (%p14) target = $region8
  $region5: #{object_transformer_forward.41} parent=0 // loop_body
    %s18 = ssub.s32 %s13, 1
    %s19 = ssub.s32 %s13, 2
    %s20 = sadd.s32 %s13, 1
    %s21 = ssub.s32 %s13, %s20
    %p22 = scmp.eq.s32.totalorder %s21, 0
    %s24 = sadd.s32 %s23, 1
    %s25 = scalar_select %p22, %s23, %s24
    %p28 = pneg %p22
    %p29 = scmp.eq.s32.totalorder %s13, 3
    %p30 = por %p28, %p29
    %p31 = scmp.ne.s32.totalorder %s23, %s26
    %p32 = scmp.eq.s32.totalorder %s13, 0
    %p33 = por %p31, %p32
    %p34 = scmp.ne.s32.totalorder %s23, %s26
    %p35 = scmp.eq.s32.totalorder %s18, 3
    %p36 = por %p34, %p35
    %p37 = scmp.ne.s32.totalorder %s26, %s27
    %p38 = scmp.eq.s32.totalorder %s18, 0
    %p39 = por %p37, %p38
    %p40 = scmp.ne.s32.totalorder %s26, %s27
    %p41 = scmp.eq.s32.totalorder %s19, 3
    %p42 = por %p40, %p41
    %p44 = scmp.ne.s32.totalorder %s27, %s43
    %p45 = scmp.eq.s32.totalorder %s19, 0
    %p46 = por %p44, %p45
    %s48 = sadd.s32 %s47, 1
    %p51 = scmp.eq.s32.totalorder %s13, 3
    %p52 = scmp.ne.s32.totalorder %s47, %s49
    %p53 = scmp.eq.s32.totalorder %s13, 0
    %p54 = por %p52, %p53
    %p55 = scmp.ne.s32.totalorder %s47, %s49
    %p56 = scmp.eq.s32.totalorder %s18, 3
    %p57 = por %p55, %p56
    %p58 = scmp.ne.s32.totalorder %s49, %s50
    %p59 = scmp.eq.s32.totalorder %s18, 0
    %p60 = por %p58, %p59
    %p61 = scmp.ne.s32.totalorder %s49, %s50
    %p62 = scmp.eq.s32.totalorder %s19, 3
    %p63 = por %p61, %p62
    %p65 = scmp.ne.s32.totalorder %s50, %s64
    %p66 = scmp.eq.s32.totalorder %s19, 0
    %p67 = por %p65, %p66
    %s69 = sadd.s32 %s68, 1
    %p72 = scmp.eq.s32.totalorder %s13, 3
    %p73 = scmp.ne.s32.totalorder %s68, %s70
    %p74 = scmp.eq.s32.totalorder %s13, 0
    %p75 = por %p73, %p74
    %p76 = scmp.ne.s32.totalorder %s68, %s70
    %p77 = scmp.eq.s32.totalorder %s18, 3
    %p78 = por %p76, %p77
    %p79 = scmp.ne.s32.totalorder %s70, %s71
    %p80 = scmp.eq.s32.totalorder %s18, 0
    %p81 = por %p79, %p80
    %p82 = scmp.ne.s32.totalorder %s70, %s71
    %p83 = scmp.eq.s32.totalorder %s19, 3
    %p84 = por %p82, %p83
    %p86 = scmp.ne.s32.totalorder %s71, %s85
    %p87 = scmp.eq.s32.totalorder %s19, 0
    %p88 = por %p86, %p87
    %s90 = sadd.s32 %s89, 1
    %p93 = scmp.eq.s32.totalorder %s13, 3
    %p94 = scmp.ne.s32.totalorder %s89, %s91
    %p95 = scmp.eq.s32.totalorder %s13, 0
    %p96 = por %p94, %p95
    %p97 = scmp.ne.s32.totalorder %s89, %s91
    %p98 = scmp.eq.s32.totalorder %s18, 3
    %p99 = por %p97, %p98
    %p100 = scmp.ne.s32.totalorder %s91, %s92
    %p101 = scmp.eq.s32.totalorder %s18, 0
    %p102 = por %p100, %p101
    %p103 = scmp.ne.s32.totalorder %s91, %s92
    %p104 = scmp.eq.s32.totalorder %s19, 3
    %p105 = por %p103, %p104
    %p107 = scmp.ne.s32.totalorder %s92, %s106
    %p108 = scmp.eq.s32.totalorder %s19, 0
    %p109 = por %p107, %p108
    %s111 = sadd.s32 %s110, 1
    %p114 = scmp.eq.s32.totalorder %s13, 3
    %p115 = scmp.ne.s32.totalorder %s110, %s112
    %p116 = scmp.eq.s32.totalorder %s13, 0
    %p117 = por %p115, %p116
    %p118 = scmp.ne.s32.totalorder %s110, %s112
    %p119 = scmp.eq.s32.totalorder %s18, 3
    %p120 = por %p118, %p119
    %p121 = scmp.ne.s32.totalorder %s112, %s113
    %p122 = scmp.eq.s32.totalorder %s18, 0
    %p123 = por %p121, %p122
    %p124 = scmp.ne.s32.totalorder %s112, %s113
    %p125 = scmp.eq.s32.totalorder %s19, 3
    %p126 = por %p124, %p125
    %p128 = scmp.ne.s32.totalorder %s113, %s127
    %p129 = scmp.eq.s32.totalorder %s19, 0
    %p130 = por %p128, %p129
    %s132 = sadd.s32 %s131, 1
    %p135 = scmp.eq.s32.totalorder %s13, 3
    %p136 = scmp.ne.s32.totalorder %s131, %s133
    %p137 = scmp.eq.s32.totalorder %s13, 0
    %p138 = por %p136, %p137
    %p139 = scmp.ne.s32.totalorder %s131, %s133
    %p140 = scmp.eq.s32.totalorder %s18, 3
    %p141 = por %p139, %p140
    %p142 = scmp.ne.s32.totalorder %s133, %s134
    %p143 = scmp.eq.s32.totalorder %s18, 0
    %p144 = por %p142, %p143
    %p145 = scmp.ne.s32.totalorder %s133, %s134
    %p146 = scmp.eq.s32.totalorder %s19, 3
    %p147 = por %p145, %p146
    %p149 = scmp.ne.s32.totalorder %s134, %s148
    %p150 = scmp.eq.s32.totalorder %s19, 0
    %p151 = por %p149, %p150
    %s153 = sadd.s32 %s152, 1
    %p156 = scmp.eq.s32.totalorder %s13, 3
    %p157 = scmp.ne.s32.totalorder %s152, %s154
    %p158 = scmp.eq.s32.totalorder %s13, 0
    %p159 = por %p157, %p158
    %p160 = scmp.ne.s32.totalorder %s152, %s154
    %p161 = scmp.eq.s32.totalorder %s18, 3
    %p162 = por %p160, %p161
    %p163 = scmp.ne.s32.totalorder %s154, %s155
    %p164 = scmp.eq.s32.totalorder %s18, 0
    %p165 = por %p163, %p164
    %p166 = scmp.ne.s32.totalorder %s154, %s155
    %p167 = scmp.eq.s32.totalorder %s19, 3
    %p168 = por %p166, %p167
    %p170 = scmp.ne.s32.totalorder %s155, %s169
    %p171 = scmp.eq.s32.totalorder %s19, 0
    %p172 = por %p170, %p171
    %s173 = ssub.s32 %s13, %s20
    %p174 = scmp.eq.s32.totalorder %s173, 0
    %s176 = sadd.s32 %s175, 1
    %s177 = scalar_select %p174, %s175, %s176
    %p180 = pneg %p174
    %p181 = scmp.eq.s32.totalorder %s13, 3
    %p182 = por %p180, %p181
    %p183 = scmp.ne.s32.totalorder %s175, %s178
    %p184 = scmp.eq.s32.totalorder %s13, 0
    %p185 = por %p183, %p184
    %p186 = scmp.ne.s32.totalorder %s175, %s178
    %p187 = scmp.eq.s32.totalorder %s18, 3
    %p188 = por %p186, %p187
    %p189 = scmp.ne.s32.totalorder %s178, %s179
    %p190 = scmp.eq.s32.totalorder %s18, 0
    %p191 = por %p189, %p190
    %p192 = scmp.ne.s32.totalorder %s178, %s179
    %p193 = scmp.eq.s32.totalorder %s19, 3
    %p194 = por %p192, %p193
    %p196 = scmp.ne.s32.totalorder %s179, %s195
    %p197 = scmp.eq.s32.totalorder %s19, 0
    %p198 = por %p196, %p197
    %p199 = scmp.le.s32.totalorder 1, %s13
    %p200 = scmp.lt.s32.totalorder %s13, 5
    %p201 = pnand %p199, %p200
    %p202 = pneg %p201
    // Predicated region
    $region9: #{object_transformer_forward.41} parent=5 // pred_check
      _
    $region10: #{object_transformer_forward.41} parent=5 // pred_check_branch
      %204 = sbr.rel (%p201) target = $region12
    $region11: #{object_transformer_forward.41} parent=5 // pred_region
      %s205 = ssub.s32 %s13, 1
      // Predicated region
      $region13: #{object_transformer_forward.41} parent=11 // pred_check
        %p206 = pneg %p60
      $region14: #{object_transformer_forward.41} parent=11 // pred_check_branch
        %208 = sbr.rel (%p206) target = $region16
      $region15: #{object_transformer_forward.41} parent=11 // pred_region
        _
      $region16: #{object_transformer_forward.41} parent=11 // pred_fallthru
        _
      // Predicated region
      $region17: #{object_transformer_forward.41} parent=11 // pred_check
        %p209 = pneg %p81
      $region18: #{object_transformer_forward.41} parent=11 // pred_check_branch
        %211 = sbr.rel (%p209) target = $region20
      $region19: #{object_transformer_forward.41} parent=11 // pred_region
        _
      $region20: #{object_transformer_forward.41} parent=11 // pred_fallthru
        _
      // Predicated region
      $region21: #{object_transformer_forward.41} parent=11 // pred_check
        %p212 = pneg %p102
      $region22: #{object_transformer_forward.41} parent=11 // pred_check_branch
        %214 = sbr.rel (%p212) target = $region24
      $region23: #{object_transformer_forward.41} parent=11 // pred_region
        _
      $region24: #{object_transformer_forward.41} parent=11 // pred_fallthru
        _
      // Predicated region
      $region25: #{object_transformer_forward.41} parent=11 // pred_check
        %p215 = pneg %p123
      $region26: #{object_transformer_forward.41} parent=11 // pred_check_branch
        %217 = sbr.rel (%p215) target = $region28
      $region27: #{object_transformer_forward.41} parent=11 // pred_region
        _
      $region28: #{object_transformer_forward.41} parent=11 // pred_fallthru
        _
      // Predicated region
      $region29: #{object_transformer_forward.41} parent=11 // pred_check
        %p218 = pneg %p144
      $region30: #{object_transformer_forward.41} parent=11 // pred_check_branch
        %220 = sbr.rel (%p218) target = $region32
      $region31: #{object_transformer_forward.41} parent=11 // pred_region
        _
      $region32: #{object_transformer_forward.41} parent=11 // pred_fallthru
        _
      // Predicated region
      $region33: #{object_transformer_forward.41} parent=11 // pred_check
        %p221 = pneg %p165
      $region34: #{object_transformer_forward.41} parent=11 // pred_check_branch
        %223 = sbr.rel (%p221) target = $region36
      $region35: #{object_transformer_forward.41} parent=11 // pred_region
        _
      $region36: #{object_transformer_forward.41} parent=11 // pred_fallthru
        _
    $region12: #{object_transformer_forward.41} parent=5 // pred_fallthru
      _
    %p224 = scmp.lt.s32.totalorder %s13, 4
    // Predicated region
    $region37: #{object_transformer_forward.41} parent=5 // pred_check
      %p225 = pneg %p224
    $region38: #{object_transformer_forward.41} parent=5 // pred_check_branch
      %227 = sbr.rel (%p225) target = $region40
    $region39: #{object_transformer_forward.41} parent=5 // pred_region
      // Predicated region
      $region41: #{object_transformer_forward.41} parent=39 // pred_check
        %p228 = pneg %p33
      $region42: #{object_transformer_forward.41} parent=39 // pred_check_branch
        %230 = sbr.rel (%p228) target = $region44
      $region43: #{object_transformer_forward.41} parent=39 // pred_region
        %p231 = scmp.lt.s32.totalorder %s13, 3
        %s232 = scalar_select %p231, %s13, 3
        %s233 = smul.addr %s232, 4
        %s234 = scalar_lea.vmem %s0, %s233
      $region44: #{object_transformer_forward.41} parent=39 // pred_fallthru
        _
    $region40: #{object_transformer_forward.41} parent=5 // pred_fallthru
      _
    %p235 = scmp.le.s32.totalorder 1, %s13
    %p236 = scmp.lt.s32.totalorder %s13, 5
    %p237 = pnand %p235, %p236
    %p238 = pneg %p237
    // Predicated region
    $region45: #{object_transformer_forward.41} parent=5 // pred_check
      _
    $region46: #{object_transformer_forward.41} parent=5 // pred_check_branch
      %240 = sbr.rel (%p237) target = $region48
    $region47: #{object_transformer_forward.41} parent=5 // pred_region
      %s241 = ssub.s32 %s13, 1
      %p242 = scmp.lt.s32.totalorder %s18, 3
      %s243 = scalar_select %p242, %s18, 3
      %s244 = smul.addr %s243, 4
      %s245 = scalar_lea.vmem %s0, %s244
      %p246 = pneg %p39
      %p247 = pneg %p36
      %p248 = pneg %p60
      %p249 = pneg %p57
      %p250 = pneg %p81
      %p251 = pneg %p78
      %p252 = pneg %p102
      %p253 = pneg %p99
      %p254 = pneg %p123
      %p255 = pneg %p120
      %p256 = pneg %p144
      %p257 = pneg %p141
      %p258 = pneg %p165
      %p259 = pneg %p162
      %p260 = pneg %p191
      %p261 = pneg %p188
      %p262 = scmp.lt.s32.totalorder %s18, 3
      %s263 = scalar_select %p262, %s18, 3
      %s264 = smul.addr %s263, 4
      %s265 = scalar_lea.vmem %s7, %s264
      %p266 = scmp.lt.s32.totalorder %s18, 3
      %s267 = scalar_select %p266, %s18, 3
      %s268 = smul.addr %s267, 4
      %s269 = scalar_lea.vmem %s0, %s268
      %p270 = scmp.lt.s32.totalorder %s18, 3
      %s271 = scalar_select %p270, %s18, 3
      %s272 = smul.addr %s271, 4
      %s273 = scalar_lea.vmem %s7, %s272
      %v275 = vld [vmem:[%s269] sm:$0xf]
      %vm276 = vcmask 257024
      %v277 = vsel %vm276, %v275, 0.0
      %278 = vadd.xlane.f32.xlu0 %v277
      %v279 = vpop.xlane.xlu0 %278
      %v280 = vrcp.pop 32.0
      %v281 = vmul.f32 %v279, %v280
      %v282 = vsub.f32 %v275, %v281
      %v283 = vmul.f32 %v282, %v282
      %v284 = vsel %vm276, %v283, 0.0
      %285 = vadd.xlane.f32.xlu0 %v284
      %v286 = vpop.xlane.xlu0 %285
      %v287 = vmul.f32 %v286, %v280
      %v288 = vadd.f32 %v287, 1e-05
      %v289 = vrsqrt.pop %v288
      %v290 = vmul.f32 %v282, %v289
      %v291 = vld [vmem:[%s1] sm:$0x1]
      %v293 = vlaneseq
      %v294 = vshrl.u32 %v293, 7
      %v295 = vsub.s32 0, %v294
      %v296 = vrot.slane %v291, %v295
      %v298 = vmul.f32 %v290, %v296
      %v299 = vld [vmem:[%s2] sm:$0x1]
      %v301 = vlaneseq
      %v302 = vshrl.u32 %v301, 7
      %v303 = vsub.s32 0, %v302
      %v304 = vrot.slane %v299, %v303
      %v306 = vadd.f32 %v298, %v304
      %v307 = vpack.c.bf16 %v306, %v306
      %v308 = vld [vmem:[%s3] sm:$0xf]
      %v309 = vld [vmem:[%s3 + $0x4] sm:$0xf]
      %v310 = vld [vmem:[%s3 + $0x8] sm:$0xf]
      %v311 = vld [vmem:[%s3 + $0xc] sm:$0xf]
      %v312 = vld [vmem:[%s4] sm:$0x1]
      %v314 = vlaneseq
      %v315 = vshrl.u32 %v314, 7
      %v316 = vsub.s32 0, %v315
      %v317 = vrot.slane %v312, %v316
      %v323 = vunpack.c.l.b16 %v308
      %v324 = vunpack.c.l.b16 %v309
      %v325 = vunpack.c.l.b16 %v310
      %v326 = vunpack.c.l.b16 %v311
      %v327 = vpack.c.b16 %v324, %v323
      %v328 = vpack.c.b16 %v326, %v325
      %vm331 = vcmask 261120
      %v333 = vsel %vm331, %v307, 0
      %335 = vmatprep.subr.bf16.mxu0 0
      %336 = vmatpush1.bf16.msra.mxu0 %v327
      %337 = vmatprep.subr.bf16.mxu0 0
      %338 = vmatpush1.bf16.msra.mxu0 %v328
      %339 = vmatprep.subr.bf16.mxu0 0
      %340 = vmatpush1.bf16.msra.mxu0 0
      %341 = vmatprep.subr.bf16.mxu0 0
      %342 = vmatpush1.bf16.msra.mxu0 0
      %343 = vmatprep.subr.bf16.mxu0 0
      %344 = vmatpush1.bf16.msra.mxu0 0
      %345 = vmatprep.subr.bf16.mxu0 0
      %346 = vmatpush1.bf16.msra.mxu0 0
      %347 = vmatprep.subr.bf16.mxu0 0
      %348 = vmatpush1.bf16.msra.mxu0 0
      %349 = vmatprep.subr.bf16.mxu0 0
      %350 = vmatpush1.bf16.msra.mxu0 0
      %351 = vmatprep.subr.bf16.mxu0 0
      %352 = vmatpush1.bf16.msra.mxu0 0
      %353 = vmatprep.subr.bf16.mxu0 0
      %354 = vmatpush1.bf16.msra.mxu0 0
      %355 = vmatprep.subr.bf16.mxu0 0
      %356 = vmatpush1.bf16.msra.mxu0 0
      %357 = vmatprep.subr.bf16.mxu0 0
      %358 = vmatpush1.bf16.msra.mxu0 0
      %359 = vmatprep.subr.bf16.mxu0 0
      %360 = vmatpush1.bf16.msra.mxu0 0
      %361 = vmatprep.subr.bf16.mxu0 0
      %362 = vmatpush1.bf16.msra.mxu0 0
      %363 = vmatprep.subr.bf16.mxu0 0
      %364 = vmatpush1.bf16.msra.mxu0 0
      %365 = vmatprep.subr.bf16.mxu0 0
      %366 = vmatpush1.bf16.msra.mxu0 0
      %367 = vmatprep.mubr.bf16.mxu0 0
      %368 = vmatmul.mubr.bf16.gmra.mrb[0].mxu0 %v333
      %v369 = vpop.f32.mrb[0].mxu0
      %v370 = vadd.f32 %v317, %v369
      %v371 = vpop.f32.mrb[0].mxu0
      %v372 = vpop.f32.mrb[0].mxu0
      %v373 = vpop.f32.mrb[0].mxu0
      %374 = vdwg.mxu0
      %v375 = vlaneseq
      %v376 = vshrl.u32 %v375, 7
      %v377 = vlaneseq
      %v378 = vand.u32 %v377, 127
      %vm379 = vcmp.le.s32.totalorder %v378, %v376
      %v380 = vpack.c.bf16 %v370, %v370
      %382 = vrot.lane.b32.xlu0 %v380, 96
      %v383 = vpop.permute.xlu0 %382
      %vm384 = vcmask 64512
      %v386 = vsel %vm384, %v380, 0
      %v389 = vsel %vm384, %v383, 0
      %391 = vmatprep.subr.bf16.mxu0 0
      %392 = vmatpush1.bf16.xpose.msra.mxu0 %v389
      %393 = vmatprep.subr.bf16.mxu0 0
      %394 = vmatpush1.bf16.xpose.msra.mxu0 0
      %395 = vmatprep.subr.bf16.mxu0 0
      %396 = vmatpush1.bf16.xpose.msra.mxu0 0
      %397 = vmatprep.subr.bf16.mxu0 0
      %398 = vmatpush1.bf16.xpose.msra.mxu0 0
      %399 = vmatprep.subr.bf16.mxu0 0
      %400 = vmatpush1.bf16.xpose.msra.mxu0 0
      %401 = vmatprep.subr.bf16.mxu0 0
      %402 = vmatpush1.bf16.xpose.msra.mxu0 0
      %403 = vmatprep.subr.bf16.mxu0 0
      %404 = vmatpush1.bf16.xpose.msra.mxu0 0
      %405 = vmatprep.subr.bf16.mxu0 0
      %406 = vmatpush1.bf16.xpose.msra.mxu0 0
      %407 = vmatprep.subr.bf16.mxu0 0
      %408 = vmatpush1.bf16.xpose.msra.mxu0 0
      %409 = vmatprep.subr.bf16.mxu0 0
      %410 = vmatpush1.bf16.xpose.msra.mxu0 0
      %411 = vmatprep.subr.bf16.mxu0 0
      %412 = vmatpush1.bf16.xpose.msra.mxu0 0
      %413 = vmatprep.subr.bf16.mxu0 0
      %414 = vmatpush1.bf16.xpose.msra.mxu0 0
      %415 = vmatprep.subr.bf16.mxu0 0
      %416 = vmatpush1.bf16.xpose.msra.mxu0 0
      %417 = vmatprep.subr.bf16.mxu0 0
      %418 = vmatpush1.bf16.xpose.msra.mxu0 0
      %419 = vmatprep.subr.bf16.mxu0 0
      %420 = vmatpush1.bf16.xpose.msra.mxu0 0
      %421 = vmatprep.subr.bf16.mxu0 0
      %422 = vmatpush1.bf16.xpose.msra.mxu0 0
      %423 = vmatprep.mubr.bf16.mxu0 0
      %424 = vmatmul.mubr.bf16.gmra.mrb[0].mxu0 %v386
      %v425 = vpop.f32.mrb[0].mxu0
      %v426 = vadd.f32 0.0, %v425
      %v427 = vpop.f32.mrb[0].mxu0
      %v428 = vpop.f32.mrb[0].mxu0
      %v429 = vpop.f32.mrb[0].mxu0
      %430 = vdwg.mxu0
      %v431 = vmul.f32 %v426, 0.35355338
      %v432 = vsel %vm379, %v431, -1e+09
      %vm433 = vcmask 27648
      %v434 = vsel %vm433, %v432, -inf
      %435 = vmax.xlane.f32.xlu0 %v434
      %v436 = vpop.xlane.xlu0 %435
      %v437 = vsub.f32 %v432, %v436
      %v438 = vmul.f32 %v437, 1.442695
      %v439 = vpow.pop %v438
      %v440 = vsel %vm433, %v439, 0.0
      %441 = vadd.xlane.f32.xlu0 %v440
      %v442 = vpop.xlane.xlu0 %441
      %v443 = vrcp.pop %v442
      %v444 = vmul.f32 %v439, %v443
      %v445 = vpack.c.bf16 %v444, %v444
      %446 = vrot.lane.b32.xlu0 %v380, 64
      %v447 = vpop.permute.xlu0 %446
      %vm448 = vcmask 31744
      %v450 = vsel %vm448, %v445, 0
      %vm452 = vcmask 1041408
      %v454 = vsel %vm452, %v447, 0
      %456 = vmatprep.subr.bf16.mxu0 0
      %457 = vmatpush1.bf16.msra.mxu0 %v454
      %458 = vmatprep.subr.bf16.mxu0 0
      %459 = vmatpush1.bf16.msra.mxu0 0
      %460 = vmatprep.subr.bf16.mxu0 0
      %461 = vmatpush1.bf16.msra.mxu0 0
      %462 = vmatprep.subr.bf16.mxu0 0
      %463 = vmatpush1.bf16.msra.mxu0 0
      %464 = vmatprep.subr.bf16.mxu0 0
      %465 = vmatpush1.bf16.msra.mxu0 0
      %466 = vmatprep.subr.bf16.mxu0 0
      %467 = vmatpush1.bf16.msra.mxu0 0
      %468 = vmatprep.subr.bf16.mxu0 0
      %469 = vmatpush1.bf16.msra.mxu0 0
      %470 = vmatprep.subr.bf16.mxu0 0
      %471 = vmatpush1.bf16.msra.mxu0 0
      %472 = vmatprep.subr.bf16.mxu0 0
      %473 = vmatpush1.bf16.msra.mxu0 0
      %474 = vmatprep.subr.bf16.mxu0 0
      %475 = vmatpush1.bf16.msra.mxu0 0
      %476 = vmatprep.subr.bf16.mxu0 0
      %477 = vmatpush1.bf16.msra.mxu0 0
      %478 = vmatprep.subr.bf16.mxu0 0
      %479 = vmatpush1.bf16.msra.mxu0 0
      %480 = vmatprep.subr.bf16.mxu0 0
      %481 = vmatpush1.bf16.msra.mxu0 0
      %482 = vmatprep.subr.bf16.mxu0 0
      %483 = vmatpush1.bf16.msra.mxu0 0
      %484 = vmatprep.subr.bf16.mxu0 0
      %485 = vmatpush1.bf16.msra.mxu0 0
      %486 = vmatprep.subr.bf16.mxu0 0
      %487 = vmatpush1.bf16.msra.mxu0 0
      %488 = vmatprep.mubr.bf16.mxu0 0
      %489 = vmatmul.mubr.bf16.gmra.mrb[0].mxu0 %v450
      %v490 = vpop.f32.mrb[0].mxu0
      %v491 = vadd.f32 0.0, %v490
      %v492 = vpop.f32.mrb[0].mxu0
      %v493 = vpop.f32.mrb[0].mxu0
      %v494 = vpop.f32.mrb[0].mxu0
      %495 = vdwg.mxu0
      %496 = vrot.lane.b32.xlu0 %v380, 120
      %v497 = vpop.permute.xlu0 %496
      %498 = vrot.lane.b32.xlu0 %v380, 88
      %v499 = vpop.permute.xlu0 %498
      %v501 = vsel %vm384, %v497, 0
      %v504 = vsel %vm384, %v499, 0
      %506 = vmatprep.subr.bf16.mxu0 0
      %507 = vmatpush1.bf16.xpose.msra.mxu0 %v504
      %508 = vmatprep.subr.bf16.mxu0 0
      %509 = vmatpush1.bf16.xpose.msra.mxu0 0
      %510 = vmatprep.subr.bf16.mxu0 0
      %511 = vmatpush1.bf16.xpose.msra.mxu0 0
      %512 = vmatprep.subr.bf16.mxu0 0
      %513 = vmatpush1.bf16.xpose.msra.mxu0 0
      %514 = vmatprep.subr.bf16.mxu0 0
      %515 = vmatpush1.bf16.xpose.msra.mxu0 0
      %516 = vmatprep.subr.bf16.mxu0 0
      %517 = vmatpush1.bf16.xpose.msra.mxu0 0
      %518 = vmatprep.subr.bf16.mxu0 0
      %519 = vmatpush1.bf16.xpose.msra.mxu0 0
      %520 = vmatprep.subr.bf16.mxu0 0
      %521 = vmatpush1.bf16.xpose.msra.mxu0 0
      %522 = vmatprep.subr.bf16.mxu0 0
      %523 = vmatpush1.bf16.xpose.msra.mxu0 0
      %524 = vmatprep.subr.bf16.mxu0 0
      %525 = vmatpush1.bf16.xpose.msra.mxu0 0
      %526 = vmatprep.subr.bf16.mxu0 0
      %527 = vmatpush1.bf16.xpose.msra.mxu0 0
      %528 = vmatprep.subr.bf16.mxu0 0
      %529 = vmatpush1.bf16.xpose.msra.mxu0 0
      %530 = vmatprep.subr.bf16.mxu0 0
      %531 = vmatpush1.bf16.xpose.msra.mxu0 0
      %532 = vmatprep.subr.bf16.mxu0 0
      %533 = vmatpush1.bf16.xpose.msra.mxu0 0
      %534 = vmatprep.subr.bf16.mxu0 0
      %535 = vmatpush1.bf16.xpose.msra.mxu0 0
      %536 = vmatprep.subr.bf16.mxu0 0
      %537 = vmatpush1.bf16.xpose.msra.mxu0 0
      %538 = vmatprep.mubr.bf16.mxu0 0
      %539 = vmatmul.mubr.bf16.gmra.mrb[0].mxu0 %v501
      %v540 = vpop.f32.mrb[0].mxu0
      %v541 = vadd.f32 0.0, %v540
      %v542 = vpop.f32.mrb[0].mxu0
      %v543 = vpop.f32.mrb[0].mxu0
      %v544 = vpop.f32.mrb[0].mxu0
      %545 = vdwg.mxu0
      %v546 = vmul.f32 %v541, 0.35355338
      %v547 = vsel %vm379, %v546, -1e+09
      %v548 = vsel %vm433, %v547, -inf
      %549 = vmax.xlane.f32.xlu0 %v548
      %v550 = vpop.xlane.xlu0 %549
      %v551 = vsub.f32 %v547, %v550
      %v552 = vmul.f32 %v551, 1.442695
      %v553 = vpow.pop %v552
      %v554 = vsel %vm433, %v553, 0.0
      %555 = vadd.xlane.f32.xlu0 %v554
      %v556 = vpop.xlane.xlu0 %555
      %v557 = vrcp.pop %v556
      %v558 = vmul.f32 %v553, %v557
      %v559 = vpack.c.bf16 %v558, %v558
      %560 = vrot.lane.b32.xlu0 %v380, 56
      %v561 = vpop.permute.xlu0 %560
      %v563 = vsel %vm448, %v559, 0
      %v566 = vsel %vm452, %v561, 0
      %568 = vmatprep.subr.bf16.mxu0 0
      %569 = vmatpush1.bf16.msra.mxu0 %v566
      %570 = vmatprep.subr.bf16.mxu0 0
      %571 = vmatpush1.bf16.msra.mxu0 0
      %572 = vmatprep.subr.bf16.mxu0 0
      %573 = vmatpush1.bf16.msra.mxu0 0
      %574 = vmatprep.subr.bf16.mxu0 0
      %575 = vmatpush1.bf16.msra.mxu0 0
      %576 = vmatprep.subr.bf16.mxu0 0
      %577 = vmatpush1.bf16.msra.mxu0 0
      %578 = vmatprep.subr.bf16.mxu0 0
      %579 = vmatpush1.bf16.msra.mxu0 0
      %580 = vmatprep.subr.bf16.mxu0 0
      %581 = vmatpush1.bf16.msra.mxu0 0
      %582 = vmatprep.subr.bf16.mxu0 0
      %583 = vmatpush1.bf16.msra.mxu0 0
      %584 = vmatprep.subr.bf16.mxu0 0
      %585 = vmatpush1.bf16.msra.mxu0 0
      %586 = vmatprep.subr.bf16.mxu0 0
      %587 = vmatpush1.bf16.msra.mxu0 0
      %588 = vmatprep.subr.bf16.mxu0 0
      %589 = vmatpush1.bf16.msra.mxu0 0
      %590 = vmatprep.subr.bf16.mxu0 0
      %591 = vmatpush1.bf16.msra.mxu0 0
      %592 = vmatprep.subr.bf16.mxu0 0
      %593 = vmatpush1.bf16.msra.mxu0 0
      %594 = vmatprep.subr.bf16.mxu0 0
      %595 = vmatpush1.bf16.msra.mxu0 0
      %596 = vmatprep.subr.bf16.mxu0 0
      %597 = vmatpush1.bf16.msra.mxu0 0
      %598 = vmatprep.subr.bf16.mxu0 0
      %599 = vmatpush1.bf16.msra.mxu0 0
      %600 = vmatprep.mubr.bf16.mxu0 0
      %601 = vmatmul.mubr.bf16.gmra.mrb[0].mxu0 %v563
      %v602 = vpop.f32.mrb[0].mxu0
      %v603 = vadd.f32 0.0, %v602
      %v604 = vpop.f32.mrb[0].mxu0
      %v605 = vpop.f32.mrb[0].mxu0
      %v606 = vpop.f32.mrb[0].mxu0
      %607 = vdwg.mxu0
      %608 = vrot.lane.b32.xlu0 %v380, 112
      %v609 = vpop.permute.xlu0 %608
      %610 = vrot.lane.b32.xlu0 %v380, 80
      %v611 = vpop.permute.xlu0 %610
      %v613 = vsel %vm384, %v609, 0
      %v616 = vsel %vm384, %v611, 0
      %618 = vmatprep.subr.bf16.mxu0 0
      %619 = vmatpush1.bf16.xpose.msra.mxu0 %v616
      %620 = vmatprep.subr.bf16.mxu0 0
      %621 = vmatpush1.bf16.xpose.msra.mxu0 0
      %622 = vmatprep.subr.bf16.mxu0 0
      %623 = vmatpush1.bf16.xpose.msra.mxu0 0
      %624 = vmatprep.subr.bf16.mxu0 0
      %625 = vmatpush1.bf16.xpose.msra.mxu0 0
      %626 = vmatprep.subr.bf16.mxu0 0
      %627 = vmatpush1.bf16.xpose.msra.mxu0 0
      %628 = vmatprep.subr.bf16.mxu0 0
      %629 = vmatpush1.bf16.xpose.msra.mxu0 0
      %630 = vmatprep.subr.bf16.mxu0 0
      %631 = vmatpush1.bf16.xpose.msra.mxu0 0
      %632 = vmatprep.subr.bf16.mxu0 0
      %633 = vmatpush1.bf16.xpose.msra.mxu0 0
      %634 = vmatprep.subr.bf16.mxu0 0
      %635 = vmatpush1.bf16.xpose.msra.mxu0 0
      %636 = vmatprep.subr.bf16.mxu0 0
      %637 = vmatpush1.bf16.xpose.msra.mxu0 0
      %638 = vmatprep.subr.bf16.mxu0 0
      %639 = vmatpush1.bf16.xpose.msra.mxu0 0
      %640 = vmatprep.subr.bf16.mxu0 0
      %641 = vmatpush1.bf16.xpose.msra.mxu0 0
      %642 = vmatprep.subr.bf16.mxu0 0
      %643 = vmatpush1.bf16.xpose.msra.mxu0 0
      %644 = vmatprep.subr.bf16.mxu0 0
      %645 = vmatpush1.bf16.xpose.msra.mxu0 0
      %646 = vmatprep.subr.bf16.mxu0 0
      %647 = vmatpush1.bf16.xpose.msra.mxu0 0
      %648 = vmatprep.subr.bf16.mxu0 0
      %649 = vmatpush1.bf16.xpose.msra.mxu0 0
      %650 = vmatprep.mubr.bf16.mxu0 0
      %651 = vmatmul.mubr.bf16.gmra.mrb[0].mxu0 %v613
      %v652 = vpop.f32.mrb[0].mxu0
      %v653 = vadd.f32 0.0, %v652
      %v654 = vpop.f32.mrb[0].mxu0
      %v655 = vpop.f32.mrb[0].mxu0
      %v656 = vpop.f32.mrb[0].mxu0
      %657 = vdwg.mxu0
      %v658 = vmul.f32 %v653, 0.35355338
      %v659 = vsel %vm379, %v658, -1e+09
      %v660 = vsel %vm433, %v659, -inf
      %661 = vmax.xlane.f32.xlu0 %v660
      %v662 = vpop.xlane.xlu0 %661
      %v663 = vsub.f32 %v659, %v662
      %v664 = vmul.f32 %v663, 1.442695
      %v665 = vpow.pop %v664
      %v666 = vsel %vm433, %v665, 0.0
      %667 = vadd.xlane.f32.xlu0 %v666
      %v668 = vpop.xlane.xlu0 %667
      %v669 = vrcp.pop %v668
      %v670 = vmul.f32 %v665, %v669
      %v671 = vpack.c.bf16 %v670, %v670
      %672 = vrot.lane.b32.xlu0 %v380, 48
      %v673 = vpop.permute.xlu0 %672
      %v675 = vsel %vm448, %v671, 0
      %v678 = vsel %vm452, %v673, 0
      %680 = vmatprep.subr.bf16.mxu0 0
      %681 = vmatpush1.bf16.msra.mxu0 %v678
      %682 = vmatprep.subr.bf16.mxu0 0
      %683 = vmatpush1.bf16.msra.mxu0 0
      %684 = vmatprep.subr.bf16.mxu0 0
      %685 = vmatpush1.bf16.msra.mxu0 0
      %686 = vmatprep.subr.bf16.mxu0 0
      %687 = vmatpush1.bf16.msra.mxu0 0
      %688 = vmatprep.subr.bf16.mxu0 0
      %689 = vmatpush1.bf16.msra.mxu0 0
      %690 = vmatprep.subr.bf16.mxu0 0
      %691 = vmatpush1.bf16.msra.mxu0 0
      %692 = vmatprep.subr.bf16.mxu0 0
      %693 = vmatpush1.bf16.msra.mxu0 0
      %694 = vmatprep.subr.bf16.mxu0 0
      %695 = vmatpush1.bf16.msra.mxu0 0
      %696 = vmatprep.subr.bf16.mxu0 0
      %697 = vmatpush1.bf16.msra.mxu0 0
      %698 = vmatprep.subr.bf16.mxu0 0
      %699 = vmatpush1.bf16.msra.mxu0 0
      %700 = vmatprep.subr.bf16.mxu0 0
      %701 = vmatpush1.bf16.msra.mxu0 0
      %702 = vmatprep.subr.bf16.mxu0 0
      %703 = vmatpush1.bf16.msra.mxu0 0
      %704 = vmatprep.subr.bf16.mxu0 0
      %705 = vmatpush1.bf16.msra.mxu0 0
      %706 = vmatprep.subr.bf16.mxu0 0
      %707 = vmatpush1.bf16.msra.mxu0 0
      %708 = vmatprep.subr.bf16.mxu0 0
      %709 = vmatpush1.bf16.msra.mxu0 0
      %710 = vmatprep.subr.bf16.mxu0 0
      %711 = vmatpush1.bf16.msra.mxu0 0
      %712 = vmatprep.mubr.bf16.mxu0 0
      %713 = vmatmul.mubr.bf16.gmra.mrb[0].mxu0 %v675
      %v714 = vpop.f32.mrb[0].mxu0
      %v715 = vadd.f32 0.0, %v714
      %v716 = vpop.f32.mrb[0].mxu0
      %v717 = vpop.f32.mrb[0].mxu0
      %v718 = vpop.f32.mrb[0].mxu0
      %719 = vdwg.mxu0
      %720 = vrot.lane.b32.xlu0 %v380, 104
      %v721 = vpop.permute.xlu0 %720
      %722 = vrot.lane.b32.xlu0 %v380, 72
      %v723 = vpop.permute.xlu0 %722
      %v725 = vsel %vm384, %v721, 0
      %v728 = vsel %vm384, %v723, 0
      %730 = vmatprep.subr.bf16.mxu0 0
      %731 = vmatpush1.bf16.xpose.msra.mxu0 %v728
      %732 = vmatprep.subr.bf16.mxu0 0
      %733 = vmatpush1.bf16.xpose.msra.mxu0 0
      %734 = vmatprep.subr.bf16.mxu0 0
      %735 = vmatpush1.bf16.xpose.msra.mxu0 0
      %736 = vmatprep.subr.bf16.mxu0 0
      %737 = vmatpush1.bf16.xpose.msra.mxu0 0
      %738 = vmatprep.subr.bf16.mxu0 0
      %739 = vmatpush1.bf16.xpose.msra.mxu0 0
      %740 = vmatprep.subr.bf16.mxu0 0
      %741 = vmatpush1.bf16.xpose.msra.mxu0 0
      %742 = vmatprep.subr.bf16.mxu0 0
      %743 = vmatpush1.bf16.xpose.msra.mxu0 0
      %744 = vmatprep.subr.bf16.mxu0 0
      %745 = vmatpush1.bf16.xpose.msra.mxu0 0
      %746 = vmatprep.subr.bf16.mxu0 0
      %747 = vmatpush1.bf16.xpose.msra.mxu0 0
      %748 = vmatprep.subr.bf16.mxu0 0
      %749 = vmatpush1.bf16.xpose.msra.mxu0 0
      %750 = vmatprep.subr.bf16.mxu0 0
      %751 = vmatpush1.bf16.xpose.msra.mxu0 0
      %752 = vmatprep.subr.bf16.mxu0 0
      %753 = vmatpush1.bf16.xpose.msra.mxu0 0
      %754 = vmatprep.subr.bf16.mxu0 0
      %755 = vmatpush1.bf16.xpose.msra.mxu0 0
      %756 = vmatprep.subr.bf16.mxu0 0
      %757 = vmatpush1.bf16.xpose.msra.mxu0 0
      %758 = vmatprep.subr.bf16.mxu0 0
      %759 = vmatpush1.bf16.xpose.msra.mxu0 0
      %760 = vmatprep.subr.bf16.mxu0 0
      %761 = vmatpush1.bf16.xpose.msra.mxu0 0
      %762 = vmatprep.mubr.bf16.mxu0 0
      %763 = vmatmul.mubr.bf16.gmra.mrb[0].mxu0 %v725
      %v764 = vpop.f32.mrb[0].mxu0
      %v765 = vadd.f32 0.0, %v764
      %v766 = vpop.f32.mrb[0].mxu0
      %v767 = vpop.f32.mrb[0].mxu0
      %v768 = vpop.f32.mrb[0].mxu0
      %769 = vdwg.mxu0
      %v770 = vmul.f32 %v765, 0.35355338
      %v771 = vsel %vm379, %v770, -1e+09
      %v772 = vsel %vm433, %v771, -inf
      %773 = vmax.xlane.f32.xlu0 %v772
      %v774 = vpop.xlane.xlu0 %773
      %v775 = vsub.f32 %v771, %v774
      %v776 = vmul.f32 %v775, 1.442695
      %v777 = vpow.pop %v776
      %v778 = vsel %vm433, %v777, 0.0
      %779 = vadd.xlane.f32.xlu0 %v778
      %v780 = vpop.xlane.xlu0 %779
      %v781 = vrcp.pop %v780
      %v782 = vmul.f32 %v777, %v781
      %v783 = vpack.c.bf16 %v782, %v782
      %784 = vrot.lane.b32.xlu0 %v380, 40
      %v785 = vpop.permute.xlu0 %784
      %v787 = vsel %vm448, %v783, 0
      %v790 = vsel %vm452, %v785, 0
      %792 = vmatprep.subr.bf16.mxu0 0
      %793 = vmatpush1.bf16.msra.mxu0 %v790
      %794 = vmatprep.subr.bf16.mxu0 0
      %795 = vmatpush1.bf16.msra.mxu0 0
      %796 = vmatprep.subr.bf16.mxu0 0
      %797 = vmatpush1.bf16.msra.mxu0 0
      %798 = vmatprep.subr.bf16.mxu0 0
      %799 = vmatpush1.bf16.msra.mxu0 0
      %800 = vmatprep.subr.bf16.mxu0 0
      %801 = vmatpush1.bf16.msra.mxu0 0
      %802 = vmatprep.subr.bf16.mxu0 0
      %803 = vmatpush1.bf16.msra.mxu0 0
      %804 = vmatprep.subr.bf16.mxu0 0
      %805 = vmatpush1.bf16.msra.mxu0 0
      %806 = vmatprep.subr.bf16.mxu0 0
      %807 = vmatpush1.bf16.msra.mxu0 0
      %808 = vmatprep.subr.bf16.mxu0 0
      %809 = vmatpush1.bf16.msra.mxu0 0
      %810 = vmatprep.subr.bf16.mxu0 0
      %811 = vmatpush1.bf16.msra.mxu0 0
      %812 = vmatprep.subr.bf16.mxu0 0
      %813 = vmatpush1.bf16.msra.mxu0 0
      %814 = vmatprep.subr.bf16.mxu0 0
      %815 = vmatpush1.bf16.msra.mxu0 0
      %816 = vmatprep.subr.bf16.mxu0 0
      %817 = vmatpush1.bf16.msra.mxu0 0
      %818 = vmatprep.subr.bf16.mxu0 0
      %819 = vmatpush1.bf16.msra.mxu0 0
      %820 = vmatprep.subr.bf16.mxu0 0
      %821 = vmatpush1.bf16.msra.mxu0 0
      %822 = vmatprep.subr.bf16.mxu0 0
      %823 = vmatpush1.bf16.msra.mxu0 0
      %824 = vmatprep.mubr.bf16.mxu0 0
      %825 = vmatmul.mubr.bf16.gmra.mrb[0].mxu0 %v787
      %v826 = vpop.f32.mrb[0].mxu0
      %v827 = vadd.f32 0.0, %v826
      %v828 = vpop.f32.mrb[0].mxu0
      %v829 = vpop.f32.mrb[0].mxu0
      %v830 = vpop.f32.mrb[0].mxu0
      %831 = vdwg.mxu0
      %833 = vrot.lane.b32.xlu0 %v603, 8
      %v834 = vpop.permute.xlu0 %833
      %837 = vrot.lane.b32.xlu0 %v715, 16
      %v838 = vpop.permute.xlu0 %837
      %841 = vrot.lane.b32.xlu0 %v827, 24
      %v842 = vpop.permute.xlu0 %841
      %v844 = vsel %vm384, %v491, %v834
      %vm845 = vcmask 130048
      %v846 = vsel %vm845, %v844, %v838
      %vm847 = vcmask 195584
      %v848 = vsel %vm847, %v846, %v842
      %v849 = vpack.c.bf16 %v848, %v848
      %v850 = vld [vmem:[%s5] sm:$0xf]
      %v851 = vld [vmem:[%s5 + $0x4] sm:$0xf]
      %v852 = vld [vmem:[%s5 + $0x8] sm:$0xf]
      %v853 = vld [vmem:[%s5 + $0xc] sm:$0xf]
      %v854 = vld [vmem:[%s6] sm:$0x1]
      %v856 = vlaneseq
      %v857 = vshrl.u32 %v856, 7
      %v858 = vsub.s32 0, %v857
      %v859 = vrot.slane %v854, %v858
      %v865 = vunpack.c.l.b16 %v850
      %v866 = vunpack.c.l.b16 %v851
      %v867 = vunpack.c.l.b16 %v852
      %v868 = vunpack.c.l.b16 %v853
      %v869 = vpack.c.b16 %v866, %v865
      %v870 = vpack.c.b16 %v868, %v867
      %v874 = vsel %vm331, %v849, 0
      %876 = vmatprep.subr.bf16.mxu0 0
      %877 = vmatpush1.bf16.msra.mxu0 %v869
      %878 = vmatprep.subr.bf16.mxu0 0
      %879 = vmatpush1.bf16.msra.mxu0 %v870
      %880 = vmatprep.subr.bf16.mxu0 0
      %881 = vmatpush1.bf16.msra.mxu0 0
      %882 = vmatprep.subr.bf16.mxu0 0
      %883 = vmatpush1.bf16.msra.mxu0 0
      %884 = vmatprep.subr.bf16.mxu0 0
      %885 = vmatpush1.bf16.msra.mxu0 0
      %886 = vmatprep.subr.bf16.mxu0 0
      %887 = vmatpush1.bf16.msra.mxu0 0
      %888 = vmatprep.subr.bf16.mxu0 0
      %889 = vmatpush1.bf16.msra.mxu0 0
      %890 = vmatprep.subr.bf16.mxu0 0
      %891 = vmatpush1.bf16.msra.mxu0 0
      %892 = vmatprep.subr.bf16.mxu0 0
      %893 = vmatpush1.bf16.msra.mxu0 0
      %894 = vmatprep.subr.bf16.mxu0 0
      %895 = vmatpush1.bf16.msra.mxu0 0
      %896 = vmatprep.subr.bf16.mxu0 0
      %897 = vmatpush1.bf16.msra.mxu0 0
      %898 = vmatprep.subr.bf16.mxu0 0
      %899 = vmatpush1.bf16.msra.mxu0 0
      %900 = vmatprep.subr.bf16.mxu0 0
      %901 = vmatpush1.bf16.msra.mxu0 0
      %902 = vmatprep.subr.bf16.mxu0 0
      %903 = vmatpush1.bf16.msra.mxu0 0
      %904 = vmatprep.subr.bf16.mxu0 0
      %905 = vmatpush1.bf16.msra.mxu0 0
      %906 = vmatprep.subr.bf16.mxu0 0
      %907 = vmatpush1.bf16.msra.mxu0 0
      %908 = vmatprep.mubr.bf16.mxu0 0
      %909 = vmatmul.mubr.bf16.gmra.mrb[0].mxu0 %v874
      %v910 = vpop.f32.mrb[0].mxu0
      %v911 = vadd.f32 %v859, %v910
      %v912 = vpop.f32.mrb[0].mxu0
      %v913 = vpop.f32.mrb[0].mxu0
      %v914 = vpop.f32.mrb[0].mxu0
      %915 = vdwg.mxu0
      %v916 = vadd.f32 %v911, %v275
      %917 = vst.msk [vmem:[%s273] sm:$0xf] %vm276, %v916
      %p918 = scmp.lt.s32.totalorder %s18, 3
      %s919 = scalar_select %p918, %s18, 3
      %s920 = smul.addr %s919, 4
      %s921 = scalar_lea.vmem %s7, %s920
      // Predicated region
      $region49: #{object_transformer_forward.41} parent=47 // pred_check
        %p922 = pneg %p188
      $region50: #{object_transformer_forward.41} parent=47 // pred_check_branch
        %924 = sbr.rel (%p922) target = $region52
      $region51: #{object_transformer_forward.41} parent=47 // pred_region
        _
      $region52: #{object_transformer_forward.41} parent=47 // pred_fallthru
        _
    $region48: #{object_transformer_forward.41} parent=5 // pred_fallthru
      _
    %p925 = scmp.le.s32.totalorder 2, %s13
    // Predicated region
    $region53: #{object_transformer_forward.41} parent=5 // pred_check
      %p926 = pneg %p925
    $region54: #{object_transformer_forward.41} parent=5 // pred_check_branch
      %928 = sbr.rel (%p926) target = $region56
    $region55: #{object_transformer_forward.41} parent=5 // pred_region
      %s929 = ssub.s32 %s13, 2
      // Predicated region
      $region57: #{object_transformer_forward.41} parent=55 // pred_check
        %p930 = pneg %p194
      $region58: #{object_transformer_forward.41} parent=55 // pred_check_branch
        %932 = sbr.rel (%p930) target = $region60
      $region59: #{object_transformer_forward.41} parent=55 // pred_region
        %p933 = scmp.lt.s32.totalorder %s19, 3
        %s934 = scalar_select %p933, %s19, 3
        %s935 = smul.addr %s934, 4
        %s936 = scalar_lea.vmem %s7, %s935
      $region60: #{object_transformer_forward.41} parent=55 // pred_fallthru
        _
    $region56: #{object_transformer_forward.41} parent=5 // pred_fallthru
      _
  $region6: #{object_transformer_forward.41} parent=0 // loop_footer
    %s17 = sadd.s32 1, %s13
  $region7: #{object_transformer_forward.41} parent=0 // loop_footer_branch
    %12 = sbr.rel target = $region3
  $region8: #{object_transformer_forward.41} parent=0 // loop_exit
    _

// kernel: object_transformer_forward.44
$region0: #{object_transformer_forward.44}
  #allocation0 [shape = 'u32[]', space=smem, size = 0x4, offset = 0x4, fixed_abs, tag = 'smem constant byte address 0x4 - core index']
  #allocation1 [shape = 'u32[144,128]{1,0:T(1,128)}', space=vmem, size = 0x12000, scoped, tag = 'internal scratch']
  %s0 = inlined_call_operand.vmem [shape: f32[16,32], index: 0, kind: input, shape index: {}]
  %s1 = inlined_call_operand.vmem [shape: f32[16,128], index: 1, kind: input, shape index: {}]
  %s2 = inlined_call_operand.vmem [shape: bf16[128,32], index: 2, kind: input, shape index: {}]
  %s3 = inlined_call_operand.vmem [shape: f32[1,32], index: 3, kind: input, shape index: {}]
  %s4 = inlined_call_operand.vmem [shape: f32[16,32], index: 4, kind: output, shape index: {}]
  %s5 = sld [smem:[#allocation0]]
  $region26: #{object_transformer_forward.44} parent=0
    _
  %s7 = ssub.s32 1, %s5
  %s8 = scalar_select 0, %s7, %s5
  // Predicated region
  $region2: #{object_transformer_forward.44} parent=0 // pred_check
    _
  $region3: #{object_transformer_forward.44} parent=0 // pred_check_branch
    %10 = sbr.rel (0) target = $region5
  $region4: #{object_transformer_forward.44} parent=0 // pred_region
    _
  $region5: #{object_transformer_forward.44} parent=0 // pred_fallthru
    _
  // Predicated region
  $region6: #{object_transformer_forward.44} parent=0 // pred_check
    _
  $region7: #{object_transformer_forward.44} parent=0 // pred_check_branch
    %12 = sbr.rel (0) target = $region9
  $region8: #{object_transformer_forward.44} parent=0 // pred_region
    _
  $region9: #{object_transformer_forward.44} parent=0 // pred_fallthru
    _
  // Predicated region
  $region10: #{object_transformer_forward.44} parent=0 // pred_check
    _
  $region11: #{object_transformer_forward.44} parent=0 // pred_check_branch
    %14 = sbr.rel (0) target = $region13
  $region12: #{object_transformer_forward.44} parent=0 // pred_region
    _
  $region13: #{object_transformer_forward.44} parent=0 // pred_fallthru
    _
  // Predicated region
  $region14: #{object_transformer_forward.44} parent=0 // pred_check
    _
  $region15: #{object_transformer_forward.44} parent=0 // pred_check_branch
    %16 = sbr.rel (0) target = $region17
  $region16: #{object_transformer_forward.44} parent=0 // pred_region
    _
  $region17: #{object_transformer_forward.44} parent=0 // pred_fallthru
    _
  %v18 = vld [vmem:[%s1] sm:$0xff]
  %v19 = vld [vmem:[%s1 + $0x8] sm:$0xff]
  %v20 = vpack.c.bf16 %v19, %v18
  %v21 = vld [vmem:[%s2] sm:$0xf]
  %v22 = vld [vmem:[%s2 + $0x4] sm:$0xf]
  %v23 = vld [vmem:[%s2 + $0x8] sm:$0xf]
  %v24 = vld [vmem:[%s2 + $0xc] sm:$0xf]
  %v25 = vld [vmem:[%s2 + $0x10] sm:$0xf]
  %v26 = vld [vmem:[%s2 + $0x14] sm:$0xf]
  %v27 = vld [vmem:[%s2 + $0x18] sm:$0xf]
  %v28 = vld [vmem:[%s2 + $0x1c] sm:$0xf]
  %v29 = vld [vmem:[%s2 + $0x20] sm:$0xf]
  %v30 = vld [vmem:[%s2 + $0x24] sm:$0xf]
  %v31 = vld [vmem:[%s2 + $0x28] sm:$0xf]
  %v32 = vld [vmem:[%s2 + $0x2c] sm:$0xf]
  %v33 = vld [vmem:[%s2 + $0x30] sm:$0xf]
  %v34 = vld [vmem:[%s2 + $0x34] sm:$0xf]
  %v35 = vld [vmem:[%s2 + $0x38] sm:$0xf]
  %v36 = vld [vmem:[%s2 + $0x3c] sm:$0xf]
  %v37 = vld [vmem:[%s3] sm:$0x1]
  %v39 = vlaneseq
  %v40 = vshrl.u32 %v39, 7
  %v41 = vsub.s32 0, %v40
  %v42 = vrot.slane %v37, %v41
  %v60 = vunpack.c.l.b16 %v21
  %v61 = vunpack.c.l.b16 %v22
  %v62 = vunpack.c.l.b16 %v23
  %v63 = vunpack.c.l.b16 %v24
  %v64 = vunpack.c.l.b16 %v25
  %v65 = vunpack.c.l.b16 %v26
  %v66 = vunpack.c.l.b16 %v27
  %v67 = vunpack.c.l.b16 %v28
  %v68 = vunpack.c.l.b16 %v29
  %v69 = vunpack.c.l.b16 %v30
  %v70 = vunpack.c.l.b16 %v31
  %v71 = vunpack.c.l.b16 %v32
  %v72 = vunpack.c.l.b16 %v33
  %v73 = vunpack.c.l.b16 %v34
  %v74 = vunpack.c.l.b16 %v35
  %v75 = vunpack.c.l.b16 %v36
  %v76 = vpack.c.b16 %v61, %v60
  %v77 = vpack.c.b16 %v63, %v62
  %v78 = vpack.c.b16 %v65, %v64
  %v79 = vpack.c.b16 %v67, %v66
  %v80 = vpack.c.b16 %v69, %v68
  %v81 = vpack.c.b16 %v71, %v70
  %v82 = vpack.c.b16 %v73, %v72
  %v83 = vpack.c.b16 %v75, %v74
  %92 = vmatprep.subr.bf16.mxu0 0
  %93 = vmatpush1.bf16.msra.mxu0 %v76
  %94 = vmatprep.subr.bf16.mxu0 0
  %95 = vmatpush1.bf16.msra.mxu0 %v77
  %96 = vmatprep.subr.bf16.mxu0 0
  %97 = vmatpush1.bf16.msra.mxu0 %v78
  %98 = vmatprep.subr.bf16.mxu0 0
  %99 = vmatpush1.bf16.msra.mxu0 %v79
  %100 = vmatprep.subr.bf16.mxu0 0
  %101 = vmatpush1.bf16.msra.mxu0 %v80
  %102 = vmatprep.subr.bf16.mxu0 0
  %103 = vmatpush1.bf16.msra.mxu0 %v81
  %104 = vmatprep.subr.bf16.mxu0 0
  %105 = vmatpush1.bf16.msra.mxu0 %v82
  %106 = vmatprep.subr.bf16.mxu0 0
  %107 = vmatpush1.bf16.msra.mxu0 %v83
  %108 = vmatprep.subr.bf16.mxu0 0
  %109 = vmatpush1.bf16.msra.mxu0 0
  %110 = vmatprep.subr.bf16.mxu0 0
  %111 = vmatpush1.bf16.msra.mxu0 0
  %112 = vmatprep.subr.bf16.mxu0 0
  %113 = vmatpush1.bf16.msra.mxu0 0
  %114 = vmatprep.subr.bf16.mxu0 0
  %115 = vmatpush1.bf16.msra.mxu0 0
  %116 = vmatprep.subr.bf16.mxu0 0
  %117 = vmatpush1.bf16.msra.mxu0 0
  %118 = vmatprep.subr.bf16.mxu0 0
  %119 = vmatpush1.bf16.msra.mxu0 0
  %120 = vmatprep.subr.bf16.mxu0 0
  %121 = vmatpush1.bf16.msra.mxu0 0
  %122 = vmatprep.subr.bf16.mxu0 0
  %123 = vmatpush1.bf16.msra.mxu0 0
  %124 = vmatprep.mubr.bf16.mxu0 0
  %125 = vmatmul.mubr.bf16.gmra.mrb[0].mxu0 %v20
  %v126 = vpop.f32.mrb[0].mxu0
  %v127 = vadd.f32 %v42, %v126
  %v128 = vpop.f32.mrb[0].mxu0
  %v129 = vpop.f32.mrb[0].mxu0
  %v130 = vadd.f32 %v42, %v129
  %v131 = vpop.f32.mrb[0].mxu0
  %132 = vdwg.mxu0
  %v133 = vld [vmem:[%s0] sm:$0xff]
  %v134 = vld [vmem:[%s0 + $0x8] sm:$0xff]
  %v135 = vadd.f32 %v127, %v133
  %v136 = vadd.f32 %v130, %v134
  %vm137 = vcmask 261120
  %138 = vst.msk [vmem:[%s4] sm:$0xff] %vm137, %v135
  %139 = vst.msk [vmem:[%s4 + $0x8] sm:$0xff] %vm137, %v136
  // Predicated region
  $region18: #{object_transformer_forward.44} parent=0 // pred_check
    _
  $region19: #{object_transformer_forward.44} parent=0 // pred_check_branch
    %141 = sbr.rel (0) target = $region21
  $region20: #{object_transformer_forward.44} parent=0 // pred_region
    _
  $region21: #{object_transformer_forward.44} parent=0 // pred_fallthru
    _
  // Predicated region
  $region22: #{object_transformer_forward.44} parent=0 // pred_check
    _
  $region23: #{object_transformer_forward.44} parent=0 // pred_check_branch
    %143 = sbr.rel (0) target = $region25
  $region24: #{object_transformer_forward.44} parent=0 // pred_region
    _
  $region25: #{object_transformer_forward.44} parent=0 // pred_fallthru
    _

// kernel: object_transformer_forward.43
$region0: #{object_transformer_forward.43}
  #allocation0 [shape = 'u32[]', space=smem, size = 0x4, offset = 0x4, fixed_abs, tag = 'smem constant byte address 0x4 - core index']
  #allocation1 [shape = 'u32[144,128]{1,0:T(1,128)}', space=vmem, size = 0x12000, scoped, tag = 'internal scratch']
  %s0 = inlined_call_operand.vmem [shape: f32[16,32], index: 0, kind: input, shape index: {}]
  %s1 = inlined_call_operand.vmem [shape: f32[1,32], index: 1, kind: input, shape index: {}]
  %s2 = inlined_call_operand.vmem [shape: f32[1,32], index: 2, kind: input, shape index: {}]
  %s3 = inlined_call_operand.vmem [shape: bf16[32,128], index: 3, kind: input, shape index: {}]
  %s4 = inlined_call_operand.vmem [shape: f32[1,128], index: 4, kind: input, shape index: {}]
  %s5 = inlined_call_operand.vmem [shape: f32[16,128], index: 5, kind: output, shape index: {}]
  %s6 = sld [smem:[#allocation0]]
  $region30: #{object_transformer_forward.43} parent=0
    _
  %s8 = ssub.s32 1, %s6
  %s9 = scalar_select 0, %s8, %s6
  // Predicated region
  $region2: #{object_transformer_forward.43} parent=0 // pred_check
    _
  $region3: #{object_transformer_forward.43} parent=0 // pred_check_branch
    %11 = sbr.rel (0) target = $region5
  $region4: #{object_transformer_forward.43} parent=0 // pred_region
    _
  $region5: #{object_transformer_forward.43} parent=0 // pred_fallthru
    _
  // Predicated region
  $region6: #{object_transformer_forward.43} parent=0 // pred_check
    _
  $region7: #{object_transformer_forward.43} parent=0 // pred_check_branch
    %13 = sbr.rel (0) target = $region9
  $region8: #{object_transformer_forward.43} parent=0 // pred_region
    _
  $region9: #{object_transformer_forward.43} parent=0 // pred_fallthru
    _
  // Predicated region
  $region10: #{object_transformer_forward.43} parent=0 // pred_check
    _
  $region11: #{object_transformer_forward.43} parent=0 // pred_check_branch
    %15 = sbr.rel (0) target = $region13
  $region12: #{object_transformer_forward.43} parent=0 // pred_region
    _
  $region13: #{object_transformer_forward.43} parent=0 // pred_fallthru
    _
  // Predicated region
  $region14: #{object_transformer_forward.43} parent=0 // pred_check
    _
  $region15: #{object_transformer_forward.43} parent=0 // pred_check_branch
    %17 = sbr.rel (0) target = $region17
  $region16: #{object_transformer_forward.43} parent=0 // pred_region
    _
  $region17: #{object_transformer_forward.43} parent=0 // pred_fallthru
    _
  // Predicated region
  $region18: #{object_transformer_forward.43} parent=0 // pred_check
    _
  $region19: #{object_transformer_forward.43} parent=0 // pred_check_branch
    %19 = sbr.rel (0) target = $region21
  $region20: #{object_transformer_forward.43} parent=0 // pred_region
    _
  $region21: #{object_transformer_forward.43} parent=0 // pred_fallthru
    _
  %v21 = vld [vmem:[%s0] sm:$0xff]
  %v22 = vld [vmem:[%s0 + $0x8] sm:$0xff]
  %vm23 = vcmask 261120
  %v24 = vsel %vm23, %v21, 0.0
  %25 = vadd.xlane.f32.xlu0 %v24
  %v26 = vpop.xlane.xlu0 %25
  %v27 = vsel %vm23, %v22, 0.0
  %28 = vadd.xlane.f32.xlu0 %v27
  %v29 = vpop.xlane.xlu0 %28
  %v30 = vrcp.pop 32.0
  %v31 = vmul.f32 %v26, %v30
  %v32 = vmul.f32 %v29, %v30
  %v33 = vsub.f32 %v21, %v31
  %v34 = vsub.f32 %v22, %v32
  %v35 = vmul.f32 %v33, %v33
  %v36 = vmul.f32 %v34, %v34
  %v37 = vsel %vm23, %v35, 0.0
  %38 = vadd.xlane.f32.xlu0 %v37
  %v39 = vpop.xlane.xlu0 %38
  %v40 = vsel %vm23, %v36, 0.0
  %41 = vadd.xlane.f32.xlu0 %v40
  %v42 = vpop.xlane.xlu0 %41
  %v43 = vmul.f32 %v39, %v30
  %v44 = vmul.f32 %v42, %v30
  %v45 = vadd.f32 %v43, 1e-05
  %v46 = vadd.f32 %v44, 1e-05
  %v47 = vrsqrt.pop %v45
  %v48 = vrsqrt.pop %v46
  %v49 = vmul.f32 %v33, %v47
  %v50 = vmul.f32 %v34, %v48
  %v51 = vld [vmem:[%s1] sm:$0x1]
  %v53 = vlaneseq
  %v54 = vshrl.u32 %v53, 7
  %v55 = vsub.s32 0, %v54
  %v56 = vrot.slane %v51, %v55
  %v58 = vmul.f32 %v49, %v56
  %v59 = vmul.f32 %v50, %v56
  %v60 = vld [vmem:[%s2] sm:$0x1]
  %v62 = vlaneseq
  %v63 = vshrl.u32 %v62, 7
  %v64 = vsub.s32 0, %v63
  %v65 = vrot.slane %v60, %v64
  %v67 = vadd.f32 %v58, %v65
  %v68 = vadd.f32 %v59, %v65
  %v69 = vpack.c.bf16 %v68, %v67
  %v70 = vld [vmem:[%s3] sm:$0xf]
  %v71 = vld [vmem:[%s3 + $0x4] sm:$0xf]
  %v72 = vld [vmem:[%s3 + $0x8] sm:$0xf]
  %v73 = vld [vmem:[%s3 + $0xc] sm:$0xf]
  %v74 = vld [vmem:[%s4] sm:$0x1]
  %v76 = vlaneseq
  %v77 = vshrl.u32 %v76, 7
  %v78 = vsub.s32 0, %v77
  %v79 = vrot.slane %v74, %v78
  %v85 = vunpack.c.l.b16 %v70
  %v86 = vunpack.c.l.b16 %v71
  %v87 = vunpack.c.l.b16 %v72
  %v88 = vunpack.c.l.b16 %v73
  %v89 = vpack.c.b16 %v86, %v85
  %v90 = vpack.c.b16 %v88, %v87
  %v94 = vsel %vm23, %v69, 0
  %96 = vmatprep.subr.bf16.mxu0 0
  %97 = vmatpush1.bf16.msra.mxu0 %v89
  %98 = vmatprep.subr.bf16.mxu0 0
  %99 = vmatpush1.bf16.msra.mxu0 %v90
  %100 = vmatprep.subr.bf16.mxu0 0
  %101 = vmatpush1.bf16.msra.mxu0 0
  %102 = vmatprep.subr.bf16.mxu0 0
  %103 = vmatpush1.bf16.msra.mxu0 0
  %104 = vmatprep.subr.bf16.mxu0 0
  %105 = vmatpush1.bf16.msra.mxu0 0
  %106 = vmatprep.subr.bf16.mxu0 0
  %107 = vmatpush1.bf16.msra.mxu0 0
  %108 = vmatprep.subr.bf16.mxu0 0
  %109 = vmatpush1.bf16.msra.mxu0 0
  %110 = vmatprep.subr.bf16.mxu0 0
  %111 = vmatpush1.bf16.msra.mxu0 0
  %112 = vmatprep.subr.bf16.mxu0 0
  %113 = vmatpush1.bf16.msra.mxu0 0
  %114 = vmatprep.subr.bf16.mxu0 0
  %115 = vmatpush1.bf16.msra.mxu0 0
  %116 = vmatprep.subr.bf16.mxu0 0
  %117 = vmatpush1.bf16.msra.mxu0 0
  %118 = vmatprep.subr.bf16.mxu0 0
  %119 = vmatpush1.bf16.msra.mxu0 0
  %120 = vmatprep.subr.bf16.mxu0 0
  %121 = vmatpush1.bf16.msra.mxu0 0
  %122 = vmatprep.subr.bf16.mxu0 0
  %123 = vmatpush1.bf16.msra.mxu0 0
  %124 = vmatprep.subr.bf16.mxu0 0
  %125 = vmatpush1.bf16.msra.mxu0 0
  %126 = vmatprep.subr.bf16.mxu0 0
  %127 = vmatpush1.bf16.msra.mxu0 0
  %128 = vmatprep.mubr.bf16.mxu0 0
  %129 = vmatmul.mubr.bf16.gmra.mrb[0].mxu0 %v94
  %v130 = vpop.f32.mrb[0].mxu0
  %v131 = vadd.f32 %v79, %v130
  %v132 = vpop.f32.mrb[0].mxu0
  %v133 = vpop.f32.mrb[0].mxu0
  %v134 = vadd.f32 %v79, %v133
  %v135 = vpop.f32.mrb[0].mxu0
  %136 = vdwg.mxu0
  %v137 = vmul.f32 %v131, 0.5
  %v138 = vmul.f32 %v134, 0.5
  %v139 = vmul.f32 %v131, 0.70710677
  %v140 = vmul.f32 %v134, 0.70710677
  %v141 = verf.f32.pop %v139
  %v142 = verf.f32.pop %v140
  %v143 = vadd.f32 %v141, 1.0
  %v144 = vadd.f32 %v142, 1.0
  %v145 = vmul.f32 %v137, %v143
  %v146 = vmul.f32 %v138, %v144
  %147 = vst [vmem:[%s5] sm:$0xff] %v145
  %148 = vst [vmem:[%s5 + $0x8] sm:$0xff] %v146
  // Predicated region
  $region22: #{object_transformer_forward.43} parent=0 // pred_check
    _
  $region23: #{object_transformer_forward.43} parent=0 // pred_check_branch
    %150 = sbr.rel (0) target = $region25
  $region24: #{object_transformer_forward.43} parent=0 // pred_region
    _
  $region25: #{object_transformer_forward.43} parent=0 // pred_fallthru
    _
  // Predicated region
  $region26: #{object_transformer_forward.43} parent=0 // pred_check
    _
  $region27: #{object_transformer_forward.43} parent=0 // pred_check_branch
    %152 = sbr.rel (0) target = $region29
  $region28: #{object_transformer_forward.43} parent=0 // pred_region
    _
  $region29: #{object_transformer_forward.43} parent=0 // pred_fallthru
    _

// kernel: object_transformer_forward.42
$region0: #{object_transformer_forward.42}
  #allocation0 [shape = 'u32[]', space=smem, size = 0x4, offset = 0x4, fixed_abs, tag = 'smem constant byte address 0x4 - core index']
  #allocation1 [shape = 'u32[144,128]{1,0:T(1,128)}', space=vmem, size = 0x12000, scoped, tag = 'internal scratch']
  %s0 = inlined_call_operand.vmem [shape: f32[4,4,32], index: 0, kind: input, shape index: {}]
  %s1 = inlined_call_operand.vmem [shape: f32[4,5,32], index: 1, kind: input, shape index: {}]
  %s2 = inlined_call_operand.vmem [shape: f32[4,1,5], index: 2, kind: input, shape index: {}]
  %s3 = inlined_call_operand.vmem [shape: f32[1,32], index: 3, kind: input, shape index: {}]
  %s4 = inlined_call_operand.vmem [shape: f32[1,32], index: 4, kind: input, shape index: {}]
  %s5 = inlined_call_operand.vmem [shape: f32[1,32], index: 5, kind: input, shape index: {}]
  %s6 = inlined_call_operand.vmem [shape: f32[1,32], index: 6, kind: input, shape index: {}]
  %s7 = inlined_call_operand.vmem [shape: bf16[32,32], index: 7, kind: input, shape index: {}]
  %s8 = inlined_call_operand.vmem [shape: f32[1,32], index: 8, kind: input, shape index: {}]
  %s9 = inlined_call_operand.vmem [shape: bf16[32,32], index: 9, kind: input, shape index: {}]
  %s10 = inlined_call_operand.vmem [shape: f32[1,32], index: 10, kind: input, shape index: {}]
  %s11 = inlined_call_operand.vmem [shape: bf16[32,32], index: 11, kind: input, shape index: {}]
  %s12 = inlined_call_operand.vmem [shape: f32[1,32], index: 12, kind: input, shape index: {}]
  %s13 = inlined_call_operand.vmem [shape: bf16[32,32], index: 13, kind: input, shape index: {}]
  %s14 = inlined_call_operand.vmem [shape: f32[1,32], index: 14, kind: input, shape index: {}]
  %s15 = inlined_call_operand.vmem [shape: f32[4,4,32], index: 15, kind: output, shape index: {}]
  %s16 = sld [smem:[#allocation0]]
  $region93: #{object_transformer_forward.42} parent=0
    _
  %s18 = ssub.s32 1, %s16
  %s19 = scalar_select 0, %s18, %s16
  loop: start=0, step=1, limit=6
  $region2: #{object_transformer_forward.42} parent=0 // loop_pre_header
    _
  $region3: #{object_transformer_forward.42} parent=0 // loop_header
    %s21 = sphi 0, %s25
    %p22 = scmp.ge.s32.totalorder %s21, 6
    %s31 = sphi 0, %s33
    %s34 = sphi 0, %s31
    %s35 = sphi 0, %s34
    %s51 = sphi 0, %s35
    %s57 = sphi 0, %s59
    %s60 = sphi 0, %s57
    %s61 = sphi 0, %s60
    %s77 = sphi 0, %s61
    %s83 = sphi 0, %s85
    %s86 = sphi 0, %s83
    %s87 = sphi 0, %s86
    %s103 = sphi 0, %s87
    %s107 = sphi 0, %s107
    %s109 = sphi 0, %s107
    %s110 = sphi 0, %s109
    %s124 = sphi 0, %s110
    %s128 = sphi 0, %s128
    %s130 = sphi 0, %s128
    %s131 = sphi 0, %s130
    %s145 = sphi 0, %s131
    %s149 = sphi 0, %s149
    %s151 = sphi 0, %s149
    %s152 = sphi 0, %s151
    %s166 = sphi 0, %s152
    %s170 = sphi 0, %s170
    %s172 = sphi 0, %s170
    %s173 = sphi 0, %s172
    %s187 = sphi 0, %s173
    %s191 = sphi 0, %s191
    %s193 = sphi 0, %s191
    %s194 = sphi 0, %s193
    %s208 = sphi 0, %s194
    %s212 = sphi 0, %s212
    %s214 = sphi 0, %s212
    %s215 = sphi 0, %s214
    %s229 = sphi 0, %s215
    %s233 = sphi 0, %s233
    %s235 = sphi 0, %s233
    %s236 = sphi 0, %s235
    %s250 = sphi 0, %s236
    %s254 = sphi 0, %s254
    %s256 = sphi 0, %s254
    %s257 = sphi 0, %s256
    %s271 = sphi 0, %s257
    %s275 = sphi 0, %s275
    %s277 = sphi 0, %s275
    %s278 = sphi 0, %s277
    %s292 = sphi 0, %s278
    %s296 = sphi 0, %s296
    %s298 = sphi 0, %s296
    %s299 = sphi 0, %s298
    %s313 = sphi 0, %s299
    %s317 = sphi 0, %s317
    %s319 = sphi 0, %s317
    %s320 = sphi 0, %s319
    %s334 = sphi 0, %s320
    %s338 = sphi 0, %s338
    %s340 = sphi 0, %s338
    %s341 = sphi 0, %s340
    %s355 = sphi 0, %s341
    %s361 = sphi 0, %s363
    %s364 = sphi 0, %s361
    %s365 = sphi 0, %s364
    %s381 = sphi 0, %s365
  $region4: #{object_transformer_forward.42} parent=0 // loop_header_branch
    %24 = sbr.rel (%p22) target = $region8
  $region5: #{object_transformer_forward.42} parent=0 // loop_body
    %s26 = ssub.s32 %s21, 1
    %s27 = ssub.s32 %s21, 2
    %s28 = sadd.s32 %s21, 1
    %s29 = ssub.s32 %s21, %s28
    %p30 = scmp.eq.s32.totalorder %s29, 0
    %s32 = sadd.s32 %s31, 1
    %s33 = scalar_select %p30, %s31, %s32
    %p36 = pneg %p30
    %p37 = scmp.eq.s32.totalorder %s21, 3
    %p38 = por %p36, %p37
    %p39 = scmp.ne.s32.totalorder %s31, %s34
    %p40 = scmp.eq.s32.totalorder %s21, 0
    %p41 = por %p39, %p40
    %p42 = scmp.ne.s32.totalorder %s31, %s34
    %p43 = scmp.eq.s32.totalorder %s26, 3
    %p44 = por %p42, %p43
    %p45 = scmp.ne.s32.totalorder %s34, %s35
    %p46 = scmp.eq.s32.totalorder %s26, 0
    %p47 = por %p45, %p46
    %p48 = scmp.ne.s32.totalorder %s34, %s35
    %p49 = scmp.eq.s32.totalorder %s27, 3
    %p50 = por %p48, %p49
    %p52 = scmp.ne.s32.totalorder %s35, %s51
    %p53 = scmp.eq.s32.totalorder %s27, 0
    %p54 = por %p52, %p53
    %s55 = ssub.s32 %s21, %s28
    %p56 = scmp.eq.s32.totalorder %s55, 0
    %s58 = sadd.s32 %s57, 1
    %s59 = scalar_select %p56, %s57, %s58
    %p62 = pneg %p56
    %p63 = scmp.eq.s32.totalorder %s21, 3
    %p64 = por %p62, %p63
    %p65 = scmp.ne.s32.totalorder %s57, %s60
    %p66 = scmp.eq.s32.totalorder %s21, 0
    %p67 = por %p65, %p66
    %p68 = scmp.ne.s32.totalorder %s57, %s60
    %p69 = scmp.eq.s32.totalorder %s26, 3
    %p70 = por %p68, %p69
    %p71 = scmp.ne.s32.totalorder %s60, %s61
    %p72 = scmp.eq.s32.totalorder %s26, 0
    %p73 = por %p71, %p72
    %p74 = scmp.ne.s32.totalorder %s60, %s61
    %p75 = scmp.eq.s32.totalorder %s27, 3
    %p76 = por %p74, %p75
    %p78 = scmp.ne.s32.totalorder %s61, %s77
    %p79 = scmp.eq.s32.totalorder %s27, 0
    %p80 = por %p78, %p79
    %s81 = ssub.s32 %s21, %s28
    %p82 = scmp.eq.s32.totalorder %s81, 0
    %s84 = sadd.s32 %s83, 1
    %s85 = scalar_select %p82, %s83, %s84
    %p88 = pneg %p82
    %p89 = scmp.eq.s32.totalorder %s21, 3
    %p90 = por %p88, %p89
    %p91 = scmp.ne.s32.totalorder %s83, %s86
    %p92 = scmp.eq.s32.totalorder %s21, 0
    %p93 = por %p91, %p92
    %p94 = scmp.ne.s32.totalorder %s83, %s86
    %p95 = scmp.eq.s32.totalorder %s26, 3
    %p96 = por %p94, %p95
    %p97 = scmp.ne.s32.totalorder %s86, %s87
    %p98 = scmp.eq.s32.totalorder %s26, 0
    %p99 = por %p97, %p98
    %p100 = scmp.ne.s32.totalorder %s86, %s87
    %p101 = scmp.eq.s32.totalorder %s27, 3
    %p102 = por %p100, %p101
    %p104 = scmp.ne.s32.totalorder %s87, %s103
    %p105 = scmp.eq.s32.totalorder %s27, 0
    %p106 = por %p104, %p105
    %s108 = sadd.s32 %s107, 1
    %p111 = scmp.eq.s32.totalorder %s21, 3
    %p112 = scmp.ne.s32.totalorder %s107, %s109
    %p113 = scmp.eq.s32.totalorder %s21, 0
    %p114 = por %p112, %p113
    %p115 = scmp.ne.s32.totalorder %s107, %s109
    %p116 = scmp.eq.s32.totalorder %s26, 3
    %p117 = por %p115, %p116
    %p118 = scmp.ne.s32.totalorder %s109, %s110
    %p119 = scmp.eq.s32.totalorder %s26, 0
    %p120 = por %p118, %p119
    %p121 = scmp.ne.s32.totalorder %s109, %s110
    %p122 = scmp.eq.s32.totalorder %s27, 3
    %p123 = por %p121, %p122
    %p125 = scmp.ne.s32.totalorder %s110, %s124
    %p126 = scmp.eq.s32.totalorder %s27, 0
    %p127 = por %p125, %p126
    %s129 = sadd.s32 %s128, 1
    %p132 = scmp.eq.s32.totalorder %s21, 3
    %p133 = scmp.ne.s32.totalorder %s128, %s130
    %p134 = scmp.eq.s32.totalorder %s21, 0
    %p135 = por %p133, %p134
    %p136 = scmp.ne.s32.totalorder %s128, %s130
    %p137 = scmp.eq.s32.totalorder %s26, 3
    %p138 = por %p136, %p137
    %p139 = scmp.ne.s32.totalorder %s130, %s131
    %p140 = scmp.eq.s32.totalorder %s26, 0
    %p141 = por %p139, %p140
    %p142 = scmp.ne.s32.totalorder %s130, %s131
    %p143 = scmp.eq.s32.totalorder %s27, 3
    %p144 = por %p142, %p143
    %p146 = scmp.ne.s32.totalorder %s131, %s145
    %p147 = scmp.eq.s32.totalorder %s27, 0
    %p148 = por %p146, %p147
    %s150 = sadd.s32 %s149, 1
    %p153 = scmp.eq.s32.totalorder %s21, 3
    %p154 = scmp.ne.s32.totalorder %s149, %s151
    %p155 = scmp.eq.s32.totalorder %s21, 0
    %p156 = por %p154, %p155
    %p157 = scmp.ne.s32.totalorder %s149, %s151
    %p158 = scmp.eq.s32.totalorder %s26, 3
    %p159 = por %p157, %p158
    %p160 = scmp.ne.s32.totalorder %s151, %s152
    %p161 = scmp.eq.s32.totalorder %s26, 0
    %p162 = por %p160, %p161
    %p163 = scmp.ne.s32.totalorder %s151, %s152
    %p164 = scmp.eq.s32.totalorder %s27, 3
    %p165 = por %p163, %p164
    %p167 = scmp.ne.s32.totalorder %s152, %s166
    %p168 = scmp.eq.s32.totalorder %s27, 0
    %p169 = por %p167, %p168
    %s171 = sadd.s32 %s170, 1
    %p174 = scmp.eq.s32.totalorder %s21, 3
    %p175 = scmp.ne.s32.totalorder %s170, %s172
    %p176 = scmp.eq.s32.totalorder %s21, 0
    %p177 = por %p175, %p176
    %p178 = scmp.ne.s32.totalorder %s170, %s172
    %p179 = scmp.eq.s32.totalorder %s26, 3
    %p180 = por %p178, %p179
    %p181 = scmp.ne.s32.totalorder %s172, %s173
    %p182 = scmp.eq.s32.totalorder %s26, 0
    %p183 = por %p181, %p182
    %p184 = scmp.ne.s32.totalorder %s172, %s173
    %p185 = scmp.eq.s32.totalorder %s27, 3
    %p186 = por %p184, %p185
    %p188 = scmp.ne.s32.totalorder %s173, %s187
    %p189 = scmp.eq.s32.totalorder %s27, 0
    %p190 = por %p188, %p189
    %s192 = sadd.s32 %s191, 1
    %p195 = scmp.eq.s32.totalorder %s21, 3
    %p196 = scmp.ne.s32.totalorder %s191, %s193
    %p197 = scmp.eq.s32.totalorder %s21, 0
    %p198 = por %p196, %p197
    %p199 = scmp.ne.s32.totalorder %s191, %s193
    %p200 = scmp.eq.s32.totalorder %s26, 3
    %p201 = por %p199, %p200
    %p202 = scmp.ne.s32.totalorder %s193, %s194
    %p203 = scmp.eq.s32.totalorder %s26, 0
    %p204 = por %p202, %p203
    %p205 = scmp.ne.s32.totalorder %s193, %s194
    %p206 = scmp.eq.s32.totalorder %s27, 3
    %p207 = por %p205, %p206
    %p209 = scmp.ne.s32.totalorder %s194, %s208
    %p210 = scmp.eq.s32.totalorder %s27, 0
    %p211 = por %p209, %p210
    %s213 = sadd.s32 %s212, 1
    %p216 = scmp.eq.s32.totalorder %s21, 3
    %p217 = scmp.ne.s32.totalorder %s212, %s214
    %p218 = scmp.eq.s32.totalorder %s21, 0
    %p219 = por %p217, %p218
    %p220 = scmp.ne.s32.totalorder %s212, %s214
    %p221 = scmp.eq.s32.totalorder %s26, 3
    %p222 = por %p220, %p221
    %p223 = scmp.ne.s32.totalorder %s214, %s215
    %p224 = scmp.eq.s32.totalorder %s26, 0
    %p225 = por %p223, %p224
    %p226 = scmp.ne.s32.totalorder %s214, %s215
    %p227 = scmp.eq.s32.totalorder %s27, 3
    %p228 = por %p226, %p227
    %p230 = scmp.ne.s32.totalorder %s215, %s229
    %p231 = scmp.eq.s32.totalorder %s27, 0
    %p232 = por %p230, %p231
    %s234 = sadd.s32 %s233, 1
    %p237 = scmp.eq.s32.totalorder %s21, 3
    %p238 = scmp.ne.s32.totalorder %s233, %s235
    %p239 = scmp.eq.s32.totalorder %s21, 0
    %p240 = por %p238, %p239
    %p241 = scmp.ne.s32.totalorder %s233, %s235
    %p242 = scmp.eq.s32.totalorder %s26, 3
    %p243 = por %p241, %p242
    %p244 = scmp.ne.s32.totalorder %s235, %s236
    %p245 = scmp.eq.s32.totalorder %s26, 0
    %p246 = por %p244, %p245
    %p247 = scmp.ne.s32.totalorder %s235, %s236
    %p248 = scmp.eq.s32.totalorder %s27, 3
    %p249 = por %p247, %p248
    %p251 = scmp.ne.s32.totalorder %s236, %s250
    %p252 = scmp.eq.s32.totalorder %s27, 0
    %p253 = por %p251, %p252
    %s255 = sadd.s32 %s254, 1
    %p258 = scmp.eq.s32.totalorder %s21, 3
    %p259 = scmp.ne.s32.totalorder %s254, %s256
    %p260 = scmp.eq.s32.totalorder %s21, 0
    %p261 = por %p259, %p260
    %p262 = scmp.ne.s32.totalorder %s254, %s256
    %p263 = scmp.eq.s32.totalorder %s26, 3
    %p264 = por %p262, %p263
    %p265 = scmp.ne.s32.totalorder %s256, %s257
    %p266 = scmp.eq.s32.totalorder %s26, 0
    %p267 = por %p265, %p266
    %p268 = scmp.ne.s32.totalorder %s256, %s257
    %p269 = scmp.eq.s32.totalorder %s27, 3
    %p270 = por %p268, %p269
    %p272 = scmp.ne.s32.totalorder %s257, %s271
    %p273 = scmp.eq.s32.totalorder %s27, 0
    %p274 = por %p272, %p273
    %s276 = sadd.s32 %s275, 1
    %p279 = scmp.eq.s32.totalorder %s21, 3
    %p280 = scmp.ne.s32.totalorder %s275, %s277
    %p281 = scmp.eq.s32.totalorder %s21, 0
    %p282 = por %p280, %p281
    %p283 = scmp.ne.s32.totalorder %s275, %s277
    %p284 = scmp.eq.s32.totalorder %s26, 3
    %p285 = por %p283, %p284
    %p286 = scmp.ne.s32.totalorder %s277, %s278
    %p287 = scmp.eq.s32.totalorder %s26, 0
    %p288 = por %p286, %p287
    %p289 = scmp.ne.s32.totalorder %s277, %s278
    %p290 = scmp.eq.s32.totalorder %s27, 3
    %p291 = por %p289, %p290
    %p293 = scmp.ne.s32.totalorder %s278, %s292
    %p294 = scmp.eq.s32.totalorder %s27, 0
    %p295 = por %p293, %p294
    %s297 = sadd.s32 %s296, 1
    %p300 = scmp.eq.s32.totalorder %s21, 3
    %p301 = scmp.ne.s32.totalorder %s296, %s298
    %p302 = scmp.eq.s32.totalorder %s21, 0
    %p303 = por %p301, %p302
    %p304 = scmp.ne.s32.totalorder %s296, %s298
    %p305 = scmp.eq.s32.totalorder %s26, 3
    %p306 = por %p304, %p305
    %p307 = scmp.ne.s32.totalorder %s298, %s299
    %p308 = scmp.eq.s32.totalorder %s26, 0
    %p309 = por %p307, %p308
    %p310 = scmp.ne.s32.totalorder %s298, %s299
    %p311 = scmp.eq.s32.totalorder %s27, 3
    %p312 = por %p310, %p311
    %p314 = scmp.ne.s32.totalorder %s299, %s313
    %p315 = scmp.eq.s32.totalorder %s27, 0
    %p316 = por %p314, %p315
    %s318 = sadd.s32 %s317, 1
    %p321 = scmp.eq.s32.totalorder %s21, 3
    %p322 = scmp.ne.s32.totalorder %s317, %s319
    %p323 = scmp.eq.s32.totalorder %s21, 0
    %p324 = por %p322, %p323
    %p325 = scmp.ne.s32.totalorder %s317, %s319
    %p326 = scmp.eq.s32.totalorder %s26, 3
    %p327 = por %p325, %p326
    %p328 = scmp.ne.s32.totalorder %s319, %s320
    %p329 = scmp.eq.s32.totalorder %s26, 0
    %p330 = por %p328, %p329
    %p331 = scmp.ne.s32.totalorder %s319, %s320
    %p332 = scmp.eq.s32.totalorder %s27, 3
    %p333 = por %p331, %p332
    %p335 = scmp.ne.s32.totalorder %s320, %s334
    %p336 = scmp.eq.s32.totalorder %s27, 0
    %p337 = por %p335, %p336
    %s339 = sadd.s32 %s338, 1
    %p342 = scmp.eq.s32.totalorder %s21, 3
    %p343 = scmp.ne.s32.totalorder %s338, %s340
    %p344 = scmp.eq.s32.totalorder %s21, 0
    %p345 = por %p343, %p344
    %p346 = scmp.ne.s32.totalorder %s338, %s340
    %p347 = scmp.eq.s32.totalorder %s26, 3
    %p348 = por %p346, %p347
    %p349 = scmp.ne.s32.totalorder %s340, %s341
    %p350 = scmp.eq.s32.totalorder %s26, 0
    %p351 = por %p349, %p350
    %p352 = scmp.ne.s32.totalorder %s340, %s341
    %p353 = scmp.eq.s32.totalorder %s27, 3
    %p354 = por %p352, %p353
    %p356 = scmp.ne.s32.totalorder %s341, %s355
    %p357 = scmp.eq.s32.totalorder %s27, 0
    %p358 = por %p356, %p357
    %s359 = ssub.s32 %s21, %s28
    %p360 = scmp.eq.s32.totalorder %s359, 0
    %s362 = sadd.s32 %s361, 1
    %s363 = scalar_select %p360, %s361, %s362
    %p366 = pneg %p360
    %p367 = scmp.eq.s32.totalorder %s21, 3
    %p368 = por %p366, %p367
    %p369 = scmp.ne.s32.totalorder %s361, %s364
    %p370 = scmp.eq.s32.totalorder %s21, 0
    %p371 = por %p369, %p370
    %p372 = scmp.ne.s32.totalorder %s361, %s364
    %p373 = scmp.eq.s32.totalorder %s26, 3
    %p374 = por %p372, %p373
    %p375 = scmp.ne.s32.totalorder %s364, %s365
    %p376 = scmp.eq.s32.totalorder %s26, 0
    %p377 = por %p375, %p376
    %p378 = scmp.ne.s32.totalorder %s364, %s365
    %p379 = scmp.eq.s32.totalorder %s27, 3
    %p380 = por %p378, %p379
    %p382 = scmp.ne.s32.totalorder %s365, %s381
    %p383 = scmp.eq.s32.totalorder %s27, 0
    %p384 = por %p382, %p383
    %p385 = scmp.le.s32.totalorder 1, %s21
    %p386 = scmp.lt.s32.totalorder %s21, 5
    %p387 = pnand %p385, %p386
    %p388 = pneg %p387
    // Predicated region
    $region9: #{object_transformer_forward.42} parent=5 // pred_check
      _
    $region10: #{object_transformer_forward.42} parent=5 // pred_check_branch
      %390 = sbr.rel (%p387) target = $region12
    $region11: #{object_transformer_forward.42} parent=5 // pred_region
      %s391 = ssub.s32 %s21, 1
      // Predicated region
      $region13: #{object_transformer_forward.42} parent=11 // pred_check
        %p392 = pneg %p120
      $region14: #{object_transformer_forward.42} parent=11 // pred_check_branch
        %394 = sbr.rel (%p392) target = $region16
      $region15: #{object_transformer_forward.42} parent=11 // pred_region
        _
      $region16: #{object_transformer_forward.42} parent=11 // pred_fallthru
        _
      // Predicated region
      $region17: #{object_transformer_forward.42} parent=11 // pred_check
        %p395 = pneg %p141
      $region18: #{object_transformer_forward.42} parent=11 // pred_check_branch
        %397 = sbr.rel (%p395) target = $region20
      $region19: #{object_transformer_forward.42} parent=11 // pred_region
        _
      $region20: #{object_transformer_forward.42} parent=11 // pred_fallthru
        _
      // Predicated region
      $region21: #{object_transformer_forward.42} parent=11 // pred_check
        %p398 = pneg %p162
      $region22: #{object_transformer_forward.42} parent=11 // pred_check_branch
        %400 = sbr.rel (%p398) target = $region24
      $region23: #{object_transformer_forward.42} parent=11 // pred_region
        _
      $region24: #{object_transformer_forward.42} parent=11 // pred_fallthru
        _
      // Predicated region
      $region25: #{object_transformer_forward.42} parent=11 // pred_check
        %p401 = pneg %p183
      $region26: #{object_transformer_forward.42} parent=11 // pred_check_branch
        %403 = sbr.rel (%p401) target = $region28
      $region27: #{object_transformer_forward.42} parent=11 // pred_region
        _
      $region28: #{object_transformer_forward.42} parent=11 // pred_fallthru
        _
      // Predicated region
      $region29: #{object_transformer_forward.42} parent=11 // pred_check
        %p404 = pneg %p204
      $region30: #{object_transformer_forward.42} parent=11 // pred_check_branch
        %406 = sbr.rel (%p404) target = $region32
      $region31: #{object_transformer_forward.42} parent=11 // pred_region
        _
      $region32: #{object_transformer_forward.42} parent=11 // pred_fallthru
        _
      // Predicated region
      $region33: #{object_transformer_forward.42} parent=11 // pred_check
        %p407 = pneg %p225
      $region34: #{object_transformer_forward.42} parent=11 // pred_check_branch
        %409 = sbr.rel (%p407) target = $region36
      $region35: #{object_transformer_forward.42} parent=11 // pred_region
        _
      $region36: #{object_transformer_forward.42} parent=11 // pred_fallthru
        _
      // Predicated region
      $region37: #{object_transformer_forward.42} parent=11 // pred_check
        %p410 = pneg %p246
      $region38: #{object_transformer_forward.42} parent=11 // pred_check_branch
        %412 = sbr.rel (%p410) target = $region40
      $region39: #{object_transformer_forward.42} parent=11 // pred_region
        _
      $region40: #{object_transformer_forward.42} parent=11 // pred_fallthru
        _
      // Predicated region
      $region41: #{object_transformer_forward.42} parent=11 // pred_check
        %p413 = pneg %p267
      $region42: #{object_transformer_forward.42} parent=11 // pred_check_branch
        %415 = sbr.rel (%p413) target = $region44
      $region43: #{object_transformer_forward.42} parent=11 // pred_region
        _
      $region44: #{object_transformer_forward.42} parent=11 // pred_fallthru
        _
      // Predicated region
      $region45: #{object_transformer_forward.42} parent=11 // pred_check
        %p416 = pneg %p288
      $region46: #{object_transformer_forward.42} parent=11 // pred_check_branch
        %418 = sbr.rel (%p416) target = $region48
      $region47: #{object_transformer_forward.42} parent=11 // pred_region
        _
      $region48: #{object_transformer_forward.42} parent=11 // pred_fallthru
        _
      // Predicated region
      $region49: #{object_transformer_forward.42} parent=11 // pred_check
        %p419 = pneg %p309
      $region50: #{object_transformer_forward.42} parent=11 // pred_check_branch
        %421 = sbr.rel (%p419) target = $region52
      $region51: #{object_transformer_forward.42} parent=11 // pred_region
        _
      $region52: #{object_transformer_forward.42} parent=11 // pred_fallthru
        _
      // Predicated region
      $region53: #{object_transformer_forward.42} parent=11 // pred_check
        %p422 = pneg %p330
      $region54: #{object_transformer_forward.42} parent=11 // pred_check_branch
        %424 = sbr.rel (%p422) target = $region56
      $region55: #{object_transformer_forward.42} parent=11 // pred_region
        _
      $region56: #{object_transformer_forward.42} parent=11 // pred_fallthru
        _
      // Predicated region
      $region57: #{object_transformer_forward.42} parent=11 // pred_check
        %p425 = pneg %p351
      $region58: #{object_transformer_forward.42} parent=11 // pred_check_branch
        %427 = sbr.rel (%p425) target = $region60
      $region59: #{object_transformer_forward.42} parent=11 // pred_region
        _
      $region60: #{object_transformer_forward.42} parent=11 // pred_fallthru
        _
    $region12: #{object_transformer_forward.42} parent=5 // pred_fallthru
      _
    %p428 = scmp.lt.s32.totalorder %s21, 4
    // Predicated region
    $region61: #{object_transformer_forward.42} parent=5 // pred_check
      %p429 = pneg %p428
    $region62: #{object_transformer_forward.42} parent=5 // pred_check_branch
      %431 = sbr.rel (%p429) target = $region64
    $region63: #{object_transformer_forward.42} parent=5 // pred_region
      // Predicated region
      $region65: #{object_transformer_forward.42} parent=63 // pred_check
        %p432 = pneg %p41
      $region66: #{object_transformer_forward.42} parent=63 // pred_check_branch
        %434 = sbr.rel (%p432) target = $region68
      $region67: #{object_transformer_forward.42} parent=63 // pred_region
        %p435 = scmp.lt.s32.totalorder %s21, 3
        %s436 = scalar_select %p435, %s21, 3
        %s437 = smul.addr %s436, 4
        %s438 = scalar_lea.vmem %s0, %s437
      $region68: #{object_transformer_forward.42} parent=63 // pred_fallthru
        _
      // Predicated region
      $region69: #{object_transformer_forward.42} parent=63 // pred_check
        %p439 = pneg %p67
      $region70: #{object_transformer_forward.42} parent=63 // pred_check_branch
        %441 = sbr.rel (%p439) target = $region72
      $region71: #{object_transformer_forward.42} parent=63 // pred_region
        %p442 = scmp.lt.s32.totalorder %s21, 3
        %s443 = scalar_select %p442, %s21, 3
        %s444 = smul.addr %s443, 8
        %s445 = scalar_lea.vmem %s1, %s444
      $region72: #{object_transformer_forward.42} parent=63 // pred_fallthru
        _
      // Predicated region
      $region73: #{object_transformer_forward.42} parent=63 // pred_check
        %p446 = pneg %p93
      $region74: #{object_transformer_forward.42} parent=63 // pred_check_branch
        %448 = sbr.rel (%p446) target = $region76
      $region75: #{object_transformer_forward.42} parent=63 // pred_region
        %p449 = scmp.lt.s32.totalorder %s21, 3
        %s450 = scalar_select %p449, %s21, 3
        %s451 = scalar_lea.vmem %s2, %s450
      $region76: #{object_transformer_forward.42} parent=63 // pred_fallthru
        _
    $region64: #{object_transformer_forward.42} parent=5 // pred_fallthru
      _
    %p452 = scmp.le.s32.totalorder 1, %s21
    %p453 = scmp.lt.s32.totalorder %s21, 5
    %p454 = pnand %p452, %p453
    %p455 = pneg %p454
    // Predicated region
    $region77: #{object_transformer_forward.42} parent=5 // pred_check
      _
    $region78: #{object_transformer_forward.42} parent=5 // pred_check_branch
      %457 = sbr.rel (%p454) target = $region80
    $region79: #{object_transformer_forward.42} parent=5 // pred_region
      %s458 = ssub.s32 %s21, 1
      %p459 = scmp.lt.s32.totalorder %s26, 3
      %s460 = scalar_select %p459, %s26, 3
      %s461 = smul.addr %s460, 4
      %s462 = scalar_lea.vmem %s0, %s461
      %p463 = pneg %p47
      %p464 = pneg %p44
      %p465 = scmp.lt.s32.totalorder %s26, 3
      %s466 = scalar_select %p465, %s26, 3
      %s467 = smul.addr %s466, 8
      %s468 = scalar_lea.vmem %s1, %s467
      %p469 = pneg %p73
      %p470 = pneg %p70
      %p471 = scmp.lt.s32.totalorder %s26, 3
      %s472 = scalar_select %p471, %s26, 3
      %s473 = scalar_lea.vmem %s2, %s472
      %p474 = pneg %p99
      %p475 = pneg %p96
      %p476 = pneg %p120
      %p477 = pneg %p117
      %p478 = pneg %p141
      %p479 = pneg %p138
      %p480 = pneg %p162
      %p481 = pneg %p159
      %p482 = pneg %p183
      %p483 = pneg %p180
      %p484 = pneg %p204
      %p485 = pneg %p201
      %p486 = pneg %p225
      %p487 = pneg %p222
      %p488 = pneg %p246
      %p489 = pneg %p243
      %p490 = pneg %p267
      %p491 = pneg %p264
      %p492 = pneg %p288
      %p493 = pneg %p285
      %p494 = pneg %p309
      %p495 = pneg %p306
      %p496 = pneg %p330
      %p497 = pneg %p327
      %p498 = pneg %p351
      %p499 = pneg %p348
      %p500 = pneg %p377
      %p501 = pneg %p374
      %p502 = scmp.lt.s32.totalorder %s26, 3
      %s503 = scalar_select %p502, %s26, 3
      %s504 = smul.addr %s503, 4
      %s505 = scalar_lea.vmem %s15, %s504
      %p506 = scmp.lt.s32.totalorder %s26, 3
      %s507 = scalar_select %p506, %s26, 3
      %s508 = smul.addr %s507, 4
      %s509 = scalar_lea.vmem %s0, %s508
      %p510 = scmp.lt.s32.totalorder %s26, 3
      %s511 = scalar_select %p510, %s26, 3
      %s512 = smul.addr %s511, 8
      %s513 = scalar_lea.vmem %s1, %s512
      %p514 = scmp.lt.s32.totalorder %s26, 3
      %s515 = scalar_select %p514, %s26, 3
      %s516 = scalar_lea.vmem %s2, %s515
      %p517 = scmp.lt.s32.totalorder %s26, 3
      %s518 = scalar_select %p517, %s26, 3
      %s519 = smul.addr %s518, 4
      %s520 = scalar_lea.vmem %s15, %s519
      %v522 = vld [vmem:[%s509] sm:$0xf]
      %v523 = vld [vmem:[%s513] sm:$0x1f]
      %v524 = vld [vmem:[%s3] sm:$0x1]
      %v525 = vld [vmem:[%s4] sm:$0x1]
      %vm526 = vcmask 257024
      %v527 = vsel %vm526, %v522, 0.0
      %528 = vadd.xlane.f32.xlu0 %v527
      %v529 = vpop.xlane.xlu0 %528
      %v530 = vrcp.pop 32.0
      %v531 = vmul.f32 %v529, %v530
      %v532 = vsub.f32 %v522, %v531
      %v533 = vmul.f32 %v532, %v532
      %v534 = vsel %vm526, %v533, 0.0
      %535 = vadd.xlane.f32.xlu0 %v534
      %v536 = vpop.xlane.xlu0 %535
      %v537 = vmul.f32 %v536, %v530
      %v538 = vadd.f32 %v537, 1e-05
      %v539 = vrsqrt.pop %v538
      %v540 = vmul.f32 %v532, %v539
      %v542 = vlaneseq
      %v543 = vshrl.u32 %v542, 7
      %v544 = vsub.s32 0, %v543
      %v545 = vrot.slane %v524, %v544
      %v547 = vmul.f32 %v540, %v545
      %v549 = vlaneseq
      %v550 = vshrl.u32 %v549, 7
      %v551 = vsub.s32 0, %v550
      %v552 = vrot.slane %v525, %v551
      %v554 = vadd.f32 %v547, %v552
      %v555 = vld [vmem:[%s5] sm:$0x1]
      %v556 = vld [vmem:[%s6] sm:$0x1]
      %vm557 = vcmask 258048
      %v558 = vsel %vm557, %v523, 0.0
      %559 = vadd.xlane.f32.xlu0 %v558
      %v560 = vpop.xlane.xlu0 %559
      %v561 = vmul.f32 %v560, %v530
      %v562 = vsub.f32 %v523, %v561
      %v563 = vmul.f32 %v562, %v562
      %v564 = vsel %vm557, %v563, 0.0
      %565 = vadd.xlane.f32.xlu0 %v564
      %v566 = vpop.xlane.xlu0 %565
      %v567 = vmul.f32 %v566, %v530
      %v568 = vadd.f32 %v567, 1e-05
      %v569 = vrsqrt.pop %v568
      %v570 = vmul.f32 %v562, %v569
      %v572 = vlaneseq
      %v573 = vshrl.u32 %v572, 7
      %v574 = vsub.s32 0, %v573
      %v575 = vrot.slane %v555, %v574
      %v577 = vmul.f32 %v570, %v575
      %v579 = vlaneseq
      %v580 = vshrl.u32 %v579, 7
      %v581 = vsub.s32 0, %v580
      %v582 = vrot.slane %v556, %v581
      %v584 = vadd.f32 %v577, %v582
      %v585 = vpack.c.bf16 %v554, %v554
      %v586 = vld [vmem:[%s7] sm:$0xf]
      %v587 = vld [vmem:[%s7 + $0x4] sm:$0xf]
      %v588 = vld [vmem:[%s7 + $0x8] sm:$0xf]
      %v589 = vld [vmem:[%s7 + $0xc] sm:$0xf]
      %v590 = vld [vmem:[%s8] sm:$0x1]
      %v592 = vlaneseq
      %v593 = vshrl.u32 %v592, 7
      %v594 = vsub.s32 0, %v593
      %v595 = vrot.slane %v590, %v594
      %v601 = vunpack.c.l.b16 %v586
      %v602 = vunpack.c.l.b16 %v587
      %v603 = vunpack.c.l.b16 %v588
      %v604 = vunpack.c.l.b16 %v589
      %v605 = vpack.c.b16 %v602, %v601
      %v606 = vpack.c.b16 %v604, %v603
      %vm609 = vcmask 261120
      %v611 = vsel %vm609, %v585, 0
      %613 = vmatprep.subr.bf16.mxu0 0
      %614 = vmatpush1.bf16.msra.mxu0 %v605
      %615 = vmatprep.subr.bf16.mxu0 0
      %616 = vmatpush1.bf16.msra.mxu0 %v606
      %617 = vmatprep.subr.bf16.mxu0 0
      %618 = vmatpush1.bf16.msra.mxu0 0
      %619 = vmatprep.subr.bf16.mxu0 0
      %620 = vmatpush1.bf16.msra.mxu0 0
      %621 = vmatprep.subr.bf16.mxu0 0
      %622 = vmatpush1.bf16.msra.mxu0 0
      %623 = vmatprep.subr.bf16.mxu0 0
      %624 = vmatpush1.bf16.msra.mxu0 0
      %625 = vmatprep.subr.bf16.mxu0 0
      %626 = vmatpush1.bf16.msra.mxu0 0
      %627 = vmatprep.subr.bf16.mxu0 0
      %628 = vmatpush1.bf16.msra.mxu0 0
      %629 = vmatprep.subr.bf16.mxu0 0
      %630 = vmatpush1.bf16.msra.mxu0 0
      %631 = vmatprep.subr.bf16.mxu0 0
      %632 = vmatpush1.bf16.msra.mxu0 0
      %633 = vmatprep.subr.bf16.mxu0 0
      %634 = vmatpush1.bf16.msra.mxu0 0
      %635 = vmatprep.subr.bf16.mxu0 0
      %636 = vmatpush1.bf16.msra.mxu0 0
      %637 = vmatprep.subr.bf16.mxu0 0
      %638 = vmatpush1.bf16.msra.mxu0 0
      %639 = vmatprep.subr.bf16.mxu0 0
      %640 = vmatpush1.bf16.msra.mxu0 0
      %641 = vmatprep.subr.bf16.mxu0 0
      %642 = vmatpush1.bf16.msra.mxu0 0
      %643 = vmatprep.subr.bf16.mxu0 0
      %644 = vmatpush1.bf16.msra.mxu0 0
      %645 = vmatprep.mubr.bf16.mxu0 0
      %646 = vmatmul.mubr.bf16.gmra.mrb[0].mxu0 %v611
      %v647 = vpop.f32.mrb[0].mxu0
      %v648 = vadd.f32 %v595, %v647
      %v649 = vpop.f32.mrb[0].mxu0
      %v650 = vpop.f32.mrb[0].mxu0
      %v651 = vpop.f32.mrb[0].mxu0
      %652 = vdwg.mxu0
      %v653 = vpack.c.bf16 %v584, %v584
      %v654 = vld [vmem:[%s9] sm:$0xf]
      %v655 = vld [vmem:[%s9 + $0x4] sm:$0xf]
      %v656 = vld [vmem:[%s9 + $0x8] sm:$0xf]
      %v657 = vld [vmem:[%s9 + $0xc] sm:$0xf]
      %v658 = vld [vmem:[%s10] sm:$0x1]
      %v660 = vlaneseq
      %v661 = vshrl.u32 %v660, 7
      %v662 = vsub.s32 0, %v661
      %v663 = vrot.slane %v658, %v662
      %v669 = vunpack.c.l.b16 %v654
      %v670 = vunpack.c.l.b16 %v655
      %v671 = vunpack.c.l.b16 %v656
      %v672 = vunpack.c.l.b16 %v657
      %v673 = vpack.c.b16 %v670, %v669
      %v674 = vpack.c.b16 %v672, %v671
      %v678 = vsel %vm609, %v653, 0
      %680 = vmatprep.subr.bf16.mxu0 0
      %681 = vmatpush1.bf16.msra.mxu0 %v673
      %682 = vmatprep.subr.bf16.mxu0 0
      %683 = vmatpush1.bf16.msra.mxu0 %v674
      %684 = vmatprep.subr.bf16.mxu0 0
      %685 = vmatpush1.bf16.msra.mxu0 0
      %686 = vmatprep.subr.bf16.mxu0 0
      %687 = vmatpush1.bf16.msra.mxu0 0
      %688 = vmatprep.subr.bf16.mxu0 0
      %689 = vmatpush1.bf16.msra.mxu0 0
      %690 = vmatprep.subr.bf16.mxu0 0
      %691 = vmatpush1.bf16.msra.mxu0 0
      %692 = vmatprep.subr.bf16.mxu0 0
      %693 = vmatpush1.bf16.msra.mxu0 0
      %694 = vmatprep.subr.bf16.mxu0 0
      %695 = vmatpush1.bf16.msra.mxu0 0
      %696 = vmatprep.subr.bf16.mxu0 0
      %697 = vmatpush1.bf16.msra.mxu0 0
      %698 = vmatprep.subr.bf16.mxu0 0
      %699 = vmatpush1.bf16.msra.mxu0 0
      %700 = vmatprep.subr.bf16.mxu0 0
      %701 = vmatpush1.bf16.msra.mxu0 0
      %702 = vmatprep.subr.bf16.mxu0 0
      %703 = vmatpush1.bf16.msra.mxu0 0
      %704 = vmatprep.subr.bf16.mxu0 0
      %705 = vmatpush1.bf16.msra.mxu0 0
      %706 = vmatprep.subr.bf16.mxu0 0
      %707 = vmatpush1.bf16.msra.mxu0 0
      %708 = vmatprep.subr.bf16.mxu0 0
      %709 = vmatpush1.bf16.msra.mxu0 0
      %710 = vmatprep.subr.bf16.mxu0 0
      %711 = vmatpush1.bf16.msra.mxu0 0
      %712 = vmatprep.mubr.bf16.mxu0 0
      %713 = vmatmul.mubr.bf16.gmra.mrb[0].mxu0 %v678
      %v714 = vpop.f32.mrb[0].mxu0
      %v715 = vadd.f32 %v663, %v714
      %v716 = vpop.f32.mrb[0].mxu0
      %v717 = vpop.f32.mrb[0].mxu0
      %v718 = vpop.f32.mrb[0].mxu0
      %719 = vdwg.mxu0
      %v720 = vld [vmem:[%s11] sm:$0xf]
      %v721 = vld [vmem:[%s11 + $0x4] sm:$0xf]
      %v722 = vld [vmem:[%s11 + $0x8] sm:$0xf]
      %v723 = vld [vmem:[%s11 + $0xc] sm:$0xf]
      %v724 = vld [vmem:[%s12] sm:$0x1]
      %v726 = vlaneseq
      %v727 = vshrl.u32 %v726, 7
      %v728 = vsub.s32 0, %v727
      %v729 = vrot.slane %v724, %v728
      %v735 = vunpack.c.l.b16 %v720
      %v736 = vunpack.c.l.b16 %v721
      %v737 = vunpack.c.l.b16 %v722
      %v738 = vunpack.c.l.b16 %v723
      %v739 = vpack.c.b16 %v736, %v735
      %v740 = vpack.c.b16 %v738, %v737
      %743 = vmatprep.subr.bf16.mxu0 0
      %744 = vmatpush1.bf16.msra.mxu0 %v739
      %745 = vmatprep.subr.bf16.mxu0 0
      %746 = vmatpush1.bf16.msra.mxu0 %v740
      %747 = vmatprep.subr.bf16.mxu0 0
      %748 = vmatpush1.bf16.msra.mxu0 0
      %749 = vmatprep.subr.bf16.mxu0 0
      %750 = vmatpush1.bf16.msra.mxu0 0
      %751 = vmatprep.subr.bf16.mxu0 0
      %752 = vmatpush1.bf16.msra.mxu0 0
      %753 = vmatprep.subr.bf16.mxu0 0
      %754 = vmatpush1.bf16.msra.mxu0 0
      %755 = vmatprep.subr.bf16.mxu0 0
      %756 = vmatpush1.bf16.msra.mxu0 0
      %757 = vmatprep.subr.bf16.mxu0 0
      %758 = vmatpush1.bf16.msra.mxu0 0
      %759 = vmatprep.subr.bf16.mxu0 0
      %760 = vmatpush1.bf16.msra.mxu0 0
      %761 = vmatprep.subr.bf16.mxu0 0
      %762 = vmatpush1.bf16.msra.mxu0 0
      %763 = vmatprep.subr.bf16.mxu0 0
      %764 = vmatpush1.bf16.msra.mxu0 0
      %765 = vmatprep.subr.bf16.mxu0 0
      %766 = vmatpush1.bf16.msra.mxu0 0
      %767 = vmatprep.subr.bf16.mxu0 0
      %768 = vmatpush1.bf16.msra.mxu0 0
      %769 = vmatprep.subr.bf16.mxu0 0
      %770 = vmatpush1.bf16.msra.mxu0 0
      %771 = vmatprep.subr.bf16.mxu0 0
      %772 = vmatpush1.bf16.msra.mxu0 0
      %773 = vmatprep.subr.bf16.mxu0 0
      %774 = vmatpush1.bf16.msra.mxu0 0
      %775 = vmatprep.mubr.bf16.mxu0 0
      %776 = vmatmul.mubr.bf16.gmra.mrb[0].mxu0 %v678
      %v777 = vpop.f32.mrb[0].mxu0
      %v778 = vadd.f32 %v729, %v777
      %v779 = vpop.f32.mrb[0].mxu0
      %v780 = vpop.f32.mrb[0].mxu0
      %v781 = vpop.f32.mrb[0].mxu0
      %782 = vdwg.mxu0
      %v783 = vld [vmem:[%s516] sm:$0x1]
      %v784 = vpack.c.bf16 %v648, %v648
      %v785 = vpack.c.bf16 %v715, %v715
      %v786 = vpack.c.bf16 %v778, %v778
      %vm787 = vcmask 64512
      %v789 = vsel %vm787, %v784, 0
      %v792 = vsel %vm787, %v785, 0
      %794 = vmatprep.subr.bf16.mxu0 0
      %795 = vmatpush1.bf16.xpose.msra.mxu0 %v792
      %796 = vmatprep.subr.bf16.mxu0 0
      %797 = vmatpush1.bf16.xpose.msra.mxu0 0
      %798 = vmatprep.subr.bf16.mxu0 0
      %799 = vmatpush1.bf16.xpose.msra.mxu0 0
      %800 = vmatprep.subr.bf16.mxu0 0
      %801 = vmatpush1.bf16.xpose.msra.mxu0 0
      %802 = vmatprep.subr.bf16.mxu0 0
      %803 = vmatpush1.bf16.xpose.msra.mxu0 0
      %804 = vmatprep.subr.bf16.mxu0 0
      %805 = vmatpush1.bf16.xpose.msra.mxu0 0
      %806 = vmatprep.subr.bf16.mxu0 0
      %807 = vmatpush1.bf16.xpose.msra.mxu0 0
      %808 = vmatprep.subr.bf16.mxu0 0
      %809 = vmatpush1.bf16.xpose.msra.mxu0 0
      %810 = vmatprep.subr.bf16.mxu0 0
      %811 = vmatpush1.bf16.xpose.msra.mxu0 0
      %812 = vmatprep.subr.bf16.mxu0 0
      %813 = vmatpush1.bf16.xpose.msra.mxu0 0
      %814 = vmatprep.subr.bf16.mxu0 0
      %815 = vmatpush1.bf16.xpose.msra.mxu0 0
      %816 = vmatprep.subr.bf16.mxu0 0
      %817 = vmatpush1.bf16.xpose.msra.mxu0 0
      %818 = vmatprep.subr.bf16.mxu0 0
      %819 = vmatpush1.bf16.xpose.msra.mxu0 0
      %820 = vmatprep.subr.bf16.mxu0 0
      %821 = vmatpush1.bf16.xpose.msra.mxu0 0
      %822 = vmatprep.subr.bf16.mxu0 0
      %823 = vmatpush1.bf16.xpose.msra.mxu0 0
      %824 = vmatprep.subr.bf16.mxu0 0
      %825 = vmatpush1.bf16.xpose.msra.mxu0 0
      %826 = vmatprep.mubr.bf16.mxu0 0
      %827 = vmatmul.mubr.bf16.gmra.mrb[0].mxu0 %v789
      %v828 = vpop.f32.mrb[0].mxu0
      %v829 = vadd.f32 0.0, %v828
      %v830 = vpop.f32.mrb[0].mxu0
      %v831 = vpop.f32.mrb[0].mxu0
      %v832 = vpop.f32.mrb[0].mxu0
      %833 = vdwg.mxu0
      %v834 = vmul.f32 %v829, 0.35355338
      %v836 = vlaneseq
      %v837 = vshrl.u32 %v836, 7
      %v838 = vsub.s32 0, %v837
      %v839 = vrot.slane %v783, %v838
      %v841 = vadd.f32 %v834, %v839
      %vm842 = vcmask 35840
      %v843 = vsel %vm842, %v841, -inf
      %844 = vmax.xlane.f32.xlu0 %v843
      %v845 = vpop.xlane.xlu0 %844
      %v846 = vsub.f32 %v841, %v845
      %v847 = vmul.f32 %v846, 1.442695
      %v848 = vpow.pop %v847
      %v849 = vsel %vm842, %v848, 0.0
      %850 = vadd.xlane.f32.xlu0 %v849
      %v851 = vpop.xlane.xlu0 %850
      %v852 = vrcp.pop %v851
      %v853 = vmul.f32 %v848, %v852
      %v854 = vpack.c.bf16 %v853, %v853
      %vm855 = vcmask 39936
      %v857 = vsel %vm855, %v854, 0
      %vm859 = vcmask 1041408
      %vm860 = vcmask 1042432
      %v861 = vsel %vm859, 4294967295, 65535
      %v862 = vsel %vm860, %v861, 0
      %v864 = vand.u32 %v786, %v862
      %866 = vmatprep.subr.bf16.mxu0 0
      %867 = vmatpush1.bf16.msra.mxu0 %v864
      %868 = vmatprep.subr.bf16.mxu0 0
      %869 = vmatpush1.bf16.msra.mxu0 0
      %870 = vmatprep.subr.bf16.mxu0 0
      %871 = vmatpush1.bf16.msra.mxu0 0
      %872 = vmatprep.subr.bf16.mxu0 0
      %873 = vmatpush1.bf16.msra.mxu0 0
      %874 = vmatprep.subr.bf16.mxu0 0
      %875 = vmatpush1.bf16.msra.mxu0 0
      %876 = vmatprep.subr.bf16.mxu0 0
      %877 = vmatpush1.bf16.msra.mxu0 0
      %878 = vmatprep.subr.bf16.mxu0 0
      %879 = vmatpush1.bf16.msra.mxu0 0
      %880 = vmatprep.subr.bf16.mxu0 0
      %881 = vmatpush1.bf16.msra.mxu0 0
      %882 = vmatprep.subr.bf16.mxu0 0
      %883 = vmatpush1.bf16.msra.mxu0 0
      %884 = vmatprep.subr.bf16.mxu0 0
      %885 = vmatpush1.bf16.msra.mxu0 0
      %886 = vmatprep.subr.bf16.mxu0 0
      %887 = vmatpush1.bf16.msra.mxu0 0
      %888 = vmatprep.subr.bf16.mxu0 0
      %889 = vmatpush1.bf16.msra.mxu0 0
      %890 = vmatprep.subr.bf16.mxu0 0
      %891 = vmatpush1.bf16.msra.mxu0 0
      %892 = vmatprep.subr.bf16.mxu0 0
      %893 = vmatpush1.bf16.msra.mxu0 0
      %894 = vmatprep.subr.bf16.mxu0 0
      %895 = vmatpush1.bf16.msra.mxu0 0
      %896 = vmatprep.subr.bf16.mxu0 0
      %897 = vmatpush1.bf16.msra.mxu0 0
      %898 = vmatprep.mubr.bf16.mxu0 0
      %899 = vmatmul.mubr.bf16.gmra.mrb[0].mxu0 %v857
      %v900 = vpop.f32.mrb[0].mxu0
      %v901 = vadd.f32 0.0, %v900
      %v902 = vpop.f32.mrb[0].mxu0
      %v903 = vpop.f32.mrb[0].mxu0
      %v904 = vpop.f32.mrb[0].mxu0
      %905 = vdwg.mxu0
      %907 = vrot.lane.b32.xlu0 %v784, 120
      %v908 = vpop.permute.xlu0 %907
      %910 = vrot.lane.b32.xlu0 %v785, 120
      %v911 = vpop.permute.xlu0 %910
      %v913 = vsel %vm787, %v908, 0
      %v916 = vsel %vm787, %v911, 0
      %918 = vmatprep.subr.bf16.mxu0 0
      %919 = vmatpush1.bf16.xpose.msra.mxu0 %v916
      %920 = vmatprep.subr.bf16.mxu0 0
      %921 = vmatpush1.bf16.xpose.msra.mxu0 0
      %922 = vmatprep.subr.bf16.mxu0 0
      %923 = vmatpush1.bf16.xpose.msra.mxu0 0
      %924 = vmatprep.subr.bf16.mxu0 0
      %925 = vmatpush1.bf16.xpose.msra.mxu0 0
      %926 = vmatprep.subr.bf16.mxu0 0
      %927 = vmatpush1.bf16.xpose.msra.mxu0 0
      %928 = vmatprep.subr.bf16.mxu0 0
      %929 = vmatpush1.bf16.xpose.msra.mxu0 0
      %930 = vmatprep.subr.bf16.mxu0 0
      %931 = vmatpush1.bf16.xpose.msra.mxu0 0
      %932 = vmatprep.subr.bf16.mxu0 0
      %933 = vmatpush1.bf16.xpose.msra.mxu0 0
      %934 = vmatprep.subr.bf16.mxu0 0
      %935 = vmatpush1.bf16.xpose.msra.mxu0 0
      %936 = vmatprep.subr.bf16.mxu0 0
      %937 = vmatpush1.bf16.xpose.msra.mxu0 0
      %938 = vmatprep.subr.bf16.mxu0 0
      %939 = vmatpush1.bf16.xpose.msra.mxu0 0
      %940 = vmatprep.subr.bf16.mxu0 0
      %941 = vmatpush1.bf16.xpose.msra.mxu0 0
      %942 = vmatprep.subr.bf16.mxu0 0
      %943 = vmatpush1.bf16.xpose.msra.mxu0 0
      %944 = vmatprep.subr.bf16.mxu0 0
      %945 = vmatpush1.bf16.xpose.msra.mxu0 0
      %946 = vmatprep.subr.bf16.mxu0 0
      %947 = vmatpush1.bf16.xpose.msra.mxu0 0
      %948 = vmatprep.subr.bf16.mxu0 0
      %949 = vmatpush1.bf16.xpose.msra.mxu0 0
      %950 = vmatprep.mubr.bf16.mxu0 0
      %951 = vmatmul.mubr.bf16.gmra.mrb[0].mxu0 %v913
      %v952 = vpop.f32.mrb[0].mxu0
      %v953 = vadd.f32 0.0, %v952
      %v954 = vpop.f32.mrb[0].mxu0
      %v955 = vpop.f32.mrb[0].mxu0
      %v956 = vpop.f32.mrb[0].mxu0
      %957 = vdwg.mxu0
      %v958 = vmul.f32 %v953, 0.35355338
      %v959 = vadd.f32 %v958, %v839
      %v960 = vsel %vm842, %v959, -inf
      %961 = vmax.xlane.f32.xlu0 %v960
      %v962 = vpop.xlane.xlu0 %961
      %v963 = vsub.f32 %v959, %v962
      %v964 = vmul.f32 %v963, 1.442695
      %v965 = vpow.pop %v964
      %v966 = vsel %vm842, %v965, 0.0
      %967 = vadd.xlane.f32.xlu0 %v966
      %v968 = vpop.xlane.xlu0 %967
      %v969 = vrcp.pop %v968
      %v970 = vmul.f32 %v965, %v969
      %v971 = vpack.c.bf16 %v970, %v970
      %973 = vrot.lane.b32.xlu0 %v786, 120
      %v974 = vpop.permute.xlu0 %973
      %v976 = vsel %vm855, %v971, 0
      %v979 = vand.u32 %v974, %v862
      %981 = vmatprep.subr.bf16.mxu0 0
      %982 = vmatpush1.bf16.msra.mxu0 %v979
      %983 = vmatprep.subr.bf16.mxu0 0
      %984 = vmatpush1.bf16.msra.mxu0 0
      %985 = vmatprep.subr.bf16.mxu0 0
      %986 = vmatpush1.bf16.msra.mxu0 0
      %987 = vmatprep.subr.bf16.mxu0 0
      %988 = vmatpush1.bf16.msra.mxu0 0
      %989 = vmatprep.subr.bf16.mxu0 0
      %990 = vmatpush1.bf16.msra.mxu0 0
      %991 = vmatprep.subr.bf16.mxu0 0
      %992 = vmatpush1.bf16.msra.mxu0 0
      %993 = vmatprep.subr.bf16.mxu0 0
      %994 = vmatpush1.bf16.msra.mxu0 0
      %995 = vmatprep.subr.bf16.mxu0 0
      %996 = vmatpush1.bf16.msra.mxu0 0
      %997 = vmatprep.subr.bf16.mxu0 0
      %998 = vmatpush1.bf16.msra.mxu0 0
      %999 = vmatprep.subr.bf16.mxu0 0
      %1000 = vmatpush1.bf16.msra.mxu0 0
      %1001 = vmatprep.subr.bf16.mxu0 0
      %1002 = vmatpush1.bf16.msra.mxu0 0
      %1003 = vmatprep.subr.bf16.mxu0 0
      %1004 = vmatpush1.bf16.msra.mxu0 0
      %1005 = vmatprep.subr.bf16.mxu0 0
      %1006 = vmatpush1.bf16.msra.mxu0 0
      %1007 = vmatprep.subr.bf16.mxu0 0
      %1008 = vmatpush1.bf16.msra.mxu0 0
      %1009 = vmatprep.subr.bf16.mxu0 0
      %1010 = vmatpush1.bf16.msra.mxu0 0
      %1011 = vmatprep.subr.bf16.mxu0 0
      %1012 = vmatpush1.bf16.msra.mxu0 0
      %1013 = vmatprep.mubr.bf16.mxu0 0
      %1014 = vmatmul.mubr.bf16.gmra.mrb[0].mxu0 %v976
      %v1015 = vpop.f32.mrb[0].mxu0
      %v1016 = vadd.f32 0.0, %v1015
      %v1017 = vpop.f32.mrb[0].mxu0
      %v1018 = vpop.f32.mrb[0].mxu0
      %v1019 = vpop.f32.mrb[0].mxu0
      %1020 = vdwg.mxu0
      %1021 = vrot.lane.b32.xlu0 %v784, 112
      %v1022 = vpop.permute.xlu0 %1021
      %1023 = vrot.lane.b32.xlu0 %v785, 112
      %v1024 = vpop.permute.xlu0 %1023
      %v1026 = vsel %vm787, %v1022, 0
      %v1029 = vsel %vm787, %v1024, 0
      %1031 = vmatprep.subr.bf16.mxu0 0
      %1032 = vmatpush1.bf16.xpose.msra.mxu0 %v1029
      %1033 = vmatprep.subr.bf16.mxu0 0
      %1034 = vmatpush1.bf16.xpose.msra.mxu0 0
      %1035 = vmatprep.subr.bf16.mxu0 0
      %1036 = vmatpush1.bf16.xpose.msra.mxu0 0
      %1037 = vmatprep.subr.bf16.mxu0 0
      %1038 = vmatpush1.bf16.xpose.msra.mxu0 0
      %1039 = vmatprep.subr.bf16.mxu0 0
      %1040 = vmatpush1.bf16.xpose.msra.mxu0 0
      %1041 = vmatprep.subr.bf16.mxu0 0
      %1042 = vmatpush1.bf16.xpose.msra.mxu0 0
      %1043 = vmatprep.subr.bf16.mxu0 0
      %1044 = vmatpush1.bf16.xpose.msra.mxu0 0
      %1045 = vmatprep.subr.bf16.mxu0 0
      %1046 = vmatpush1.bf16.xpose.msra.mxu0 0
      %1047 = vmatprep.subr.bf16.mxu0 0
      %1048 = vmatpush1.bf16.xpose.msra.mxu0 0
      %1049 = vmatprep.subr.bf16.mxu0 0
      %1050 = vmatpush1.bf16.xpose.msra.mxu0 0
      %1051 = vmatprep.subr.bf16.mxu0 0
      %1052 = vmatpush1.bf16.xpose.msra.mxu0 0
      %1053 = vmatprep.subr.bf16.mxu0 0
      %1054 = vmatpush1.bf16.xpose.msra.mxu0 0
      %1055 = vmatprep.subr.bf16.mxu0 0
      %1056 = vmatpush1.bf16.xpose.msra.mxu0 0
      %1057 = vmatprep.subr.bf16.mxu0 0
      %1058 = vmatpush1.bf16.xpose.msra.mxu0 0
      %1059 = vmatprep.subr.bf16.mxu0 0
      %1060 = vmatpush1.bf16.xpose.msra.mxu0 0
      %1061 = vmatprep.subr.bf16.mxu0 0
      %1062 = vmatpush1.bf16.xpose.msra.mxu0 0
      %1063 = vmatprep.mubr.bf16.mxu0 0
      %1064 = vmatmul.mubr.bf16.gmra.mrb[0].mxu0 %v1026
      %v1065 = vpop.f32.mrb[0].mxu0
      %v1066 = vadd.f32 0.0, %v1065
      %v1067 = vpop.f32.mrb[0].mxu0
      %v1068 = vpop.f32.mrb[0].mxu0
      %v1069 = vpop.f32.mrb[0].mxu0
      %1070 = vdwg.mxu0
      %v1071 = vmul.f32 %v1066, 0.35355338
      %v1072 = vadd.f32 %v1071, %v839
      %v1073 = vsel %vm842, %v1072, -inf
      %1074 = vmax.xlane.f32.xlu0 %v1073
      %v1075 = vpop.xlane.xlu0 %1074
      %v1076 = vsub.f32 %v1072, %v1075
      %v1077 = vmul.f32 %v1076, 1.442695
      %v1078 = vpow.pop %v1077
      %v1079 = vsel %vm842, %v1078, 0.0
      %1080 = vadd.xlane.f32.xlu0 %v1079
      %v1081 = vpop.xlane.xlu0 %1080
      %v1082 = vrcp.pop %v1081
      %v1083 = vmul.f32 %v1078, %v1082
      %v1084 = vpack.c.bf16 %v1083, %v1083
      %1085 = vrot.lane.b32.xlu0 %v786, 112
      %v1086 = vpop.permute.xlu0 %1085
      %v1088 = vsel %vm855, %v1084, 0
      %v1091 = vand.u32 %v1086, %v862
      %1093 = vmatprep.subr.bf16.mxu0 0
      %1094 = vmatpush1.bf16.msra.mxu0 %v1091
      %1095 = vmatprep.subr.bf16.mxu0 0
      %1096 = vmatpush1.bf16.msra.mxu0 0
      %1097 = vmatprep.subr.bf16.mxu0 0
      %1098 = vmatpush1.bf16.msra.mxu0 0
      %1099 = vmatprep.subr.bf16.mxu0 0
      %1100 = vmatpush1.bf16.msra.mxu0 0
      %1101 = vmatprep.subr.bf16.mxu0 0
      %1102 = vmatpush1.bf16.msra.mxu0 0
      %1103 = vmatprep.subr.bf16.mxu0 0
      %1104 = vmatpush1.bf16.msra.mxu0 0
      %1105 = vmatprep.subr.bf16.mxu0 0
      %1106 = vmatpush1.bf16.msra.mxu0 0
      %1107 = vmatprep.subr.bf16.mxu0 0
      %1108 = vmatpush1.bf16.msra.mxu0 0
      %1109 = vmatprep.subr.bf16.mxu0 0
      %1110 = vmatpush1.bf16.msra.mxu0 0
      %1111 = vmatprep.subr.bf16.mxu0 0
      %1112 = vmatpush1.bf16.msra.mxu0 0
      %1113 = vmatprep.subr.bf16.mxu0 0
      %1114 = vmatpush1.bf16.msra.mxu0 0
      %1115 = vmatprep.subr.bf16.mxu0 0
      %1116 = vmatpush1.bf16.msra.mxu0 0
      %1117 = vmatprep.subr.bf16.mxu0 0
      %1118 = vmatpush1.bf16.msra.mxu0 0
      %1119 = vmatprep.subr.bf16.mxu0 0
      %1120 = vmatpush1.bf16.msra.mxu0 0
      %1121 = vmatprep.subr.bf16.mxu0 0
      %1122 = vmatpush1.bf16.msra.mxu0 0
      %1123 = vmatprep.subr.bf16.mxu0 0
      %1124 = vmatpush1.bf16.msra.mxu0 0
      %1125 = vmatprep.mubr.bf16.mxu0 0
      %1126 = vmatmul.mubr.bf16.gmra.mrb[0].mxu0 %v1088
      %v1127 = vpop.f32.mrb[0].mxu0
      %v1128 = vadd.f32 0.0, %v1127
      %v1129 = vpop.f32.mrb[0].mxu0
      %v1130 = vpop.f32.mrb[0].mxu0
      %v1131 = vpop.f32.mrb[0].mxu0
      %1132 = vdwg.mxu0
      %1133 = vrot.lane.b32.xlu0 %v784, 104
      %v1134 = vpop.permute.xlu0 %1133
      %1135 = vrot.lane.b32.xlu0 %v785, 104
      %v1136 = vpop.permute.xlu0 %1135
      %v1138 = vsel %vm787, %v1134, 0
      %v1141 = vsel %vm787, %v1136, 0
      %1143 = vmatprep.subr.bf16.mxu0 0
      %1144 = vmatpush1.bf16.xpose.msra.mxu0 %v1141
      %1145 = vmatprep.subr.bf16.mxu0 0
      %1146 = vmatpush1.bf16.xpose.msra.mxu0 0
      %1147 = vmatprep.subr.bf16.mxu0 0
      %1148 = vmatpush1.bf16.xpose.msra.mxu0 0
      %1149 = vmatprep.subr.bf16.mxu0 0
      %1150 = vmatpush1.bf16.xpose.msra.mxu0 0
      %1151 = vmatprep.subr.bf16.mxu0 0
      %1152 = vmatpush1.bf16.xpose.msra.mxu0 0
      %1153 = vmatprep.subr.bf16.mxu0 0
      %1154 = vmatpush1.bf16.xpose.msra.mxu0 0
      %1155 = vmatprep.subr.bf16.mxu0 0
      %1156 = vmatpush1.bf16.xpose.msra.mxu0 0
      %1157 = vmatprep.subr.bf16.mxu0 0
      %1158 = vmatpush1.bf16.xpose.msra.mxu0 0
      %1159 = vmatprep.subr.bf16.mxu0 0
      %1160 = vmatpush1.bf16.xpose.msra.mxu0 0
      %1161 = vmatprep.subr.bf16.mxu0 0
      %1162 = vmatpush1.bf16.xpose.msra.mxu0 0
      %1163 = vmatprep.subr.bf16.mxu0 0
      %1164 = vmatpush1.bf16.xpose.msra.mxu0 0
      %1165 = vmatprep.subr.bf16.mxu0 0
      %1166 = vmatpush1.bf16.xpose.msra.mxu0 0
      %1167 = vmatprep.subr.bf16.mxu0 0
      %1168 = vmatpush1.bf16.xpose.msra.mxu0 0
      %1169 = vmatprep.subr.bf16.mxu0 0
      %1170 = vmatpush1.bf16.xpose.msra.mxu0 0
      %1171 = vmatprep.subr.bf16.mxu0 0
      %1172 = vmatpush1.bf16.xpose.msra.mxu0 0
      %1173 = vmatprep.subr.bf16.mxu0 0
      %1174 = vmatpush1.bf16.xpose.msra.mxu0 0
      %1175 = vmatprep.mubr.bf16.mxu0 0
      %1176 = vmatmul.mubr.bf16.gmra.mrb[0].mxu0 %v1138
      %v1177 = vpop.f32.mrb[0].mxu0
      %v1178 = vadd.f32 0.0, %v1177
      %v1179 = vpop.f32.mrb[0].mxu0
      %v1180 = vpop.f32.mrb[0].mxu0
      %v1181 = vpop.f32.mrb[0].mxu0
      %1182 = vdwg.mxu0
      %v1183 = vmul.f32 %v1178, 0.35355338
      %v1184 = vadd.f32 %v1183, %v839
      %v1185 = vsel %vm842, %v1184, -inf
      %1186 = vmax.xlane.f32.xlu0 %v1185
      %v1187 = vpop.xlane.xlu0 %1186
      %v1188 = vsub.f32 %v1184, %v1187
      %v1189 = vmul.f32 %v1188, 1.442695
      %v1190 = vpow.pop %v1189
      %v1191 = vsel %vm842, %v1190, 0.0
      %1192 = vadd.xlane.f32.xlu0 %v1191
      %v1193 = vpop.xlane.xlu0 %1192
      %v1194 = vrcp.pop %v1193
      %v1195 = vmul.f32 %v1190, %v1194
      %v1196 = vpack.c.bf16 %v1195, %v1195
      %1197 = vrot.lane.b32.xlu0 %v786, 104
      %v1198 = vpop.permute.xlu0 %1197
      %v1200 = vsel %vm855, %v1196, 0
      %v1203 = vand.u32 %v1198, %v862
      %1205 = vmatprep.subr.bf16.mxu0 0
      %1206 = vmatpush1.bf16.msra.mxu0 %v1203
      %1207 = vmatprep.subr.bf16.mxu0 0
      %1208 = vmatpush1.bf16.msra.mxu0 0
      %1209 = vmatprep.subr.bf16.mxu0 0
      %1210 = vmatpush1.bf16.msra.mxu0 0
      %1211 = vmatprep.subr.bf16.mxu0 0
      %1212 = vmatpush1.bf16.msra.mxu0 0
      %1213 = vmatprep.subr.bf16.mxu0 0
      %1214 = vmatpush1.bf16.msra.mxu0 0
      %1215 = vmatprep.subr.bf16.mxu0 0
      %1216 = vmatpush1.bf16.msra.mxu0 0
      %1217 = vmatprep.subr.bf16.mxu0 0
      %1218 = vmatpush1.bf16.msra.mxu0 0
      %1219 = vmatprep.subr.bf16.mxu0 0
      %1220 = vmatpush1.bf16.msra.mxu0 0
      %1221 = vmatprep.subr.bf16.mxu0 0
      %1222 = vmatpush1.bf16.msra.mxu0 0
      %1223 = vmatprep.subr.bf16.mxu0 0
      %1224 = vmatpush1.bf16.msra.mxu0 0
      %1225 = vmatprep.subr.bf16.mxu0 0
      %1226 = vmatpush1.bf16.msra.mxu0 0
      %1227 = vmatprep.subr.bf16.mxu0 0
      %1228 = vmatpush1.bf16.msra.mxu0 0
      %1229 = vmatprep.subr.bf16.mxu0 0
      %1230 = vmatpush1.bf16.msra.mxu0 0
      %1231 = vmatprep.subr.bf16.mxu0 0
      %1232 = vmatpush1.bf16.msra.mxu0 0
      %1233 = vmatprep.subr.bf16.mxu0 0
      %1234 = vmatpush1.bf16.msra.mxu0 0
      %1235 = vmatprep.subr.bf16.mxu0 0
      %1236 = vmatpush1.bf16.msra.mxu0 0
      %1237 = vmatprep.mubr.bf16.mxu0 0
      %1238 = vmatmul.mubr.bf16.gmra.mrb[0].mxu0 %v1200
      %v1239 = vpop.f32.mrb[0].mxu0
      %v1240 = vadd.f32 0.0, %v1239
      %v1241 = vpop.f32.mrb[0].mxu0
      %v1242 = vpop.f32.mrb[0].mxu0
      %v1243 = vpop.f32.mrb[0].mxu0
      %1244 = vdwg.mxu0
      %1246 = vrot.lane.b32.xlu0 %v1016, 8
      %v1247 = vpop.permute.xlu0 %1246
      %1250 = vrot.lane.b32.xlu0 %v1128, 16
      %v1251 = vpop.permute.xlu0 %1250
      %1254 = vrot.lane.b32.xlu0 %v1240, 24
      %v1255 = vpop.permute.xlu0 %1254
      %v1257 = vsel %vm787, %v901, %v1247
      %vm1258 = vcmask 130048
      %v1259 = vsel %vm1258, %v1257, %v1251
      %vm1260 = vcmask 195584
      %v1261 = vsel %vm1260, %v1259, %v1255
      %v1262 = vpack.c.bf16 %v1261, %v1261
      %v1263 = vld [vmem:[%s13] sm:$0xf]
      %v1264 = vld [vmem:[%s13 + $0x4] sm:$0xf]
      %v1265 = vld [vmem:[%s13 + $0x8] sm:$0xf]
      %v1266 = vld [vmem:[%s13 + $0xc] sm:$0xf]
      %v1267 = vld [vmem:[%s14] sm:$0x1]
      %v1269 = vlaneseq
      %v1270 = vshrl.u32 %v1269, 7
      %v1271 = vsub.s32 0, %v1270
      %v1272 = vrot.slane %v1267, %v1271
      %v1278 = vunpack.c.l.b16 %v1263
      %v1279 = vunpack.c.l.b16 %v1264
      %v1280 = vunpack.c.l.b16 %v1265
      %v1281 = vunpack.c.l.b16 %v1266
      %v1282 = vpack.c.b16 %v1279, %v1278
      %v1283 = vpack.c.b16 %v1281, %v1280
      %v1287 = vsel %vm609, %v1262, 0
      %1289 = vmatprep.subr.bf16.mxu0 0
      %1290 = vmatpush1.bf16.msra.mxu0 %v1282
      %1291 = vmatprep.subr.bf16.mxu0 0
      %1292 = vmatpush1.bf16.msra.mxu0 %v1283
      %1293 = vmatprep.subr.bf16.mxu0 0
      %1294 = vmatpush1.bf16.msra.mxu0 0
      %1295 = vmatprep.subr.bf16.mxu0 0
      %1296 = vmatpush1.bf16.msra.mxu0 0
      %1297 = vmatprep.subr.bf16.mxu0 0
      %1298 = vmatpush1.bf16.msra.mxu0 0
      %1299 = vmatprep.subr.bf16.mxu0 0
      %1300 = vmatpush1.bf16.msra.mxu0 0
      %1301 = vmatprep.subr.bf16.mxu0 0
      %1302 = vmatpush1.bf16.msra.mxu0 0
      %1303 = vmatprep.subr.bf16.mxu0 0
      %1304 = vmatpush1.bf16.msra.mxu0 0
      %1305 = vmatprep.subr.bf16.mxu0 0
      %1306 = vmatpush1.bf16.msra.mxu0 0
      %1307 = vmatprep.subr.bf16.mxu0 0
      %1308 = vmatpush1.bf16.msra.mxu0 0
      %1309 = vmatprep.subr.bf16.mxu0 0
      %1310 = vmatpush1.bf16.msra.mxu0 0
      %1311 = vmatprep.subr.bf16.mxu0 0
      %1312 = vmatpush1.bf16.msra.mxu0 0
      %1313 = vmatprep.subr.bf16.mxu0 0
      %1314 = vmatpush1.bf16.msra.mxu0 0
      %1315 = vmatprep.subr.bf16.mxu0 0
      %1316 = vmatpush1.bf16.msra.mxu0 0
      %1317 = vmatprep.subr.bf16.mxu0 0
      %1318 = vmatpush1.bf16.msra.mxu0 0
      %1319 = vmatprep.subr.bf16.mxu0 0
      %1320 = vmatpush1.bf16.msra.mxu0 0
      %1321 = vmatprep.mubr.bf16.mxu0 0
      %1322 = vmatmul.mubr.bf16.gmra.mrb[0].mxu0 %v1287
      %v1323 = vpop.f32.mrb[0].mxu0
      %v1324 = vadd.f32 %v1272, %v1323
      %v1325 = vpop.f32.mrb[0].mxu0
      %v1326 = vpop.f32.mrb[0].mxu0
      %v1327 = vpop.f32.mrb[0].mxu0
      %1328 = vdwg.mxu0
      %v1329 = vadd.f32 %v1324, %v522
      %1330 = vst.msk [vmem:[%s520] sm:$0xf] %vm526, %v1329
      %p1331 = scmp.lt.s32.totalorder %s26, 3
      %s1332 = scalar_select %p1331, %s26, 3
      %s1333 = smul.addr %s1332, 4
      %s1334 = scalar_lea.vmem %s15, %s1333
      // Predicated region
      $region81: #{object_transformer_forward.42} parent=79 // pred_check
        %p1335 = pneg %p374
      $region82: #{object_transformer_forward.42} parent=79 // pred_check_branch
        %1337 = sbr.rel (%p1335) target = $region84
      $region83: #{object_transformer_forward.42} parent=79 // pred_region
        _
      $region84: #{object_transformer_forward.42} parent=79 // pred_fallthru
        _
    $region80: #{object_transformer_forward.42} parent=5 // pred_fallthru
      _
    %p1338 = scmp.le.s32.totalorder 2, %s21
    // Predicated region
    $region85: #{object_transformer_forward.42} parent=5 // pred_check
      %p1339 = pneg %p1338
    $region86: #{object_transformer_forward.42} parent=5 // pred_check_branch
      %1341 = sbr.rel (%p1339) target = $region88
    $region87: #{object_transformer_forward.42} parent=5 // pred_region
      %s1342 = ssub.s32 %s21, 2
      // Predicated region
      $region89: #{object_transformer_forward.42} parent=87 // pred_check
        %p1343 = pneg %p380
      $region90: #{object_transformer_forward.42} parent=87 // pred_check_branch
        %1345 = sbr.rel (%p1343) target = $region92
      $region91: #{object_transformer_forward.42} parent=87 // pred_region
        %p1346 = scmp.lt.s32.totalorder %s27, 3
        %s1347 = scalar_select %p1346, %s27, 3
        %s1348 = smul.addr %s1347, 4
        %s1349 = scalar_lea.vmem %s15, %s1348
      $region92: #{object_transformer_forward.42} parent=87 // pred_fallthru
        _
    $region88: #{object_transformer_forward.42} parent=5 // pred_fallthru
      _
  $region6: #{object_transformer_forward.42} parent=0 // loop_footer
    %s25 = sadd.s32 1, %s21
  $region7: #{object_transformer_forward.42} parent=0 // loop_footer_branch
    %20 = sbr.rel target = $region3
  $region8: #{object_transformer_forward.42} parent=0 // loop_exit
    _

</llo_original>
